<compile_context>
chip_gen: v7x
topology: tpu7x:2x2x1
jax: 0.10.0
libtpu: 0.0.40
codegen_flags: <defaults>
</compile_context>

<pallas_src>
import functools

import jax
import jax.numpy as jnp
from jax.experimental import pallas as pl
from jax.experimental.pallas import tpu as pltpu


# ----------------------------------------------------------------------------
# In-kernel helpers (operate on VMEM-resident values)
# ----------------------------------------------------------------------------
def _zero_pad_hw(t, pad):
    """Zero-pad the two leading (spatial) dims of a (H, W, C) value."""
    H, W, C = t.shape
    zc = jnp.zeros((H, pad, C), t.dtype)
    t = jnp.concatenate([zc, t, zc], axis=1)             # (H, W + 2p, C)
    zr = jnp.zeros((pad, W + 2 * pad, C), t.dtype)
    return jnp.concatenate([zr, t, zr], axis=0)           # (H + 2p, W + 2p, C)


def _im2col(tpad, H, W, K):
    """(H+K-1, W+K-1, C) padded value -> (H*W, K*K*C) patch matrix.

    Column order is (kh, kw, c) with c fastest, matching
    w.reshape(K*K*C, Cout) of an HWIO weight.
    """
    C = tpad.shape[-1]
    cols = []
    for kh in range(K):
        for kw in range(K):
            cols.append(tpad[kh:kh + H, kw:kw + W, :].reshape(H * W, C))
    return jnp.concatenate(cols, axis=-1)


def _avg_pool3(tpad, H, W):
    """3x3 / stride-1 avg pool (count_include_pad=True) of padded (H+2,W+2,C)."""
    C = tpad.shape[-1]
    acc = jnp.zeros((H, W, C), jnp.float32)
    for kh in range(3):
        for kw in range(3):
            acc = acc + tpad[kh:kh + H, kw:kw + W, :].astype(jnp.float32)
    return acc * (1.0 / 9.0)


# ----------------------------------------------------------------------------
# Fused InceptionA kernel: one grid step == one batch element.
# ----------------------------------------------------------------------------
def _inception_a_kernel(x_ref, wh_ref, bh_ref, w52_ref, b52_ref,
                        w32_ref, b32_ref, w33_ref, b33_ref, bp_ref,
                        o_ref, *, H, W):
    """
    x_ref  : (1, H*W, Cin)          channels-last, spatially flattened input
    wh_ref : (Cin, 72)              merged 1x1 heads [b1 | b5_1 | b3_1 | pool]
    bh_ref : (1, 48)                merged biases    [b1 | b5_1 | b3_1]
    w52_ref: (400, 24)  b52_ref: (1, 24)   5x5 conv (16 -> 24), HWIO flattened
    w32_ref: (144, 24)  b32_ref: (1, 24)   3x3 conv (16 -> 24)
    w33_ref: (216, 24)  b33_ref: (1, 24)   3x3 conv (24 -> 24)
    bp_ref : (1, 24)                pool-branch 1x1 bias (added after pooling)
    o_ref  : (1, 88, H*W)           lane-dense NC(HW) output block
    """
    HW = H * W
    f32 = jnp.float32

    x2d = x_ref[0].astype(f32)                                     # (HW, Cin)

    # ---- merged 1x1 branch heads: one MXU matmul, Cout = 16+16+16+24 ------
    h = jnp.dot(x2d, wh_ref[...], preferred_element_type=f32)      # (HW, 72)
    br1 = h[:, 0:16] + bh_ref[:, 0:16]      # branch1x1 output        (HW,16)
    t5 = h[:, 16:32] + bh_ref[:, 16:32]     # branch5x5_1 output      (HW,16)
    t3 = h[:, 32:48] + bh_ref[:, 32:48]     # branch3x3_1 output      (HW,16)
    tp = h[:, 48:72]                        # pool-branch (bias later)(HW,24)

    # ---- branch5x5: 5x5 'same' conv (16 -> 24) via im2col matmul ----------
    p5 = _im2col(_zero_pad_hw(t5.reshape(H, W, 16), 2), H, W, 5)   # (HW, 400)
    br5 = jnp.dot(p5, w52_ref[...], preferred_element_type=f32) + b52_ref[...]

    # ---- branch3x3: two chained 3x3 'same' convs (16 -> 24 -> 24) ---------
    p3a = _im2col(_zero_pad_hw(t3.reshape(H, W, 16), 1), H, W, 3)  # (HW, 144)
    m3 = jnp.dot(p3a, w32_ref[...], preferred_element_type=f32) + b32_ref[...]
    p3b = _im2col(_zero_pad_hw(m3.reshape(H, W, 24), 1), H, W, 3)  # (HW, 216)
    br3 = jnp.dot(p3b, w33_ref[...], preferred_element_type=f32) + b33_ref[...]

    # ---- branch_pool: (x @ Wp) then 3x3 avg-pool  == pool(x) @ Wp ---------
    pooled = _avg_pool3(_zero_pad_hw(tp.reshape(H, W, 24), 1), H, W)
    brp = pooled.reshape(HW, 24) + bp_ref[...]                      # (HW, 24)

    # ---- concat in PyTorch order [1x1, 3x3, 5x5, pool], pad lanes to 128,
    #      transpose once (XLU) so the stored output is lane-dense (88, HW) --
    out = jnp.concatenate(
        [br1, br3, br5, brp, jnp.zeros((HW, 128 - 88), f32)], axis=-1)  # (HW,128)
    out_t = jnp.transpose(out, (1, 0))                                   # (128,HW)
    o_ref[...] = out_t[0:88, :][None].astype(o_ref.dtype)


# ----------------------------------------------------------------------------
# Wrapper: single pallas_call, weights pre-flattened / pre-merged (XLA side).
# ----------------------------------------------------------------------------
def inception_a_forward(x_nchw, params):
    """Matches InceptionA.forward; input (N, Cin, H, W) -> output (N, 88, H, W)."""
    N, Cin, H, W = x_nchw.shape
    HW = H * W

    # NCHW -> (N, HW, Cin): channels on the lane axis for the head matmul.
    x = jnp.transpose(x_nchw, (0, 2, 3, 1)).reshape(N, HW, Cin)

    def w1x1(w):  # (1,1,Cin,Cout) HWIO -> (Cin, Cout)
        return w.reshape(w.shape[2], w.shape[3])

    w_head = jnp.concatenate(
        [w1x1(params["b1_w"]), w1x1(params["b5_1_w"]),
         w1x1(params["b3_1_w"]), w1x1(params["bp_w"])], axis=-1)    # (Cin, 72)
    b_head = jnp.concatenate(
        [params["b1_b"], params["b5_1_b"], params["b3_1_b"]])[None, :]  # (1,48)

    w52 = params["b5_2_w"].reshape(5 * 5 * 16, 24)
    w32 = params["b3_2_w"].reshape(3 * 3 * 16, 24)
    w33 = params["b3_3_w"].reshape(3 * 3 * 24, 24)
    b52 = params["b5_2_b"][None, :]
    b32 = params["b3_2_b"][None, :]
    b33 = params["b3_3_b"][None, :]
    bpb = params["bp_b"][None, :]

    kernel = functools.partial(_inception_a_kernel, H=H, W=W)
    const = lambda n: (0, 0)   # broadcast weights/biases to every grid step

    out = pl.pallas_call(
        kernel,
        out_shape=jax.ShapeDtypeStruct((N, 88, HW), x_nchw.dtype),
        grid=(N,),
        in_specs=[
            pl.BlockSpec((1, HW, Cin), lambda n: (n, 0, 0)),
            pl.BlockSpec((Cin, 72), const),
            pl.BlockSpec((1, 48), const),
            pl.BlockSpec((5 * 5 * 16, 24), const),
            pl.BlockSpec((1, 24), const),
            pl.BlockSpec((3 * 3 * 16, 24), const),
            pl.BlockSpec((1, 24), const),
            pl.BlockSpec((3 * 3 * 24, 24), const),
            pl.BlockSpec((1, 24), const),
            pl.BlockSpec((1, 24), const),
        ],
        out_specs=pl.BlockSpec((1, 88, HW), lambda n: (n, 0, 0)),
        compiler_params=pltpu.CompilerParams(
            dimension_semantics=("parallel",),
            vmem_limit_bytes=32 * 1024 * 1024),
    )(x, w_head, b_head, w52, b52, w32, b32, w33, b33, bpb)

    # (N, 88, H*W) -> (N, 88, H, W): layout-identical, free reshape (NCHW).
    return out.reshape(N, 88, H, W)


# ----------------------------------------------------------------------------
# Parameter init (PyTorch-default style: uniform +-1/sqrt(fan_in), HWIO).
# ----------------------------------------------------------------------------
def init_inception_a_params(key, in_channels):
    def conv_init(k, ksize, cin, cout):
        kw, kb = jax.random.split(k)
        fan_in = cin * ksize * ksize
        bound = 1.0 / (fan_in ** 0.5)
        w = jax.random.uniform(kw, (ksize, ksize, cin, cout), jnp.float32,
                               -bound, bound)
        b = jax.random.uniform(kb, (cout,), jnp.float32, -bound, bound)
        return w, b

    keys = jax.random.split(key, 7)
    p = {}
    p["b1_w"],   p["b1_b"]   = conv_init(keys[0], 1, in_channels, 16)
    p["b5_1_w"], p["b5_1_b"] = conv_init(keys[1], 1, in_channels, 16)
    p["b5_2_w"], p["b5_2_b"] = conv_init(keys[2], 5, 16, 24)
    p["b3_1_w"], p["b3_1_b"] = conv_init(keys[3], 1, in_channels, 16)
    p["b3_2_w"], p["b3_2_b"] = conv_init(keys[4], 3, 16, 24)
    p["b3_3_w"], p["b3_3_b"] = conv_init(keys[5], 3, 24, 24)
    p["bp_w"],   p["bp_b"]   = conv_init(keys[6], 1, in_channels, 24)
    return p


# ----------------------------------------------------------------------------
# Pure-JAX reference (correctness check only; mirrors the PyTorch module).
# ----------------------------------------------------------------------------
def _ref_forward(x_nchw, params):
    x = jnp.transpose(x_nchw, (0, 2, 3, 1))

    def conv(inp, w, b):
        k = w.shape[0]
        pad = (k - 1) // 2
        y = jax.lax.conv_general_dilated(
            inp, w, window_strides=(1, 1),
            padding=[(pad, pad), (pad, pad)],
            dimension_numbers=("NHWC", "HWIO", "NHWC"))
        return y + b

    b1 = conv(x, params["b1_w"], params["b1_b"])
    b5 = conv(conv(x, params["b5_1_w"], params["b5_1_b"]),
              params["b5_2_w"], params["b5_2_b"])
    b3 = conv(conv(conv(x, params["b3_1_w"], params["b3_1_b"]),
                   params["b3_2_w"], params["b3_2_b"]),
              params["b3_3_w"], params["b3_3_b"])
    bp = jax.lax.reduce_window(
        x, 0.0, jax.lax.add, (1, 3, 3, 1), (1, 1, 1, 1),
        [(0, 0), (1, 1), (1, 1), (0, 0)]) / 9.0
    bp = conv(bp, params["bp_w"], params["bp_b"])
    # PyTorch order: [branch1x1, branch3x3, branch5x5, branch_pool]
    out = jnp.concatenate([b1, b3, b5, bp], axis=-1)
    return jnp.transpose(out, (0, 3, 1, 2))


# ----------------------------------------------------------------------------
if __name__ == "__main__":
    key = jax.random.PRNGKey(0)
    k_x, k_p = jax.random.split(key)

    N, Cin, H, W = 2, 4, 16, 16
    x = jax.random.normal(k_x, (N, Cin, H, W), dtype=jnp.float32)
    params = init_inception_a_params(k_p, Cin)

    out = inception_a_forward(x, params)
    out = jax.block_until_ready(out)

    assert out.shape == (N, 16 + 24 + 24 + 24, H, W), out.shape

    ref = jax.block_until_ready(_ref_forward(x, params))
    assert jnp.allclose(out, ref, rtol=5e-3, atol=5e-3), (
        float(jnp.max(jnp.abs(out - ref))))

    print("KERNEL_OK")
</pallas_src>

<mosaic_0001>
module attributes {stable_mosaic.version = 11 : i64} {
  func.func @_inception_a_kernel(%arg0: i32, %arg1: memref<1x256x4xf32, #tpu.memory_space<vmem>>, %arg2: memref<4x72xf32, #tpu.memory_space<vmem>>, %arg3: memref<1x48xf32, #tpu.memory_space<vmem>>, %arg4: memref<400x24xf32, #tpu.memory_space<vmem>>, %arg5: memref<1x24xf32, #tpu.memory_space<vmem>>, %arg6: memref<144x24xf32, #tpu.memory_space<vmem>>, %arg7: memref<1x24xf32, #tpu.memory_space<vmem>>, %arg8: memref<216x24xf32, #tpu.memory_space<vmem>>, %arg9: memref<1x24xf32, #tpu.memory_space<vmem>>, %arg10: memref<1x24xf32, #tpu.memory_space<vmem>>, %arg11: memref<1x88x256xf32, #tpu.memory_space<vmem>>) attributes {dimension_semantics = [#tpu.dimension_semantics<parallel>], iteration_bounds = array<i64: 2>, scalar_prefetch = 0 : i64, scratch_operands = 0 : i64, tpu.core_type = #tpu.core_type<tc>, window_params = [{transform_indices = @transform_0, window_bounds = array<i64: 1, 256, 4>}, {pipeline_mode = #tpu.pipeline_mode<synchronous>, transform_indices = @transform_1, window_bounds = array<i64: 4, 72>}, {pipeline_mode = #tpu.pipeline_mode<synchronous>, transform_indices = @transform_2, window_bounds = array<i64: 1, 48>}, {pipeline_mode = #tpu.pipeline_mode<synchronous>, transform_indices = @transform_3, window_bounds = array<i64: 400, 24>}, {pipeline_mode = #tpu.pipeline_mode<synchronous>, transform_indices = @transform_4, window_bounds = array<i64: 1, 24>}, {pipeline_mode = #tpu.pipeline_mode<synchronous>, transform_indices = @transform_5, window_bounds = array<i64: 144, 24>}, {pipeline_mode = #tpu.pipeline_mode<synchronous>, transform_indices = @transform_6, window_bounds = array<i64: 1, 24>}, {pipeline_mode = #tpu.pipeline_mode<synchronous>, transform_indices = @transform_7, window_bounds = array<i64: 216, 24>}, {pipeline_mode = #tpu.pipeline_mode<synchronous>, transform_indices = @transform_8, window_bounds = array<i64: 1, 24>}, {pipeline_mode = #tpu.pipeline_mode<synchronous>, transform_indices = @transform_9, window_bounds = array<i64: 1, 24>}, {transform_indices = @transform_10, window_bounds = array<i64: 1, 88, 256>}]} {
    %c0 = arith.constant 0 : index
    %c0_0 = arith.constant 0 : index
    %c0_1 = arith.constant 0 : index
    %0 = vector.load %arg1[%c0, %c0_0, %c0_1] : memref<1x256x4xf32, #tpu.memory_space<vmem>>, vector<1x256x4xf32>
    %1 = vector.shape_cast %0 : vector<1x256x4xf32> to vector<256x4xf32>
    %c0_2 = arith.constant 0 : index
    %c0_3 = arith.constant 0 : index
    %2 = vector.load %arg2[%c0_2, %c0_3] : memref<4x72xf32, #tpu.memory_space<vmem>>, vector<4x72xf32>
    %cst = arith.constant dense<0.000000e+00> : vector<256x72xf32>
    %3 = tpu.matmul %1, %2, %cst {dimension_numbers = #tpu.dot_dimension_numbers<[1], [0], [0], [1], [0, 0, 1, 1], [], []>} : vector<256x4xf32>, vector<4x72xf32>, vector<256x72xf32> -> vector<256x72xf32>
    %4 = vector.extract_strided_slice %3 {offsets = [0, 0], sizes = [256, 16], strides = [1, 1]} : vector<256x72xf32> to vector<256x16xf32>
    %c0_4 = arith.constant 0 : index
    %c0_5 = arith.constant 0 : index
    %5 = vector.load %arg3[%c0_4, %c0_5] : memref<1x48xf32, #tpu.memory_space<vmem>>, vector<1x16xf32>
    %6 = vector.broadcast %5 : vector<1x16xf32> to vector<256x16xf32>
    %7 = arith.addf %4, %6 : vector<256x16xf32>
    %8 = vector.extract_strided_slice %3 {offsets = [0, 16], sizes = [256, 16], strides = [1, 1]} : vector<256x72xf32> to vector<256x16xf32>
    %c0_6 = arith.constant 0 : index
    %c16 = arith.constant 16 : index
    %9 = vector.load %arg3[%c0_6, %c16] : memref<1x48xf32, #tpu.memory_space<vmem>>, vector<1x16xf32>
    %10 = vector.broadcast %9 : vector<1x16xf32> to vector<256x16xf32>
    %11 = arith.addf %8, %10 : vector<256x16xf32>
    %12 = vector.extract_strided_slice %3 {offsets = [0, 32], sizes = [256, 16], strides = [1, 1]} : vector<256x72xf32> to vector<256x16xf32>
    %c0_7 = arith.constant 0 : index
    %c32 = arith.constant 32 : index
    %13 = vector.load %arg3[%c0_7, %c32] : memref<1x48xf32, #tpu.memory_space<vmem>>, vector<1x16xf32>
    %14 = vector.broadcast %13 : vector<1x16xf32> to vector<256x16xf32>
    %15 = arith.addf %12, %14 : vector<256x16xf32>
    %16 = vector.extract_strided_slice %3 {offsets = [0, 48], sizes = [256, 24], strides = [1, 1]} : vector<256x72xf32> to vector<256x24xf32>
    %17 = vector.shape_cast %11 : vector<256x16xf32> to vector<16x16x16xf32>
    %cst_8 = arith.constant 0.000000e+00 : f32
    %18 = vector.broadcast %cst_8 : f32 to vector<16x2x16xf32>
    %19 = tpu.concatenate %18, %17, %18 in 1 : vector<16x2x16xf32>, vector<16x16x16xf32>, vector<16x2x16xf32> -> vector<16x20x16xf32>
    %cst_9 = arith.constant 0.000000e+00 : f32
    %20 = vector.broadcast %cst_9 : f32 to vector<2x20x16xf32>
    %21 = tpu.concatenate %20, %19, %20 in 0 : vector<2x20x16xf32>, vector<16x20x16xf32>, vector<2x20x16xf32> -> vector<20x20x16xf32>
    %22 = vector.extract_strided_slice %21 {offsets = [0, 0, 0], sizes = [16, 16, 16], strides = [1, 1, 1]} : vector<20x20x16xf32> to vector<16x16x16xf32>
    %23 = vector.shape_cast %22 : vector<16x16x16xf32> to vector<256x16xf32>
    %24 = vector.extract_strided_slice %21 {offsets = [0, 1, 0], sizes = [16, 16, 16], strides = [1, 1, 1]} : vector<20x20x16xf32> to vector<16x16x16xf32>
    %25 = vector.shape_cast %24 : vector<16x16x16xf32> to vector<256x16xf32>
    %26 = vector.extract_strided_slice %21 {offsets = [0, 2, 0], sizes = [16, 16, 16], strides = [1, 1, 1]} : vector<20x20x16xf32> to vector<16x16x16xf32>
    %27 = vector.shape_cast %26 : vector<16x16x16xf32> to vector<256x16xf32>
    %28 = vector.extract_strided_slice %21 {offsets = [0, 3, 0], sizes = [16, 16, 16], strides = [1, 1, 1]} : vector<20x20x16xf32> to vector<16x16x16xf32>
    %29 = vector.shape_cast %28 : vector<16x16x16xf32> to vector<256x16xf32>
    %30 = vector.extract_strided_slice %21 {offsets = [0, 4, 0], sizes = [16, 16, 16], strides = [1, 1, 1]} : vector<20x20x16xf32> to vector<16x16x16xf32>
    %31 = vector.shape_cast %30 : vector<16x16x16xf32> to vector<256x16xf32>
    %32 = vector.extract_strided_slice %21 {offsets = [1, 0, 0], sizes = [16, 16, 16], strides = [1, 1, 1]} : vector<20x20x16xf32> to vector<16x16x16xf32>
    %33 = vector.shape_cast %32 : vector<16x16x16xf32> to vector<256x16xf32>
    %34 = vector.extract_strided_slice %21 {offsets = [1, 1, 0], sizes = [16, 16, 16], strides = [1, 1, 1]} : vector<20x20x16xf32> to vector<16x16x16xf32>
    %35 = vector.shape_cast %34 : vector<16x16x16xf32> to vector<256x16xf32>
    %36 = vector.extract_strided_slice %21 {offsets = [1, 2, 0], sizes = [16, 16, 16], strides = [1, 1, 1]} : vector<20x20x16xf32> to vector<16x16x16xf32>
    %37 = vector.shape_cast %36 : vector<16x16x16xf32> to vector<256x16xf32>
    %38 = vector.extract_strided_slice %21 {offsets = [1, 3, 0], sizes = [16, 16, 16], strides = [1, 1, 1]} : vector<20x20x16xf32> to vector<16x16x16xf32>
    %39 = vector.shape_cast %38 : vector<16x16x16xf32> to vector<256x16xf32>
    %40 = vector.extract_strided_slice %21 {offsets = [1, 4, 0], sizes = [16, 16, 16], strides = [1, 1, 1]} : vector<20x20x16xf32> to vector<16x16x16xf32>
    %41 = vector.shape_cast %40 : vector<16x16x16xf32> to vector<256x16xf32>
    %42 = vector.extract_strided_slice %21 {offsets = [2, 0, 0], sizes = [16, 16, 16], strides = [1, 1, 1]} : vector<20x20x16xf32> to vector<16x16x16xf32>
    %43 = vector.shape_cast %42 : vector<16x16x16xf32> to vector<256x16xf32>
    %44 = vector.extract_strided_slice %21 {offsets = [2, 1, 0], sizes = [16, 16, 16], strides = [1, 1, 1]} : vector<20x20x16xf32> to vector<16x16x16xf32>
    %45 = vector.shape_cast %44 : vector<16x16x16xf32> to vector<256x16xf32>
    %46 = vector.extract_strided_slice %21 {offsets = [2, 2, 0], sizes = [16, 16, 16], strides = [1, 1, 1]} : vector<20x20x16xf32> to vector<16x16x16xf32>
    %47 = vector.shape_cast %46 : vector<16x16x16xf32> to vector<256x16xf32>
    %48 = vector.extract_strided_slice %21 {offsets = [2, 3, 0], sizes = [16, 16, 16], strides = [1, 1, 1]} : vector<20x20x16xf32> to vector<16x16x16xf32>
    %49 = vector.shape_cast %48 : vector<16x16x16xf32> to vector<256x16xf32>
    %50 = vector.extract_strided_slice %21 {offsets = [2, 4, 0], sizes = [16, 16, 16], strides = [1, 1, 1]} : vector<20x20x16xf32> to vector<16x16x16xf32>
    %51 = vector.shape_cast %50 : vector<16x16x16xf32> to vector<256x16xf32>
    %52 = vector.extract_strided_slice %21 {offsets = [3, 0, 0], sizes = [16, 16, 16], strides = [1, 1, 1]} : vector<20x20x16xf32> to vector<16x16x16xf32>
    %53 = vector.shape_cast %52 : vector<16x16x16xf32> to vector<256x16xf32>
    %54 = vector.extract_strided_slice %21 {offsets = [3, 1, 0], sizes = [16, 16, 16], strides = [1, 1, 1]} : vector<20x20x16xf32> to vector<16x16x16xf32>
    %55 = vector.shape_cast %54 : vector<16x16x16xf32> to vector<256x16xf32>
    %56 = vector.extract_strided_slice %21 {offsets = [3, 2, 0], sizes = [16, 16, 16], strides = [1, 1, 1]} : vector<20x20x16xf32> to vector<16x16x16xf32>
    %57 = vector.shape_cast %56 : vector<16x16x16xf32> to vector<256x16xf32>
    %58 = vector.extract_strided_slice %21 {offsets = [3, 3, 0], sizes = [16, 16, 16], strides = [1, 1, 1]} : vector<20x20x16xf32> to vector<16x16x16xf32>
    %59 = vector.shape_cast %58 : vector<16x16x16xf32> to vector<256x16xf32>
    %60 = vector.extract_strided_slice %21 {offsets = [3, 4, 0], sizes = [16, 16, 16], strides = [1, 1, 1]} : vector<20x20x16xf32> to vector<16x16x16xf32>
    %61 = vector.shape_cast %60 : vector<16x16x16xf32> to vector<256x16xf32>
    %62 = vector.extract_strided_slice %21 {offsets = [4, 0, 0], sizes = [16, 16, 16], strides = [1, 1, 1]} : vector<20x20x16xf32> to vector<16x16x16xf32>
    %63 = vector.shape_cast %62 : vector<16x16x16xf32> to vector<256x16xf32>
    %64 = vector.extract_strided_slice %21 {offsets = [4, 1, 0], sizes = [16, 16, 16], strides = [1, 1, 1]} : vector<20x20x16xf32> to vector<16x16x16xf32>
    %65 = vector.shape_cast %64 : vector<16x16x16xf32> to vector<256x16xf32>
    %66 = vector.extract_strided_slice %21 {offsets = [4, 2, 0], sizes = [16, 16, 16], strides = [1, 1, 1]} : vector<20x20x16xf32> to vector<16x16x16xf32>
    %67 = vector.shape_cast %66 : vector<16x16x16xf32> to vector<256x16xf32>
    %68 = vector.extract_strided_slice %21 {offsets = [4, 3, 0], sizes = [16, 16, 16], strides = [1, 1, 1]} : vector<20x20x16xf32> to vector<16x16x16xf32>
    %69 = vector.shape_cast %68 : vector<16x16x16xf32> to vector<256x16xf32>
    %70 = vector.extract_strided_slice %21 {offsets = [4, 4, 0], sizes = [16, 16, 16], strides = [1, 1, 1]} : vector<20x20x16xf32> to vector<16x16x16xf32>
    %71 = vector.shape_cast %70 : vector<16x16x16xf32> to vector<256x16xf32>
    %72 = tpu.concatenate %23, %25, %27, %29, %31, %33, %35, %37, %39, %41, %43, %45, %47, %49, %51, %53 in 1 : vector<256x16xf32>, vector<256x16xf32>, vector<256x16xf32>, vector<256x16xf32>, vector<256x16xf32>, vector<256x16xf32>, vector<256x16xf32>, vector<256x16xf32>, vector<256x16xf32>, vector<256x16xf32>, vector<256x16xf32>, vector<256x16xf32>, vector<256x16xf32>, vector<256x16xf32>, vector<256x16xf32>, vector<256x16xf32> -> vector<256x256xf32>
    %73 = tpu.concatenate %55, %57, %59, %61, %63, %65, %67, %69, %71 in 1 : vector<256x16xf32>, vector<256x16xf32>, vector<256x16xf32>, vector<256x16xf32>, vector<256x16xf32>, vector<256x16xf32>, vector<256x16xf32>, vector<256x16xf32>, vector<256x16xf32> -> vector<256x144xf32>
    %74 = tpu.concatenate %72, %73 in 1 : vector<256x256xf32>, vector<256x144xf32> -> vector<256x400xf32>
    %c0_10 = arith.constant 0 : index
    %c0_11 = arith.constant 0 : index
    %75 = vector.load %arg4[%c0_10, %c0_11] : memref<400x24xf32, #tpu.memory_space<vmem>>, vector<400x24xf32>
    %cst_12 = arith.constant dense<0.000000e+00> : vector<256x24xf32>
    %76 = tpu.matmul %74, %75, %cst_12 {dimension_numbers = #tpu.dot_dimension_numbers<[1], [0], [0], [1], [0, 0, 1, 1], [], []>} : vector<256x400xf32>, vector<400x24xf32>, vector<256x24xf32> -> vector<256x24xf32>
    %c0_13 = arith.constant 0 : index
    %c0_14 = arith.constant 0 : index
    %77 = vector.load %arg5[%c0_13, %c0_14] : memref<1x24xf32, #tpu.memory_space<vmem>>, vector<1x24xf32>
    %78 = vector.broadcast %77 : vector<1x24xf32> to vector<256x24xf32>
    %79 = arith.addf %76, %78 : vector<256x24xf32>
    %80 = vector.shape_cast %15 : vector<256x16xf32> to vector<16x16x16xf32>
    %cst_15 = arith.constant 0.000000e+00 : f32
    %81 = vector.broadcast %cst_15 : f32 to vector<16x1x16xf32>
    %82 = tpu.concatenate %81, %80, %81 in 1 : vector<16x1x16xf32>, vector<16x16x16xf32>, vector<16x1x16xf32> -> vector<16x18x16xf32>
    %cst_16 = arith.constant 0.000000e+00 : f32
    %83 = vector.broadcast %cst_16 : f32 to vector<1x18x16xf32>
    %84 = tpu.concatenate %83, %82, %83 in 0 : vector<1x18x16xf32>, vector<16x18x16xf32>, vector<1x18x16xf32> -> vector<18x18x16xf32>
    %85 = vector.extract_strided_slice %84 {offsets = [0, 0, 0], sizes = [16, 16, 16], strides = [1, 1, 1]} : vector<18x18x16xf32> to vector<16x16x16xf32>
    %86 = vector.shape_cast %85 : vector<16x16x16xf32> to vector<256x16xf32>
    %87 = vector.extract_strided_slice %84 {offsets = [0, 1, 0], sizes = [16, 16, 16], strides = [1, 1, 1]} : vector<18x18x16xf32> to vector<16x16x16xf32>
    %88 = vector.shape_cast %87 : vector<16x16x16xf32> to vector<256x16xf32>
    %89 = vector.extract_strided_slice %84 {offsets = [0, 2, 0], sizes = [16, 16, 16], strides = [1, 1, 1]} : vector<18x18x16xf32> to vector<16x16x16xf32>
    %90 = vector.shape_cast %89 : vector<16x16x16xf32> to vector<256x16xf32>
    %91 = vector.extract_strided_slice %84 {offsets = [1, 0, 0], sizes = [16, 16, 16], strides = [1, 1, 1]} : vector<18x18x16xf32> to vector<16x16x16xf32>
    %92 = vector.shape_cast %91 : vector<16x16x16xf32> to vector<256x16xf32>
    %93 = vector.extract_strided_slice %84 {offsets = [1, 1, 0], sizes = [16, 16, 16], strides = [1, 1, 1]} : vector<18x18x16xf32> to vector<16x16x16xf32>
    %94 = vector.shape_cast %93 : vector<16x16x16xf32> to vector<256x16xf32>
    %95 = vector.extract_strided_slice %84 {offsets = [1, 2, 0], sizes = [16, 16, 16], strides = [1, 1, 1]} : vector<18x18x16xf32> to vector<16x16x16xf32>
    %96 = vector.shape_cast %95 : vector<16x16x16xf32> to vector<256x16xf32>
    %97 = vector.extract_strided_slice %84 {offsets = [2, 0, 0], sizes = [16, 16, 16], strides = [1, 1, 1]} : vector<18x18x16xf32> to vector<16x16x16xf32>
    %98 = vector.shape_cast %97 : vector<16x16x16xf32> to vector<256x16xf32>
    %99 = vector.extract_strided_slice %84 {offsets = [2, 1, 0], sizes = [16, 16, 16], strides = [1, 1, 1]} : vector<18x18x16xf32> to vector<16x16x16xf32>
    %100 = vector.shape_cast %99 : vector<16x16x16xf32> to vector<256x16xf32>
    %101 = vector.extract_strided_slice %84 {offsets = [2, 2, 0], sizes = [16, 16, 16], strides = [1, 1, 1]} : vector<18x18x16xf32> to vector<16x16x16xf32>
    %102 = vector.shape_cast %101 : vector<16x16x16xf32> to vector<256x16xf32>
    %103 = tpu.concatenate %86, %88, %90, %92, %94, %96, %98, %100, %102 in 1 : vector<256x16xf32>, vector<256x16xf32>, vector<256x16xf32>, vector<256x16xf32>, vector<256x16xf32>, vector<256x16xf32>, vector<256x16xf32>, vector<256x16xf32>, vector<256x16xf32> -> vector<256x144xf32>
    %c0_17 = arith.constant 0 : index
    %c0_18 = arith.constant 0 : index
    %104 = vector.load %arg6[%c0_17, %c0_18] : memref<144x24xf32, #tpu.memory_space<vmem>>, vector<144x24xf32>
    %cst_19 = arith.constant dense<0.000000e+00> : vector<256x24xf32>
    %105 = tpu.matmul %103, %104, %cst_19 {dimension_numbers = #tpu.dot_dimension_numbers<[1], [0], [0], [1], [0, 0, 1, 1], [], []>} : vector<256x144xf32>, vector<144x24xf32>, vector<256x24xf32> -> vector<256x24xf32>
    %c0_20 = arith.constant 0 : index
    %c0_21 = arith.constant 0 : index
    %106 = vector.load %arg7[%c0_20, %c0_21] : memref<1x24xf32, #tpu.memory_space<vmem>>, vector<1x24xf32>
    %107 = vector.broadcast %106 : vector<1x24xf32> to vector<256x24xf32>
    %108 = arith.addf %105, %107 : vector<256x24xf32>
    %109 = vector.shape_cast %108 : vector<256x24xf32> to vector<16x16x24xf32>
    %cst_22 = arith.constant 0.000000e+00 : f32
    %110 = vector.broadcast %cst_22 : f32 to vector<16x1x24xf32>
    %111 = tpu.concatenate %110, %109, %110 in 1 : vector<16x1x24xf32>, vector<16x16x24xf32>, vector<16x1x24xf32> -> vector<16x18x24xf32>
    %cst_23 = arith.constant 0.000000e+00 : f32
    %112 = vector.broadcast %cst_23 : f32 to vector<1x18x24xf32>
    %113 = tpu.concatenate %112, %111, %112 in 0 : vector<1x18x24xf32>, vector<16x18x24xf32>, vector<1x18x24xf32> -> vector<18x18x24xf32>
    %114 = vector.extract_strided_slice %113 {offsets = [0, 0, 0], sizes = [16, 16, 24], strides = [1, 1, 1]} : vector<18x18x24xf32> to vector<16x16x24xf32>
    %115 = vector.shape_cast %114 : vector<16x16x24xf32> to vector<256x24xf32>
    %116 = vector.extract_strided_slice %113 {offsets = [0, 1, 0], sizes = [16, 16, 24], strides = [1, 1, 1]} : vector<18x18x24xf32> to vector<16x16x24xf32>
    %117 = vector.shape_cast %116 : vector<16x16x24xf32> to vector<256x24xf32>
    %118 = vector.extract_strided_slice %113 {offsets = [0, 2, 0], sizes = [16, 16, 24], strides = [1, 1, 1]} : vector<18x18x24xf32> to vector<16x16x24xf32>
    %119 = vector.shape_cast %118 : vector<16x16x24xf32> to vector<256x24xf32>
    %120 = vector.extract_strided_slice %113 {offsets = [1, 0, 0], sizes = [16, 16, 24], strides = [1, 1, 1]} : vector<18x18x24xf32> to vector<16x16x24xf32>
    %121 = vector.shape_cast %120 : vector<16x16x24xf32> to vector<256x24xf32>
    %122 = vector.extract_strided_slice %113 {offsets = [1, 1, 0], sizes = [16, 16, 24], strides = [1, 1, 1]} : vector<18x18x24xf32> to vector<16x16x24xf32>
    %123 = vector.shape_cast %122 : vector<16x16x24xf32> to vector<256x24xf32>
    %124 = vector.extract_strided_slice %113 {offsets = [1, 2, 0], sizes = [16, 16, 24], strides = [1, 1, 1]} : vector<18x18x24xf32> to vector<16x16x24xf32>
    %125 = vector.shape_cast %124 : vector<16x16x24xf32> to vector<256x24xf32>
    %126 = vector.extract_strided_slice %113 {offsets = [2, 0, 0], sizes = [16, 16, 24], strides = [1, 1, 1]} : vector<18x18x24xf32> to vector<16x16x24xf32>
    %127 = vector.shape_cast %126 : vector<16x16x24xf32> to vector<256x24xf32>
    %128 = vector.extract_strided_slice %113 {offsets = [2, 1, 0], sizes = [16, 16, 24], strides = [1, 1, 1]} : vector<18x18x24xf32> to vector<16x16x24xf32>
    %129 = vector.shape_cast %128 : vector<16x16x24xf32> to vector<256x24xf32>
    %130 = vector.extract_strided_slice %113 {offsets = [2, 2, 0], sizes = [16, 16, 24], strides = [1, 1, 1]} : vector<18x18x24xf32> to vector<16x16x24xf32>
    %131 = vector.shape_cast %130 : vector<16x16x24xf32> to vector<256x24xf32>
    %132 = tpu.concatenate %115, %117, %119, %121, %123, %125, %127, %129, %131 in 1 : vector<256x24xf32>, vector<256x24xf32>, vector<256x24xf32>, vector<256x24xf32>, vector<256x24xf32>, vector<256x24xf32>, vector<256x24xf32>, vector<256x24xf32>, vector<256x24xf32> -> vector<256x216xf32>
    %c0_24 = arith.constant 0 : index
    %c0_25 = arith.constant 0 : index
    %133 = vector.load %arg8[%c0_24, %c0_25] : memref<216x24xf32, #tpu.memory_space<vmem>>, vector<216x24xf32>
    %cst_26 = arith.constant dense<0.000000e+00> : vector<256x24xf32>
    %134 = tpu.matmul %132, %133, %cst_26 {dimension_numbers = #tpu.dot_dimension_numbers<[1], [0], [0], [1], [0, 0, 1, 1], [], []>} : vector<256x216xf32>, vector<216x24xf32>, vector<256x24xf32> -> vector<256x24xf32>
    %c0_27 = arith.constant 0 : index
    %c0_28 = arith.constant 0 : index
    %135 = vector.load %arg9[%c0_27, %c0_28] : memref<1x24xf32, #tpu.memory_space<vmem>>, vector<1x24xf32>
    %136 = vector.broadcast %135 : vector<1x24xf32> to vector<256x24xf32>
    %137 = arith.addf %134, %136 : vector<256x24xf32>
    %138 = vector.shape_cast %16 : vector<256x24xf32> to vector<16x16x24xf32>
    %cst_29 = arith.constant 0.000000e+00 : f32
    %139 = vector.broadcast %cst_29 : f32 to vector<16x1x24xf32>
    %140 = tpu.concatenate %139, %138, %139 in 1 : vector<16x1x24xf32>, vector<16x16x24xf32>, vector<16x1x24xf32> -> vector<16x18x24xf32>
    %cst_30 = arith.constant 0.000000e+00 : f32
    %141 = vector.broadcast %cst_30 : f32 to vector<1x18x24xf32>
    %142 = tpu.concatenate %141, %140, %141 in 0 : vector<1x18x24xf32>, vector<16x18x24xf32>, vector<1x18x24xf32> -> vector<18x18x24xf32>
    %cst_31 = arith.constant 0.000000e+00 : f32
    %143 = vector.broadcast %cst_31 : f32 to vector<16x16x24xf32>
    %144 = vector.extract_strided_slice %142 {offsets = [0, 0, 0], sizes = [16, 16, 24], strides = [1, 1, 1]} : vector<18x18x24xf32> to vector<16x16x24xf32>
    %145 = arith.addf %143, %144 : vector<16x16x24xf32>
    %146 = vector.extract_strided_slice %142 {offsets = [0, 1, 0], sizes = [16, 16, 24], strides = [1, 1, 1]} : vector<18x18x24xf32> to vector<16x16x24xf32>
    %147 = arith.addf %145, %146 : vector<16x16x24xf32>
    %148 = vector.extract_strided_slice %142 {offsets = [0, 2, 0], sizes = [16, 16, 24], strides = [1, 1, 1]} : vector<18x18x24xf32> to vector<16x16x24xf32>
    %149 = arith.addf %147, %148 : vector<16x16x24xf32>
    %150 = vector.extract_strided_slice %142 {offsets = [1, 0, 0], sizes = [16, 16, 24], strides = [1, 1, 1]} : vector<18x18x24xf32> to vector<16x16x24xf32>
    %151 = arith.addf %149, %150 : vector<16x16x24xf32>
    %152 = vector.extract_strided_slice %142 {offsets = [1, 1, 0], sizes = [16, 16, 24], strides = [1, 1, 1]} : vector<18x18x24xf32> to vector<16x16x24xf32>
    %153 = arith.addf %151, %152 : vector<16x16x24xf32>
    %154 = vector.extract_strided_slice %142 {offsets = [1, 2, 0], sizes = [16, 16, 24], strides = [1, 1, 1]} : vector<18x18x24xf32> to vector<16x16x24xf32>
    %155 = arith.addf %153, %154 : vector<16x16x24xf32>
    %156 = vector.extract_strided_slice %142 {offsets = [2, 0, 0], sizes = [16, 16, 24], strides = [1, 1, 1]} : vector<18x18x24xf32> to vector<16x16x24xf32>
    %157 = arith.addf %155, %156 : vector<16x16x24xf32>
    %158 = vector.extract_strided_slice %142 {offsets = [2, 1, 0], sizes = [16, 16, 24], strides = [1, 1, 1]} : vector<18x18x24xf32> to vector<16x16x24xf32>
    %159 = arith.addf %157, %158 : vector<16x16x24xf32>
    %160 = vector.extract_strided_slice %142 {offsets = [2, 2, 0], sizes = [16, 16, 24], strides = [1, 1, 1]} : vector<18x18x24xf32> to vector<16x16x24xf32>
    %161 = arith.addf %159, %160 : vector<16x16x24xf32>
    %cst_32 = arith.constant 0.111111112 : f32
    %162 = vector.broadcast %cst_32 : f32 to vector<16x16x24xf32>
    %163 = arith.mulf %161, %162 : vector<16x16x24xf32>
    %164 = vector.shape_cast %163 : vector<16x16x24xf32> to vector<256x24xf32>
    %c0_33 = arith.constant 0 : index
    %c0_34 = arith.constant 0 : index
    %165 = vector.load %arg10[%c0_33, %c0_34] : memref<1x24xf32, #tpu.memory_space<vmem>>, vector<1x24xf32>
    %166 = vector.broadcast %165 : vector<1x24xf32> to vector<256x24xf32>
    %167 = arith.addf %164, %166 : vector<256x24xf32>
    %cst_35 = arith.constant 0.000000e+00 : f32
    %168 = vector.broadcast %cst_35 : f32 to vector<256x40xf32>
    %169 = tpu.concatenate %7, %137, %79, %167, %168 in 1 : vector<256x16xf32>, vector<256x24xf32>, vector<256x24xf32>, vector<256x24xf32>, vector<256x40xf32> -> vector<256x128xf32>
    %170 = tpu.transpose %169, [1, 0] : vector<256x128xf32> -> vector<128x256xf32>
    %171 = vector.extract_strided_slice %170 {offsets = [0, 0], sizes = [88, 256], strides = [1, 1]} : vector<128x256xf32> to vector<88x256xf32>
    %172 = vector.shape_cast %171 : vector<88x256xf32> to vector<1x88x256xf32>
    %c0_36 = arith.constant 0 : index
    %c0_37 = arith.constant 0 : index
    %c0_38 = arith.constant 0 : index
    %173 = vector.load %arg11[%c0_36, %c0_37, %c0_38] : memref<1x88x256xf32, #tpu.memory_space<vmem>>, vector<1x88x256xf32>
    tpu.vector_store %arg11[%c0_36, %c0_37, %c0_38], %172 {strides = array<i32>} : memref<1x88x256xf32, #tpu.memory_space<vmem>>, vector<1x88x256xf32>,
    return
  }
  func.func @transform_0(%arg0: i32) -> (i32, i32, i32) {
    %c0_i32 = arith.constant 0 : i32
    %c0_i32_0 = arith.constant 0 : i32
    %c0_i32_1 = arith.constant 0 : i32
    return %arg0, %c0_i32, %c0_i32_0 : i32, i32, i32
  }
  func.func @transform_1(%arg0: i32) -> (i32, i32) {
    %c0_i32 = arith.constant 0 : i32
    %c0_i32_0 = arith.constant 0 : i32
    %c0_i32_1 = arith.constant 0 : i32
    return %c0_i32, %c0_i32_0 : i32, i32
  }
  func.func @transform_2(%arg0: i32) -> (i32, i32) {
    %c0_i32 = arith.constant 0 : i32
    %c0_i32_0 = arith.constant 0 : i32
    %c0_i32_1 = arith.constant 0 : i32
    return %c0_i32, %c0_i32_0 : i32, i32
  }
  func.func @transform_3(%arg0: i32) -> (i32, i32) {
    %c0_i32 = arith.constant 0 : i32
    %c0_i32_0 = arith.constant 0 : i32
    %c0_i32_1 = arith.constant 0 : i32
    return %c0_i32, %c0_i32_0 : i32, i32
  }
  func.func @transform_4(%arg0: i32) -> (i32, i32) {
    %c0_i32 = arith.constant 0 : i32
    %c0_i32_0 = arith.constant 0 : i32
    %c0_i32_1 = arith.constant 0 : i32
    return %c0_i32, %c0_i32_0 : i32, i32
  }
  func.func @transform_5(%arg0: i32) -> (i32, i32) {
    %c0_i32 = arith.constant 0 : i32
    %c0_i32_0 = arith.constant 0 : i32
    %c0_i32_1 = arith.constant 0 : i32
    return %c0_i32, %c0_i32_0 : i32, i32
  }
  func.func @transform_6(%arg0: i32) -> (i32, i32) {
    %c0_i32 = arith.constant 0 : i32
    %c0_i32_0 = arith.constant 0 : i32
    %c0_i32_1 = arith.constant 0 : i32
    return %c0_i32, %c0_i32_0 : i32, i32
  }
  func.func @transform_7(%arg0: i32) -> (i32, i32) {
    %c0_i32 = arith.constant 0 : i32
    %c0_i32_0 = arith.constant 0 : i32
    %c0_i32_1 = arith.constant 0 : i32
    return %c0_i32, %c0_i32_0 : i32, i32
  }
  func.func @transform_8(%arg0: i32) -> (i32, i32) {
    %c0_i32 = arith.constant 0 : i32
    %c0_i32_0 = arith.constant 0 : i32
    %c0_i32_1 = arith.constant 0 : i32
    return %c0_i32, %c0_i32_0 : i32, i32
  }
  func.func @transform_9(%arg0: i32) -> (i32, i32) {
    %c0_i32 = arith.constant 0 : i32
    %c0_i32_0 = arith.constant 0 : i32
    %c0_i32_1 = arith.constant 0 : i32
    return %c0_i32, %c0_i32_0 : i32, i32
  }
  func.func @transform_10(%arg0: i32) -> (i32, i32, i32) {
    %c0_i32 = arith.constant 0 : i32
    %c0_i32_0 = arith.constant 0 : i32
    %c0_i32_1 = arith.constant 0 : i32
    return %arg0, %c0_i32, %c0_i32_0 : i32, i32, i32
  }
}

</mosaic_0001>

<llo_original>
// kernel: tpu_custom_call.1
$region0: #{tpu_custom_call.1}
  #allocation0 [shape = 'u32[]', space=smem, size = 0x4, offset = 0x4, fixed_abs, tag = 'smem constant byte address 0x4 - core index']
  #allocation1 [shape = 'u32[144,128]{1,0:T(1,128)}', space=vmem, size = 0x12000, scoped, tag = 'internal scratch']
  %s0 = inlined_call_operand.vmem [shape: f32[2,256,4], index: 0, kind: input, shape index: {}]
  %s1 = inlined_call_operand.vmem [shape: f32[4,72], index: 1, kind: input, shape index: {}]
  %s2 = inlined_call_operand.vmem [shape: f32[1,48], index: 2, kind: input, shape index: {}]
  %s3 = inlined_call_operand.vmem [shape: f32[400,24], index: 3, kind: input, shape index: {}]
  %s4 = inlined_call_operand.vmem [shape: f32[1,24], index: 4, kind: input, shape index: {}]
  %s5 = inlined_call_operand.vmem [shape: f32[144,24], index: 5, kind: input, shape index: {}]
  %s6 = inlined_call_operand.vmem [shape: f32[1,24], index: 6, kind: input, shape index: {}]
  %s7 = inlined_call_operand.vmem [shape: f32[216,24], index: 7, kind: input, shape index: {}]
  %s8 = inlined_call_operand.vmem [shape: f32[1,24], index: 8, kind: input, shape index: {}]
  %s9 = inlined_call_operand.vmem [shape: f32[1,24], index: 9, kind: input, shape index: {}]
  %s10 = inlined_call_operand.hbm [shape: f32[2,88,256], index: 10, kind: output, shape index: {}]
  %s11 = sld [smem:[#allocation0]]
  $region73: #{tpu_custom_call.1} parent=0
    _
  %s13 = ssub.s32 1, %s11
  %s14 = scalar_select 0, %s13, %s11
  $region1: #{tpu_custom_call.1} parent=0
    #allocation2 [shape = 'u8[180224]{0}', space=vmem, size = 0x2c000, scoped, tag = 'output window, operand 0']
    #allocation3 [shape = 's32[2]{0}', space=sflag, size = 0x8, scoped, tag = 'scoped memory for tpu_custom_call.1']
    %15 = vsyncpa [#allocation3], 0
    %s16 = scalar_lea.sflag [#allocation3], 1
    %17 = vsyncpa %s16, 0
    loop: start=0, step=1, limit=4
    $region2: #{tpu_custom_call.1} parent=1 // loop_pre_header
      _
    $region3: #{tpu_custom_call.1} parent=1 // loop_header
      %s19 = sphi 0, %s23
      %p20 = scmp.ge.s32.totalorder %s19, 4
      %s29 = sphi 0, %s31
      %s32 = sphi 0, %s29
      %s33 = sphi 0, %s32
      %s49 = sphi 0, %s33
      %s53 = sphi 0, %s53
      %s55 = sphi 0, %s53
      %s56 = sphi 0, %s55
      %s70 = sphi 0, %s56
      %s74 = sphi 0, %s74
      %s76 = sphi 0, %s74
      %s77 = sphi 0, %s76
      %s91 = sphi 0, %s77
      %s95 = sphi 0, %s95
      %s97 = sphi 0, %s95
      %s98 = sphi 0, %s97
      %s112 = sphi 0, %s98
      %s116 = sphi 0, %s116
      %s118 = sphi 0, %s116
      %s119 = sphi 0, %s118
      %s133 = sphi 0, %s119
      %s137 = sphi 0, %s137
      %s139 = sphi 0, %s137
      %s140 = sphi 0, %s139
      %s154 = sphi 0, %s140
      %s158 = sphi 0, %s158
      %s160 = sphi 0, %s158
      %s161 = sphi 0, %s160
      %s175 = sphi 0, %s161
      %s179 = sphi 0, %s179
      %s181 = sphi 0, %s179
      %s182 = sphi 0, %s181
      %s196 = sphi 0, %s182
      %s200 = sphi 0, %s200
      %s202 = sphi 0, %s200
      %s203 = sphi 0, %s202
      %s217 = sphi 0, %s203
      %s221 = sphi 0, %s221
      %s223 = sphi 0, %s221
      %s224 = sphi 0, %s223
      %s238 = sphi 0, %s224
      %s244 = sphi 0, %s246
      %s247 = sphi 0, %s244
      %s248 = sphi 0, %s247
      %s264 = sphi 0, %s248
    $region4: #{tpu_custom_call.1} parent=1 // loop_header_branch
      %22 = sbr.rel (%p20) target = $region8
    $region5: #{tpu_custom_call.1} parent=1 // loop_body
      %s24 = ssub.s32 %s19, 1
      %s25 = ssub.s32 %s19, 2
      %s26 = sadd.s32 %s19, 1
      %s27 = ssub.s32 %s19, %s26
      %p28 = scmp.eq.s32.totalorder %s27, 0
      %s30 = sadd.s32 %s29, 1
      %s31 = scalar_select %p28, %s29, %s30
      %p34 = pneg %p28
      %p35 = scmp.eq.s32.totalorder %s19, 1
      %p36 = por %p34, %p35
      %p37 = scmp.ne.s32.totalorder %s29, %s32
      %p38 = scmp.eq.s32.totalorder %s19, 0
      %p39 = por %p37, %p38
      %p40 = scmp.ne.s32.totalorder %s29, %s32
      %p41 = scmp.eq.s32.totalorder %s24, 1
      %p42 = por %p40, %p41
      %p43 = scmp.ne.s32.totalorder %s32, %s33
      %p44 = scmp.eq.s32.totalorder %s24, 0
      %p45 = por %p43, %p44
      %p46 = scmp.ne.s32.totalorder %s32, %s33
      %p47 = scmp.eq.s32.totalorder %s25, 1
      %p48 = por %p46, %p47
      %p50 = scmp.ne.s32.totalorder %s33, %s49
      %p51 = scmp.eq.s32.totalorder %s25, 0
      %p52 = por %p50, %p51
      %s54 = sadd.s32 %s53, 1
      %p57 = scmp.eq.s32.totalorder %s19, 1
      %p58 = scmp.ne.s32.totalorder %s53, %s55
      %p59 = scmp.eq.s32.totalorder %s19, 0
      %p60 = por %p58, %p59
      %p61 = scmp.ne.s32.totalorder %s53, %s55
      %p62 = scmp.eq.s32.totalorder %s24, 1
      %p63 = por %p61, %p62
      %p64 = scmp.ne.s32.totalorder %s55, %s56
      %p65 = scmp.eq.s32.totalorder %s24, 0
      %p66 = por %p64, %p65
      %p67 = scmp.ne.s32.totalorder %s55, %s56
      %p68 = scmp.eq.s32.totalorder %s25, 1
      %p69 = por %p67, %p68
      %p71 = scmp.ne.s32.totalorder %s56, %s70
      %p72 = scmp.eq.s32.totalorder %s25, 0
      %p73 = por %p71, %p72
      %s75 = sadd.s32 %s74, 1
      %p78 = scmp.eq.s32.totalorder %s19, 1
      %p79 = scmp.ne.s32.totalorder %s74, %s76
      %p80 = scmp.eq.s32.totalorder %s19, 0
      %p81 = por %p79, %p80
      %p82 = scmp.ne.s32.totalorder %s74, %s76
      %p83 = scmp.eq.s32.totalorder %s24, 1
      %p84 = por %p82, %p83
      %p85 = scmp.ne.s32.totalorder %s76, %s77
      %p86 = scmp.eq.s32.totalorder %s24, 0
      %p87 = por %p85, %p86
      %p88 = scmp.ne.s32.totalorder %s76, %s77
      %p89 = scmp.eq.s32.totalorder %s25, 1
      %p90 = por %p88, %p89
      %p92 = scmp.ne.s32.totalorder %s77, %s91
      %p93 = scmp.eq.s32.totalorder %s25, 0
      %p94 = por %p92, %p93
      %s96 = sadd.s32 %s95, 1
      %p99 = scmp.eq.s32.totalorder %s19, 1
      %p100 = scmp.ne.s32.totalorder %s95, %s97
      %p101 = scmp.eq.s32.totalorder %s19, 0
      %p102 = por %p100, %p101
      %p103 = scmp.ne.s32.totalorder %s95, %s97
      %p104 = scmp.eq.s32.totalorder %s24, 1
      %p105 = por %p103, %p104
      %p106 = scmp.ne.s32.totalorder %s97, %s98
      %p107 = scmp.eq.s32.totalorder %s24, 0
      %p108 = por %p106, %p107
      %p109 = scmp.ne.s32.totalorder %s97, %s98
      %p110 = scmp.eq.s32.totalorder %s25, 1
      %p111 = por %p109, %p110
      %p113 = scmp.ne.s32.totalorder %s98, %s112
      %p114 = scmp.eq.s32.totalorder %s25, 0
      %p115 = por %p113, %p114
      %s117 = sadd.s32 %s116, 1
      %p120 = scmp.eq.s32.totalorder %s19, 1
      %p121 = scmp.ne.s32.totalorder %s116, %s118
      %p122 = scmp.eq.s32.totalorder %s19, 0
      %p123 = por %p121, %p122
      %p124 = scmp.ne.s32.totalorder %s116, %s118
      %p125 = scmp.eq.s32.totalorder %s24, 1
      %p126 = por %p124, %p125
      %p127 = scmp.ne.s32.totalorder %s118, %s119
      %p128 = scmp.eq.s32.totalorder %s24, 0
      %p129 = por %p127, %p128
      %p130 = scmp.ne.s32.totalorder %s118, %s119
      %p131 = scmp.eq.s32.totalorder %s25, 1
      %p132 = por %p130, %p131
      %p134 = scmp.ne.s32.totalorder %s119, %s133
      %p135 = scmp.eq.s32.totalorder %s25, 0
      %p136 = por %p134, %p135
      %s138 = sadd.s32 %s137, 1
      %p141 = scmp.eq.s32.totalorder %s19, 1
      %p142 = scmp.ne.s32.totalorder %s137, %s139
      %p143 = scmp.eq.s32.totalorder %s19, 0
      %p144 = por %p142, %p143
      %p145 = scmp.ne.s32.totalorder %s137, %s139
      %p146 = scmp.eq.s32.totalorder %s24, 1
      %p147 = por %p145, %p146
      %p148 = scmp.ne.s32.totalorder %s139, %s140
      %p149 = scmp.eq.s32.totalorder %s24, 0
      %p150 = por %p148, %p149
      %p151 = scmp.ne.s32.totalorder %s139, %s140
      %p152 = scmp.eq.s32.totalorder %s25, 1
      %p153 = por %p151, %p152
      %p155 = scmp.ne.s32.totalorder %s140, %s154
      %p156 = scmp.eq.s32.totalorder %s25, 0
      %p157 = por %p155, %p156
      %s159 = sadd.s32 %s158, 1
      %p162 = scmp.eq.s32.totalorder %s19, 1
      %p163 = scmp.ne.s32.totalorder %s158, %s160
      %p164 = scmp.eq.s32.totalorder %s19, 0
      %p165 = por %p163, %p164
      %p166 = scmp.ne.s32.totalorder %s158, %s160
      %p167 = scmp.eq.s32.totalorder %s24, 1
      %p168 = por %p166, %p167
      %p169 = scmp.ne.s32.totalorder %s160, %s161
      %p170 = scmp.eq.s32.totalorder %s24, 0
      %p171 = por %p169, %p170
      %p172 = scmp.ne.s32.totalorder %s160, %s161
      %p173 = scmp.eq.s32.totalorder %s25, 1
      %p174 = por %p172, %p173
      %p176 = scmp.ne.s32.totalorder %s161, %s175
      %p177 = scmp.eq.s32.totalorder %s25, 0
      %p178 = por %p176, %p177
      %s180 = sadd.s32 %s179, 1
      %p183 = scmp.eq.s32.totalorder %s19, 1
      %p184 = scmp.ne.s32.totalorder %s179, %s181
      %p185 = scmp.eq.s32.totalorder %s19, 0
      %p186 = por %p184, %p185
      %p187 = scmp.ne.s32.totalorder %s179, %s181
      %p188 = scmp.eq.s32.totalorder %s24, 1
      %p189 = por %p187, %p188
      %p190 = scmp.ne.s32.totalorder %s181, %s182
      %p191 = scmp.eq.s32.totalorder %s24, 0
      %p192 = por %p190, %p191
      %p193 = scmp.ne.s32.totalorder %s181, %s182
      %p194 = scmp.eq.s32.totalorder %s25, 1
      %p195 = por %p193, %p194
      %p197 = scmp.ne.s32.totalorder %s182, %s196
      %p198 = scmp.eq.s32.totalorder %s25, 0
      %p199 = por %p197, %p198
      %s201 = sadd.s32 %s200, 1
      %p204 = scmp.eq.s32.totalorder %s19, 1
      %p205 = scmp.ne.s32.totalorder %s200, %s202
      %p206 = scmp.eq.s32.totalorder %s19, 0
      %p207 = por %p205, %p206
      %p208 = scmp.ne.s32.totalorder %s200, %s202
      %p209 = scmp.eq.s32.totalorder %s24, 1
      %p210 = por %p208, %p209
      %p211 = scmp.ne.s32.totalorder %s202, %s203
      %p212 = scmp.eq.s32.totalorder %s24, 0
      %p213 = por %p211, %p212
      %p214 = scmp.ne.s32.totalorder %s202, %s203
      %p215 = scmp.eq.s32.totalorder %s25, 1
      %p216 = por %p214, %p215
      %p218 = scmp.ne.s32.totalorder %s203, %s217
      %p219 = scmp.eq.s32.totalorder %s25, 0
      %p220 = por %p218, %p219
      %s222 = sadd.s32 %s221, 1
      %p225 = scmp.eq.s32.totalorder %s19, 1
      %p226 = scmp.ne.s32.totalorder %s221, %s223
      %p227 = scmp.eq.s32.totalorder %s19, 0
      %p228 = por %p226, %p227
      %p229 = scmp.ne.s32.totalorder %s221, %s223
      %p230 = scmp.eq.s32.totalorder %s24, 1
      %p231 = por %p229, %p230
      %p232 = scmp.ne.s32.totalorder %s223, %s224
      %p233 = scmp.eq.s32.totalorder %s24, 0
      %p234 = por %p232, %p233
      %p235 = scmp.ne.s32.totalorder %s223, %s224
      %p236 = scmp.eq.s32.totalorder %s25, 1
      %p237 = por %p235, %p236
      %p239 = scmp.ne.s32.totalorder %s224, %s238
      %p240 = scmp.eq.s32.totalorder %s25, 0
      %p241 = por %p239, %p240
      %s242 = ssub.s32 %s19, %s26
      %p243 = scmp.eq.s32.totalorder %s242, 0
      %s245 = sadd.s32 %s244, 1
      %s246 = scalar_select %p243, %s244, %s245
      %p249 = pneg %p243
      %p250 = scmp.eq.s32.totalorder %s19, 1
      %p251 = por %p249, %p250
      %p252 = scmp.ne.s32.totalorder %s244, %s247
      %p253 = scmp.eq.s32.totalorder %s19, 0
      %p254 = por %p252, %p253
      %p255 = scmp.ne.s32.totalorder %s244, %s247
      %p256 = scmp.eq.s32.totalorder %s24, 1
      %p257 = por %p255, %p256
      %p258 = scmp.ne.s32.totalorder %s247, %s248
      %p259 = scmp.eq.s32.totalorder %s24, 0
      %p260 = por %p258, %p259
      %p261 = scmp.ne.s32.totalorder %s247, %s248
      %p262 = scmp.eq.s32.totalorder %s25, 1
      %p263 = por %p261, %p262
      %p265 = scmp.ne.s32.totalorder %s248, %s264
      %p266 = scmp.eq.s32.totalorder %s25, 0
      %p267 = por %p265, %p266
      %p268 = scmp.le.s32.totalorder 1, %s19
      %p269 = scmp.lt.s32.totalorder %s19, 3
      %p270 = pnand %p268, %p269
      %p271 = pneg %p270
      // Predicated region
      $region9: #{tpu_custom_call.1} parent=5 // pred_check
        _
      $region10: #{tpu_custom_call.1} parent=5 // pred_check_branch
        %273 = sbr.rel (%p270) target = $region12
      $region11: #{tpu_custom_call.1} parent=5 // pred_region
        %s274 = ssub.s32 %s19, 1
        // Predicated region
        $region13: #{tpu_custom_call.1} parent=11 // pred_check
          %p275 = pneg %p66
        $region14: #{tpu_custom_call.1} parent=11 // pred_check_branch
          %277 = sbr.rel (%p275) target = $region16
        $region15: #{tpu_custom_call.1} parent=11 // pred_region
          _
        $region16: #{tpu_custom_call.1} parent=11 // pred_fallthru
          _
        // Predicated region
        $region17: #{tpu_custom_call.1} parent=11 // pred_check
          %p278 = pneg %p87
        $region18: #{tpu_custom_call.1} parent=11 // pred_check_branch
          %280 = sbr.rel (%p278) target = $region20
        $region19: #{tpu_custom_call.1} parent=11 // pred_region
          _
        $region20: #{tpu_custom_call.1} parent=11 // pred_fallthru
          _
        // Predicated region
        $region21: #{tpu_custom_call.1} parent=11 // pred_check
          %p281 = pneg %p108
        $region22: #{tpu_custom_call.1} parent=11 // pred_check_branch
          %283 = sbr.rel (%p281) target = $region24
        $region23: #{tpu_custom_call.1} parent=11 // pred_region
          _
        $region24: #{tpu_custom_call.1} parent=11 // pred_fallthru
          _
        // Predicated region
        $region25: #{tpu_custom_call.1} parent=11 // pred_check
          %p284 = pneg %p129
        $region26: #{tpu_custom_call.1} parent=11 // pred_check_branch
          %286 = sbr.rel (%p284) target = $region28
        $region27: #{tpu_custom_call.1} parent=11 // pred_region
          _
        $region28: #{tpu_custom_call.1} parent=11 // pred_fallthru
          _
        // Predicated region
        $region29: #{tpu_custom_call.1} parent=11 // pred_check
          %p287 = pneg %p150
        $region30: #{tpu_custom_call.1} parent=11 // pred_check_branch
          %289 = sbr.rel (%p287) target = $region32
        $region31: #{tpu_custom_call.1} parent=11 // pred_region
          _
        $region32: #{tpu_custom_call.1} parent=11 // pred_fallthru
          _
        // Predicated region
        $region33: #{tpu_custom_call.1} parent=11 // pred_check
          %p290 = pneg %p171
        $region34: #{tpu_custom_call.1} parent=11 // pred_check_branch
          %292 = sbr.rel (%p290) target = $region36
        $region35: #{tpu_custom_call.1} parent=11 // pred_region
          _
        $region36: #{tpu_custom_call.1} parent=11 // pred_fallthru
          _
        // Predicated region
        $region37: #{tpu_custom_call.1} parent=11 // pred_check
          %p293 = pneg %p192
        $region38: #{tpu_custom_call.1} parent=11 // pred_check_branch
          %295 = sbr.rel (%p293) target = $region40
        $region39: #{tpu_custom_call.1} parent=11 // pred_region
          _
        $region40: #{tpu_custom_call.1} parent=11 // pred_fallthru
          _
        // Predicated region
        $region41: #{tpu_custom_call.1} parent=11 // pred_check
          %p296 = pneg %p213
        $region42: #{tpu_custom_call.1} parent=11 // pred_check_branch
          %298 = sbr.rel (%p296) target = $region44
        $region43: #{tpu_custom_call.1} parent=11 // pred_region
          _
        $region44: #{tpu_custom_call.1} parent=11 // pred_fallthru
          _
        // Predicated region
        $region45: #{tpu_custom_call.1} parent=11 // pred_check
          %p299 = pneg %p234
        $region46: #{tpu_custom_call.1} parent=11 // pred_check_branch
          %301 = sbr.rel (%p299) target = $region48
        $region47: #{tpu_custom_call.1} parent=11 // pred_region
          _
        $region48: #{tpu_custom_call.1} parent=11 // pred_fallthru
          _
      $region12: #{tpu_custom_call.1} parent=5 // pred_fallthru
        _
      %p302 = scmp.lt.s32.totalorder %s19, 2
      // Predicated region
      $region49: #{tpu_custom_call.1} parent=5 // pred_check
        %p303 = pneg %p302
      $region50: #{tpu_custom_call.1} parent=5 // pred_check_branch
        %305 = sbr.rel (%p303) target = $region52
      $region51: #{tpu_custom_call.1} parent=5 // pred_region
        // Predicated region
        $region53: #{tpu_custom_call.1} parent=51 // pred_check
          %p306 = pneg %p39
        $region54: #{tpu_custom_call.1} parent=51 // pred_check_branch
          %308 = sbr.rel (%p306) target = $region56
        $region55: #{tpu_custom_call.1} parent=51 // pred_region
          %p309 = scmp.lt.s32.totalorder %s19, 1
          %s310 = scalar_select %p309, %s19, 1
          %s311 = smul.addr %s310, 32
          %s312 = smul.addr %s311, 8
          %s313 = scalar_lea.vmem %s0, %s312
        $region56: #{tpu_custom_call.1} parent=51 // pred_fallthru
          _
      $region52: #{tpu_custom_call.1} parent=5 // pred_fallthru
        _
      %p314 = scmp.le.s32.totalorder 1, %s19
      %p315 = scmp.lt.s32.totalorder %s19, 3
      %p316 = pnand %p314, %p315
      %p317 = pneg %p316
      // Predicated region
      $region57: #{tpu_custom_call.1} parent=5 // pred_check
        _
      $region58: #{tpu_custom_call.1} parent=5 // pred_check_branch
        %319 = sbr.rel (%p316) target = $region60
      $region59: #{tpu_custom_call.1} parent=5 // pred_region
        %s320 = ssub.s32 %s19, 1
        %p321 = scmp.lt.s32.totalorder %s24, 1
        %s322 = scalar_select %p321, %s24, 1
        %s323 = smul.addr %s322, 32
        %s324 = smul.addr %s323, 8
        %s325 = scalar_lea.vmem %s0, %s324
        %p326 = pneg %p45
        %p327 = pneg %p42
        %p328 = pneg %p66
        %p329 = pneg %p63
        %p330 = pneg %p87
        %p331 = pneg %p84
        %p332 = pneg %p108
        %p333 = pneg %p105
        %p334 = pneg %p129
        %p335 = pneg %p126
        %p336 = pneg %p150
        %p337 = pneg %p147
        %p338 = pneg %p171
        %p339 = pneg %p168
        %p340 = pneg %p192
        %p341 = pneg %p189
        %p342 = pneg %p213
        %p343 = pneg %p210
        %p344 = pneg %p234
        %p345 = pneg %p231
        %p346 = pneg %p260
        %p347 = pneg %p257
        %s348 = sand.u32 %s247, 1
        %s349 = scalar_lea.sflag [#allocation3], %s348
        %s350 = sand.u32 %s247, 1
        %s351 = smul.addr %s350, 176
        %s352 = scalar_lea.vmem [#allocation2], %s351
        %p353 = scmp.lt.s32.totalorder %s24, 1
        %s354 = scalar_select %p353, %s24, 1
        %s355 = smul.addr %s354, 32
        %s356 = smul.addr %s355, 8
        %s357 = scalar_lea.vmem %s0, %s356
        %v358 = vld [vmem:[%s357] sm:$0xff]
        %v359 = vld [vmem:[%s357 + $0x8] sm:$0xff]
        %v360 = vld [vmem:[%s357 + $0x10] sm:$0xff]
        %v361 = vld [vmem:[%s357 + $0x18] sm:$0xff]
        %v362 = vld [vmem:[%s357 + $0x20] sm:$0xff]
        %v363 = vld [vmem:[%s357 + $0x28] sm:$0xff]
        %v364 = vld [vmem:[%s357 + $0x30] sm:$0xff]
        %v365 = vld [vmem:[%s357 + $0x38] sm:$0xff]
        %v366 = vld [vmem:[%s357 + $0x40] sm:$0xff]
        %v367 = vld [vmem:[%s357 + $0x48] sm:$0xff]
        %v368 = vld [vmem:[%s357 + $0x50] sm:$0xff]
        %v369 = vld [vmem:[%s357 + $0x58] sm:$0xff]
        %v370 = vld [vmem:[%s357 + $0x60] sm:$0xff]
        %v371 = vld [vmem:[%s357 + $0x68] sm:$0xff]
        %v372 = vld [vmem:[%s357 + $0x70] sm:$0xff]
        %v373 = vld [vmem:[%s357 + $0x78] sm:$0xff]
        %v374 = vld [vmem:[%s357 + $0x80] sm:$0xff]
        %v375 = vld [vmem:[%s357 + $0x88] sm:$0xff]
        %v376 = vld [vmem:[%s357 + $0x90] sm:$0xff]
        %v377 = vld [vmem:[%s357 + $0x98] sm:$0xff]
        %v378 = vld [vmem:[%s357 + $0xa0] sm:$0xff]
        %v379 = vld [vmem:[%s357 + $0xa8] sm:$0xff]
        %v380 = vld [vmem:[%s357 + $0xb0] sm:$0xff]
        %v381 = vld [vmem:[%s357 + $0xb8] sm:$0xff]
        %v382 = vld [vmem:[%s357 + $0xc0] sm:$0xff]
        %v383 = vld [vmem:[%s357 + $0xc8] sm:$0xff]
        %v384 = vld [vmem:[%s357 + $0xd0] sm:$0xff]
        %v385 = vld [vmem:[%s357 + $0xd8] sm:$0xff]
        %v386 = vld [vmem:[%s357 + $0xe0] sm:$0xff]
        %v387 = vld [vmem:[%s357 + $0xe8] sm:$0xff]
        %v388 = vld [vmem:[%s357 + $0xf0] sm:$0xff]
        %v389 = vld [vmem:[%s357 + $0xf8] sm:$0xff]
        %v390 = vld [vmem:[%s1] sm:$0xf]
        %vm391 = vcmask 31744
        %v393 = vsel %vm391, %v358, 0
        %v396 = vsel %vm391, %v359, 0
        %v399 = vsel %vm391, %v360, 0
        %v402 = vsel %vm391, %v361, 0
        %v405 = vsel %vm391, %v362, 0
        %v408 = vsel %vm391, %v363, 0
        %v411 = vsel %vm391, %v364, 0
        %v414 = vsel %vm391, %v365, 0
        %v417 = vsel %vm391, %v366, 0
        %v420 = vsel %vm391, %v367, 0
        %v423 = vsel %vm391, %v368, 0
        %v426 = vsel %vm391, %v369, 0
        %v429 = vsel %vm391, %v370, 0
        %v432 = vsel %vm391, %v371, 0
        %v435 = vsel %vm391, %v372, 0
        %v438 = vsel %vm391, %v373, 0
        %v441 = vsel %vm391, %v374, 0
        %v444 = vsel %vm391, %v375, 0
        %v447 = vsel %vm391, %v376, 0
        %v450 = vsel %vm391, %v377, 0
        %v453 = vsel %vm391, %v378, 0
        %v456 = vsel %vm391, %v379, 0
        %v459 = vsel %vm391, %v380, 0
        %v462 = vsel %vm391, %v381, 0
        %v465 = vsel %vm391, %v382, 0
        %v468 = vsel %vm391, %v383, 0
        %v471 = vsel %vm391, %v384, 0
        %v474 = vsel %vm391, %v385, 0
        %v477 = vsel %vm391, %v386, 0
        %v480 = vsel %vm391, %v387, 0
        %v483 = vsel %vm391, %v388, 0
        %v486 = vsel %vm391, %v389, 0
        %vm488 = vcmask 1043456
        %v490 = vsel %vm488, %v390, 0
        %492 = vmatprep.subr.mxu0 0.0
        %493 = vmatpush1.msra.mxu0 %v490
        %494 = vmatprep.subr.mxu0 0.0
        %495 = vmatpush1.msra.mxu0 0.0
        %496 = vmatprep.subr.mxu0 0.0
        %497 = vmatpush1.msra.mxu0 0.0
        %498 = vmatprep.subr.mxu0 0.0
        %499 = vmatpush1.msra.mxu0 0.0
        %500 = vmatprep.subr.mxu0 0.0
        %501 = vmatpush1.msra.mxu0 0.0
        %502 = vmatprep.subr.mxu0 0.0
        %503 = vmatpush1.msra.mxu0 0.0
        %504 = vmatprep.subr.mxu0 0.0
        %505 = vmatpush1.msra.mxu0 0.0
        %506 = vmatprep.subr.mxu0 0.0
        %507 = vmatpush1.msra.mxu0 0.0
        %508 = vmatprep.subr.mxu0 0.0
        %509 = vmatpush1.msra.mxu0 0.0
        %510 = vmatprep.subr.mxu0 0.0
        %511 = vmatpush1.msra.mxu0 0.0
        %512 = vmatprep.subr.mxu0 0.0
        %513 = vmatpush1.msra.mxu0 0.0
        %514 = vmatprep.subr.mxu0 0.0
        %515 = vmatpush1.msra.mxu0 0.0
        %516 = vmatprep.subr.mxu0 0.0
        %517 = vmatpush1.msra.mxu0 0.0
        %518 = vmatprep.subr.mxu0 0.0
        %519 = vmatpush1.msra.mxu0 0.0
        %520 = vmatprep.subr.mxu0 0.0
        %521 = vmatpush1.msra.mxu0 0.0
        %522 = vmatprep.subr.mxu0 0.0
        %523 = vmatpush1.msra.mxu0 0.0
        %524 = vmatprep.subr.mxu0 0.0
        %525 = vmatpush1.msra.mxu0 0.0
        %526 = vmatprep.subr.mxu0 0.0
        %527 = vmatpush1.msra.mxu0 0.0
        %528 = vmatprep.subr.mxu0 0.0
        %529 = vmatpush1.msra.mxu0 0.0
        %530 = vmatprep.subr.mxu0 0.0
        %531 = vmatpush1.msra.mxu0 0.0
        %532 = vmatprep.subr.mxu0 0.0
        %533 = vmatpush1.msra.mxu0 0.0
        %534 = vmatprep.subr.mxu0 0.0
        %535 = vmatpush1.msra.mxu0 0.0
        %536 = vmatprep.subr.mxu0 0.0
        %537 = vmatpush1.msra.mxu0 0.0
        %538 = vmatprep.subr.mxu0 0.0
        %539 = vmatpush1.msra.mxu0 0.0
        %540 = vmatprep.subr.mxu0 0.0
        %541 = vmatpush1.msra.mxu0 0.0
        %542 = vmatprep.subr.mxu0 0.0
        %543 = vmatpush1.msra.mxu0 0.0
        %544 = vmatprep.subr.mxu0 0.0
        %545 = vmatpush1.msra.mxu0 0.0
        %546 = vmatprep.subr.mxu0 0.0
        %547 = vmatpush1.msra.mxu0 0.0
        %548 = vmatprep.subr.mxu0 0.0
        %549 = vmatpush1.msra.mxu0 0.0
        %550 = vmatprep.subr.mxu0 0.0
        %551 = vmatpush1.msra.mxu0 0.0
        %552 = vmatprep.subr.mxu0 0.0
        %553 = vmatpush1.msra.mxu0 0.0
        %554 = vmatprep.subr.mxu0 0.0
        %555 = vmatpush1.msra.mxu0 0.0
        %556 = vmatprep.mubr.f32.mxu0 0.0
        %557 = vmatmul.mubr.f32.gmra.mrb[0].mxu0 %v393
        %v558 = vpop.f32.mrb[0].mxu0
        %v559 = vadd.f32 0.0, %v558
        %v560 = vpop.f32.mrb[0].mxu0
        %561 = vmatprep.mubr.f32.mxu0 0.0
        %562 = vmatmul.mubr.f32.gmra.mrb[0].mxu0 %v396
        %v563 = vpop.f32.mrb[0].mxu0
        %v564 = vadd.f32 0.0, %v563
        %v565 = vpop.f32.mrb[0].mxu0
        %566 = vmatprep.mubr.f32.mxu0 0.0
        %567 = vmatmul.mubr.f32.gmra.mrb[0].mxu0 %v399
        %v568 = vpop.f32.mrb[0].mxu0
        %v569 = vadd.f32 0.0, %v568
        %v570 = vpop.f32.mrb[0].mxu0
        %571 = vmatprep.mubr.f32.mxu0 0.0
        %572 = vmatmul.mubr.f32.gmra.mrb[0].mxu0 %v402
        %v573 = vpop.f32.mrb[0].mxu0
        %v574 = vadd.f32 0.0, %v573
        %v575 = vpop.f32.mrb[0].mxu0
        %576 = vmatprep.mubr.f32.mxu0 0.0
        %577 = vmatmul.mubr.f32.gmra.mrb[0].mxu0 %v405
        %v578 = vpop.f32.mrb[0].mxu0
        %v579 = vadd.f32 0.0, %v578
        %v580 = vpop.f32.mrb[0].mxu0
        %581 = vmatprep.mubr.f32.mxu0 0.0
        %582 = vmatmul.mubr.f32.gmra.mrb[0].mxu0 %v408
        %v583 = vpop.f32.mrb[0].mxu0
        %v584 = vadd.f32 0.0, %v583
        %v585 = vpop.f32.mrb[0].mxu0
        %586 = vmatprep.mubr.f32.mxu0 0.0
        %587 = vmatmul.mubr.f32.gmra.mrb[0].mxu0 %v411
        %v588 = vpop.f32.mrb[0].mxu0
        %v589 = vadd.f32 0.0, %v588
        %v590 = vpop.f32.mrb[0].mxu0
        %591 = vmatprep.mubr.f32.mxu0 0.0
        %592 = vmatmul.mubr.f32.gmra.mrb[0].mxu0 %v414
        %v593 = vpop.f32.mrb[0].mxu0
        %v594 = vadd.f32 0.0, %v593
        %v595 = vpop.f32.mrb[0].mxu0
        %596 = vmatprep.mubr.f32.mxu0 0.0
        %597 = vmatmul.mubr.f32.gmra.mrb[0].mxu0 %v417
        %v598 = vpop.f32.mrb[0].mxu0
        %v599 = vadd.f32 0.0, %v598
        %v600 = vpop.f32.mrb[0].mxu0
        %601 = vmatprep.mubr.f32.mxu0 0.0
        %602 = vmatmul.mubr.f32.gmra.mrb[0].mxu0 %v420
        %v603 = vpop.f32.mrb[0].mxu0
        %v604 = vadd.f32 0.0, %v603
        %v605 = vpop.f32.mrb[0].mxu0
        %606 = vmatprep.mubr.f32.mxu0 0.0
        %607 = vmatmul.mubr.f32.gmra.mrb[0].mxu0 %v423
        %v608 = vpop.f32.mrb[0].mxu0
        %v609 = vadd.f32 0.0, %v608
        %v610 = vpop.f32.mrb[0].mxu0
        %611 = vmatprep.mubr.f32.mxu0 0.0
        %612 = vmatmul.mubr.f32.gmra.mrb[0].mxu0 %v426
        %v613 = vpop.f32.mrb[0].mxu0
        %v614 = vadd.f32 0.0, %v613
        %v615 = vpop.f32.mrb[0].mxu0
        %616 = vmatprep.mubr.f32.mxu0 0.0
        %617 = vmatmul.mubr.f32.gmra.mrb[0].mxu0 %v429
        %v618 = vpop.f32.mrb[0].mxu0
        %v619 = vadd.f32 0.0, %v618
        %v620 = vpop.f32.mrb[0].mxu0
        %621 = vmatprep.mubr.f32.mxu0 0.0
        %622 = vmatmul.mubr.f32.gmra.mrb[0].mxu0 %v432
        %v623 = vpop.f32.mrb[0].mxu0
        %v624 = vadd.f32 0.0, %v623
        %v625 = vpop.f32.mrb[0].mxu0
        %626 = vmatprep.mubr.f32.mxu0 0.0
        %627 = vmatmul.mubr.f32.gmra.mrb[0].mxu0 %v435
        %v628 = vpop.f32.mrb[0].mxu0
        %v629 = vadd.f32 0.0, %v628
        %v630 = vpop.f32.mrb[0].mxu0
        %631 = vmatprep.mubr.f32.mxu0 0.0
        %632 = vmatmul.mubr.f32.gmra.mrb[0].mxu0 %v438
        %v633 = vpop.f32.mrb[0].mxu0
        %v634 = vadd.f32 0.0, %v633
        %v635 = vpop.f32.mrb[0].mxu0
        %636 = vmatprep.mubr.f32.mxu0 0.0
        %637 = vmatmul.mubr.f32.gmra.mrb[0].mxu0 %v441
        %v638 = vpop.f32.mrb[0].mxu0
        %v639 = vadd.f32 0.0, %v638
        %v640 = vpop.f32.mrb[0].mxu0
        %641 = vmatprep.mubr.f32.mxu0 0.0
        %642 = vmatmul.mubr.f32.gmra.mrb[0].mxu0 %v444
        %v643 = vpop.f32.mrb[0].mxu0
        %v644 = vadd.f32 0.0, %v643
        %v645 = vpop.f32.mrb[0].mxu0
        %646 = vmatprep.mubr.f32.mxu0 0.0
        %647 = vmatmul.mubr.f32.gmra.mrb[0].mxu0 %v447
        %v648 = vpop.f32.mrb[0].mxu0
        %v649 = vadd.f32 0.0, %v648
        %v650 = vpop.f32.mrb[0].mxu0
        %651 = vmatprep.mubr.f32.mxu0 0.0
        %652 = vmatmul.mubr.f32.gmra.mrb[0].mxu0 %v450
        %v653 = vpop.f32.mrb[0].mxu0
        %v654 = vadd.f32 0.0, %v653
        %v655 = vpop.f32.mrb[0].mxu0
        %656 = vmatprep.mubr.f32.mxu0 0.0
        %657 = vmatmul.mubr.f32.gmra.mrb[0].mxu0 %v453
        %v658 = vpop.f32.mrb[0].mxu0
        %v659 = vadd.f32 0.0, %v658
        %v660 = vpop.f32.mrb[0].mxu0
        %661 = vmatprep.mubr.f32.mxu0 0.0
        %662 = vmatmul.mubr.f32.gmra.mrb[0].mxu0 %v456
        %v663 = vpop.f32.mrb[0].mxu0
        %v664 = vadd.f32 0.0, %v663
        %v665 = vpop.f32.mrb[0].mxu0
        %666 = vmatprep.mubr.f32.mxu0 0.0
        %667 = vmatmul.mubr.f32.gmra.mrb[0].mxu0 %v459
        %v668 = vpop.f32.mrb[0].mxu0
        %v669 = vadd.f32 0.0, %v668
        %v670 = vpop.f32.mrb[0].mxu0
        %671 = vmatprep.mubr.f32.mxu0 0.0
        %672 = vmatmul.mubr.f32.gmra.mrb[0].mxu0 %v462
        %v673 = vpop.f32.mrb[0].mxu0
        %v674 = vadd.f32 0.0, %v673
        %v675 = vpop.f32.mrb[0].mxu0
        %676 = vmatprep.mubr.f32.mxu0 0.0
        %677 = vmatmul.mubr.f32.gmra.mrb[0].mxu0 %v465
        %v678 = vpop.f32.mrb[0].mxu0
        %v679 = vadd.f32 0.0, %v678
        %v680 = vpop.f32.mrb[0].mxu0
        %681 = vmatprep.mubr.f32.mxu0 0.0
        %682 = vmatmul.mubr.f32.gmra.mrb[0].mxu0 %v468
        %v683 = vpop.f32.mrb[0].mxu0
        %v684 = vadd.f32 0.0, %v683
        %v685 = vpop.f32.mrb[0].mxu0
        %686 = vmatprep.mubr.f32.mxu0 0.0
        %687 = vmatmul.mubr.f32.gmra.mrb[0].mxu0 %v471
        %v688 = vpop.f32.mrb[0].mxu0
        %v689 = vadd.f32 0.0, %v688
        %v690 = vpop.f32.mrb[0].mxu0
        %691 = vmatprep.mubr.f32.mxu0 0.0
        %692 = vmatmul.mubr.f32.gmra.mrb[0].mxu0 %v474
        %v693 = vpop.f32.mrb[0].mxu0
        %v694 = vadd.f32 0.0, %v693
        %v695 = vpop.f32.mrb[0].mxu0
        %696 = vmatprep.mubr.f32.mxu0 0.0
        %697 = vmatmul.mubr.f32.gmra.mrb[0].mxu0 %v477
        %v698 = vpop.f32.mrb[0].mxu0
        %v699 = vadd.f32 0.0, %v698
        %v700 = vpop.f32.mrb[0].mxu0
        %701 = vmatprep.mubr.f32.mxu0 0.0
        %702 = vmatmul.mubr.f32.gmra.mrb[0].mxu0 %v480
        %v703 = vpop.f32.mrb[0].mxu0
        %v704 = vadd.f32 0.0, %v703
        %v705 = vpop.f32.mrb[0].mxu0
        %706 = vmatprep.mubr.f32.mxu0 0.0
        %707 = vmatmul.mubr.f32.gmra.mrb[0].mxu0 %v483
        %v708 = vpop.f32.mrb[0].mxu0
        %v709 = vadd.f32 0.0, %v708
        %v710 = vpop.f32.mrb[0].mxu0
        %711 = vmatprep.mubr.f32.mxu0 0.0
        %712 = vmatmul.mubr.f32.gmra.mrb[0].mxu0 %v486
        %v713 = vpop.f32.mrb[0].mxu0
        %v714 = vadd.f32 0.0, %v713
        %v715 = vpop.f32.mrb[0].mxu0
        %716 = vdwg.mxu0
        %v717 = vld [vmem:[%s2] sm:$0x1]
        %v719 = vlaneseq
        %v720 = vshrl.u32 %v719, 7
        %v721 = vsub.s32 0, %v720
        %v722 = vrot.slane %v717, %v721
        %v724 = vadd.f32 %v559, %v722
        %v725 = vadd.f32 %v564, %v722
        %v726 = vadd.f32 %v569, %v722
        %v727 = vadd.f32 %v574, %v722
        %v728 = vadd.f32 %v579, %v722
        %v729 = vadd.f32 %v584, %v722
        %v730 = vadd.f32 %v589, %v722
        %v731 = vadd.f32 %v594, %v722
        %v732 = vadd.f32 %v599, %v722
        %v733 = vadd.f32 %v604, %v722
        %v734 = vadd.f32 %v609, %v722
        %v735 = vadd.f32 %v614, %v722
        %v736 = vadd.f32 %v619, %v722
        %v737 = vadd.f32 %v624, %v722
        %v738 = vadd.f32 %v629, %v722
        %v739 = vadd.f32 %v634, %v722
        %v740 = vadd.f32 %v639, %v722
        %v741 = vadd.f32 %v644, %v722
        %v742 = vadd.f32 %v649, %v722
        %v743 = vadd.f32 %v654, %v722
        %v744 = vadd.f32 %v659, %v722
        %v745 = vadd.f32 %v664, %v722
        %v746 = vadd.f32 %v669, %v722
        %v747 = vadd.f32 %v674, %v722
        %v748 = vadd.f32 %v679, %v722
        %v749 = vadd.f32 %v684, %v722
        %v750 = vadd.f32 %v689, %v722
        %v751 = vadd.f32 %v694, %v722
        %v752 = vadd.f32 %v699, %v722
        %v753 = vadd.f32 %v704, %v722
        %v754 = vadd.f32 %v709, %v722
        %v755 = vadd.f32 %v714, %v722
        %vm788 = vcmask 1041408
        %v789 = vrot.slane %v724, 6
        %v790 = vrot.slane %v725, 6
        %v791 = vsel %vm788, %v789, %v790
        %v792 = vrot.slane %v726, 6
        %v793 = vrot.slane %v727, 6
        %v794 = vsel %vm788, %v792, %v793
        %v795 = vrot.slane %v728, 6
        %v796 = vrot.slane %v729, 6
        %v797 = vsel %vm788, %v795, %v796
        %v798 = vrot.slane %v730, 6
        %v799 = vrot.slane %v731, 6
        %v800 = vsel %vm788, %v798, %v799
        %v801 = vrot.slane %v732, 6
        %v802 = vrot.slane %v733, 6
        %v803 = vsel %vm788, %v801, %v802
        %v804 = vrot.slane %v734, 6
        %v805 = vrot.slane %v735, 6
        %v806 = vsel %vm788, %v804, %v805
        %v807 = vrot.slane %v736, 6
        %v808 = vrot.slane %v737, 6
        %v809 = vsel %vm788, %v807, %v808
        %v810 = vrot.slane %v738, 6
        %v811 = vrot.slane %v739, 6
        %v812 = vsel %vm788, %v810, %v811
        %v813 = vrot.slane %v740, 6
        %v814 = vrot.slane %v741, 6
        %v815 = vsel %vm788, %v813, %v814
        %v816 = vrot.slane %v742, 6
        %v817 = vrot.slane %v743, 6
        %v818 = vsel %vm788, %v816, %v817
        %v819 = vrot.slane %v744, 6
        %v820 = vrot.slane %v745, 6
        %v821 = vsel %vm788, %v819, %v820
        %v822 = vrot.slane %v746, 6
        %v823 = vrot.slane %v747, 6
        %v824 = vsel %vm788, %v822, %v823
        %v825 = vrot.slane %v748, 6
        %v826 = vrot.slane %v749, 6
        %v827 = vsel %vm788, %v825, %v826
        %v828 = vrot.slane %v750, 6
        %v829 = vrot.slane %v751, 6
        %v830 = vsel %vm788, %v828, %v829
        %v831 = vrot.slane %v752, 6
        %v832 = vrot.slane %v753, 6
        %v833 = vsel %vm788, %v831, %v832
        %v834 = vrot.slane %v754, 6
        %v835 = vrot.slane %v755, 6
        %v836 = vsel %vm788, %v834, %v835
        %837 = vrot.lane.b32.xlu0 %v789, 112
        %v838 = vpop.permute.xlu0 %837
        %839 = vrot.lane.b32.xlu0 %v791, 112
        %v840 = vpop.permute.xlu0 %839
        %841 = vrot.lane.b32.xlu0 %v790, 112
        %v842 = vpop.permute.xlu0 %841
        %843 = vrot.lane.b32.xlu0 %v792, 112
        %v844 = vpop.permute.xlu0 %843
        %845 = vrot.lane.b32.xlu0 %v794, 112
        %v846 = vpop.permute.xlu0 %845
        %847 = vrot.lane.b32.xlu0 %v793, 112
        %v848 = vpop.permute.xlu0 %847
        %849 = vrot.lane.b32.xlu0 %v795, 112
        %v850 = vpop.permute.xlu0 %849
        %851 = vrot.lane.b32.xlu0 %v797, 112
        %v852 = vpop.permute.xlu0 %851
        %853 = vrot.lane.b32.xlu0 %v796, 112
        %v854 = vpop.permute.xlu0 %853
        %855 = vrot.lane.b32.xlu0 %v798, 112
        %v856 = vpop.permute.xlu0 %855
        %857 = vrot.lane.b32.xlu0 %v800, 112
        %v858 = vpop.permute.xlu0 %857
        %859 = vrot.lane.b32.xlu0 %v799, 112
        %v860 = vpop.permute.xlu0 %859
        %861 = vrot.lane.b32.xlu0 %v801, 112
        %v862 = vpop.permute.xlu0 %861
        %863 = vrot.lane.b32.xlu0 %v803, 112
        %v864 = vpop.permute.xlu0 %863
        %865 = vrot.lane.b32.xlu0 %v802, 112
        %v866 = vpop.permute.xlu0 %865
        %867 = vrot.lane.b32.xlu0 %v804, 112
        %v868 = vpop.permute.xlu0 %867
        %869 = vrot.lane.b32.xlu0 %v806, 112
        %v870 = vpop.permute.xlu0 %869
        %871 = vrot.lane.b32.xlu0 %v805, 112
        %v872 = vpop.permute.xlu0 %871
        %873 = vrot.lane.b32.xlu0 %v807, 112
        %v874 = vpop.permute.xlu0 %873
        %875 = vrot.lane.b32.xlu0 %v809, 112
        %v876 = vpop.permute.xlu0 %875
        %877 = vrot.lane.b32.xlu0 %v808, 112
        %v878 = vpop.permute.xlu0 %877
        %879 = vrot.lane.b32.xlu0 %v810, 112
        %v880 = vpop.permute.xlu0 %879
        %881 = vrot.lane.b32.xlu0 %v812, 112
        %v882 = vpop.permute.xlu0 %881
        %883 = vrot.lane.b32.xlu0 %v811, 112
        %v884 = vpop.permute.xlu0 %883
        %885 = vrot.lane.b32.xlu0 %v813, 112
        %v886 = vpop.permute.xlu0 %885
        %887 = vrot.lane.b32.xlu0 %v815, 112
        %v888 = vpop.permute.xlu0 %887
        %889 = vrot.lane.b32.xlu0 %v814, 112
        %v890 = vpop.permute.xlu0 %889
        %891 = vrot.lane.b32.xlu0 %v816, 112
        %v892 = vpop.permute.xlu0 %891
        %893 = vrot.lane.b32.xlu0 %v818, 112
        %v894 = vpop.permute.xlu0 %893
        %895 = vrot.lane.b32.xlu0 %v817, 112
        %v896 = vpop.permute.xlu0 %895
        %897 = vrot.lane.b32.xlu0 %v819, 112
        %v898 = vpop.permute.xlu0 %897
        %899 = vrot.lane.b32.xlu0 %v821, 112
        %v900 = vpop.permute.xlu0 %899
        %901 = vrot.lane.b32.xlu0 %v820, 112
        %v902 = vpop.permute.xlu0 %901
        %903 = vrot.lane.b32.xlu0 %v822, 112
        %v904 = vpop.permute.xlu0 %903
        %905 = vrot.lane.b32.xlu0 %v824, 112
        %v906 = vpop.permute.xlu0 %905
        %907 = vrot.lane.b32.xlu0 %v823, 112
        %v908 = vpop.permute.xlu0 %907
        %909 = vrot.lane.b32.xlu0 %v825, 112
        %v910 = vpop.permute.xlu0 %909
        %911 = vrot.lane.b32.xlu0 %v827, 112
        %v912 = vpop.permute.xlu0 %911
        %913 = vrot.lane.b32.xlu0 %v826, 112
        %v914 = vpop.permute.xlu0 %913
        %915 = vrot.lane.b32.xlu0 %v828, 112
        %v916 = vpop.permute.xlu0 %915
        %917 = vrot.lane.b32.xlu0 %v830, 112
        %v918 = vpop.permute.xlu0 %917
        %919 = vrot.lane.b32.xlu0 %v829, 112
        %v920 = vpop.permute.xlu0 %919
        %921 = vrot.lane.b32.xlu0 %v831, 112
        %v922 = vpop.permute.xlu0 %921
        %923 = vrot.lane.b32.xlu0 %v833, 112
        %v924 = vpop.permute.xlu0 %923
        %925 = vrot.lane.b32.xlu0 %v832, 112
        %v926 = vpop.permute.xlu0 %925
        %927 = vrot.lane.b32.xlu0 %v834, 112
        %v928 = vpop.permute.xlu0 %927
        %929 = vrot.lane.b32.xlu0 %v836, 112
        %v930 = vpop.permute.xlu0 %929
        %931 = vrot.lane.b32.xlu0 %v835, 112
        %v932 = vpop.permute.xlu0 %931
        %v979 = vsel %vm788, 0.0, %v838
        %v980 = vsel %vm788, 0.0, %v844
        %v981 = vsel %vm788, 0.0, %v850
        %v982 = vsel %vm788, 0.0, %v856
        %v983 = vsel %vm788, 0.0, %v862
        %v984 = vsel %vm788, 0.0, %v868
        %v985 = vsel %vm788, 0.0, %v874
        %v986 = vsel %vm788, 0.0, %v880
        %v987 = vsel %vm788, 0.0, %v886
        %v988 = vsel %vm788, 0.0, %v892
        %v989 = vsel %vm788, 0.0, %v898
        %v990 = vsel %vm788, 0.0, %v904
        %v991 = vsel %vm788, 0.0, %v910
        %v992 = vsel %vm788, 0.0, %v916
        %v993 = vsel %vm788, 0.0, %v922
        %v994 = vsel %vm788, 0.0, %v928
        %v995 = vsel %vm788, %v842, 0.0
        %v996 = vsel %vm788, %v848, 0.0
        %v997 = vsel %vm788, %v854, 0.0
        %v998 = vsel %vm788, %v860, 0.0
        %v999 = vsel %vm788, %v866, 0.0
        %v1000 = vsel %vm788, %v872, 0.0
        %v1001 = vsel %vm788, %v878, 0.0
        %v1002 = vsel %vm788, %v884, 0.0
        %v1003 = vsel %vm788, %v890, 0.0
        %v1004 = vsel %vm788, %v896, 0.0
        %v1005 = vsel %vm788, %v902, 0.0
        %v1006 = vsel %vm788, %v908, 0.0
        %v1007 = vsel %vm788, %v914, 0.0
        %v1008 = vsel %vm788, %v920, 0.0
        %v1009 = vsel %vm788, %v926, 0.0
        %v1010 = vsel %vm788, %v932, 0.0
        %vm1040 = vcmask 1046528
        %v1041 = vrot.slane 0.0, 1
        %v1042 = vsel %vm1040, %v1041, %v1041
        %v1043 = vrot.slane %v979, 1
        %v1044 = vrot.slane %v840, 1
        %v1045 = vsel %vm1040, %v1043, %v1044
        %v1046 = vrot.slane %v995, 1
        %v1047 = vsel %vm1040, %v1044, %v1046
        %v1048 = vrot.slane %v980, 1
        %v1049 = vrot.slane %v846, 1
        %v1050 = vsel %vm1040, %v1048, %v1049
        %v1051 = vrot.slane %v996, 1
        %v1052 = vsel %vm1040, %v1049, %v1051
        %v1053 = vrot.slane %v981, 1
        %v1054 = vrot.slane %v852, 1
        %v1055 = vsel %vm1040, %v1053, %v1054
        %v1056 = vrot.slane %v997, 1
        %v1057 = vsel %vm1040, %v1054, %v1056
        %v1058 = vrot.slane %v982, 1
        %v1059 = vrot.slane %v858, 1
        %v1060 = vsel %vm1040, %v1058, %v1059
        %v1061 = vrot.slane %v998, 1
        %v1062 = vsel %vm1040, %v1059, %v1061
        %v1063 = vrot.slane %v983, 1
        %v1064 = vrot.slane %v864, 1
        %v1065 = vsel %vm1040, %v1063, %v1064
        %v1066 = vrot.slane %v999, 1
        %v1067 = vsel %vm1040, %v1064, %v1066
        %v1068 = vrot.slane %v984, 1
        %v1069 = vrot.slane %v870, 1
        %v1070 = vsel %vm1040, %v1068, %v1069
        %v1071 = vrot.slane %v1000, 1
        %v1072 = vsel %vm1040, %v1069, %v1071
        %v1073 = vrot.slane %v985, 1
        %v1074 = vrot.slane %v876, 1
        %v1075 = vsel %vm1040, %v1073, %v1074
        %v1076 = vrot.slane %v1001, 1
        %v1077 = vsel %vm1040, %v1074, %v1076
        %v1078 = vrot.slane %v986, 1
        %v1079 = vrot.slane %v882, 1
        %v1080 = vsel %vm1040, %v1078, %v1079
        %v1081 = vrot.slane %v1002, 1
        %v1082 = vsel %vm1040, %v1079, %v1081
        %v1083 = vrot.slane %v987, 1
        %v1084 = vrot.slane %v888, 1
        %v1085 = vsel %vm1040, %v1083, %v1084
        %v1086 = vrot.slane %v1003, 1
        %v1087 = vsel %vm1040, %v1084, %v1086
        %v1088 = vrot.slane %v988, 1
        %v1089 = vrot.slane %v894, 1
        %v1090 = vsel %vm1040, %v1088, %v1089
        %v1091 = vrot.slane %v1004, 1
        %v1092 = vsel %vm1040, %v1089, %v1091
        %v1093 = vrot.slane %v989, 1
        %v1094 = vrot.slane %v900, 1
        %v1095 = vsel %vm1040, %v1093, %v1094
        %v1096 = vrot.slane %v1005, 1
        %v1097 = vsel %vm1040, %v1094, %v1096
        %v1098 = vrot.slane %v990, 1
        %v1099 = vrot.slane %v906, 1
        %v1100 = vsel %vm1040, %v1098, %v1099
        %v1101 = vrot.slane %v1006, 1
        %v1102 = vsel %vm1040, %v1099, %v1101
        %v1103 = vrot.slane %v991, 1
        %v1104 = vrot.slane %v912, 1
        %v1105 = vsel %vm1040, %v1103, %v1104
        %v1106 = vrot.slane %v1007, 1
        %v1107 = vsel %vm1040, %v1104, %v1106
        %v1108 = vrot.slane %v992, 1
        %v1109 = vrot.slane %v918, 1
        %v1110 = vsel %vm1040, %v1108, %v1109
        %v1111 = vrot.slane %v1008, 1
        %v1112 = vsel %vm1040, %v1109, %v1111
        %vm1113 = vcmask 1045504
        %v1114 = vrot.slane 0.0, 2
        %v1115 = vsel %vm1113, %v1114, %v1114
        %v1116 = vrot.slane %v979, 2
        %v1117 = vrot.slane %v840, 2
        %v1118 = vsel %vm1113, %v1116, %v1117
        %v1119 = vrot.slane %v995, 2
        %v1120 = vsel %vm1113, %v1117, %v1119
        %v1121 = vrot.slane %v980, 2
        %v1122 = vrot.slane %v846, 2
        %v1123 = vsel %vm1113, %v1121, %v1122
        %v1124 = vrot.slane %v996, 2
        %v1125 = vsel %vm1113, %v1122, %v1124
        %v1126 = vrot.slane %v981, 2
        %v1127 = vrot.slane %v852, 2
        %v1128 = vsel %vm1113, %v1126, %v1127
        %v1129 = vrot.slane %v997, 2
        %v1130 = vsel %vm1113, %v1127, %v1129
        %v1131 = vrot.slane %v982, 2
        %v1132 = vrot.slane %v858, 2
        %v1133 = vsel %vm1113, %v1131, %v1132
        %v1134 = vrot.slane %v998, 2
        %v1135 = vsel %vm1113, %v1132, %v1134
        %v1136 = vrot.slane %v983, 2
        %v1137 = vrot.slane %v864, 2
        %v1138 = vsel %vm1113, %v1136, %v1137
        %v1139 = vrot.slane %v999, 2
        %v1140 = vsel %vm1113, %v1137, %v1139
        %v1141 = vrot.slane %v984, 2
        %v1142 = vrot.slane %v870, 2
        %v1143 = vsel %vm1113, %v1141, %v1142
        %v1144 = vrot.slane %v1000, 2
        %v1145 = vsel %vm1113, %v1142, %v1144
        %v1146 = vrot.slane %v985, 2
        %v1147 = vrot.slane %v876, 2
        %v1148 = vsel %vm1113, %v1146, %v1147
        %v1149 = vrot.slane %v1001, 2
        %v1150 = vsel %vm1113, %v1147, %v1149
        %v1151 = vrot.slane %v986, 2
        %v1152 = vrot.slane %v882, 2
        %v1153 = vsel %vm1113, %v1151, %v1152
        %v1154 = vrot.slane %v1002, 2
        %v1155 = vsel %vm1113, %v1152, %v1154
        %v1156 = vrot.slane %v987, 2
        %v1157 = vrot.slane %v888, 2
        %v1158 = vsel %vm1113, %v1156, %v1157
        %v1159 = vrot.slane %v1003, 2
        %v1160 = vsel %vm1113, %v1157, %v1159
        %v1161 = vrot.slane %v988, 2
        %v1162 = vrot.slane %v894, 2
        %v1163 = vsel %vm1113, %v1161, %v1162
        %v1164 = vrot.slane %v1004, 2
        %v1165 = vsel %vm1113, %v1162, %v1164
        %v1166 = vrot.slane %v989, 2
        %v1167 = vrot.slane %v900, 2
        %v1168 = vsel %vm1113, %v1166, %v1167
        %v1169 = vrot.slane %v1005, 2
        %v1170 = vsel %vm1113, %v1167, %v1169
        %v1171 = vrot.slane %v990, 2
        %v1172 = vrot.slane %v906, 2
        %v1173 = vsel %vm1113, %v1171, %v1172
        %v1174 = vrot.slane %v1006, 2
        %v1175 = vsel %vm1113, %v1172, %v1174
        %v1176 = vrot.slane %v991, 2
        %v1177 = vrot.slane %v912, 2
        %v1178 = vsel %vm1113, %v1176, %v1177
        %v1179 = vrot.slane %v1007, 2
        %v1180 = vsel %vm1113, %v1177, %v1179
        %v1181 = vrot.slane %v992, 2
        %v1182 = vrot.slane %v918, 2
        %v1183 = vsel %vm1113, %v1181, %v1182
        %v1184 = vrot.slane %v1008, 2
        %v1185 = vsel %vm1113, %v1182, %v1184
        %vm1186 = vcmask 1044480
        %v1187 = vrot.slane 0.0, 3
        %v1188 = vsel %vm1186, %v1187, %v1187
        %v1189 = vrot.slane %v979, 3
        %v1190 = vrot.slane %v840, 3
        %v1191 = vsel %vm1186, %v1189, %v1190
        %v1192 = vrot.slane %v995, 3
        %v1193 = vsel %vm1186, %v1190, %v1192
        %v1194 = vrot.slane %v980, 3
        %v1195 = vrot.slane %v846, 3
        %v1196 = vsel %vm1186, %v1194, %v1195
        %v1197 = vrot.slane %v996, 3
        %v1198 = vsel %vm1186, %v1195, %v1197
        %v1199 = vrot.slane %v981, 3
        %v1200 = vrot.slane %v852, 3
        %v1201 = vsel %vm1186, %v1199, %v1200
        %v1202 = vrot.slane %v997, 3
        %v1203 = vsel %vm1186, %v1200, %v1202
        %v1204 = vrot.slane %v982, 3
        %v1205 = vrot.slane %v858, 3
        %v1206 = vsel %vm1186, %v1204, %v1205
        %v1207 = vrot.slane %v998, 3
        %v1208 = vsel %vm1186, %v1205, %v1207
        %v1209 = vrot.slane %v983, 3
        %v1210 = vrot.slane %v864, 3
        %v1211 = vsel %vm1186, %v1209, %v1210
        %v1212 = vrot.slane %v999, 3
        %v1213 = vsel %vm1186, %v1210, %v1212
        %v1214 = vrot.slane %v984, 3
        %v1215 = vrot.slane %v870, 3
        %v1216 = vsel %vm1186, %v1214, %v1215
        %v1217 = vrot.slane %v1000, 3
        %v1218 = vsel %vm1186, %v1215, %v1217
        %v1219 = vrot.slane %v985, 3
        %v1220 = vrot.slane %v876, 3
        %v1221 = vsel %vm1186, %v1219, %v1220
        %v1222 = vrot.slane %v1001, 3
        %v1223 = vsel %vm1186, %v1220, %v1222
        %v1224 = vrot.slane %v986, 3
        %v1225 = vrot.slane %v882, 3
        %v1226 = vsel %vm1186, %v1224, %v1225
        %v1227 = vrot.slane %v1002, 3
        %v1228 = vsel %vm1186, %v1225, %v1227
        %v1229 = vrot.slane %v987, 3
        %v1230 = vrot.slane %v888, 3
        %v1231 = vsel %vm1186, %v1229, %v1230
        %v1232 = vrot.slane %v1003, 3
        %v1233 = vsel %vm1186, %v1230, %v1232
        %v1234 = vrot.slane %v988, 3
        %v1235 = vrot.slane %v894, 3
        %v1236 = vsel %vm1186, %v1234, %v1235
        %v1237 = vrot.slane %v1004, 3
        %v1238 = vsel %vm1186, %v1235, %v1237
        %v1239 = vrot.slane %v989, 3
        %v1240 = vrot.slane %v900, 3
        %v1241 = vsel %vm1186, %v1239, %v1240
        %v1242 = vrot.slane %v1005, 3
        %v1243 = vsel %vm1186, %v1240, %v1242
        %v1244 = vrot.slane %v990, 3
        %v1245 = vrot.slane %v906, 3
        %v1246 = vsel %vm1186, %v1244, %v1245
        %v1247 = vrot.slane %v1006, 3
        %v1248 = vsel %vm1186, %v1245, %v1247
        %v1249 = vrot.slane %v991, 3
        %v1250 = vrot.slane %v912, 3
        %v1251 = vsel %vm1186, %v1249, %v1250
        %v1252 = vrot.slane %v1007, 3
        %v1253 = vsel %vm1186, %v1250, %v1252
        %v1254 = vrot.slane %v992, 3
        %v1255 = vrot.slane %v918, 3
        %v1256 = vsel %vm1186, %v1254, %v1255
        %v1257 = vrot.slane %v1008, 3
        %v1258 = vsel %vm1186, %v1255, %v1257
        %v1259 = vrot.slane 0.0, 4
        %v1260 = vsel %vm488, %v1259, %v1259
        %v1261 = vrot.slane %v979, 4
        %v1262 = vrot.slane %v840, 4
        %v1263 = vsel %vm488, %v1261, %v1262
        %v1264 = vrot.slane %v995, 4
        %v1265 = vsel %vm488, %v1262, %v1264
        %v1266 = vrot.slane %v980, 4
        %v1267 = vrot.slane %v846, 4
        %v1268 = vsel %vm488, %v1266, %v1267
        %v1269 = vrot.slane %v996, 4
        %v1270 = vsel %vm488, %v1267, %v1269
        %v1271 = vrot.slane %v981, 4
        %v1272 = vrot.slane %v852, 4
        %v1273 = vsel %vm488, %v1271, %v1272
        %v1274 = vrot.slane %v997, 4
        %v1275 = vsel %vm488, %v1272, %v1274
        %v1276 = vrot.slane %v982, 4
        %v1277 = vrot.slane %v858, 4
        %v1278 = vsel %vm488, %v1276, %v1277
        %v1279 = vrot.slane %v998, 4
        %v1280 = vsel %vm488, %v1277, %v1279
        %v1281 = vrot.slane %v983, 4
        %v1282 = vrot.slane %v864, 4
        %v1283 = vsel %vm488, %v1281, %v1282
        %v1284 = vrot.slane %v999, 4
        %v1285 = vsel %vm488, %v1282, %v1284
        %v1286 = vrot.slane %v984, 4
        %v1287 = vrot.slane %v870, 4
        %v1288 = vsel %vm488, %v1286, %v1287
        %v1289 = vrot.slane %v1000, 4
        %v1290 = vsel %vm488, %v1287, %v1289
        %v1291 = vrot.slane %v985, 4
        %v1292 = vrot.slane %v876, 4
        %v1293 = vsel %vm488, %v1291, %v1292
        %v1294 = vrot.slane %v1001, 4
        %v1295 = vsel %vm488, %v1292, %v1294
        %v1296 = vrot.slane %v986, 4
        %v1297 = vrot.slane %v882, 4
        %v1298 = vsel %vm488, %v1296, %v1297
        %v1299 = vrot.slane %v1002, 4
        %v1300 = vsel %vm488, %v1297, %v1299
        %v1301 = vrot.slane %v987, 4
        %v1302 = vrot.slane %v888, 4
        %v1303 = vsel %vm488, %v1301, %v1302
        %v1304 = vrot.slane %v1003, 4
        %v1305 = vsel %vm488, %v1302, %v1304
        %v1306 = vrot.slane %v988, 4
        %v1307 = vrot.slane %v894, 4
        %v1308 = vsel %vm488, %v1306, %v1307
        %v1309 = vrot.slane %v1004, 4
        %v1310 = vsel %vm488, %v1307, %v1309
        %v1311 = vrot.slane %v989, 4
        %v1312 = vrot.slane %v900, 4
        %v1313 = vsel %vm488, %v1311, %v1312
        %v1314 = vrot.slane %v1005, 4
        %v1315 = vsel %vm488, %v1312, %v1314
        %v1316 = vrot.slane %v990, 4
        %v1317 = vrot.slane %v906, 4
        %v1318 = vsel %vm488, %v1316, %v1317
        %v1319 = vrot.slane %v1006, 4
        %v1320 = vsel %vm488, %v1317, %v1319
        %v1321 = vrot.slane %v991, 4
        %v1322 = vrot.slane %v912, 4
        %v1323 = vsel %vm488, %v1321, %v1322
        %v1324 = vrot.slane %v1007, 4
        %v1325 = vsel %vm488, %v1322, %v1324
        %v1326 = vrot.slane %v992, 4
        %v1327 = vrot.slane %v918, 4
        %v1328 = vsel %vm488, %v1326, %v1327
        %v1329 = vrot.slane %v1008, 4
        %v1330 = vsel %vm488, %v1327, %v1329
        %v1333 = vrot.slane %v993, 1
        %v1334 = vrot.slane %v924, 1
        %v1335 = vsel %vm1040, %v1333, %v1334
        %v1336 = vrot.slane %v1009, 1
        %v1337 = vsel %vm1040, %v1334, %v1336
        %v1338 = vrot.slane %v993, 2
        %v1339 = vrot.slane %v924, 2
        %v1340 = vsel %vm1113, %v1338, %v1339
        %v1341 = vrot.slane %v1009, 2
        %v1342 = vsel %vm1113, %v1339, %v1341
        %v1343 = vrot.slane %v993, 3
        %v1344 = vrot.slane %v924, 3
        %v1345 = vsel %vm1186, %v1343, %v1344
        %v1346 = vrot.slane %v1009, 3
        %v1347 = vsel %vm1186, %v1344, %v1346
        %v1379 = vrot.slane %v993, 4
        %v1380 = vrot.slane %v924, 4
        %v1381 = vsel %vm488, %v1379, %v1380
        %v1382 = vrot.slane %v1009, 4
        %v1383 = vsel %vm488, %v1380, %v1382
        %v1386 = vrot.slane %v994, 1
        %v1387 = vrot.slane %v930, 1
        %v1388 = vsel %vm1040, %v1386, %v1387
        %v1389 = vrot.slane %v1010, 1
        %v1390 = vsel %vm1040, %v1387, %v1389
        %v1391 = vrot.slane %v994, 2
        %v1392 = vrot.slane %v930, 2
        %v1393 = vsel %vm1113, %v1391, %v1392
        %v1394 = vrot.slane %v1010, 2
        %v1395 = vsel %vm1113, %v1392, %v1394
        %v1396 = vrot.slane %v994, 3
        %v1397 = vrot.slane %v930, 3
        %v1398 = vsel %vm1186, %v1396, %v1397
        %v1399 = vrot.slane %v1010, 3
        %v1400 = vsel %vm1186, %v1397, %v1399
        %v1401 = vrot.slane %v994, 4
        %v1402 = vrot.slane %v930, 4
        %v1403 = vsel %vm488, %v1401, %v1402
        %v1404 = vrot.slane %v1010, 4
        %v1405 = vsel %vm488, %v1402, %v1404
        %1437 = vrot.lane.b32.xlu0 %v1042, 16
        %v1438 = vpop.permute.xlu0 %1437
        %1439 = vrot.lane.b32.xlu0 %v1045, 16
        %v1440 = vpop.permute.xlu0 %1439
        %1441 = vrot.lane.b32.xlu0 %v1047, 16
        %v1442 = vpop.permute.xlu0 %1441
        %1443 = vrot.lane.b32.xlu0 %v1050, 16
        %v1444 = vpop.permute.xlu0 %1443
        %1445 = vrot.lane.b32.xlu0 %v1052, 16
        %v1446 = vpop.permute.xlu0 %1445
        %1447 = vrot.lane.b32.xlu0 %v1055, 16
        %v1448 = vpop.permute.xlu0 %1447
        %1449 = vrot.lane.b32.xlu0 %v1057, 16
        %v1450 = vpop.permute.xlu0 %1449
        %1451 = vrot.lane.b32.xlu0 %v1060, 16
        %v1452 = vpop.permute.xlu0 %1451
        %1453 = vrot.lane.b32.xlu0 %v1062, 16
        %v1454 = vpop.permute.xlu0 %1453
        %1455 = vrot.lane.b32.xlu0 %v1065, 16
        %v1456 = vpop.permute.xlu0 %1455
        %1457 = vrot.lane.b32.xlu0 %v1067, 16
        %v1458 = vpop.permute.xlu0 %1457
        %1459 = vrot.lane.b32.xlu0 %v1070, 16
        %v1460 = vpop.permute.xlu0 %1459
        %1461 = vrot.lane.b32.xlu0 %v1072, 16
        %v1462 = vpop.permute.xlu0 %1461
        %1463 = vrot.lane.b32.xlu0 %v1075, 16
        %v1464 = vpop.permute.xlu0 %1463
        %1465 = vrot.lane.b32.xlu0 %v1077, 16
        %v1466 = vpop.permute.xlu0 %1465
        %1467 = vrot.lane.b32.xlu0 %v1080, 16
        %v1468 = vpop.permute.xlu0 %1467
        %1469 = vrot.lane.b32.xlu0 %v1082, 16
        %v1470 = vpop.permute.xlu0 %1469
        %1471 = vrot.lane.b32.xlu0 %v1085, 16
        %v1472 = vpop.permute.xlu0 %1471
        %1473 = vrot.lane.b32.xlu0 %v1087, 16
        %v1474 = vpop.permute.xlu0 %1473
        %1475 = vrot.lane.b32.xlu0 %v1090, 16
        %v1476 = vpop.permute.xlu0 %1475
        %1477 = vrot.lane.b32.xlu0 %v1092, 16
        %v1478 = vpop.permute.xlu0 %1477
        %1479 = vrot.lane.b32.xlu0 %v1095, 16
        %v1480 = vpop.permute.xlu0 %1479
        %1481 = vrot.lane.b32.xlu0 %v1097, 16
        %v1482 = vpop.permute.xlu0 %1481
        %1483 = vrot.lane.b32.xlu0 %v1100, 16
        %v1484 = vpop.permute.xlu0 %1483
        %1485 = vrot.lane.b32.xlu0 %v1102, 16
        %v1486 = vpop.permute.xlu0 %1485
        %1487 = vrot.lane.b32.xlu0 %v1105, 16
        %v1488 = vpop.permute.xlu0 %1487
        %1489 = vrot.lane.b32.xlu0 %v1107, 16
        %v1490 = vpop.permute.xlu0 %1489
        %1491 = vrot.lane.b32.xlu0 %v1110, 16
        %v1492 = vpop.permute.xlu0 %1491
        %1493 = vrot.lane.b32.xlu0 %v1112, 16
        %v1494 = vpop.permute.xlu0 %1493
        %1524 = vrot.lane.b32.xlu0 %v1115, 32
        %v1525 = vpop.permute.xlu0 %1524
        %1526 = vrot.lane.b32.xlu0 %v1118, 32
        %v1527 = vpop.permute.xlu0 %1526
        %1528 = vrot.lane.b32.xlu0 %v1120, 32
        %v1529 = vpop.permute.xlu0 %1528
        %1530 = vrot.lane.b32.xlu0 %v1123, 32
        %v1531 = vpop.permute.xlu0 %1530
        %1532 = vrot.lane.b32.xlu0 %v1125, 32
        %v1533 = vpop.permute.xlu0 %1532
        %1534 = vrot.lane.b32.xlu0 %v1128, 32
        %v1535 = vpop.permute.xlu0 %1534
        %1536 = vrot.lane.b32.xlu0 %v1130, 32
        %v1537 = vpop.permute.xlu0 %1536
        %1538 = vrot.lane.b32.xlu0 %v1133, 32
        %v1539 = vpop.permute.xlu0 %1538
        %1540 = vrot.lane.b32.xlu0 %v1135, 32
        %v1541 = vpop.permute.xlu0 %1540
        %1542 = vrot.lane.b32.xlu0 %v1138, 32
        %v1543 = vpop.permute.xlu0 %1542
        %1544 = vrot.lane.b32.xlu0 %v1140, 32
        %v1545 = vpop.permute.xlu0 %1544
        %1546 = vrot.lane.b32.xlu0 %v1143, 32
        %v1547 = vpop.permute.xlu0 %1546
        %1548 = vrot.lane.b32.xlu0 %v1145, 32
        %v1549 = vpop.permute.xlu0 %1548
        %1550 = vrot.lane.b32.xlu0 %v1148, 32
        %v1551 = vpop.permute.xlu0 %1550
        %1552 = vrot.lane.b32.xlu0 %v1150, 32
        %v1553 = vpop.permute.xlu0 %1552
        %1554 = vrot.lane.b32.xlu0 %v1153, 32
        %v1555 = vpop.permute.xlu0 %1554
        %1556 = vrot.lane.b32.xlu0 %v1155, 32
        %v1557 = vpop.permute.xlu0 %1556
        %1558 = vrot.lane.b32.xlu0 %v1158, 32
        %v1559 = vpop.permute.xlu0 %1558
        %1560 = vrot.lane.b32.xlu0 %v1160, 32
        %v1561 = vpop.permute.xlu0 %1560
        %1562 = vrot.lane.b32.xlu0 %v1163, 32
        %v1563 = vpop.permute.xlu0 %1562
        %1564 = vrot.lane.b32.xlu0 %v1165, 32
        %v1565 = vpop.permute.xlu0 %1564
        %1566 = vrot.lane.b32.xlu0 %v1168, 32
        %v1567 = vpop.permute.xlu0 %1566
        %1568 = vrot.lane.b32.xlu0 %v1170, 32
        %v1569 = vpop.permute.xlu0 %1568
        %1570 = vrot.lane.b32.xlu0 %v1173, 32
        %v1571 = vpop.permute.xlu0 %1570
        %1572 = vrot.lane.b32.xlu0 %v1175, 32
        %v1573 = vpop.permute.xlu0 %1572
        %1574 = vrot.lane.b32.xlu0 %v1178, 32
        %v1575 = vpop.permute.xlu0 %1574
        %1576 = vrot.lane.b32.xlu0 %v1180, 32
        %v1577 = vpop.permute.xlu0 %1576
        %1578 = vrot.lane.b32.xlu0 %v1183, 32
        %v1579 = vpop.permute.xlu0 %1578
        %1580 = vrot.lane.b32.xlu0 %v1185, 32
        %v1581 = vpop.permute.xlu0 %1580
        %1611 = vrot.lane.b32.xlu0 %v1188, 48
        %v1612 = vpop.permute.xlu0 %1611
        %1613 = vrot.lane.b32.xlu0 %v1191, 48
        %v1614 = vpop.permute.xlu0 %1613
        %1615 = vrot.lane.b32.xlu0 %v1193, 48
        %v1616 = vpop.permute.xlu0 %1615
        %1617 = vrot.lane.b32.xlu0 %v1196, 48
        %v1618 = vpop.permute.xlu0 %1617
        %1619 = vrot.lane.b32.xlu0 %v1198, 48
        %v1620 = vpop.permute.xlu0 %1619
        %1621 = vrot.lane.b32.xlu0 %v1201, 48
        %v1622 = vpop.permute.xlu0 %1621
        %1623 = vrot.lane.b32.xlu0 %v1203, 48
        %v1624 = vpop.permute.xlu0 %1623
        %1625 = vrot.lane.b32.xlu0 %v1206, 48
        %v1626 = vpop.permute.xlu0 %1625
        %1627 = vrot.lane.b32.xlu0 %v1208, 48
        %v1628 = vpop.permute.xlu0 %1627
        %1629 = vrot.lane.b32.xlu0 %v1211, 48
        %v1630 = vpop.permute.xlu0 %1629
        %1631 = vrot.lane.b32.xlu0 %v1213, 48
        %v1632 = vpop.permute.xlu0 %1631
        %1633 = vrot.lane.b32.xlu0 %v1216, 48
        %v1634 = vpop.permute.xlu0 %1633
        %1635 = vrot.lane.b32.xlu0 %v1218, 48
        %v1636 = vpop.permute.xlu0 %1635
        %1637 = vrot.lane.b32.xlu0 %v1221, 48
        %v1638 = vpop.permute.xlu0 %1637
        %1639 = vrot.lane.b32.xlu0 %v1223, 48
        %v1640 = vpop.permute.xlu0 %1639
        %1641 = vrot.lane.b32.xlu0 %v1226, 48
        %v1642 = vpop.permute.xlu0 %1641
        %1643 = vrot.lane.b32.xlu0 %v1228, 48
        %v1644 = vpop.permute.xlu0 %1643
        %1645 = vrot.lane.b32.xlu0 %v1231, 48
        %v1646 = vpop.permute.xlu0 %1645
        %1647 = vrot.lane.b32.xlu0 %v1233, 48
        %v1648 = vpop.permute.xlu0 %1647
        %1649 = vrot.lane.b32.xlu0 %v1236, 48
        %v1650 = vpop.permute.xlu0 %1649
        %1651 = vrot.lane.b32.xlu0 %v1238, 48
        %v1652 = vpop.permute.xlu0 %1651
        %1653 = vrot.lane.b32.xlu0 %v1241, 48
        %v1654 = vpop.permute.xlu0 %1653
        %1655 = vrot.lane.b32.xlu0 %v1243, 48
        %v1656 = vpop.permute.xlu0 %1655
        %1657 = vrot.lane.b32.xlu0 %v1246, 48
        %v1658 = vpop.permute.xlu0 %1657
        %1659 = vrot.lane.b32.xlu0 %v1248, 48
        %v1660 = vpop.permute.xlu0 %1659
        %1661 = vrot.lane.b32.xlu0 %v1251, 48
        %v1662 = vpop.permute.xlu0 %1661
        %1663 = vrot.lane.b32.xlu0 %v1253, 48
        %v1664 = vpop.permute.xlu0 %1663
        %1665 = vrot.lane.b32.xlu0 %v1256, 48
        %v1666 = vpop.permute.xlu0 %1665
        %1667 = vrot.lane.b32.xlu0 %v1258, 48
        %v1668 = vpop.permute.xlu0 %1667
        %1698 = vrot.lane.b32.xlu0 %v1260, 64
        %v1699 = vpop.permute.xlu0 %1698
        %1700 = vrot.lane.b32.xlu0 %v1263, 64
        %v1701 = vpop.permute.xlu0 %1700
        %1702 = vrot.lane.b32.xlu0 %v1265, 64
        %v1703 = vpop.permute.xlu0 %1702
        %1704 = vrot.lane.b32.xlu0 %v1268, 64
        %v1705 = vpop.permute.xlu0 %1704
        %1706 = vrot.lane.b32.xlu0 %v1270, 64
        %v1707 = vpop.permute.xlu0 %1706
        %1708 = vrot.lane.b32.xlu0 %v1273, 64
        %v1709 = vpop.permute.xlu0 %1708
        %1710 = vrot.lane.b32.xlu0 %v1275, 64
        %v1711 = vpop.permute.xlu0 %1710
        %1712 = vrot.lane.b32.xlu0 %v1278, 64
        %v1713 = vpop.permute.xlu0 %1712
        %1714 = vrot.lane.b32.xlu0 %v1280, 64
        %v1715 = vpop.permute.xlu0 %1714
        %1716 = vrot.lane.b32.xlu0 %v1283, 64
        %v1717 = vpop.permute.xlu0 %1716
        %1718 = vrot.lane.b32.xlu0 %v1285, 64
        %v1719 = vpop.permute.xlu0 %1718
        %1720 = vrot.lane.b32.xlu0 %v1288, 64
        %v1721 = vpop.permute.xlu0 %1720
        %1722 = vrot.lane.b32.xlu0 %v1290, 64
        %v1723 = vpop.permute.xlu0 %1722
        %1724 = vrot.lane.b32.xlu0 %v1293, 64
        %v1725 = vpop.permute.xlu0 %1724
        %1726 = vrot.lane.b32.xlu0 %v1295, 64
        %v1727 = vpop.permute.xlu0 %1726
        %1728 = vrot.lane.b32.xlu0 %v1298, 64
        %v1729 = vpop.permute.xlu0 %1728
        %1730 = vrot.lane.b32.xlu0 %v1300, 64
        %v1731 = vpop.permute.xlu0 %1730
        %1732 = vrot.lane.b32.xlu0 %v1303, 64
        %v1733 = vpop.permute.xlu0 %1732
        %1734 = vrot.lane.b32.xlu0 %v1305, 64
        %v1735 = vpop.permute.xlu0 %1734
        %1736 = vrot.lane.b32.xlu0 %v1308, 64
        %v1737 = vpop.permute.xlu0 %1736
        %1738 = vrot.lane.b32.xlu0 %v1310, 64
        %v1739 = vpop.permute.xlu0 %1738
        %1740 = vrot.lane.b32.xlu0 %v1313, 64
        %v1741 = vpop.permute.xlu0 %1740
        %1742 = vrot.lane.b32.xlu0 %v1315, 64
        %v1743 = vpop.permute.xlu0 %1742
        %1744 = vrot.lane.b32.xlu0 %v1318, 64
        %v1745 = vpop.permute.xlu0 %1744
        %1746 = vrot.lane.b32.xlu0 %v1320, 64
        %v1747 = vpop.permute.xlu0 %1746
        %1748 = vrot.lane.b32.xlu0 %v1323, 64
        %v1749 = vpop.permute.xlu0 %1748
        %1750 = vrot.lane.b32.xlu0 %v1325, 64
        %v1751 = vpop.permute.xlu0 %1750
        %1752 = vrot.lane.b32.xlu0 %v1328, 64
        %v1753 = vpop.permute.xlu0 %1752
        %1754 = vrot.lane.b32.xlu0 %v1330, 64
        %v1755 = vpop.permute.xlu0 %1754
        %1785 = vrot.lane.b32.xlu0 0.0, 80
        %v1786 = vpop.permute.xlu0 %1785
        %1787 = vrot.lane.b32.xlu0 %v979, 80
        %v1788 = vpop.permute.xlu0 %1787
        %1789 = vrot.lane.b32.xlu0 %v840, 80
        %v1790 = vpop.permute.xlu0 %1789
        %1791 = vrot.lane.b32.xlu0 %v980, 80
        %v1792 = vpop.permute.xlu0 %1791
        %1793 = vrot.lane.b32.xlu0 %v846, 80
        %v1794 = vpop.permute.xlu0 %1793
        %1795 = vrot.lane.b32.xlu0 %v981, 80
        %v1796 = vpop.permute.xlu0 %1795
        %1797 = vrot.lane.b32.xlu0 %v852, 80
        %v1798 = vpop.permute.xlu0 %1797
        %1799 = vrot.lane.b32.xlu0 %v982, 80
        %v1800 = vpop.permute.xlu0 %1799
        %1801 = vrot.lane.b32.xlu0 %v858, 80
        %v1802 = vpop.permute.xlu0 %1801
        %1803 = vrot.lane.b32.xlu0 %v983, 80
        %v1804 = vpop.permute.xlu0 %1803
        %1805 = vrot.lane.b32.xlu0 %v864, 80
        %v1806 = vpop.permute.xlu0 %1805
        %1807 = vrot.lane.b32.xlu0 %v984, 80
        %v1808 = vpop.permute.xlu0 %1807
        %1809 = vrot.lane.b32.xlu0 %v870, 80
        %v1810 = vpop.permute.xlu0 %1809
        %1811 = vrot.lane.b32.xlu0 %v985, 80
        %v1812 = vpop.permute.xlu0 %1811
        %1813 = vrot.lane.b32.xlu0 %v876, 80
        %v1814 = vpop.permute.xlu0 %1813
        %1815 = vrot.lane.b32.xlu0 %v986, 80
        %v1816 = vpop.permute.xlu0 %1815
        %1817 = vrot.lane.b32.xlu0 %v882, 80
        %v1818 = vpop.permute.xlu0 %1817
        %1819 = vrot.lane.b32.xlu0 %v987, 80
        %v1820 = vpop.permute.xlu0 %1819
        %1821 = vrot.lane.b32.xlu0 %v888, 80
        %v1822 = vpop.permute.xlu0 %1821
        %1823 = vrot.lane.b32.xlu0 %v988, 80
        %v1824 = vpop.permute.xlu0 %1823
        %1825 = vrot.lane.b32.xlu0 %v894, 80
        %v1826 = vpop.permute.xlu0 %1825
        %1827 = vrot.lane.b32.xlu0 %v989, 80
        %v1828 = vpop.permute.xlu0 %1827
        %1829 = vrot.lane.b32.xlu0 %v900, 80
        %v1830 = vpop.permute.xlu0 %1829
        %1831 = vrot.lane.b32.xlu0 %v990, 80
        %v1832 = vpop.permute.xlu0 %1831
        %1833 = vrot.lane.b32.xlu0 %v906, 80
        %v1834 = vpop.permute.xlu0 %1833
        %1835 = vrot.lane.b32.xlu0 %v991, 80
        %v1836 = vpop.permute.xlu0 %1835
        %1837 = vrot.lane.b32.xlu0 %v912, 80
        %v1838 = vpop.permute.xlu0 %1837
        %1839 = vrot.lane.b32.xlu0 %v992, 80
        %v1840 = vpop.permute.xlu0 %1839
        %1841 = vrot.lane.b32.xlu0 %v918, 80
        %v1842 = vpop.permute.xlu0 %1841
        %1843 = vrot.lane.b32.xlu0 %v993, 80
        %v1844 = vpop.permute.xlu0 %1843
        %1845 = vrot.lane.b32.xlu0 %v924, 80
        %v1846 = vpop.permute.xlu0 %1845
        %1878 = vrot.lane.b32.xlu0 %v1042, 96
        %v1879 = vpop.permute.xlu0 %1878
        %1880 = vrot.lane.b32.xlu0 %v1045, 96
        %v1881 = vpop.permute.xlu0 %1880
        %1882 = vrot.lane.b32.xlu0 %v1047, 96
        %v1883 = vpop.permute.xlu0 %1882
        %1884 = vrot.lane.b32.xlu0 %v1050, 96
        %v1885 = vpop.permute.xlu0 %1884
        %1886 = vrot.lane.b32.xlu0 %v1052, 96
        %v1887 = vpop.permute.xlu0 %1886
        %1888 = vrot.lane.b32.xlu0 %v1055, 96
        %v1889 = vpop.permute.xlu0 %1888
        %1890 = vrot.lane.b32.xlu0 %v1057, 96
        %v1891 = vpop.permute.xlu0 %1890
        %1892 = vrot.lane.b32.xlu0 %v1060, 96
        %v1893 = vpop.permute.xlu0 %1892
        %1894 = vrot.lane.b32.xlu0 %v1062, 96
        %v1895 = vpop.permute.xlu0 %1894
        %1896 = vrot.lane.b32.xlu0 %v1065, 96
        %v1897 = vpop.permute.xlu0 %1896
        %1898 = vrot.lane.b32.xlu0 %v1067, 96
        %v1899 = vpop.permute.xlu0 %1898
        %1900 = vrot.lane.b32.xlu0 %v1070, 96
        %v1901 = vpop.permute.xlu0 %1900
        %1902 = vrot.lane.b32.xlu0 %v1072, 96
        %v1903 = vpop.permute.xlu0 %1902
        %1904 = vrot.lane.b32.xlu0 %v1075, 96
        %v1905 = vpop.permute.xlu0 %1904
        %1906 = vrot.lane.b32.xlu0 %v1077, 96
        %v1907 = vpop.permute.xlu0 %1906
        %1908 = vrot.lane.b32.xlu0 %v1080, 96
        %v1909 = vpop.permute.xlu0 %1908
        %1910 = vrot.lane.b32.xlu0 %v1082, 96
        %v1911 = vpop.permute.xlu0 %1910
        %1912 = vrot.lane.b32.xlu0 %v1085, 96
        %v1913 = vpop.permute.xlu0 %1912
        %1914 = vrot.lane.b32.xlu0 %v1087, 96
        %v1915 = vpop.permute.xlu0 %1914
        %1916 = vrot.lane.b32.xlu0 %v1090, 96
        %v1917 = vpop.permute.xlu0 %1916
        %1918 = vrot.lane.b32.xlu0 %v1092, 96
        %v1919 = vpop.permute.xlu0 %1918
        %1920 = vrot.lane.b32.xlu0 %v1095, 96
        %v1921 = vpop.permute.xlu0 %1920
        %1922 = vrot.lane.b32.xlu0 %v1097, 96
        %v1923 = vpop.permute.xlu0 %1922
        %1924 = vrot.lane.b32.xlu0 %v1100, 96
        %v1925 = vpop.permute.xlu0 %1924
        %1926 = vrot.lane.b32.xlu0 %v1102, 96
        %v1927 = vpop.permute.xlu0 %1926
        %1928 = vrot.lane.b32.xlu0 %v1105, 96
        %v1929 = vpop.permute.xlu0 %1928
        %1930 = vrot.lane.b32.xlu0 %v1107, 96
        %v1931 = vpop.permute.xlu0 %1930
        %1932 = vrot.lane.b32.xlu0 %v1110, 96
        %v1933 = vpop.permute.xlu0 %1932
        %1934 = vrot.lane.b32.xlu0 %v1112, 96
        %v1935 = vpop.permute.xlu0 %1934
        %1936 = vrot.lane.b32.xlu0 %v1335, 96
        %v1937 = vpop.permute.xlu0 %1936
        %1938 = vrot.lane.b32.xlu0 %v1337, 96
        %v1939 = vpop.permute.xlu0 %1938
        %1971 = vrot.lane.b32.xlu0 %v1115, 112
        %v1972 = vpop.permute.xlu0 %1971
        %1973 = vrot.lane.b32.xlu0 %v1118, 112
        %v1974 = vpop.permute.xlu0 %1973
        %1975 = vrot.lane.b32.xlu0 %v1120, 112
        %v1976 = vpop.permute.xlu0 %1975
        %1977 = vrot.lane.b32.xlu0 %v1123, 112
        %v1978 = vpop.permute.xlu0 %1977
        %1979 = vrot.lane.b32.xlu0 %v1125, 112
        %v1980 = vpop.permute.xlu0 %1979
        %1981 = vrot.lane.b32.xlu0 %v1128, 112
        %v1982 = vpop.permute.xlu0 %1981
        %1983 = vrot.lane.b32.xlu0 %v1130, 112
        %v1984 = vpop.permute.xlu0 %1983
        %1985 = vrot.lane.b32.xlu0 %v1133, 112
        %v1986 = vpop.permute.xlu0 %1985
        %1987 = vrot.lane.b32.xlu0 %v1135, 112
        %v1988 = vpop.permute.xlu0 %1987
        %1989 = vrot.lane.b32.xlu0 %v1138, 112
        %v1990 = vpop.permute.xlu0 %1989
        %1991 = vrot.lane.b32.xlu0 %v1140, 112
        %v1992 = vpop.permute.xlu0 %1991
        %1993 = vrot.lane.b32.xlu0 %v1143, 112
        %v1994 = vpop.permute.xlu0 %1993
        %1995 = vrot.lane.b32.xlu0 %v1145, 112
        %v1996 = vpop.permute.xlu0 %1995
        %1997 = vrot.lane.b32.xlu0 %v1148, 112
        %v1998 = vpop.permute.xlu0 %1997
        %1999 = vrot.lane.b32.xlu0 %v1150, 112
        %v2000 = vpop.permute.xlu0 %1999
        %2001 = vrot.lane.b32.xlu0 %v1153, 112
        %v2002 = vpop.permute.xlu0 %2001
        %2003 = vrot.lane.b32.xlu0 %v1155, 112
        %v2004 = vpop.permute.xlu0 %2003
        %2005 = vrot.lane.b32.xlu0 %v1158, 112
        %v2006 = vpop.permute.xlu0 %2005
        %2007 = vrot.lane.b32.xlu0 %v1160, 112
        %v2008 = vpop.permute.xlu0 %2007
        %2009 = vrot.lane.b32.xlu0 %v1163, 112
        %v2010 = vpop.permute.xlu0 %2009
        %2011 = vrot.lane.b32.xlu0 %v1165, 112
        %v2012 = vpop.permute.xlu0 %2011
        %2013 = vrot.lane.b32.xlu0 %v1168, 112
        %v2014 = vpop.permute.xlu0 %2013
        %2015 = vrot.lane.b32.xlu0 %v1170, 112
        %v2016 = vpop.permute.xlu0 %2015
        %2017 = vrot.lane.b32.xlu0 %v1173, 112
        %v2018 = vpop.permute.xlu0 %2017
        %2019 = vrot.lane.b32.xlu0 %v1175, 112
        %v2020 = vpop.permute.xlu0 %2019
        %2021 = vrot.lane.b32.xlu0 %v1178, 112
        %v2022 = vpop.permute.xlu0 %2021
        %2023 = vrot.lane.b32.xlu0 %v1180, 112
        %v2024 = vpop.permute.xlu0 %2023
        %2025 = vrot.lane.b32.xlu0 %v1183, 112
        %v2026 = vpop.permute.xlu0 %2025
        %2027 = vrot.lane.b32.xlu0 %v1185, 112
        %v2028 = vpop.permute.xlu0 %2027
        %2029 = vrot.lane.b32.xlu0 %v1340, 112
        %v2030 = vpop.permute.xlu0 %2029
        %2031 = vrot.lane.b32.xlu0 %v1342, 112
        %v2032 = vpop.permute.xlu0 %2031
        %2064 = vrot.lane.b32.xlu0 %v1260, 16
        %v2065 = vpop.permute.xlu0 %2064
        %2066 = vrot.lane.b32.xlu0 %v1263, 16
        %v2067 = vpop.permute.xlu0 %2066
        %2068 = vrot.lane.b32.xlu0 %v1265, 16
        %v2069 = vpop.permute.xlu0 %2068
        %2070 = vrot.lane.b32.xlu0 %v1268, 16
        %v2071 = vpop.permute.xlu0 %2070
        %2072 = vrot.lane.b32.xlu0 %v1270, 16
        %v2073 = vpop.permute.xlu0 %2072
        %2074 = vrot.lane.b32.xlu0 %v1273, 16
        %v2075 = vpop.permute.xlu0 %2074
        %2076 = vrot.lane.b32.xlu0 %v1275, 16
        %v2077 = vpop.permute.xlu0 %2076
        %2078 = vrot.lane.b32.xlu0 %v1278, 16
        %v2079 = vpop.permute.xlu0 %2078
        %2080 = vrot.lane.b32.xlu0 %v1280, 16
        %v2081 = vpop.permute.xlu0 %2080
        %2082 = vrot.lane.b32.xlu0 %v1283, 16
        %v2083 = vpop.permute.xlu0 %2082
        %2084 = vrot.lane.b32.xlu0 %v1285, 16
        %v2085 = vpop.permute.xlu0 %2084
        %2086 = vrot.lane.b32.xlu0 %v1288, 16
        %v2087 = vpop.permute.xlu0 %2086
        %2088 = vrot.lane.b32.xlu0 %v1290, 16
        %v2089 = vpop.permute.xlu0 %2088
        %2090 = vrot.lane.b32.xlu0 %v1293, 16
        %v2091 = vpop.permute.xlu0 %2090
        %2092 = vrot.lane.b32.xlu0 %v1295, 16
        %v2093 = vpop.permute.xlu0 %2092
        %2094 = vrot.lane.b32.xlu0 %v1298, 16
        %v2095 = vpop.permute.xlu0 %2094
        %2096 = vrot.lane.b32.xlu0 %v1300, 16
        %v2097 = vpop.permute.xlu0 %2096
        %2098 = vrot.lane.b32.xlu0 %v1303, 16
        %v2099 = vpop.permute.xlu0 %2098
        %2100 = vrot.lane.b32.xlu0 %v1305, 16
        %v2101 = vpop.permute.xlu0 %2100
        %2102 = vrot.lane.b32.xlu0 %v1308, 16
        %v2103 = vpop.permute.xlu0 %2102
        %2104 = vrot.lane.b32.xlu0 %v1310, 16
        %v2105 = vpop.permute.xlu0 %2104
        %2106 = vrot.lane.b32.xlu0 %v1313, 16
        %v2107 = vpop.permute.xlu0 %2106
        %2108 = vrot.lane.b32.xlu0 %v1315, 16
        %v2109 = vpop.permute.xlu0 %2108
        %2110 = vrot.lane.b32.xlu0 %v1318, 16
        %v2111 = vpop.permute.xlu0 %2110
        %2112 = vrot.lane.b32.xlu0 %v1320, 16
        %v2113 = vpop.permute.xlu0 %2112
        %2114 = vrot.lane.b32.xlu0 %v1323, 16
        %v2115 = vpop.permute.xlu0 %2114
        %2116 = vrot.lane.b32.xlu0 %v1325, 16
        %v2117 = vpop.permute.xlu0 %2116
        %2118 = vrot.lane.b32.xlu0 %v1328, 16
        %v2119 = vpop.permute.xlu0 %2118
        %2120 = vrot.lane.b32.xlu0 %v1330, 16
        %v2121 = vpop.permute.xlu0 %2120
        %2122 = vrot.lane.b32.xlu0 %v1381, 16
        %v2123 = vpop.permute.xlu0 %2122
        %2124 = vrot.lane.b32.xlu0 %v1383, 16
        %v2125 = vpop.permute.xlu0 %2124
        %2157 = vrot.lane.b32.xlu0 %v979, 32
        %v2158 = vpop.permute.xlu0 %2157
        %2159 = vrot.lane.b32.xlu0 %v840, 32
        %v2160 = vpop.permute.xlu0 %2159
        %2161 = vrot.lane.b32.xlu0 %v980, 32
        %v2162 = vpop.permute.xlu0 %2161
        %2163 = vrot.lane.b32.xlu0 %v846, 32
        %v2164 = vpop.permute.xlu0 %2163
        %2165 = vrot.lane.b32.xlu0 %v981, 32
        %v2166 = vpop.permute.xlu0 %2165
        %2167 = vrot.lane.b32.xlu0 %v852, 32
        %v2168 = vpop.permute.xlu0 %2167
        %2169 = vrot.lane.b32.xlu0 %v982, 32
        %v2170 = vpop.permute.xlu0 %2169
        %2171 = vrot.lane.b32.xlu0 %v858, 32
        %v2172 = vpop.permute.xlu0 %2171
        %2173 = vrot.lane.b32.xlu0 %v983, 32
        %v2174 = vpop.permute.xlu0 %2173
        %2175 = vrot.lane.b32.xlu0 %v864, 32
        %v2176 = vpop.permute.xlu0 %2175
        %2177 = vrot.lane.b32.xlu0 %v984, 32
        %v2178 = vpop.permute.xlu0 %2177
        %2179 = vrot.lane.b32.xlu0 %v870, 32
        %v2180 = vpop.permute.xlu0 %2179
        %2181 = vrot.lane.b32.xlu0 %v985, 32
        %v2182 = vpop.permute.xlu0 %2181
        %2183 = vrot.lane.b32.xlu0 %v876, 32
        %v2184 = vpop.permute.xlu0 %2183
        %2185 = vrot.lane.b32.xlu0 %v986, 32
        %v2186 = vpop.permute.xlu0 %2185
        %2187 = vrot.lane.b32.xlu0 %v882, 32
        %v2188 = vpop.permute.xlu0 %2187
        %2189 = vrot.lane.b32.xlu0 %v987, 32
        %v2190 = vpop.permute.xlu0 %2189
        %2191 = vrot.lane.b32.xlu0 %v888, 32
        %v2192 = vpop.permute.xlu0 %2191
        %2193 = vrot.lane.b32.xlu0 %v988, 32
        %v2194 = vpop.permute.xlu0 %2193
        %2195 = vrot.lane.b32.xlu0 %v894, 32
        %v2196 = vpop.permute.xlu0 %2195
        %2197 = vrot.lane.b32.xlu0 %v989, 32
        %v2198 = vpop.permute.xlu0 %2197
        %2199 = vrot.lane.b32.xlu0 %v900, 32
        %v2200 = vpop.permute.xlu0 %2199
        %2201 = vrot.lane.b32.xlu0 %v990, 32
        %v2202 = vpop.permute.xlu0 %2201
        %2203 = vrot.lane.b32.xlu0 %v906, 32
        %v2204 = vpop.permute.xlu0 %2203
        %2205 = vrot.lane.b32.xlu0 %v991, 32
        %v2206 = vpop.permute.xlu0 %2205
        %2207 = vrot.lane.b32.xlu0 %v912, 32
        %v2208 = vpop.permute.xlu0 %2207
        %2209 = vrot.lane.b32.xlu0 %v992, 32
        %v2210 = vpop.permute.xlu0 %2209
        %2211 = vrot.lane.b32.xlu0 %v918, 32
        %v2212 = vpop.permute.xlu0 %2211
        %2213 = vrot.lane.b32.xlu0 %v993, 32
        %v2214 = vpop.permute.xlu0 %2213
        %2215 = vrot.lane.b32.xlu0 %v924, 32
        %v2216 = vpop.permute.xlu0 %2215
        %2217 = vrot.lane.b32.xlu0 %v994, 32
        %v2218 = vpop.permute.xlu0 %2217
        %2219 = vrot.lane.b32.xlu0 %v930, 32
        %v2220 = vpop.permute.xlu0 %2219
        %2253 = vrot.lane.b32.xlu0 %v1045, 48
        %v2254 = vpop.permute.xlu0 %2253
        %2255 = vrot.lane.b32.xlu0 %v1047, 48
        %v2256 = vpop.permute.xlu0 %2255
        %2257 = vrot.lane.b32.xlu0 %v1050, 48
        %v2258 = vpop.permute.xlu0 %2257
        %2259 = vrot.lane.b32.xlu0 %v1052, 48
        %v2260 = vpop.permute.xlu0 %2259
        %2261 = vrot.lane.b32.xlu0 %v1055, 48
        %v2262 = vpop.permute.xlu0 %2261
        %2263 = vrot.lane.b32.xlu0 %v1057, 48
        %v2264 = vpop.permute.xlu0 %2263
        %2265 = vrot.lane.b32.xlu0 %v1060, 48
        %v2266 = vpop.permute.xlu0 %2265
        %2267 = vrot.lane.b32.xlu0 %v1062, 48
        %v2268 = vpop.permute.xlu0 %2267
        %2269 = vrot.lane.b32.xlu0 %v1065, 48
        %v2270 = vpop.permute.xlu0 %2269
        %2271 = vrot.lane.b32.xlu0 %v1067, 48
        %v2272 = vpop.permute.xlu0 %2271
        %2273 = vrot.lane.b32.xlu0 %v1070, 48
        %v2274 = vpop.permute.xlu0 %2273
        %2275 = vrot.lane.b32.xlu0 %v1072, 48
        %v2276 = vpop.permute.xlu0 %2275
        %2277 = vrot.lane.b32.xlu0 %v1075, 48
        %v2278 = vpop.permute.xlu0 %2277
        %2279 = vrot.lane.b32.xlu0 %v1077, 48
        %v2280 = vpop.permute.xlu0 %2279
        %2281 = vrot.lane.b32.xlu0 %v1080, 48
        %v2282 = vpop.permute.xlu0 %2281
        %2283 = vrot.lane.b32.xlu0 %v1082, 48
        %v2284 = vpop.permute.xlu0 %2283
        %2285 = vrot.lane.b32.xlu0 %v1085, 48
        %v2286 = vpop.permute.xlu0 %2285
        %2287 = vrot.lane.b32.xlu0 %v1087, 48
        %v2288 = vpop.permute.xlu0 %2287
        %2289 = vrot.lane.b32.xlu0 %v1090, 48
        %v2290 = vpop.permute.xlu0 %2289
        %2291 = vrot.lane.b32.xlu0 %v1092, 48
        %v2292 = vpop.permute.xlu0 %2291
        %2293 = vrot.lane.b32.xlu0 %v1095, 48
        %v2294 = vpop.permute.xlu0 %2293
        %2295 = vrot.lane.b32.xlu0 %v1097, 48
        %v2296 = vpop.permute.xlu0 %2295
        %2297 = vrot.lane.b32.xlu0 %v1100, 48
        %v2298 = vpop.permute.xlu0 %2297
        %2299 = vrot.lane.b32.xlu0 %v1102, 48
        %v2300 = vpop.permute.xlu0 %2299
        %2301 = vrot.lane.b32.xlu0 %v1105, 48
        %v2302 = vpop.permute.xlu0 %2301
        %2303 = vrot.lane.b32.xlu0 %v1107, 48
        %v2304 = vpop.permute.xlu0 %2303
        %2305 = vrot.lane.b32.xlu0 %v1110, 48
        %v2306 = vpop.permute.xlu0 %2305
        %2307 = vrot.lane.b32.xlu0 %v1112, 48
        %v2308 = vpop.permute.xlu0 %2307
        %2309 = vrot.lane.b32.xlu0 %v1335, 48
        %v2310 = vpop.permute.xlu0 %2309
        %2311 = vrot.lane.b32.xlu0 %v1337, 48
        %v2312 = vpop.permute.xlu0 %2311
        %2313 = vrot.lane.b32.xlu0 %v1388, 48
        %v2314 = vpop.permute.xlu0 %2313
        %2315 = vrot.lane.b32.xlu0 %v1390, 48
        %v2316 = vpop.permute.xlu0 %2315
        %2349 = vrot.lane.b32.xlu0 %v1118, 64
        %v2350 = vpop.permute.xlu0 %2349
        %2351 = vrot.lane.b32.xlu0 %v1120, 64
        %v2352 = vpop.permute.xlu0 %2351
        %2353 = vrot.lane.b32.xlu0 %v1123, 64
        %v2354 = vpop.permute.xlu0 %2353
        %2355 = vrot.lane.b32.xlu0 %v1125, 64
        %v2356 = vpop.permute.xlu0 %2355
        %2357 = vrot.lane.b32.xlu0 %v1128, 64
        %v2358 = vpop.permute.xlu0 %2357
        %2359 = vrot.lane.b32.xlu0 %v1130, 64
        %v2360 = vpop.permute.xlu0 %2359
        %2361 = vrot.lane.b32.xlu0 %v1133, 64
        %v2362 = vpop.permute.xlu0 %2361
        %2363 = vrot.lane.b32.xlu0 %v1135, 64
        %v2364 = vpop.permute.xlu0 %2363
        %2365 = vrot.lane.b32.xlu0 %v1138, 64
        %v2366 = vpop.permute.xlu0 %2365
        %2367 = vrot.lane.b32.xlu0 %v1140, 64
        %v2368 = vpop.permute.xlu0 %2367
        %2369 = vrot.lane.b32.xlu0 %v1143, 64
        %v2370 = vpop.permute.xlu0 %2369
        %2371 = vrot.lane.b32.xlu0 %v1145, 64
        %v2372 = vpop.permute.xlu0 %2371
        %2373 = vrot.lane.b32.xlu0 %v1148, 64
        %v2374 = vpop.permute.xlu0 %2373
        %2375 = vrot.lane.b32.xlu0 %v1150, 64
        %v2376 = vpop.permute.xlu0 %2375
        %2377 = vrot.lane.b32.xlu0 %v1153, 64
        %v2378 = vpop.permute.xlu0 %2377
        %2379 = vrot.lane.b32.xlu0 %v1155, 64
        %v2380 = vpop.permute.xlu0 %2379
        %2381 = vrot.lane.b32.xlu0 %v1158, 64
        %v2382 = vpop.permute.xlu0 %2381
        %2383 = vrot.lane.b32.xlu0 %v1160, 64
        %v2384 = vpop.permute.xlu0 %2383
        %2385 = vrot.lane.b32.xlu0 %v1163, 64
        %v2386 = vpop.permute.xlu0 %2385
        %2387 = vrot.lane.b32.xlu0 %v1165, 64
        %v2388 = vpop.permute.xlu0 %2387
        %2389 = vrot.lane.b32.xlu0 %v1168, 64
        %v2390 = vpop.permute.xlu0 %2389
        %2391 = vrot.lane.b32.xlu0 %v1170, 64
        %v2392 = vpop.permute.xlu0 %2391
        %2393 = vrot.lane.b32.xlu0 %v1173, 64
        %v2394 = vpop.permute.xlu0 %2393
        %2395 = vrot.lane.b32.xlu0 %v1175, 64
        %v2396 = vpop.permute.xlu0 %2395
        %2397 = vrot.lane.b32.xlu0 %v1178, 64
        %v2398 = vpop.permute.xlu0 %2397
        %2399 = vrot.lane.b32.xlu0 %v1180, 64
        %v2400 = vpop.permute.xlu0 %2399
        %2401 = vrot.lane.b32.xlu0 %v1183, 64
        %v2402 = vpop.permute.xlu0 %2401
        %2403 = vrot.lane.b32.xlu0 %v1185, 64
        %v2404 = vpop.permute.xlu0 %2403
        %2405 = vrot.lane.b32.xlu0 %v1340, 64
        %v2406 = vpop.permute.xlu0 %2405
        %2407 = vrot.lane.b32.xlu0 %v1342, 64
        %v2408 = vpop.permute.xlu0 %2407
        %2409 = vrot.lane.b32.xlu0 %v1393, 64
        %v2410 = vpop.permute.xlu0 %2409
        %2411 = vrot.lane.b32.xlu0 %v1395, 64
        %v2412 = vpop.permute.xlu0 %2411
        %2445 = vrot.lane.b32.xlu0 %v1191, 80
        %v2446 = vpop.permute.xlu0 %2445
        %2447 = vrot.lane.b32.xlu0 %v1193, 80
        %v2448 = vpop.permute.xlu0 %2447
        %2449 = vrot.lane.b32.xlu0 %v1196, 80
        %v2450 = vpop.permute.xlu0 %2449
        %2451 = vrot.lane.b32.xlu0 %v1198, 80
        %v2452 = vpop.permute.xlu0 %2451
        %2453 = vrot.lane.b32.xlu0 %v1201, 80
        %v2454 = vpop.permute.xlu0 %2453
        %2455 = vrot.lane.b32.xlu0 %v1203, 80
        %v2456 = vpop.permute.xlu0 %2455
        %2457 = vrot.lane.b32.xlu0 %v1206, 80
        %v2458 = vpop.permute.xlu0 %2457
        %2459 = vrot.lane.b32.xlu0 %v1208, 80
        %v2460 = vpop.permute.xlu0 %2459
        %2461 = vrot.lane.b32.xlu0 %v1211, 80
        %v2462 = vpop.permute.xlu0 %2461
        %2463 = vrot.lane.b32.xlu0 %v1213, 80
        %v2464 = vpop.permute.xlu0 %2463
        %2465 = vrot.lane.b32.xlu0 %v1216, 80
        %v2466 = vpop.permute.xlu0 %2465
        %2467 = vrot.lane.b32.xlu0 %v1218, 80
        %v2468 = vpop.permute.xlu0 %2467
        %2469 = vrot.lane.b32.xlu0 %v1221, 80
        %v2470 = vpop.permute.xlu0 %2469
        %2471 = vrot.lane.b32.xlu0 %v1223, 80
        %v2472 = vpop.permute.xlu0 %2471
        %2473 = vrot.lane.b32.xlu0 %v1226, 80
        %v2474 = vpop.permute.xlu0 %2473
        %2475 = vrot.lane.b32.xlu0 %v1228, 80
        %v2476 = vpop.permute.xlu0 %2475
        %2477 = vrot.lane.b32.xlu0 %v1231, 80
        %v2478 = vpop.permute.xlu0 %2477
        %2479 = vrot.lane.b32.xlu0 %v1233, 80
        %v2480 = vpop.permute.xlu0 %2479
        %2481 = vrot.lane.b32.xlu0 %v1236, 80
        %v2482 = vpop.permute.xlu0 %2481
        %2483 = vrot.lane.b32.xlu0 %v1238, 80
        %v2484 = vpop.permute.xlu0 %2483
        %2485 = vrot.lane.b32.xlu0 %v1241, 80
        %v2486 = vpop.permute.xlu0 %2485
        %2487 = vrot.lane.b32.xlu0 %v1243, 80
        %v2488 = vpop.permute.xlu0 %2487
        %2489 = vrot.lane.b32.xlu0 %v1246, 80
        %v2490 = vpop.permute.xlu0 %2489
        %2491 = vrot.lane.b32.xlu0 %v1248, 80
        %v2492 = vpop.permute.xlu0 %2491
        %2493 = vrot.lane.b32.xlu0 %v1251, 80
        %v2494 = vpop.permute.xlu0 %2493
        %2495 = vrot.lane.b32.xlu0 %v1253, 80
        %v2496 = vpop.permute.xlu0 %2495
        %2497 = vrot.lane.b32.xlu0 %v1256, 80
        %v2498 = vpop.permute.xlu0 %2497
        %2499 = vrot.lane.b32.xlu0 %v1258, 80
        %v2500 = vpop.permute.xlu0 %2499
        %2501 = vrot.lane.b32.xlu0 %v1345, 80
        %v2502 = vpop.permute.xlu0 %2501
        %2503 = vrot.lane.b32.xlu0 %v1347, 80
        %v2504 = vpop.permute.xlu0 %2503
        %2505 = vrot.lane.b32.xlu0 %v1398, 80
        %v2506 = vpop.permute.xlu0 %2505
        %2507 = vrot.lane.b32.xlu0 %v1400, 80
        %v2508 = vpop.permute.xlu0 %2507
        %2541 = vrot.lane.b32.xlu0 %v1263, 96
        %v2542 = vpop.permute.xlu0 %2541
        %2543 = vrot.lane.b32.xlu0 %v1265, 96
        %v2544 = vpop.permute.xlu0 %2543
        %2545 = vrot.lane.b32.xlu0 %v1268, 96
        %v2546 = vpop.permute.xlu0 %2545
        %2547 = vrot.lane.b32.xlu0 %v1270, 96
        %v2548 = vpop.permute.xlu0 %2547
        %2549 = vrot.lane.b32.xlu0 %v1273, 96
        %v2550 = vpop.permute.xlu0 %2549
        %2551 = vrot.lane.b32.xlu0 %v1275, 96
        %v2552 = vpop.permute.xlu0 %2551
        %2553 = vrot.lane.b32.xlu0 %v1278, 96
        %v2554 = vpop.permute.xlu0 %2553
        %2555 = vrot.lane.b32.xlu0 %v1280, 96
        %v2556 = vpop.permute.xlu0 %2555
        %2557 = vrot.lane.b32.xlu0 %v1283, 96
        %v2558 = vpop.permute.xlu0 %2557
        %2559 = vrot.lane.b32.xlu0 %v1285, 96
        %v2560 = vpop.permute.xlu0 %2559
        %2561 = vrot.lane.b32.xlu0 %v1288, 96
        %v2562 = vpop.permute.xlu0 %2561
        %2563 = vrot.lane.b32.xlu0 %v1290, 96
        %v2564 = vpop.permute.xlu0 %2563
        %2565 = vrot.lane.b32.xlu0 %v1293, 96
        %v2566 = vpop.permute.xlu0 %2565
        %2567 = vrot.lane.b32.xlu0 %v1295, 96
        %v2568 = vpop.permute.xlu0 %2567
        %2569 = vrot.lane.b32.xlu0 %v1298, 96
        %v2570 = vpop.permute.xlu0 %2569
        %2571 = vrot.lane.b32.xlu0 %v1300, 96
        %v2572 = vpop.permute.xlu0 %2571
        %2573 = vrot.lane.b32.xlu0 %v1303, 96
        %v2574 = vpop.permute.xlu0 %2573
        %2575 = vrot.lane.b32.xlu0 %v1305, 96
        %v2576 = vpop.permute.xlu0 %2575
        %2577 = vrot.lane.b32.xlu0 %v1308, 96
        %v2578 = vpop.permute.xlu0 %2577
        %2579 = vrot.lane.b32.xlu0 %v1310, 96
        %v2580 = vpop.permute.xlu0 %2579
        %2581 = vrot.lane.b32.xlu0 %v1313, 96
        %v2582 = vpop.permute.xlu0 %2581
        %2583 = vrot.lane.b32.xlu0 %v1315, 96
        %v2584 = vpop.permute.xlu0 %2583
        %2585 = vrot.lane.b32.xlu0 %v1318, 96
        %v2586 = vpop.permute.xlu0 %2585
        %2587 = vrot.lane.b32.xlu0 %v1320, 96
        %v2588 = vpop.permute.xlu0 %2587
        %2589 = vrot.lane.b32.xlu0 %v1323, 96
        %v2590 = vpop.permute.xlu0 %2589
        %2591 = vrot.lane.b32.xlu0 %v1325, 96
        %v2592 = vpop.permute.xlu0 %2591
        %2593 = vrot.lane.b32.xlu0 %v1328, 96
        %v2594 = vpop.permute.xlu0 %2593
        %2595 = vrot.lane.b32.xlu0 %v1330, 96
        %v2596 = vpop.permute.xlu0 %2595
        %2597 = vrot.lane.b32.xlu0 %v1381, 96
        %v2598 = vpop.permute.xlu0 %2597
        %2599 = vrot.lane.b32.xlu0 %v1383, 96
        %v2600 = vpop.permute.xlu0 %2599
        %2601 = vrot.lane.b32.xlu0 %v1403, 96
        %v2602 = vpop.permute.xlu0 %2601
        %2603 = vrot.lane.b32.xlu0 %v1405, 96
        %v2604 = vpop.permute.xlu0 %2603
        %2637 = vrot.lane.b32.xlu0 %v980, 112
        %v2638 = vpop.permute.xlu0 %2637
        %2639 = vrot.lane.b32.xlu0 %v846, 112
        %v2640 = vpop.permute.xlu0 %2639
        %2641 = vrot.lane.b32.xlu0 %v981, 112
        %v2642 = vpop.permute.xlu0 %2641
        %2643 = vrot.lane.b32.xlu0 %v852, 112
        %v2644 = vpop.permute.xlu0 %2643
        %2645 = vrot.lane.b32.xlu0 %v982, 112
        %v2646 = vpop.permute.xlu0 %2645
        %2647 = vrot.lane.b32.xlu0 %v858, 112
        %v2648 = vpop.permute.xlu0 %2647
        %2649 = vrot.lane.b32.xlu0 %v983, 112
        %v2650 = vpop.permute.xlu0 %2649
        %2651 = vrot.lane.b32.xlu0 %v864, 112
        %v2652 = vpop.permute.xlu0 %2651
        %2653 = vrot.lane.b32.xlu0 %v984, 112
        %v2654 = vpop.permute.xlu0 %2653
        %2655 = vrot.lane.b32.xlu0 %v870, 112
        %v2656 = vpop.permute.xlu0 %2655
        %2657 = vrot.lane.b32.xlu0 %v985, 112
        %v2658 = vpop.permute.xlu0 %2657
        %2659 = vrot.lane.b32.xlu0 %v876, 112
        %v2660 = vpop.permute.xlu0 %2659
        %2661 = vrot.lane.b32.xlu0 %v986, 112
        %v2662 = vpop.permute.xlu0 %2661
        %2663 = vrot.lane.b32.xlu0 %v882, 112
        %v2664 = vpop.permute.xlu0 %2663
        %2665 = vrot.lane.b32.xlu0 %v987, 112
        %v2666 = vpop.permute.xlu0 %2665
        %2667 = vrot.lane.b32.xlu0 %v888, 112
        %v2668 = vpop.permute.xlu0 %2667
        %2669 = vrot.lane.b32.xlu0 %v988, 112
        %v2670 = vpop.permute.xlu0 %2669
        %2671 = vrot.lane.b32.xlu0 %v894, 112
        %v2672 = vpop.permute.xlu0 %2671
        %2673 = vrot.lane.b32.xlu0 %v989, 112
        %v2674 = vpop.permute.xlu0 %2673
        %2675 = vrot.lane.b32.xlu0 %v900, 112
        %v2676 = vpop.permute.xlu0 %2675
        %2677 = vrot.lane.b32.xlu0 %v990, 112
        %v2678 = vpop.permute.xlu0 %2677
        %2679 = vrot.lane.b32.xlu0 %v906, 112
        %v2680 = vpop.permute.xlu0 %2679
        %2681 = vrot.lane.b32.xlu0 %v991, 112
        %v2682 = vpop.permute.xlu0 %2681
        %2683 = vrot.lane.b32.xlu0 %v912, 112
        %v2684 = vpop.permute.xlu0 %2683
        %2685 = vrot.lane.b32.xlu0 %v992, 112
        %v2686 = vpop.permute.xlu0 %2685
        %2687 = vrot.lane.b32.xlu0 %v918, 112
        %v2688 = vpop.permute.xlu0 %2687
        %2689 = vrot.lane.b32.xlu0 %v993, 112
        %v2690 = vpop.permute.xlu0 %2689
        %2691 = vrot.lane.b32.xlu0 %v924, 112
        %v2692 = vpop.permute.xlu0 %2691
        %2693 = vrot.lane.b32.xlu0 %v994, 112
        %v2694 = vpop.permute.xlu0 %2693
        %2695 = vrot.lane.b32.xlu0 %v930, 112
        %v2696 = vpop.permute.xlu0 %2695
        %2697 = vrot.lane.b32.xlu0 0.0, 112
        %v2698 = vpop.permute.xlu0 %2697
        %vm2730 = vcmask 130048
        %v2731 = vsel %vm2730, 0.0, %v1438
        %v2732 = vsel %vm2730, %v979, %v1440
        %v2733 = vsel %vm2730, %v840, %v1442
        %v2734 = vsel %vm2730, %v980, %v1444
        %v2735 = vsel %vm2730, %v846, %v1446
        %v2736 = vsel %vm2730, %v981, %v1448
        %v2737 = vsel %vm2730, %v852, %v1450
        %v2738 = vsel %vm2730, %v982, %v1452
        %v2739 = vsel %vm2730, %v858, %v1454
        %v2740 = vsel %vm2730, %v983, %v1456
        %v2741 = vsel %vm2730, %v864, %v1458
        %v2742 = vsel %vm2730, %v984, %v1460
        %v2743 = vsel %vm2730, %v870, %v1462
        %v2744 = vsel %vm2730, %v985, %v1464
        %v2745 = vsel %vm2730, %v876, %v1466
        %v2746 = vsel %vm2730, %v986, %v1468
        %v2747 = vsel %vm2730, %v882, %v1470
        %v2748 = vsel %vm2730, %v987, %v1472
        %v2749 = vsel %vm2730, %v888, %v1474
        %v2750 = vsel %vm2730, %v988, %v1476
        %v2751 = vsel %vm2730, %v894, %v1478
        %v2752 = vsel %vm2730, %v989, %v1480
        %v2753 = vsel %vm2730, %v900, %v1482
        %v2754 = vsel %vm2730, %v990, %v1484
        %v2755 = vsel %vm2730, %v906, %v1486
        %v2756 = vsel %vm2730, %v991, %v1488
        %v2757 = vsel %vm2730, %v912, %v1490
        %v2758 = vsel %vm2730, %v992, %v1492
        %v2759 = vsel %vm2730, %v918, %v1494
        %vm2760 = vcmask 261120
        %v2761 = vsel %vm2760, %v2731, %v1525
        %v2762 = vsel %vm2760, %v2732, %v1527
        %v2763 = vsel %vm2760, %v2733, %v1529
        %v2764 = vsel %vm2760, %v2734, %v1531
        %v2765 = vsel %vm2760, %v2735, %v1533
        %v2766 = vsel %vm2760, %v2736, %v1535
        %v2767 = vsel %vm2760, %v2737, %v1537
        %v2768 = vsel %vm2760, %v2738, %v1539
        %v2769 = vsel %vm2760, %v2739, %v1541
        %v2770 = vsel %vm2760, %v2740, %v1543
        %v2771 = vsel %vm2760, %v2741, %v1545
        %v2772 = vsel %vm2760, %v2742, %v1547
        %v2773 = vsel %vm2760, %v2743, %v1549
        %v2774 = vsel %vm2760, %v2744, %v1551
        %v2775 = vsel %vm2760, %v2745, %v1553
        %v2776 = vsel %vm2760, %v2746, %v1555
        %v2777 = vsel %vm2760, %v2747, %v1557
        %v2778 = vsel %vm2760, %v2748, %v1559
        %v2779 = vsel %vm2760, %v2749, %v1561
        %v2780 = vsel %vm2760, %v2750, %v1563
        %v2781 = vsel %vm2760, %v2751, %v1565
        %v2782 = vsel %vm2760, %v2752, %v1567
        %v2783 = vsel %vm2760, %v2753, %v1569
        %v2784 = vsel %vm2760, %v2754, %v1571
        %v2785 = vsel %vm2760, %v2755, %v1573
        %v2786 = vsel %vm2760, %v2756, %v1575
        %v2787 = vsel %vm2760, %v2757, %v1577
        %v2788 = vsel %vm2760, %v2758, %v1579
        %v2789 = vsel %vm2760, %v2759, %v1581
        %vm2790 = vcmask 392192
        %v2791 = vsel %vm2790, %v2761, %v1612
        %v2792 = vsel %vm2790, %v2762, %v1614
        %v2793 = vsel %vm2790, %v2763, %v1616
        %v2794 = vsel %vm2790, %v2764, %v1618
        %v2795 = vsel %vm2790, %v2765, %v1620
        %v2796 = vsel %vm2790, %v2766, %v1622
        %v2797 = vsel %vm2790, %v2767, %v1624
        %v2798 = vsel %vm2790, %v2768, %v1626
        %v2799 = vsel %vm2790, %v2769, %v1628
        %v2800 = vsel %vm2790, %v2770, %v1630
        %v2801 = vsel %vm2790, %v2771, %v1632
        %v2802 = vsel %vm2790, %v2772, %v1634
        %v2803 = vsel %vm2790, %v2773, %v1636
        %v2804 = vsel %vm2790, %v2774, %v1638
        %v2805 = vsel %vm2790, %v2775, %v1640
        %v2806 = vsel %vm2790, %v2776, %v1642
        %v2807 = vsel %vm2790, %v2777, %v1644
        %v2808 = vsel %vm2790, %v2778, %v1646
        %v2809 = vsel %vm2790, %v2779, %v1648
        %v2810 = vsel %vm2790, %v2780, %v1650
        %v2811 = vsel %vm2790, %v2781, %v1652
        %v2812 = vsel %vm2790, %v2782, %v1654
        %v2813 = vsel %vm2790, %v2783, %v1656
        %v2814 = vsel %vm2790, %v2784, %v1658
        %v2815 = vsel %vm2790, %v2785, %v1660
        %v2816 = vsel %vm2790, %v2786, %v1662
        %v2817 = vsel %vm2790, %v2787, %v1664
        %v2818 = vsel %vm2790, %v2788, %v1666
        %v2819 = vsel %vm2790, %v2789, %v1668
        %vm2820 = vcmask 523264
        %v2821 = vsel %vm2820, %v2791, %v1699
        %v2822 = vsel %vm2820, %v2792, %v1701
        %v2823 = vsel %vm2820, %v2793, %v1703
        %v2824 = vsel %vm2820, %v2794, %v1705
        %v2825 = vsel %vm2820, %v2795, %v1707
        %v2826 = vsel %vm2820, %v2796, %v1709
        %v2827 = vsel %vm2820, %v2797, %v1711
        %v2828 = vsel %vm2820, %v2798, %v1713
        %v2829 = vsel %vm2820, %v2799, %v1715
        %v2830 = vsel %vm2820, %v2800, %v1717
        %v2831 = vsel %vm2820, %v2801, %v1719
        %v2832 = vsel %vm2820, %v2802, %v1721
        %v2833 = vsel %vm2820, %v2803, %v1723
        %v2834 = vsel %vm2820, %v2804, %v1725
        %v2835 = vsel %vm2820, %v2805, %v1727
        %v2836 = vsel %vm2820, %v2806, %v1729
        %v2837 = vsel %vm2820, %v2807, %v1731
        %v2838 = vsel %vm2820, %v2808, %v1733
        %v2839 = vsel %vm2820, %v2809, %v1735
        %v2840 = vsel %vm2820, %v2810, %v1737
        %v2841 = vsel %vm2820, %v2811, %v1739
        %v2842 = vsel %vm2820, %v2812, %v1741
        %v2843 = vsel %vm2820, %v2813, %v1743
        %v2844 = vsel %vm2820, %v2814, %v1745
        %v2845 = vsel %vm2820, %v2815, %v1747
        %v2846 = vsel %vm2820, %v2816, %v1749
        %v2847 = vsel %vm2820, %v2817, %v1751
        %v2848 = vsel %vm2820, %v2818, %v1753
        %v2849 = vsel %vm2820, %v2819, %v1755
        %vm2850 = vcmask 654336
        %v2851 = vsel %vm2850, %v2821, %v1786
        %v2852 = vsel %vm2850, %v2821, %v1788
        %v2853 = vsel %vm2850, %v2821, %v1790
        %v2854 = vsel %vm2850, %v2822, %v1792
        %v2855 = vsel %vm2850, %v2823, %v1794
        %v2856 = vsel %vm2850, %v2824, %v1796
        %v2857 = vsel %vm2850, %v2825, %v1798
        %v2858 = vsel %vm2850, %v2826, %v1800
        %v2859 = vsel %vm2850, %v2827, %v1802
        %v2860 = vsel %vm2850, %v2828, %v1804
        %v2861 = vsel %vm2850, %v2829, %v1806
        %v2862 = vsel %vm2850, %v2830, %v1808
        %v2863 = vsel %vm2850, %v2831, %v1810
        %v2864 = vsel %vm2850, %v2832, %v1812
        %v2865 = vsel %vm2850, %v2833, %v1814
        %v2866 = vsel %vm2850, %v2834, %v1816
        %v2867 = vsel %vm2850, %v2835, %v1818
        %v2868 = vsel %vm2850, %v2836, %v1820
        %v2869 = vsel %vm2850, %v2837, %v1822
        %v2870 = vsel %vm2850, %v2838, %v1824
        %v2871 = vsel %vm2850, %v2839, %v1826
        %v2872 = vsel %vm2850, %v2840, %v1828
        %v2873 = vsel %vm2850, %v2841, %v1830
        %v2874 = vsel %vm2850, %v2842, %v1832
        %v2875 = vsel %vm2850, %v2843, %v1834
        %v2876 = vsel %vm2850, %v2844, %v1836
        %v2877 = vsel %vm2850, %v2845, %v1838
        %v2878 = vsel %vm2850, %v2846, %v1840
        %v2879 = vsel %vm2850, %v2847, %v1842
        %v2880 = vsel %vm2850, %v2848, %v1844
        %v2881 = vsel %vm2850, %v2849, %v1846
        %vm2882 = vcmask 785408
        %v2883 = vsel %vm2882, %v2851, %v1879
        %v2884 = vsel %vm2882, %v2852, %v1881
        %v2885 = vsel %vm2882, %v2853, %v1883
        %v2886 = vsel %vm2882, %v2854, %v1885
        %v2887 = vsel %vm2882, %v2855, %v1887
        %v2888 = vsel %vm2882, %v2856, %v1889
        %v2889 = vsel %vm2882, %v2857, %v1891
        %v2890 = vsel %vm2882, %v2858, %v1893
        %v2891 = vsel %vm2882, %v2859, %v1895
        %v2892 = vsel %vm2882, %v2860, %v1897
        %v2893 = vsel %vm2882, %v2861, %v1899
        %v2894 = vsel %vm2882, %v2862, %v1901
        %v2895 = vsel %vm2882, %v2863, %v1903
        %v2896 = vsel %vm2882, %v2864, %v1905
        %v2897 = vsel %vm2882, %v2865, %v1907
        %v2898 = vsel %vm2882, %v2866, %v1909
        %v2899 = vsel %vm2882, %v2867, %v1911
        %v2900 = vsel %vm2882, %v2868, %v1913
        %v2901 = vsel %vm2882, %v2869, %v1915
        %v2902 = vsel %vm2882, %v2870, %v1917
        %v2903 = vsel %vm2882, %v2871, %v1919
        %v2904 = vsel %vm2882, %v2872, %v1921
        %v2905 = vsel %vm2882, %v2873, %v1923
        %v2906 = vsel %vm2882, %v2874, %v1925
        %v2907 = vsel %vm2882, %v2875, %v1927
        %v2908 = vsel %vm2882, %v2876, %v1929
        %v2909 = vsel %vm2882, %v2877, %v1931
        %v2910 = vsel %vm2882, %v2878, %v1933
        %v2911 = vsel %vm2882, %v2879, %v1935
        %v2912 = vsel %vm2882, %v2880, %v1937
        %v2913 = vsel %vm2882, %v2881, %v1939
        %vm2914 = vcmask 916480
        %v2915 = vsel %vm2914, %v2883, %v1972
        %v2916 = vsel %vm2914, %v2884, %v1974
        %v2917 = vsel %vm2914, %v2885, %v1976
        %v2918 = vsel %vm2914, %v2886, %v1978
        %v2919 = vsel %vm2914, %v2887, %v1980
        %v2920 = vsel %vm2914, %v2888, %v1982
        %v2921 = vsel %vm2914, %v2889, %v1984
        %v2922 = vsel %vm2914, %v2890, %v1986
        %v2923 = vsel %vm2914, %v2891, %v1988
        %v2924 = vsel %vm2914, %v2892, %v1990
        %v2925 = vsel %vm2914, %v2893, %v1992
        %v2926 = vsel %vm2914, %v2894, %v1994
        %v2927 = vsel %vm2914, %v2895, %v1996
        %v2928 = vsel %vm2914, %v2896, %v1998
        %v2929 = vsel %vm2914, %v2897, %v2000
        %v2930 = vsel %vm2914, %v2898, %v2002
        %v2931 = vsel %vm2914, %v2899, %v2004
        %v2932 = vsel %vm2914, %v2900, %v2006
        %v2933 = vsel %vm2914, %v2901, %v2008
        %v2934 = vsel %vm2914, %v2902, %v2010
        %v2935 = vsel %vm2914, %v2903, %v2012
        %v2936 = vsel %vm2914, %v2904, %v2014
        %v2937 = vsel %vm2914, %v2905, %v2016
        %v2938 = vsel %vm2914, %v2906, %v2018
        %v2939 = vsel %vm2914, %v2907, %v2020
        %v2940 = vsel %vm2914, %v2908, %v2022
        %v2941 = vsel %vm2914, %v2909, %v2024
        %v2942 = vsel %vm2914, %v2910, %v2026
        %v2943 = vsel %vm2914, %v2911, %v2028
        %v2944 = vsel %vm2914, %v2912, %v2030
        %v2945 = vsel %vm2914, %v2913, %v2032
        %v2946 = vsel %vm2730, %v1188, %v2065
        %v2947 = vsel %vm2730, %v1191, %v2067
        %v2948 = vsel %vm2730, %v1193, %v2069
        %v2949 = vsel %vm2730, %v1196, %v2071
        %v2950 = vsel %vm2730, %v1198, %v2073
        %v2951 = vsel %vm2730, %v1201, %v2075
        %v2952 = vsel %vm2730, %v1203, %v2077
        %v2953 = vsel %vm2730, %v1206, %v2079
        %v2954 = vsel %vm2730, %v1208, %v2081
        %v2955 = vsel %vm2730, %v1211, %v2083
        %v2956 = vsel %vm2730, %v1213, %v2085
        %v2957 = vsel %vm2730, %v1216, %v2087
        %v2958 = vsel %vm2730, %v1218, %v2089
        %v2959 = vsel %vm2730, %v1221, %v2091
        %v2960 = vsel %vm2730, %v1223, %v2093
        %v2961 = vsel %vm2730, %v1226, %v2095
        %v2962 = vsel %vm2730, %v1228, %v2097
        %v2963 = vsel %vm2730, %v1231, %v2099
        %v2964 = vsel %vm2730, %v1233, %v2101
        %v2965 = vsel %vm2730, %v1236, %v2103
        %v2966 = vsel %vm2730, %v1238, %v2105
        %v2967 = vsel %vm2730, %v1241, %v2107
        %v2968 = vsel %vm2730, %v1243, %v2109
        %v2969 = vsel %vm2730, %v1246, %v2111
        %v2970 = vsel %vm2730, %v1248, %v2113
        %v2971 = vsel %vm2730, %v1251, %v2115
        %v2972 = vsel %vm2730, %v1253, %v2117
        %v2973 = vsel %vm2730, %v1256, %v2119
        %v2974 = vsel %vm2730, %v1258, %v2121
        %v2975 = vsel %vm2730, %v1345, %v2123
        %v2976 = vsel %vm2730, %v1347, %v2125
        %v2977 = vsel %vm2760, %v2946, %v2158
        %v2978 = vsel %vm2760, %v2946, %v2160
        %v2979 = vsel %vm2760, %v2947, %v2162
        %v2980 = vsel %vm2760, %v2948, %v2164
        %v2981 = vsel %vm2760, %v2949, %v2166
        %v2982 = vsel %vm2760, %v2950, %v2168
        %v2983 = vsel %vm2760, %v2951, %v2170
        %v2984 = vsel %vm2760, %v2952, %v2172
        %v2985 = vsel %vm2760, %v2953, %v2174
        %v2986 = vsel %vm2760, %v2954, %v2176
        %v2987 = vsel %vm2760, %v2955, %v2178
        %v2988 = vsel %vm2760, %v2956, %v2180
        %v2989 = vsel %vm2760, %v2957, %v2182
        %v2990 = vsel %vm2760, %v2958, %v2184
        %v2991 = vsel %vm2760, %v2959, %v2186
        %v2992 = vsel %vm2760, %v2960, %v2188
        %v2993 = vsel %vm2760, %v2961, %v2190
        %v2994 = vsel %vm2760, %v2962, %v2192
        %v2995 = vsel %vm2760, %v2963, %v2194
        %v2996 = vsel %vm2760, %v2964, %v2196
        %v2997 = vsel %vm2760, %v2965, %v2198
        %v2998 = vsel %vm2760, %v2966, %v2200
        %v2999 = vsel %vm2760, %v2967, %v2202
        %v3000 = vsel %vm2760, %v2968, %v2204
        %v3001 = vsel %vm2760, %v2969, %v2206
        %v3002 = vsel %vm2760, %v2970, %v2208
        %v3003 = vsel %vm2760, %v2971, %v2210
        %v3004 = vsel %vm2760, %v2972, %v2212
        %v3005 = vsel %vm2760, %v2973, %v2214
        %v3006 = vsel %vm2760, %v2974, %v2216
        %v3007 = vsel %vm2760, %v2975, %v2218
        %v3008 = vsel %vm2760, %v2976, %v2220
        %v3009 = vsel %vm2790, %v2977, %v2254
        %v3010 = vsel %vm2790, %v2978, %v2256
        %v3011 = vsel %vm2790, %v2979, %v2258
        %v3012 = vsel %vm2790, %v2980, %v2260
        %v3013 = vsel %vm2790, %v2981, %v2262
        %v3014 = vsel %vm2790, %v2982, %v2264
        %v3015 = vsel %vm2790, %v2983, %v2266
        %v3016 = vsel %vm2790, %v2984, %v2268
        %v3017 = vsel %vm2790, %v2985, %v2270
        %v3018 = vsel %vm2790, %v2986, %v2272
        %v3019 = vsel %vm2790, %v2987, %v2274
        %v3020 = vsel %vm2790, %v2988, %v2276
        %v3021 = vsel %vm2790, %v2989, %v2278
        %v3022 = vsel %vm2790, %v2990, %v2280
        %v3023 = vsel %vm2790, %v2991, %v2282
        %v3024 = vsel %vm2790, %v2992, %v2284
        %v3025 = vsel %vm2790, %v2993, %v2286
        %v3026 = vsel %vm2790, %v2994, %v2288
        %v3027 = vsel %vm2790, %v2995, %v2290
        %v3028 = vsel %vm2790, %v2996, %v2292
        %v3029 = vsel %vm2790, %v2997, %v2294
        %v3030 = vsel %vm2790, %v2998, %v2296
        %v3031 = vsel %vm2790, %v2999, %v2298
        %v3032 = vsel %vm2790, %v3000, %v2300
        %v3033 = vsel %vm2790, %v3001, %v2302
        %v3034 = vsel %vm2790, %v3002, %v2304
        %v3035 = vsel %vm2790, %v3003, %v2306
        %v3036 = vsel %vm2790, %v3004, %v2308
        %v3037 = vsel %vm2790, %v3005, %v2310
        %v3038 = vsel %vm2790, %v3006, %v2312
        %v3039 = vsel %vm2790, %v3007, %v2314
        %v3040 = vsel %vm2790, %v3008, %v2316
        %v3041 = vsel %vm2820, %v3009, %v2350
        %v3042 = vsel %vm2820, %v3010, %v2352
        %v3043 = vsel %vm2820, %v3011, %v2354
        %v3044 = vsel %vm2820, %v3012, %v2356
        %v3045 = vsel %vm2820, %v3013, %v2358
        %v3046 = vsel %vm2820, %v3014, %v2360
        %v3047 = vsel %vm2820, %v3015, %v2362
        %v3048 = vsel %vm2820, %v3016, %v2364
        %v3049 = vsel %vm2820, %v3017, %v2366
        %v3050 = vsel %vm2820, %v3018, %v2368
        %v3051 = vsel %vm2820, %v3019, %v2370
        %v3052 = vsel %vm2820, %v3020, %v2372
        %v3053 = vsel %vm2820, %v3021, %v2374
        %v3054 = vsel %vm2820, %v3022, %v2376
        %v3055 = vsel %vm2820, %v3023, %v2378
        %v3056 = vsel %vm2820, %v3024, %v2380
        %v3057 = vsel %vm2820, %v3025, %v2382
        %v3058 = vsel %vm2820, %v3026, %v2384
        %v3059 = vsel %vm2820, %v3027, %v2386
        %v3060 = vsel %vm2820, %v3028, %v2388
        %v3061 = vsel %vm2820, %v3029, %v2390
        %v3062 = vsel %vm2820, %v3030, %v2392
        %v3063 = vsel %vm2820, %v3031, %v2394
        %v3064 = vsel %vm2820, %v3032, %v2396
        %v3065 = vsel %vm2820, %v3033, %v2398
        %v3066 = vsel %vm2820, %v3034, %v2400
        %v3067 = vsel %vm2820, %v3035, %v2402
        %v3068 = vsel %vm2820, %v3036, %v2404
        %v3069 = vsel %vm2820, %v3037, %v2406
        %v3070 = vsel %vm2820, %v3038, %v2408
        %v3071 = vsel %vm2820, %v3039, %v2410
        %v3072 = vsel %vm2820, %v3040, %v2412
        %v3073 = vsel %vm2850, %v3041, %v2446
        %v3074 = vsel %vm2850, %v3042, %v2448
        %v3075 = vsel %vm2850, %v3043, %v2450
        %v3076 = vsel %vm2850, %v3044, %v2452
        %v3077 = vsel %vm2850, %v3045, %v2454
        %v3078 = vsel %vm2850, %v3046, %v2456
        %v3079 = vsel %vm2850, %v3047, %v2458
        %v3080 = vsel %vm2850, %v3048, %v2460
        %v3081 = vsel %vm2850, %v3049, %v2462
        %v3082 = vsel %vm2850, %v3050, %v2464
        %v3083 = vsel %vm2850, %v3051, %v2466
        %v3084 = vsel %vm2850, %v3052, %v2468
        %v3085 = vsel %vm2850, %v3053, %v2470
        %v3086 = vsel %vm2850, %v3054, %v2472
        %v3087 = vsel %vm2850, %v3055, %v2474
        %v3088 = vsel %vm2850, %v3056, %v2476
        %v3089 = vsel %vm2850, %v3057, %v2478
        %v3090 = vsel %vm2850, %v3058, %v2480
        %v3091 = vsel %vm2850, %v3059, %v2482
        %v3092 = vsel %vm2850, %v3060, %v2484
        %v3093 = vsel %vm2850, %v3061, %v2486
        %v3094 = vsel %vm2850, %v3062, %v2488
        %v3095 = vsel %vm2850, %v3063, %v2490
        %v3096 = vsel %vm2850, %v3064, %v2492
        %v3097 = vsel %vm2850, %v3065, %v2494
        %v3098 = vsel %vm2850, %v3066, %v2496
        %v3099 = vsel %vm2850, %v3067, %v2498
        %v3100 = vsel %vm2850, %v3068, %v2500
        %v3101 = vsel %vm2850, %v3069, %v2502
        %v3102 = vsel %vm2850, %v3070, %v2504
        %v3103 = vsel %vm2850, %v3071, %v2506
        %v3104 = vsel %vm2850, %v3072, %v2508
        %v3105 = vsel %vm2882, %v3073, %v2542
        %v3106 = vsel %vm2882, %v3074, %v2544
        %v3107 = vsel %vm2882, %v3075, %v2546
        %v3108 = vsel %vm2882, %v3076, %v2548
        %v3109 = vsel %vm2882, %v3077, %v2550
        %v3110 = vsel %vm2882, %v3078, %v2552
        %v3111 = vsel %vm2882, %v3079, %v2554
        %v3112 = vsel %vm2882, %v3080, %v2556
        %v3113 = vsel %vm2882, %v3081, %v2558
        %v3114 = vsel %vm2882, %v3082, %v2560
        %v3115 = vsel %vm2882, %v3083, %v2562
        %v3116 = vsel %vm2882, %v3084, %v2564
        %v3117 = vsel %vm2882, %v3085, %v2566
        %v3118 = vsel %vm2882, %v3086, %v2568
        %v3119 = vsel %vm2882, %v3087, %v2570
        %v3120 = vsel %vm2882, %v3088, %v2572
        %v3121 = vsel %vm2882, %v3089, %v2574
        %v3122 = vsel %vm2882, %v3090, %v2576
        %v3123 = vsel %vm2882, %v3091, %v2578
        %v3124 = vsel %vm2882, %v3092, %v2580
        %v3125 = vsel %vm2882, %v3093, %v2582
        %v3126 = vsel %vm2882, %v3094, %v2584
        %v3127 = vsel %vm2882, %v3095, %v2586
        %v3128 = vsel %vm2882, %v3096, %v2588
        %v3129 = vsel %vm2882, %v3097, %v2590
        %v3130 = vsel %vm2882, %v3098, %v2592
        %v3131 = vsel %vm2882, %v3099, %v2594
        %v3132 = vsel %vm2882, %v3100, %v2596
        %v3133 = vsel %vm2882, %v3101, %v2598
        %v3134 = vsel %vm2882, %v3102, %v2600
        %v3135 = vsel %vm2882, %v3103, %v2602
        %v3136 = vsel %vm2882, %v3104, %v2604
        %v3137 = vsel %vm2914, %v3105, %v2638
        %v3138 = vsel %vm2914, %v3106, %v2640
        %v3139 = vsel %vm2914, %v3107, %v2642
        %v3140 = vsel %vm2914, %v3108, %v2644
        %v3141 = vsel %vm2914, %v3109, %v2646
        %v3142 = vsel %vm2914, %v3110, %v2648
        %v3143 = vsel %vm2914, %v3111, %v2650
        %v3144 = vsel %vm2914, %v3112, %v2652
        %v3145 = vsel %vm2914, %v3113, %v2654
        %v3146 = vsel %vm2914, %v3114, %v2656
        %v3147 = vsel %vm2914, %v3115, %v2658
        %v3148 = vsel %vm2914, %v3116, %v2660
        %v3149 = vsel %vm2914, %v3117, %v2662
        %v3150 = vsel %vm2914, %v3118, %v2664
        %v3151 = vsel %vm2914, %v3119, %v2666
        %v3152 = vsel %vm2914, %v3120, %v2668
        %v3153 = vsel %vm2914, %v3121, %v2670
        %v3154 = vsel %vm2914, %v3122, %v2672
        %v3155 = vsel %vm2914, %v3123, %v2674
        %v3156 = vsel %vm2914, %v3124, %v2676
        %v3157 = vsel %vm2914, %v3125, %v2678
        %v3158 = vsel %vm2914, %v3126, %v2680
        %v3159 = vsel %vm2914, %v3127, %v2682
        %v3160 = vsel %vm2914, %v3128, %v2684
        %v3161 = vsel %vm2914, %v3129, %v2686
        %v3162 = vsel %vm2914, %v3130, %v2688
        %v3163 = vsel %vm2914, %v3131, %v2690
        %v3164 = vsel %vm2914, %v3132, %v2692
        %v3165 = vsel %vm2914, %v3133, %v2694
        %v3166 = vsel %vm2914, %v3134, %v2696
        %v3167 = vsel %vm2914, %v3135, %v2698
        %v3168 = vsel %vm2914, %v3136, %v2698
        %3169 = vrot.lane.b32.xlu0 %v1123, 16
        %v3170 = vpop.permute.xlu0 %3169
        %3171 = vrot.lane.b32.xlu0 %v1125, 16
        %v3172 = vpop.permute.xlu0 %3171
        %3173 = vrot.lane.b32.xlu0 %v1128, 16
        %v3174 = vpop.permute.xlu0 %3173
        %3175 = vrot.lane.b32.xlu0 %v1130, 16
        %v3176 = vpop.permute.xlu0 %3175
        %3177 = vrot.lane.b32.xlu0 %v1133, 16
        %v3178 = vpop.permute.xlu0 %3177
        %3179 = vrot.lane.b32.xlu0 %v1135, 16
        %v3180 = vpop.permute.xlu0 %3179
        %3181 = vrot.lane.b32.xlu0 %v1138, 16
        %v3182 = vpop.permute.xlu0 %3181
        %3183 = vrot.lane.b32.xlu0 %v1140, 16
        %v3184 = vpop.permute.xlu0 %3183
        %3185 = vrot.lane.b32.xlu0 %v1143, 16
        %v3186 = vpop.permute.xlu0 %3185
        %3187 = vrot.lane.b32.xlu0 %v1145, 16
        %v3188 = vpop.permute.xlu0 %3187
        %3189 = vrot.lane.b32.xlu0 %v1148, 16
        %v3190 = vpop.permute.xlu0 %3189
        %3191 = vrot.lane.b32.xlu0 %v1150, 16
        %v3192 = vpop.permute.xlu0 %3191
        %3193 = vrot.lane.b32.xlu0 %v1153, 16
        %v3194 = vpop.permute.xlu0 %3193
        %3195 = vrot.lane.b32.xlu0 %v1155, 16
        %v3196 = vpop.permute.xlu0 %3195
        %3197 = vrot.lane.b32.xlu0 %v1158, 16
        %v3198 = vpop.permute.xlu0 %3197
        %3199 = vrot.lane.b32.xlu0 %v1160, 16
        %v3200 = vpop.permute.xlu0 %3199
        %3201 = vrot.lane.b32.xlu0 %v1163, 16
        %v3202 = vpop.permute.xlu0 %3201
        %3203 = vrot.lane.b32.xlu0 %v1165, 16
        %v3204 = vpop.permute.xlu0 %3203
        %3205 = vrot.lane.b32.xlu0 %v1168, 16
        %v3206 = vpop.permute.xlu0 %3205
        %3207 = vrot.lane.b32.xlu0 %v1170, 16
        %v3208 = vpop.permute.xlu0 %3207
        %3209 = vrot.lane.b32.xlu0 %v1173, 16
        %v3210 = vpop.permute.xlu0 %3209
        %3211 = vrot.lane.b32.xlu0 %v1175, 16
        %v3212 = vpop.permute.xlu0 %3211
        %3213 = vrot.lane.b32.xlu0 %v1178, 16
        %v3214 = vpop.permute.xlu0 %3213
        %3215 = vrot.lane.b32.xlu0 %v1180, 16
        %v3216 = vpop.permute.xlu0 %3215
        %3217 = vrot.lane.b32.xlu0 %v1183, 16
        %v3218 = vpop.permute.xlu0 %3217
        %3219 = vrot.lane.b32.xlu0 %v1185, 16
        %v3220 = vpop.permute.xlu0 %3219
        %3221 = vrot.lane.b32.xlu0 %v1340, 16
        %v3222 = vpop.permute.xlu0 %3221
        %3223 = vrot.lane.b32.xlu0 %v1342, 16
        %v3224 = vpop.permute.xlu0 %3223
        %3225 = vrot.lane.b32.xlu0 %v1393, 16
        %v3226 = vpop.permute.xlu0 %3225
        %3227 = vrot.lane.b32.xlu0 %v1395, 16
        %v3228 = vpop.permute.xlu0 %3227
        %3229 = vrot.lane.b32.xlu0 %v1115, 16
        %v3230 = vpop.permute.xlu0 %3229
        %3262 = vrot.lane.b32.xlu0 %v1196, 32
        %v3263 = vpop.permute.xlu0 %3262
        %3264 = vrot.lane.b32.xlu0 %v1198, 32
        %v3265 = vpop.permute.xlu0 %3264
        %3266 = vrot.lane.b32.xlu0 %v1201, 32
        %v3267 = vpop.permute.xlu0 %3266
        %3268 = vrot.lane.b32.xlu0 %v1203, 32
        %v3269 = vpop.permute.xlu0 %3268
        %3270 = vrot.lane.b32.xlu0 %v1206, 32
        %v3271 = vpop.permute.xlu0 %3270
        %3272 = vrot.lane.b32.xlu0 %v1208, 32
        %v3273 = vpop.permute.xlu0 %3272
        %3274 = vrot.lane.b32.xlu0 %v1211, 32
        %v3275 = vpop.permute.xlu0 %3274
        %3276 = vrot.lane.b32.xlu0 %v1213, 32
        %v3277 = vpop.permute.xlu0 %3276
        %3278 = vrot.lane.b32.xlu0 %v1216, 32
        %v3279 = vpop.permute.xlu0 %3278
        %3280 = vrot.lane.b32.xlu0 %v1218, 32
        %v3281 = vpop.permute.xlu0 %3280
        %3282 = vrot.lane.b32.xlu0 %v1221, 32
        %v3283 = vpop.permute.xlu0 %3282
        %3284 = vrot.lane.b32.xlu0 %v1223, 32
        %v3285 = vpop.permute.xlu0 %3284
        %3286 = vrot.lane.b32.xlu0 %v1226, 32
        %v3287 = vpop.permute.xlu0 %3286
        %3288 = vrot.lane.b32.xlu0 %v1228, 32
        %v3289 = vpop.permute.xlu0 %3288
        %3290 = vrot.lane.b32.xlu0 %v1231, 32
        %v3291 = vpop.permute.xlu0 %3290
        %3292 = vrot.lane.b32.xlu0 %v1233, 32
        %v3293 = vpop.permute.xlu0 %3292
        %3294 = vrot.lane.b32.xlu0 %v1236, 32
        %v3295 = vpop.permute.xlu0 %3294
        %3296 = vrot.lane.b32.xlu0 %v1238, 32
        %v3297 = vpop.permute.xlu0 %3296
        %3298 = vrot.lane.b32.xlu0 %v1241, 32
        %v3299 = vpop.permute.xlu0 %3298
        %3300 = vrot.lane.b32.xlu0 %v1243, 32
        %v3301 = vpop.permute.xlu0 %3300
        %3302 = vrot.lane.b32.xlu0 %v1246, 32
        %v3303 = vpop.permute.xlu0 %3302
        %3304 = vrot.lane.b32.xlu0 %v1248, 32
        %v3305 = vpop.permute.xlu0 %3304
        %3306 = vrot.lane.b32.xlu0 %v1251, 32
        %v3307 = vpop.permute.xlu0 %3306
        %3308 = vrot.lane.b32.xlu0 %v1253, 32
        %v3309 = vpop.permute.xlu0 %3308
        %3310 = vrot.lane.b32.xlu0 %v1256, 32
        %v3311 = vpop.permute.xlu0 %3310
        %3312 = vrot.lane.b32.xlu0 %v1258, 32
        %v3313 = vpop.permute.xlu0 %3312
        %3314 = vrot.lane.b32.xlu0 %v1345, 32
        %v3315 = vpop.permute.xlu0 %3314
        %3316 = vrot.lane.b32.xlu0 %v1347, 32
        %v3317 = vpop.permute.xlu0 %3316
        %3318 = vrot.lane.b32.xlu0 %v1398, 32
        %v3319 = vpop.permute.xlu0 %3318
        %3320 = vrot.lane.b32.xlu0 %v1400, 32
        %v3321 = vpop.permute.xlu0 %3320
        %3322 = vrot.lane.b32.xlu0 %v1188, 32
        %v3323 = vpop.permute.xlu0 %3322
        %3355 = vrot.lane.b32.xlu0 %v1268, 48
        %v3356 = vpop.permute.xlu0 %3355
        %3357 = vrot.lane.b32.xlu0 %v1270, 48
        %v3358 = vpop.permute.xlu0 %3357
        %3359 = vrot.lane.b32.xlu0 %v1273, 48
        %v3360 = vpop.permute.xlu0 %3359
        %3361 = vrot.lane.b32.xlu0 %v1275, 48
        %v3362 = vpop.permute.xlu0 %3361
        %3363 = vrot.lane.b32.xlu0 %v1278, 48
        %v3364 = vpop.permute.xlu0 %3363
        %3365 = vrot.lane.b32.xlu0 %v1280, 48
        %v3366 = vpop.permute.xlu0 %3365
        %3367 = vrot.lane.b32.xlu0 %v1283, 48
        %v3368 = vpop.permute.xlu0 %3367
        %3369 = vrot.lane.b32.xlu0 %v1285, 48
        %v3370 = vpop.permute.xlu0 %3369
        %3371 = vrot.lane.b32.xlu0 %v1288, 48
        %v3372 = vpop.permute.xlu0 %3371
        %3373 = vrot.lane.b32.xlu0 %v1290, 48
        %v3374 = vpop.permute.xlu0 %3373
        %3375 = vrot.lane.b32.xlu0 %v1293, 48
        %v3376 = vpop.permute.xlu0 %3375
        %3377 = vrot.lane.b32.xlu0 %v1295, 48
        %v3378 = vpop.permute.xlu0 %3377
        %3379 = vrot.lane.b32.xlu0 %v1298, 48
        %v3380 = vpop.permute.xlu0 %3379
        %3381 = vrot.lane.b32.xlu0 %v1300, 48
        %v3382 = vpop.permute.xlu0 %3381
        %3383 = vrot.lane.b32.xlu0 %v1303, 48
        %v3384 = vpop.permute.xlu0 %3383
        %3385 = vrot.lane.b32.xlu0 %v1305, 48
        %v3386 = vpop.permute.xlu0 %3385
        %3387 = vrot.lane.b32.xlu0 %v1308, 48
        %v3388 = vpop.permute.xlu0 %3387
        %3389 = vrot.lane.b32.xlu0 %v1310, 48
        %v3390 = vpop.permute.xlu0 %3389
        %3391 = vrot.lane.b32.xlu0 %v1313, 48
        %v3392 = vpop.permute.xlu0 %3391
        %3393 = vrot.lane.b32.xlu0 %v1315, 48
        %v3394 = vpop.permute.xlu0 %3393
        %3395 = vrot.lane.b32.xlu0 %v1318, 48
        %v3396 = vpop.permute.xlu0 %3395
        %3397 = vrot.lane.b32.xlu0 %v1320, 48
        %v3398 = vpop.permute.xlu0 %3397
        %3399 = vrot.lane.b32.xlu0 %v1323, 48
        %v3400 = vpop.permute.xlu0 %3399
        %3401 = vrot.lane.b32.xlu0 %v1325, 48
        %v3402 = vpop.permute.xlu0 %3401
        %3403 = vrot.lane.b32.xlu0 %v1328, 48
        %v3404 = vpop.permute.xlu0 %3403
        %3405 = vrot.lane.b32.xlu0 %v1330, 48
        %v3406 = vpop.permute.xlu0 %3405
        %3407 = vrot.lane.b32.xlu0 %v1381, 48
        %v3408 = vpop.permute.xlu0 %3407
        %3409 = vrot.lane.b32.xlu0 %v1383, 48
        %v3410 = vpop.permute.xlu0 %3409
        %3411 = vrot.lane.b32.xlu0 %v1403, 48
        %v3412 = vpop.permute.xlu0 %3411
        %3413 = vrot.lane.b32.xlu0 %v1405, 48
        %v3414 = vpop.permute.xlu0 %3413
        %3415 = vrot.lane.b32.xlu0 %v1260, 48
        %v3416 = vpop.permute.xlu0 %3415
        %3448 = vrot.lane.b32.xlu0 %v981, 64
        %v3449 = vpop.permute.xlu0 %3448
        %3450 = vrot.lane.b32.xlu0 %v852, 64
        %v3451 = vpop.permute.xlu0 %3450
        %3452 = vrot.lane.b32.xlu0 %v982, 64
        %v3453 = vpop.permute.xlu0 %3452
        %3454 = vrot.lane.b32.xlu0 %v858, 64
        %v3455 = vpop.permute.xlu0 %3454
        %3456 = vrot.lane.b32.xlu0 %v983, 64
        %v3457 = vpop.permute.xlu0 %3456
        %3458 = vrot.lane.b32.xlu0 %v864, 64
        %v3459 = vpop.permute.xlu0 %3458
        %3460 = vrot.lane.b32.xlu0 %v984, 64
        %v3461 = vpop.permute.xlu0 %3460
        %3462 = vrot.lane.b32.xlu0 %v870, 64
        %v3463 = vpop.permute.xlu0 %3462
        %3464 = vrot.lane.b32.xlu0 %v985, 64
        %v3465 = vpop.permute.xlu0 %3464
        %3466 = vrot.lane.b32.xlu0 %v876, 64
        %v3467 = vpop.permute.xlu0 %3466
        %3468 = vrot.lane.b32.xlu0 %v986, 64
        %v3469 = vpop.permute.xlu0 %3468
        %3470 = vrot.lane.b32.xlu0 %v882, 64
        %v3471 = vpop.permute.xlu0 %3470
        %3472 = vrot.lane.b32.xlu0 %v987, 64
        %v3473 = vpop.permute.xlu0 %3472
        %3474 = vrot.lane.b32.xlu0 %v888, 64
        %v3475 = vpop.permute.xlu0 %3474
        %3476 = vrot.lane.b32.xlu0 %v988, 64
        %v3477 = vpop.permute.xlu0 %3476
        %3478 = vrot.lane.b32.xlu0 %v894, 64
        %v3479 = vpop.permute.xlu0 %3478
        %3480 = vrot.lane.b32.xlu0 %v989, 64
        %v3481 = vpop.permute.xlu0 %3480
        %3482 = vrot.lane.b32.xlu0 %v900, 64
        %v3483 = vpop.permute.xlu0 %3482
        %3484 = vrot.lane.b32.xlu0 %v990, 64
        %v3485 = vpop.permute.xlu0 %3484
        %3486 = vrot.lane.b32.xlu0 %v906, 64
        %v3487 = vpop.permute.xlu0 %3486
        %3488 = vrot.lane.b32.xlu0 %v991, 64
        %v3489 = vpop.permute.xlu0 %3488
        %3490 = vrot.lane.b32.xlu0 %v912, 64
        %v3491 = vpop.permute.xlu0 %3490
        %3492 = vrot.lane.b32.xlu0 %v992, 64
        %v3493 = vpop.permute.xlu0 %3492
        %3494 = vrot.lane.b32.xlu0 %v918, 64
        %v3495 = vpop.permute.xlu0 %3494
        %3496 = vrot.lane.b32.xlu0 %v993, 64
        %v3497 = vpop.permute.xlu0 %3496
        %3498 = vrot.lane.b32.xlu0 %v924, 64
        %v3499 = vpop.permute.xlu0 %3498
        %3500 = vrot.lane.b32.xlu0 %v994, 64
        %v3501 = vpop.permute.xlu0 %3500
        %3502 = vrot.lane.b32.xlu0 %v930, 64
        %v3503 = vpop.permute.xlu0 %3502
        %3504 = vrot.lane.b32.xlu0 0.0, 64
        %v3505 = vpop.permute.xlu0 %3504
        %3535 = vrot.lane.b32.xlu0 %v1055, 80
        %v3536 = vpop.permute.xlu0 %3535
        %3537 = vrot.lane.b32.xlu0 %v1057, 80
        %v3538 = vpop.permute.xlu0 %3537
        %3539 = vrot.lane.b32.xlu0 %v1060, 80
        %v3540 = vpop.permute.xlu0 %3539
        %3541 = vrot.lane.b32.xlu0 %v1062, 80
        %v3542 = vpop.permute.xlu0 %3541
        %3543 = vrot.lane.b32.xlu0 %v1065, 80
        %v3544 = vpop.permute.xlu0 %3543
        %3545 = vrot.lane.b32.xlu0 %v1067, 80
        %v3546 = vpop.permute.xlu0 %3545
        %3547 = vrot.lane.b32.xlu0 %v1070, 80
        %v3548 = vpop.permute.xlu0 %3547
        %3549 = vrot.lane.b32.xlu0 %v1072, 80
        %v3550 = vpop.permute.xlu0 %3549
        %3551 = vrot.lane.b32.xlu0 %v1075, 80
        %v3552 = vpop.permute.xlu0 %3551
        %3553 = vrot.lane.b32.xlu0 %v1077, 80
        %v3554 = vpop.permute.xlu0 %3553
        %3555 = vrot.lane.b32.xlu0 %v1080, 80
        %v3556 = vpop.permute.xlu0 %3555
        %3557 = vrot.lane.b32.xlu0 %v1082, 80
        %v3558 = vpop.permute.xlu0 %3557
        %3559 = vrot.lane.b32.xlu0 %v1085, 80
        %v3560 = vpop.permute.xlu0 %3559
        %3561 = vrot.lane.b32.xlu0 %v1087, 80
        %v3562 = vpop.permute.xlu0 %3561
        %3563 = vrot.lane.b32.xlu0 %v1090, 80
        %v3564 = vpop.permute.xlu0 %3563
        %3565 = vrot.lane.b32.xlu0 %v1092, 80
        %v3566 = vpop.permute.xlu0 %3565
        %3567 = vrot.lane.b32.xlu0 %v1095, 80
        %v3568 = vpop.permute.xlu0 %3567
        %3569 = vrot.lane.b32.xlu0 %v1097, 80
        %v3570 = vpop.permute.xlu0 %3569
        %3571 = vrot.lane.b32.xlu0 %v1100, 80
        %v3572 = vpop.permute.xlu0 %3571
        %3573 = vrot.lane.b32.xlu0 %v1102, 80
        %v3574 = vpop.permute.xlu0 %3573
        %3575 = vrot.lane.b32.xlu0 %v1105, 80
        %v3576 = vpop.permute.xlu0 %3575
        %3577 = vrot.lane.b32.xlu0 %v1107, 80
        %v3578 = vpop.permute.xlu0 %3577
        %3579 = vrot.lane.b32.xlu0 %v1110, 80
        %v3580 = vpop.permute.xlu0 %3579
        %3581 = vrot.lane.b32.xlu0 %v1112, 80
        %v3582 = vpop.permute.xlu0 %3581
        %3583 = vrot.lane.b32.xlu0 %v1335, 80
        %v3584 = vpop.permute.xlu0 %3583
        %3585 = vrot.lane.b32.xlu0 %v1337, 80
        %v3586 = vpop.permute.xlu0 %3585
        %3587 = vrot.lane.b32.xlu0 %v1388, 80
        %v3588 = vpop.permute.xlu0 %3587
        %3589 = vrot.lane.b32.xlu0 %v1390, 80
        %v3590 = vpop.permute.xlu0 %3589
        %3591 = vrot.lane.b32.xlu0 %v1042, 80
        %v3592 = vpop.permute.xlu0 %3591
        %3622 = vrot.lane.b32.xlu0 %v1128, 96
        %v3623 = vpop.permute.xlu0 %3622
        %3624 = vrot.lane.b32.xlu0 %v1130, 96
        %v3625 = vpop.permute.xlu0 %3624
        %3626 = vrot.lane.b32.xlu0 %v1133, 96
        %v3627 = vpop.permute.xlu0 %3626
        %3628 = vrot.lane.b32.xlu0 %v1135, 96
        %v3629 = vpop.permute.xlu0 %3628
        %3630 = vrot.lane.b32.xlu0 %v1138, 96
        %v3631 = vpop.permute.xlu0 %3630
        %3632 = vrot.lane.b32.xlu0 %v1140, 96
        %v3633 = vpop.permute.xlu0 %3632
        %3634 = vrot.lane.b32.xlu0 %v1143, 96
        %v3635 = vpop.permute.xlu0 %3634
        %3636 = vrot.lane.b32.xlu0 %v1145, 96
        %v3637 = vpop.permute.xlu0 %3636
        %3638 = vrot.lane.b32.xlu0 %v1148, 96
        %v3639 = vpop.permute.xlu0 %3638
        %3640 = vrot.lane.b32.xlu0 %v1150, 96
        %v3641 = vpop.permute.xlu0 %3640
        %3642 = vrot.lane.b32.xlu0 %v1153, 96
        %v3643 = vpop.permute.xlu0 %3642
        %3644 = vrot.lane.b32.xlu0 %v1155, 96
        %v3645 = vpop.permute.xlu0 %3644
        %3646 = vrot.lane.b32.xlu0 %v1158, 96
        %v3647 = vpop.permute.xlu0 %3646
        %3648 = vrot.lane.b32.xlu0 %v1160, 96
        %v3649 = vpop.permute.xlu0 %3648
        %3650 = vrot.lane.b32.xlu0 %v1163, 96
        %v3651 = vpop.permute.xlu0 %3650
        %3652 = vrot.lane.b32.xlu0 %v1165, 96
        %v3653 = vpop.permute.xlu0 %3652
        %3654 = vrot.lane.b32.xlu0 %v1168, 96
        %v3655 = vpop.permute.xlu0 %3654
        %3656 = vrot.lane.b32.xlu0 %v1170, 96
        %v3657 = vpop.permute.xlu0 %3656
        %3658 = vrot.lane.b32.xlu0 %v1173, 96
        %v3659 = vpop.permute.xlu0 %3658
        %3660 = vrot.lane.b32.xlu0 %v1175, 96
        %v3661 = vpop.permute.xlu0 %3660
        %3662 = vrot.lane.b32.xlu0 %v1178, 96
        %v3663 = vpop.permute.xlu0 %3662
        %3664 = vrot.lane.b32.xlu0 %v1180, 96
        %v3665 = vpop.permute.xlu0 %3664
        %3666 = vrot.lane.b32.xlu0 %v1183, 96
        %v3667 = vpop.permute.xlu0 %3666
        %3668 = vrot.lane.b32.xlu0 %v1185, 96
        %v3669 = vpop.permute.xlu0 %3668
        %3670 = vrot.lane.b32.xlu0 %v1340, 96
        %v3671 = vpop.permute.xlu0 %3670
        %3672 = vrot.lane.b32.xlu0 %v1342, 96
        %v3673 = vpop.permute.xlu0 %3672
        %3674 = vrot.lane.b32.xlu0 %v1393, 96
        %v3675 = vpop.permute.xlu0 %3674
        %3676 = vrot.lane.b32.xlu0 %v1395, 96
        %v3677 = vpop.permute.xlu0 %3676
        %3678 = vrot.lane.b32.xlu0 %v1115, 96
        %v3679 = vpop.permute.xlu0 %3678
        %3709 = vrot.lane.b32.xlu0 %v1201, 112
        %v3710 = vpop.permute.xlu0 %3709
        %3711 = vrot.lane.b32.xlu0 %v1203, 112
        %v3712 = vpop.permute.xlu0 %3711
        %3713 = vrot.lane.b32.xlu0 %v1206, 112
        %v3714 = vpop.permute.xlu0 %3713
        %3715 = vrot.lane.b32.xlu0 %v1208, 112
        %v3716 = vpop.permute.xlu0 %3715
        %3717 = vrot.lane.b32.xlu0 %v1211, 112
        %v3718 = vpop.permute.xlu0 %3717
        %3719 = vrot.lane.b32.xlu0 %v1213, 112
        %v3720 = vpop.permute.xlu0 %3719
        %3721 = vrot.lane.b32.xlu0 %v1216, 112
        %v3722 = vpop.permute.xlu0 %3721
        %3723 = vrot.lane.b32.xlu0 %v1218, 112
        %v3724 = vpop.permute.xlu0 %3723
        %3725 = vrot.lane.b32.xlu0 %v1221, 112
        %v3726 = vpop.permute.xlu0 %3725
        %3727 = vrot.lane.b32.xlu0 %v1223, 112
        %v3728 = vpop.permute.xlu0 %3727
        %3729 = vrot.lane.b32.xlu0 %v1226, 112
        %v3730 = vpop.permute.xlu0 %3729
        %3731 = vrot.lane.b32.xlu0 %v1228, 112
        %v3732 = vpop.permute.xlu0 %3731
        %3733 = vrot.lane.b32.xlu0 %v1231, 112
        %v3734 = vpop.permute.xlu0 %3733
        %3735 = vrot.lane.b32.xlu0 %v1233, 112
        %v3736 = vpop.permute.xlu0 %3735
        %3737 = vrot.lane.b32.xlu0 %v1236, 112
        %v3738 = vpop.permute.xlu0 %3737
        %3739 = vrot.lane.b32.xlu0 %v1238, 112
        %v3740 = vpop.permute.xlu0 %3739
        %3741 = vrot.lane.b32.xlu0 %v1241, 112
        %v3742 = vpop.permute.xlu0 %3741
        %3743 = vrot.lane.b32.xlu0 %v1243, 112
        %v3744 = vpop.permute.xlu0 %3743
        %3745 = vrot.lane.b32.xlu0 %v1246, 112
        %v3746 = vpop.permute.xlu0 %3745
        %3747 = vrot.lane.b32.xlu0 %v1248, 112
        %v3748 = vpop.permute.xlu0 %3747
        %3749 = vrot.lane.b32.xlu0 %v1251, 112
        %v3750 = vpop.permute.xlu0 %3749
        %3751 = vrot.lane.b32.xlu0 %v1253, 112
        %v3752 = vpop.permute.xlu0 %3751
        %3753 = vrot.lane.b32.xlu0 %v1256, 112
        %v3754 = vpop.permute.xlu0 %3753
        %3755 = vrot.lane.b32.xlu0 %v1258, 112
        %v3756 = vpop.permute.xlu0 %3755
        %3757 = vrot.lane.b32.xlu0 %v1345, 112
        %v3758 = vpop.permute.xlu0 %3757
        %3759 = vrot.lane.b32.xlu0 %v1347, 112
        %v3760 = vpop.permute.xlu0 %3759
        %3761 = vrot.lane.b32.xlu0 %v1398, 112
        %v3762 = vpop.permute.xlu0 %3761
        %3763 = vrot.lane.b32.xlu0 %v1400, 112
        %v3764 = vpop.permute.xlu0 %3763
        %3765 = vrot.lane.b32.xlu0 %v1188, 112
        %v3766 = vpop.permute.xlu0 %3765
        %v3796 = vsel %vm2730, %v1050, %v3170
        %v3797 = vsel %vm2730, %v1052, %v3172
        %v3798 = vsel %vm2730, %v1055, %v3174
        %v3799 = vsel %vm2730, %v1057, %v3176
        %v3800 = vsel %vm2730, %v1060, %v3178
        %v3801 = vsel %vm2730, %v1062, %v3180
        %v3802 = vsel %vm2730, %v1065, %v3182
        %v3803 = vsel %vm2730, %v1067, %v3184
        %v3804 = vsel %vm2730, %v1070, %v3186
        %v3805 = vsel %vm2730, %v1072, %v3188
        %v3806 = vsel %vm2730, %v1075, %v3190
        %v3807 = vsel %vm2730, %v1077, %v3192
        %v3808 = vsel %vm2730, %v1080, %v3194
        %v3809 = vsel %vm2730, %v1082, %v3196
        %v3810 = vsel %vm2730, %v1085, %v3198
        %v3811 = vsel %vm2730, %v1087, %v3200
        %v3812 = vsel %vm2730, %v1090, %v3202
        %v3813 = vsel %vm2730, %v1092, %v3204
        %v3814 = vsel %vm2730, %v1095, %v3206
        %v3815 = vsel %vm2730, %v1097, %v3208
        %v3816 = vsel %vm2730, %v1100, %v3210
        %v3817 = vsel %vm2730, %v1102, %v3212
        %v3818 = vsel %vm2730, %v1105, %v3214
        %v3819 = vsel %vm2730, %v1107, %v3216
        %v3820 = vsel %vm2730, %v1110, %v3218
        %v3821 = vsel %vm2730, %v1112, %v3220
        %v3822 = vsel %vm2730, %v1335, %v3222
        %v3823 = vsel %vm2730, %v1337, %v3224
        %v3824 = vsel %vm2730, %v1388, %v3226
        %v3825 = vsel %vm2730, %v1390, %v3228
        %v3826 = vsel %vm2730, %v1042, %v3230
        %v3827 = vsel %vm2760, %v3796, %v3263
        %v3828 = vsel %vm2760, %v3797, %v3265
        %v3829 = vsel %vm2760, %v3798, %v3267
        %v3830 = vsel %vm2760, %v3799, %v3269
        %v3831 = vsel %vm2760, %v3800, %v3271
        %v3832 = vsel %vm2760, %v3801, %v3273
        %v3833 = vsel %vm2760, %v3802, %v3275
        %v3834 = vsel %vm2760, %v3803, %v3277
        %v3835 = vsel %vm2760, %v3804, %v3279
        %v3836 = vsel %vm2760, %v3805, %v3281
        %v3837 = vsel %vm2760, %v3806, %v3283
        %v3838 = vsel %vm2760, %v3807, %v3285
        %v3839 = vsel %vm2760, %v3808, %v3287
        %v3840 = vsel %vm2760, %v3809, %v3289
        %v3841 = vsel %vm2760, %v3810, %v3291
        %v3842 = vsel %vm2760, %v3811, %v3293
        %v3843 = vsel %vm2760, %v3812, %v3295
        %v3844 = vsel %vm2760, %v3813, %v3297
        %v3845 = vsel %vm2760, %v3814, %v3299
        %v3846 = vsel %vm2760, %v3815, %v3301
        %v3847 = vsel %vm2760, %v3816, %v3303
        %v3848 = vsel %vm2760, %v3817, %v3305
        %v3849 = vsel %vm2760, %v3818, %v3307
        %v3850 = vsel %vm2760, %v3819, %v3309
        %v3851 = vsel %vm2760, %v3820, %v3311
        %v3852 = vsel %vm2760, %v3821, %v3313
        %v3853 = vsel %vm2760, %v3822, %v3315
        %v3854 = vsel %vm2760, %v3823, %v3317
        %v3855 = vsel %vm2760, %v3824, %v3319
        %v3856 = vsel %vm2760, %v3825, %v3321
        %v3857 = vsel %vm2760, %v3826, %v3323
        %v3858 = vsel %vm2790, %v3827, %v3356
        %v3859 = vsel %vm2790, %v3828, %v3358
        %v3860 = vsel %vm2790, %v3829, %v3360
        %v3861 = vsel %vm2790, %v3830, %v3362
        %v3862 = vsel %vm2790, %v3831, %v3364
        %v3863 = vsel %vm2790, %v3832, %v3366
        %v3864 = vsel %vm2790, %v3833, %v3368
        %v3865 = vsel %vm2790, %v3834, %v3370
        %v3866 = vsel %vm2790, %v3835, %v3372
        %v3867 = vsel %vm2790, %v3836, %v3374
        %v3868 = vsel %vm2790, %v3837, %v3376
        %v3869 = vsel %vm2790, %v3838, %v3378
        %v3870 = vsel %vm2790, %v3839, %v3380
        %v3871 = vsel %vm2790, %v3840, %v3382
        %v3872 = vsel %vm2790, %v3841, %v3384
        %v3873 = vsel %vm2790, %v3842, %v3386
        %v3874 = vsel %vm2790, %v3843, %v3388
        %v3875 = vsel %vm2790, %v3844, %v3390
        %v3876 = vsel %vm2790, %v3845, %v3392
        %v3877 = vsel %vm2790, %v3846, %v3394
        %v3878 = vsel %vm2790, %v3847, %v3396
        %v3879 = vsel %vm2790, %v3848, %v3398
        %v3880 = vsel %vm2790, %v3849, %v3400
        %v3881 = vsel %vm2790, %v3850, %v3402
        %v3882 = vsel %vm2790, %v3851, %v3404
        %v3883 = vsel %vm2790, %v3852, %v3406
        %v3884 = vsel %vm2790, %v3853, %v3408
        %v3885 = vsel %vm2790, %v3854, %v3410
        %v3886 = vsel %vm2790, %v3855, %v3412
        %v3887 = vsel %vm2790, %v3856, %v3414
        %v3888 = vsel %vm2790, %v3857, %v3416
        %v3889 = vsel %vm2820, %v3858, %v3449
        %v3890 = vsel %vm2820, %v3859, %v3451
        %v3891 = vsel %vm2820, %v3860, %v3453
        %v3892 = vsel %vm2820, %v3861, %v3455
        %v3893 = vsel %vm2820, %v3862, %v3457
        %v3894 = vsel %vm2820, %v3863, %v3459
        %v3895 = vsel %vm2820, %v3864, %v3461
        %v3896 = vsel %vm2820, %v3865, %v3463
        %v3897 = vsel %vm2820, %v3866, %v3465
        %v3898 = vsel %vm2820, %v3867, %v3467
        %v3899 = vsel %vm2820, %v3868, %v3469
        %v3900 = vsel %vm2820, %v3869, %v3471
        %v3901 = vsel %vm2820, %v3870, %v3473
        %v3902 = vsel %vm2820, %v3871, %v3475
        %v3903 = vsel %vm2820, %v3872, %v3477
        %v3904 = vsel %vm2820, %v3873, %v3479
        %v3905 = vsel %vm2820, %v3874, %v3481
        %v3906 = vsel %vm2820, %v3875, %v3483
        %v3907 = vsel %vm2820, %v3876, %v3485
        %v3908 = vsel %vm2820, %v3877, %v3487
        %v3909 = vsel %vm2820, %v3878, %v3489
        %v3910 = vsel %vm2820, %v3879, %v3491
        %v3911 = vsel %vm2820, %v3880, %v3493
        %v3912 = vsel %vm2820, %v3881, %v3495
        %v3913 = vsel %vm2820, %v3882, %v3497
        %v3914 = vsel %vm2820, %v3883, %v3499
        %v3915 = vsel %vm2820, %v3884, %v3501
        %v3916 = vsel %vm2820, %v3885, %v3503
        %v3917 = vsel %vm2820, %v3886, %v3505
        %v3918 = vsel %vm2820, %v3887, %v3505
        %v3919 = vsel %vm2820, %v3888, %v3505
        %v3920 = vsel %vm2850, %v3889, %v3536
        %v3921 = vsel %vm2850, %v3890, %v3538
        %v3922 = vsel %vm2850, %v3891, %v3540
        %v3923 = vsel %vm2850, %v3892, %v3542
        %v3924 = vsel %vm2850, %v3893, %v3544
        %v3925 = vsel %vm2850, %v3894, %v3546
        %v3926 = vsel %vm2850, %v3895, %v3548
        %v3927 = vsel %vm2850, %v3896, %v3550
        %v3928 = vsel %vm2850, %v3897, %v3552
        %v3929 = vsel %vm2850, %v3898, %v3554
        %v3930 = vsel %vm2850, %v3899, %v3556
        %v3931 = vsel %vm2850, %v3900, %v3558
        %v3932 = vsel %vm2850, %v3901, %v3560
        %v3933 = vsel %vm2850, %v3902, %v3562
        %v3934 = vsel %vm2850, %v3903, %v3564
        %v3935 = vsel %vm2850, %v3904, %v3566
        %v3936 = vsel %vm2850, %v3905, %v3568
        %v3937 = vsel %vm2850, %v3906, %v3570
        %v3938 = vsel %vm2850, %v3907, %v3572
        %v3939 = vsel %vm2850, %v3908, %v3574
        %v3940 = vsel %vm2850, %v3909, %v3576
        %v3941 = vsel %vm2850, %v3910, %v3578
        %v3942 = vsel %vm2850, %v3911, %v3580
        %v3943 = vsel %vm2850, %v3912, %v3582
        %v3944 = vsel %vm2850, %v3913, %v3584
        %v3945 = vsel %vm2850, %v3914, %v3586
        %v3946 = vsel %vm2850, %v3915, %v3588
        %v3947 = vsel %vm2850, %v3916, %v3590
        %v3948 = vsel %vm2850, %v3917, %v3592
        %v3949 = vsel %vm2850, %v3918, %v3592
        %v3950 = vsel %vm2850, %v3919, %v3592
        %v3951 = vsel %vm2882, %v3920, %v3623
        %v3952 = vsel %vm2882, %v3921, %v3625
        %v3953 = vsel %vm2882, %v3922, %v3627
        %v3954 = vsel %vm2882, %v3923, %v3629
        %v3955 = vsel %vm2882, %v3924, %v3631
        %v3956 = vsel %vm2882, %v3925, %v3633
        %v3957 = vsel %vm2882, %v3926, %v3635
        %v3958 = vsel %vm2882, %v3927, %v3637
        %v3959 = vsel %vm2882, %v3928, %v3639
        %v3960 = vsel %vm2882, %v3929, %v3641
        %v3961 = vsel %vm2882, %v3930, %v3643
        %v3962 = vsel %vm2882, %v3931, %v3645
        %v3963 = vsel %vm2882, %v3932, %v3647
        %v3964 = vsel %vm2882, %v3933, %v3649
        %v3965 = vsel %vm2882, %v3934, %v3651
        %v3966 = vsel %vm2882, %v3935, %v3653
        %v3967 = vsel %vm2882, %v3936, %v3655
        %v3968 = vsel %vm2882, %v3937, %v3657
        %v3969 = vsel %vm2882, %v3938, %v3659
        %v3970 = vsel %vm2882, %v3939, %v3661
        %v3971 = vsel %vm2882, %v3940, %v3663
        %v3972 = vsel %vm2882, %v3941, %v3665
        %v3973 = vsel %vm2882, %v3942, %v3667
        %v3974 = vsel %vm2882, %v3943, %v3669
        %v3975 = vsel %vm2882, %v3944, %v3671
        %v3976 = vsel %vm2882, %v3945, %v3673
        %v3977 = vsel %vm2882, %v3946, %v3675
        %v3978 = vsel %vm2882, %v3947, %v3677
        %v3979 = vsel %vm2882, %v3948, %v3679
        %v3980 = vsel %vm2882, %v3949, %v3679
        %v3981 = vsel %vm2882, %v3950, %v3679
        %v3982 = vsel %vm2914, %v3951, %v3710
        %v3983 = vsel %vm2914, %v3952, %v3712
        %v3984 = vsel %vm2914, %v3953, %v3714
        %v3985 = vsel %vm2914, %v3954, %v3716
        %v3986 = vsel %vm2914, %v3955, %v3718
        %v3987 = vsel %vm2914, %v3956, %v3720
        %v3988 = vsel %vm2914, %v3957, %v3722
        %v3989 = vsel %vm2914, %v3958, %v3724
        %v3990 = vsel %vm2914, %v3959, %v3726
        %v3991 = vsel %vm2914, %v3960, %v3728
        %v3992 = vsel %vm2914, %v3961, %v3730
        %v3993 = vsel %vm2914, %v3962, %v3732
        %v3994 = vsel %vm2914, %v3963, %v3734
        %v3995 = vsel %vm2914, %v3964, %v3736
        %v3996 = vsel %vm2914, %v3965, %v3738
        %v3997 = vsel %vm2914, %v3966, %v3740
        %v3998 = vsel %vm2914, %v3967, %v3742
        %v3999 = vsel %vm2914, %v3968, %v3744
        %v4000 = vsel %vm2914, %v3969, %v3746
        %v4001 = vsel %vm2914, %v3970, %v3748
        %v4002 = vsel %vm2914, %v3971, %v3750
        %v4003 = vsel %vm2914, %v3972, %v3752
        %v4004 = vsel %vm2914, %v3973, %v3754
        %v4005 = vsel %vm2914, %v3974, %v3756
        %v4006 = vsel %vm2914, %v3975, %v3758
        %v4007 = vsel %vm2914, %v3976, %v3760
        %v4008 = vsel %vm2914, %v3977, %v3762
        %v4009 = vsel %vm2914, %v3978, %v3764
        %v4010 = vsel %vm2914, %v3979, %v3766
        %v4011 = vsel %vm2914, %v3980, %v3766
        %v4012 = vsel %vm2914, %v3981, %v3766
        %v4013 = vld [vmem:[%s3] sm:$0xff]
        %v4014 = vld [vmem:[%s3 + $0x8] sm:$0xff]
        %v4015 = vld [vmem:[%s3 + $0x10] sm:$0xff]
        %v4016 = vld [vmem:[%s3 + $0x18] sm:$0xff]
        %v4017 = vld [vmem:[%s3 + $0x20] sm:$0xff]
        %v4018 = vld [vmem:[%s3 + $0x28] sm:$0xff]
        %v4019 = vld [vmem:[%s3 + $0x30] sm:$0xff]
        %v4020 = vld [vmem:[%s3 + $0x38] sm:$0xff]
        %v4021 = vld [vmem:[%s3 + $0x40] sm:$0xff]
        %v4022 = vld [vmem:[%s3 + $0x48] sm:$0xff]
        %v4023 = vld [vmem:[%s3 + $0x50] sm:$0xff]
        %v4024 = vld [vmem:[%s3 + $0x58] sm:$0xff]
        %v4025 = vld [vmem:[%s3 + $0x60] sm:$0xff]
        %v4026 = vld [vmem:[%s3 + $0x68] sm:$0xff]
        %v4027 = vld [vmem:[%s3 + $0x70] sm:$0xff]
        %v4028 = vld [vmem:[%s3 + $0x78] sm:$0xff]
        %v4029 = vld [vmem:[%s3 + $0x80] sm:$0xff]
        %v4030 = vld [vmem:[%s3 + $0x88] sm:$0xff]
        %v4031 = vld [vmem:[%s3 + $0x90] sm:$0xff]
        %v4032 = vld [vmem:[%s3 + $0x98] sm:$0xff]
        %v4033 = vld [vmem:[%s3 + $0xa0] sm:$0xff]
        %v4034 = vld [vmem:[%s3 + $0xa8] sm:$0xff]
        %v4035 = vld [vmem:[%s3 + $0xb0] sm:$0xff]
        %v4036 = vld [vmem:[%s3 + $0xb8] sm:$0xff]
        %v4037 = vld [vmem:[%s3 + $0xc0] sm:$0xff]
        %v4038 = vld [vmem:[%s3 + $0xc8] sm:$0xff]
        %v4039 = vld [vmem:[%s3 + $0xd0] sm:$0xff]
        %v4040 = vld [vmem:[%s3 + $0xd8] sm:$0xff]
        %v4041 = vld [vmem:[%s3 + $0xe0] sm:$0xff]
        %v4042 = vld [vmem:[%s3 + $0xe8] sm:$0xff]
        %v4043 = vld [vmem:[%s3 + $0xf0] sm:$0xff]
        %v4044 = vld [vmem:[%s3 + $0xf8] sm:$0xff]
        %v4045 = vld [vmem:[%s3 + $0x100] sm:$0xff]
        %v4046 = vld [vmem:[%s3 + $0x108] sm:$0xff]
        %v4047 = vld [vmem:[%s3 + $0x110] sm:$0xff]
        %v4048 = vld [vmem:[%s3 + $0x118] sm:$0xff]
        %v4049 = vld [vmem:[%s3 + $0x120] sm:$0xff]
        %v4050 = vld [vmem:[%s3 + $0x128] sm:$0xff]
        %v4051 = vld [vmem:[%s3 + $0x130] sm:$0xff]
        %v4052 = vld [vmem:[%s3 + $0x138] sm:$0xff]
        %v4053 = vld [vmem:[%s3 + $0x140] sm:$0xff]
        %v4054 = vld [vmem:[%s3 + $0x148] sm:$0xff]
        %v4055 = vld [vmem:[%s3 + $0x150] sm:$0xff]
        %v4056 = vld [vmem:[%s3 + $0x158] sm:$0xff]
        %v4057 = vld [vmem:[%s3 + $0x160] sm:$0xff]
        %v4058 = vld [vmem:[%s3 + $0x168] sm:$0xff]
        %v4059 = vld [vmem:[%s3 + $0x170] sm:$0xff]
        %v4060 = vld [vmem:[%s3 + $0x178] sm:$0xff]
        %v4061 = vld [vmem:[%s3 + $0x180] sm:$0xff]
        %v4062 = vld [vmem:[%s3 + $0x188] sm:$0xff]
        %v4063 = vld [vmem:[%s4] sm:$0x1]
        %v4065 = vlaneseq
        %v4066 = vshrl.u32 %v4065, 7
        %v4067 = vsub.s32 0, %v4066
        %v4068 = vrot.slane %v4063, %v4067
        %v4070 = vsel %vm2730, %v1273, 0
        %v4072 = vsel %vm2730, %v1275, 0
        %v4074 = vsel %vm2730, %v1278, 0
        %v4076 = vsel %vm2730, %v1280, 0
        %v4078 = vsel %vm2730, %v1283, 0
        %v4080 = vsel %vm2730, %v1285, 0
        %v4082 = vsel %vm2730, %v1288, 0
        %v4084 = vsel %vm2730, %v1290, 0
        %v4086 = vsel %vm2730, %v1293, 0
        %v4088 = vsel %vm2730, %v1295, 0
        %v4090 = vsel %vm2730, %v1298, 0
        %v4092 = vsel %vm2730, %v1300, 0
        %v4094 = vsel %vm2730, %v1303, 0
        %v4096 = vsel %vm2730, %v1305, 0
        %v4098 = vsel %vm2730, %v1308, 0
        %v4100 = vsel %vm2730, %v1310, 0
        %v4102 = vsel %vm2730, %v1313, 0
        %v4104 = vsel %vm2730, %v1315, 0
        %v4106 = vsel %vm2730, %v1318, 0
        %v4108 = vsel %vm2730, %v1320, 0
        %v4110 = vsel %vm2730, %v1323, 0
        %v4112 = vsel %vm2730, %v1325, 0
        %v4114 = vsel %vm2730, %v1328, 0
        %v4116 = vsel %vm2730, %v1330, 0
        %v4118 = vsel %vm2730, %v1381, 0
        %v4120 = vsel %vm2730, %v1383, 0
        %v4122 = vsel %vm2730, %v1403, 0
        %v4124 = vsel %vm2730, %v1405, 0
        %v4126 = vsel %vm2730, %v1260, 0
        %4128 = vmatprep.subr.mxu0 0.0
        %4129 = vmatpush1.msra.mxu0 %v4013
        %4130 = vmatprep.subr.mxu0 0.0
        %4131 = vmatpush1.msra.mxu0 %v4014
        %4132 = vmatprep.subr.mxu0 0.0
        %4133 = vmatpush1.msra.mxu0 %v4015
        %4134 = vmatprep.subr.mxu0 0.0
        %4135 = vmatpush1.msra.mxu0 %v4016
        %4136 = vmatprep.subr.mxu0 0.0
        %4137 = vmatpush1.msra.mxu0 %v4017
        %4138 = vmatprep.subr.mxu0 0.0
        %4139 = vmatpush1.msra.mxu0 %v4018
        %4140 = vmatprep.subr.mxu0 0.0
        %4141 = vmatpush1.msra.mxu0 %v4019
        %4142 = vmatprep.subr.mxu0 0.0
        %4143 = vmatpush1.msra.mxu0 %v4020
        %4144 = vmatprep.subr.mxu0 0.0
        %4145 = vmatpush1.msra.mxu0 %v4021
        %4146 = vmatprep.subr.mxu0 0.0
        %4147 = vmatpush1.msra.mxu0 %v4022
        %4148 = vmatprep.subr.mxu0 0.0
        %4149 = vmatpush1.msra.mxu0 %v4023
        %4150 = vmatprep.subr.mxu0 0.0
        %4151 = vmatpush1.msra.mxu0 %v4024
        %4152 = vmatprep.subr.mxu0 0.0
        %4153 = vmatpush1.msra.mxu0 %v4025
        %4154 = vmatprep.subr.mxu0 0.0
        %4155 = vmatpush1.msra.mxu0 %v4026
        %4156 = vmatprep.subr.mxu0 0.0
        %4157 = vmatpush1.msra.mxu0 %v4027
        %4158 = vmatprep.subr.mxu0 0.0
        %4159 = vmatpush1.msra.mxu0 %v4028
        %4160 = vmatprep.subr.mxu0 0.0
        %4161 = vmatpush1.msra.mxu0 %v4029
        %4162 = vmatprep.subr.mxu0 0.0
        %4163 = vmatpush1.msra.mxu0 %v4030
        %4164 = vmatprep.subr.mxu0 0.0
        %4165 = vmatpush1.msra.mxu0 %v4031
        %4166 = vmatprep.subr.mxu0 0.0
        %4167 = vmatpush1.msra.mxu0 %v4032
        %4168 = vmatprep.subr.mxu0 0.0
        %4169 = vmatpush1.msra.mxu0 %v4033
        %4170 = vmatprep.subr.mxu0 0.0
        %4171 = vmatpush1.msra.mxu0 %v4034
        %4172 = vmatprep.subr.mxu0 0.0
        %4173 = vmatpush1.msra.mxu0 %v4035
        %4174 = vmatprep.subr.mxu0 0.0
        %4175 = vmatpush1.msra.mxu0 %v4036
        %4176 = vmatprep.subr.mxu0 0.0
        %4177 = vmatpush1.msra.mxu0 %v4037
        %4178 = vmatprep.subr.mxu0 0.0
        %4179 = vmatpush1.msra.mxu0 %v4038
        %4180 = vmatprep.subr.mxu0 0.0
        %4181 = vmatpush1.msra.mxu0 %v4039
        %4182 = vmatprep.subr.mxu0 0.0
        %4183 = vmatpush1.msra.mxu0 %v4040
        %4184 = vmatprep.subr.mxu0 0.0
        %4185 = vmatpush1.msra.mxu0 %v4041
        %4186 = vmatprep.subr.mxu0 0.0
        %4187 = vmatpush1.msra.mxu0 %v4042
        %4188 = vmatprep.subr.mxu0 0.0
        %4189 = vmatpush1.msra.mxu0 %v4043
        %4190 = vmatprep.subr.mxu0 0.0
        %4191 = vmatpush1.msra.mxu0 %v4044
        %4192 = vmatprep.mubr.f32.mxu0 %v3137
        %4193 = vmatmul.mubr.f32.gmra.mrb[0].mxu0 %v2915
        %v4194 = vpop.f32.mrb[0].mxu0
        %v4195 = vadd.f32 %v4068, %v4194
        %v4196 = vpop.f32.mrb[0].mxu0
        %4197 = vmatprep.mubr.f32.mxu0 %v3138
        %4198 = vmatmul.mubr.f32.gmra.mrb[0].mxu0 %v2915
        %v4199 = vpop.f32.mrb[0].mxu0
        %v4200 = vadd.f32 %v4068, %v4199
        %v4201 = vpop.f32.mrb[0].mxu0
        %4202 = vmatprep.mubr.f32.mxu0 %v3139
        %4203 = vmatmul.mubr.f32.gmra.mrb[0].mxu0 %v2916
        %v4204 = vpop.f32.mrb[0].mxu0
        %v4205 = vadd.f32 %v4068, %v4204
        %v4206 = vpop.f32.mrb[0].mxu0
        %4207 = vmatprep.mubr.f32.mxu0 %v3140
        %4208 = vmatmul.mubr.f32.gmra.mrb[0].mxu0 %v2917
        %v4209 = vpop.f32.mrb[0].mxu0
        %v4210 = vadd.f32 %v4068, %v4209
        %v4211 = vpop.f32.mrb[0].mxu0
        %4212 = vmatprep.mubr.f32.mxu0 %v3141
        %4213 = vmatmul.mubr.f32.gmra.mrb[0].mxu0 %v2918
        %v4214 = vpop.f32.mrb[0].mxu0
        %v4215 = vadd.f32 %v4068, %v4214
        %v4216 = vpop.f32.mrb[0].mxu0
        %4217 = vmatprep.mubr.f32.mxu0 %v3142
        %4218 = vmatmul.mubr.f32.gmra.mrb[0].mxu0 %v2919
        %v4219 = vpop.f32.mrb[0].mxu0
        %v4220 = vadd.f32 %v4068, %v4219
        %v4221 = vpop.f32.mrb[0].mxu0
        %4222 = vmatprep.mubr.f32.mxu0 %v3143
        %4223 = vmatmul.mubr.f32.gmra.mrb[0].mxu0 %v2920
        %v4224 = vpop.f32.mrb[0].mxu0
        %v4225 = vadd.f32 %v4068, %v4224
        %v4226 = vpop.f32.mrb[0].mxu0
        %4227 = vmatprep.mubr.f32.mxu0 %v3144
        %4228 = vmatmul.mubr.f32.gmra.mrb[0].mxu0 %v2921
        %v4229 = vpop.f32.mrb[0].mxu0
        %v4230 = vadd.f32 %v4068, %v4229
        %v4231 = vpop.f32.mrb[0].mxu0
        %4232 = vmatprep.mubr.f32.mxu0 %v3145
        %4233 = vmatmul.mubr.f32.gmra.mrb[0].mxu0 %v2922
        %v4234 = vpop.f32.mrb[0].mxu0
        %v4235 = vadd.f32 %v4068, %v4234
        %v4236 = vpop.f32.mrb[0].mxu0
        %4237 = vmatprep.mubr.f32.mxu0 %v3146
        %4238 = vmatmul.mubr.f32.gmra.mrb[0].mxu0 %v2923
        %v4239 = vpop.f32.mrb[0].mxu0
        %v4240 = vadd.f32 %v4068, %v4239
        %v4241 = vpop.f32.mrb[0].mxu0
        %4242 = vmatprep.mubr.f32.mxu0 %v3147
        %4243 = vmatmul.mubr.f32.gmra.mrb[0].mxu0 %v2924
        %v4244 = vpop.f32.mrb[0].mxu0
        %v4245 = vadd.f32 %v4068, %v4244
        %v4246 = vpop.f32.mrb[0].mxu0
        %4247 = vmatprep.mubr.f32.mxu0 %v3148
        %4248 = vmatmul.mubr.f32.gmra.mrb[0].mxu0 %v2925
        %v4249 = vpop.f32.mrb[0].mxu0
        %v4250 = vadd.f32 %v4068, %v4249
        %v4251 = vpop.f32.mrb[0].mxu0
        %4252 = vmatprep.mubr.f32.mxu0 %v3149
        %4253 = vmatmul.mubr.f32.gmra.mrb[0].mxu0 %v2926
        %v4254 = vpop.f32.mrb[0].mxu0
        %v4255 = vadd.f32 %v4068, %v4254
        %v4256 = vpop.f32.mrb[0].mxu0
        %4257 = vmatprep.mubr.f32.mxu0 %v3150
        %4258 = vmatmul.mubr.f32.gmra.mrb[0].mxu0 %v2927
        %v4259 = vpop.f32.mrb[0].mxu0
        %v4260 = vadd.f32 %v4068, %v4259
        %v4261 = vpop.f32.mrb[0].mxu0
        %4262 = vmatprep.mubr.f32.mxu0 %v3151
        %4263 = vmatmul.mubr.f32.gmra.mrb[0].mxu0 %v2928
        %v4264 = vpop.f32.mrb[0].mxu0
        %v4265 = vadd.f32 %v4068, %v4264
        %v4266 = vpop.f32.mrb[0].mxu0
        %4267 = vmatprep.mubr.f32.mxu0 %v3152
        %4268 = vmatmul.mubr.f32.gmra.mrb[0].mxu0 %v2929
        %v4269 = vpop.f32.mrb[0].mxu0
        %v4270 = vadd.f32 %v4068, %v4269
        %v4271 = vpop.f32.mrb[0].mxu0
        %4272 = vmatprep.mubr.f32.mxu0 %v3153
        %4273 = vmatmul.mubr.f32.gmra.mrb[0].mxu0 %v2930
        %v4274 = vpop.f32.mrb[0].mxu0
        %v4275 = vadd.f32 %v4068, %v4274
        %v4276 = vpop.f32.mrb[0].mxu0
        %4277 = vmatprep.mubr.f32.mxu0 %v3154
        %4278 = vmatmul.mubr.f32.gmra.mrb[0].mxu0 %v2931
        %v4279 = vpop.f32.mrb[0].mxu0
        %v4280 = vadd.f32 %v4068, %v4279
        %v4281 = vpop.f32.mrb[0].mxu0
        %4282 = vmatprep.mubr.f32.mxu0 %v3155
        %4283 = vmatmul.mubr.f32.gmra.mrb[0].mxu0 %v2932
        %v4284 = vpop.f32.mrb[0].mxu0
        %v4285 = vadd.f32 %v4068, %v4284
        %v4286 = vpop.f32.mrb[0].mxu0
        %4287 = vmatprep.mubr.f32.mxu0 %v3156
        %4288 = vmatmul.mubr.f32.gmra.mrb[0].mxu0 %v2933
        %v4289 = vpop.f32.mrb[0].mxu0
        %v4290 = vadd.f32 %v4068, %v4289
        %v4291 = vpop.f32.mrb[0].mxu0
        %4292 = vmatprep.mubr.f32.mxu0 %v3157
        %4293 = vmatmul.mubr.f32.gmra.mrb[0].mxu0 %v2934
        %v4294 = vpop.f32.mrb[0].mxu0
        %v4295 = vadd.f32 %v4068, %v4294
        %v4296 = vpop.f32.mrb[0].mxu0
        %4297 = vmatprep.mubr.f32.mxu0 %v3158
        %4298 = vmatmul.mubr.f32.gmra.mrb[0].mxu0 %v2935
        %v4299 = vpop.f32.mrb[0].mxu0
        %v4300 = vadd.f32 %v4068, %v4299
        %v4301 = vpop.f32.mrb[0].mxu0
        %4302 = vmatprep.mubr.f32.mxu0 %v3159
        %4303 = vmatmul.mubr.f32.gmra.mrb[0].mxu0 %v2936
        %v4304 = vpop.f32.mrb[0].mxu0
        %v4305 = vadd.f32 %v4068, %v4304
        %v4306 = vpop.f32.mrb[0].mxu0
        %4307 = vmatprep.mubr.f32.mxu0 %v3160
        %4308 = vmatmul.mubr.f32.gmra.mrb[0].mxu0 %v2937
        %v4309 = vpop.f32.mrb[0].mxu0
        %v4310 = vadd.f32 %v4068, %v4309
        %v4311 = vpop.f32.mrb[0].mxu0
        %4312 = vmatprep.mubr.f32.mxu0 %v3161
        %4313 = vmatmul.mubr.f32.gmra.mrb[0].mxu0 %v2938
        %v4314 = vpop.f32.mrb[0].mxu0
        %v4315 = vadd.f32 %v4068, %v4314
        %v4316 = vpop.f32.mrb[0].mxu0
        %4317 = vmatprep.mubr.f32.mxu0 %v3162
        %4318 = vmatmul.mubr.f32.gmra.mrb[0].mxu0 %v2939
        %v4319 = vpop.f32.mrb[0].mxu0
        %v4320 = vadd.f32 %v4068, %v4319
        %v4321 = vpop.f32.mrb[0].mxu0
        %4322 = vmatprep.mubr.f32.mxu0 %v3163
        %4323 = vmatmul.mubr.f32.gmra.mrb[0].mxu0 %v2940
        %v4324 = vpop.f32.mrb[0].mxu0
        %v4325 = vadd.f32 %v4068, %v4324
        %v4326 = vpop.f32.mrb[0].mxu0
        %4327 = vmatprep.mubr.f32.mxu0 %v3164
        %4328 = vmatmul.mubr.f32.gmra.mrb[0].mxu0 %v2941
        %v4329 = vpop.f32.mrb[0].mxu0
        %v4330 = vadd.f32 %v4068, %v4329
        %v4331 = vpop.f32.mrb[0].mxu0
        %4332 = vmatprep.mubr.f32.mxu0 %v3165
        %4333 = vmatmul.mubr.f32.gmra.mrb[0].mxu0 %v2942
        %v4334 = vpop.f32.mrb[0].mxu0
        %v4335 = vadd.f32 %v4068, %v4334
        %v4336 = vpop.f32.mrb[0].mxu0
        %4337 = vmatprep.mubr.f32.mxu0 %v3166
        %4338 = vmatmul.mubr.f32.gmra.mrb[0].mxu0 %v2943
        %v4339 = vpop.f32.mrb[0].mxu0
        %v4340 = vadd.f32 %v4068, %v4339
        %v4341 = vpop.f32.mrb[0].mxu0
        %4342 = vmatprep.mubr.f32.mxu0 %v3167
        %4343 = vmatmul.mubr.f32.gmra.mrb[0].mxu0 %v2944
        %v4344 = vpop.f32.mrb[0].mxu0
        %v4345 = vadd.f32 %v4068, %v4344
        %v4346 = vpop.f32.mrb[0].mxu0
        %4347 = vmatprep.mubr.f32.mxu0 %v3168
        %4348 = vmatmul.mubr.f32.gmra.mrb[0].mxu0 %v2945
        %v4349 = vpop.f32.mrb[0].mxu0
        %v4350 = vadd.f32 %v4068, %v4349
        %v4351 = vpop.f32.mrb[0].mxu0
        %4352 = vdwg.mxu0
        %4353 = vmatprep.subr.mxu0 0.0
        %4354 = vmatpush1.msra.mxu0 %v4045
        %4355 = vmatprep.subr.mxu0 0.0
        %4356 = vmatpush1.msra.mxu0 %v4046
        %4357 = vmatprep.subr.mxu0 0.0
        %4358 = vmatpush1.msra.mxu0 %v4047
        %4359 = vmatprep.subr.mxu0 0.0
        %4360 = vmatpush1.msra.mxu0 %v4048
        %4361 = vmatprep.subr.mxu0 0.0
        %4362 = vmatpush1.msra.mxu0 %v4049
        %4363 = vmatprep.subr.mxu0 0.0
        %4364 = vmatpush1.msra.mxu0 %v4050
        %4365 = vmatprep.subr.mxu0 0.0
        %4366 = vmatpush1.msra.mxu0 %v4051
        %4367 = vmatprep.subr.mxu0 0.0
        %4368 = vmatpush1.msra.mxu0 %v4052
        %4369 = vmatprep.subr.mxu0 0.0
        %4370 = vmatpush1.msra.mxu0 %v4053
        %4371 = vmatprep.subr.mxu0 0.0
        %4372 = vmatpush1.msra.mxu0 %v4054
        %4373 = vmatprep.subr.mxu0 0.0
        %4374 = vmatpush1.msra.mxu0 %v4055
        %4375 = vmatprep.subr.mxu0 0.0
        %4376 = vmatpush1.msra.mxu0 %v4056
        %4377 = vmatprep.subr.mxu0 0.0
        %4378 = vmatpush1.msra.mxu0 %v4057
        %4379 = vmatprep.subr.mxu0 0.0
        %4380 = vmatpush1.msra.mxu0 %v4058
        %4381 = vmatprep.subr.mxu0 0.0
        %4382 = vmatpush1.msra.mxu0 %v4059
        %4383 = vmatprep.subr.mxu0 0.0
        %4384 = vmatpush1.msra.mxu0 %v4060
        %4385 = vmatprep.subr.mxu0 0.0
        %4386 = vmatpush1.msra.mxu0 %v4061
        %4387 = vmatprep.subr.mxu0 0.0
        %4388 = vmatpush1.msra.mxu0 %v4062
        %4389 = vmatprep.subr.mxu0 0.0
        %4390 = vmatpush1.msra.mxu0 0.0
        %4391 = vmatprep.subr.mxu0 0.0
        %4392 = vmatpush1.msra.mxu0 0.0
        %4393 = vmatprep.subr.mxu0 0.0
        %4394 = vmatpush1.msra.mxu0 0.0
        %4395 = vmatprep.subr.mxu0 0.0
        %4396 = vmatpush1.msra.mxu0 0.0
        %4397 = vmatprep.subr.mxu0 0.0
        %4398 = vmatpush1.msra.mxu0 0.0
        %4399 = vmatprep.subr.mxu0 0.0
        %4400 = vmatpush1.msra.mxu0 0.0
        %4401 = vmatprep.subr.mxu0 0.0
        %4402 = vmatpush1.msra.mxu0 0.0
        %4403 = vmatprep.subr.mxu0 0.0
        %4404 = vmatpush1.msra.mxu0 0.0
        %4405 = vmatprep.subr.mxu0 0.0
        %4406 = vmatpush1.msra.mxu0 0.0
        %4407 = vmatprep.subr.mxu0 0.0
        %4408 = vmatpush1.msra.mxu0 0.0
        %4409 = vmatprep.subr.mxu0 0.0
        %4410 = vmatpush1.msra.mxu0 0.0
        %4411 = vmatprep.subr.mxu0 0.0
        %4412 = vmatpush1.msra.mxu0 0.0
        %4413 = vmatprep.subr.mxu0 0.0
        %4414 = vmatpush1.msra.mxu0 0.0
        %4415 = vmatprep.subr.mxu0 0.0
        %4416 = vmatpush1.msra.mxu0 0.0
        %4417 = vmatprep.mubr.f32.mxu0 %v4070
        %4418 = vmatmul.mubr.f32.gmra.mrb[0].mxu0 %v3982
        %v4419 = vpop.f32.mrb[0].mxu0
        %v4420 = vadd.f32 %v4195, %v4419
        %v4421 = vpop.f32.mrb[0].mxu0
        %4422 = vmatprep.mubr.f32.mxu0 %v4072
        %4423 = vmatmul.mubr.f32.gmra.mrb[0].mxu0 %v3983
        %v4424 = vpop.f32.mrb[0].mxu0
        %v4425 = vadd.f32 %v4200, %v4424
        %v4426 = vpop.f32.mrb[0].mxu0
        %4427 = vmatprep.mubr.f32.mxu0 %v4074
        %4428 = vmatmul.mubr.f32.gmra.mrb[0].mxu0 %v3984
        %v4429 = vpop.f32.mrb[0].mxu0
        %v4430 = vadd.f32 %v4205, %v4429
        %v4431 = vpop.f32.mrb[0].mxu0
        %4432 = vmatprep.mubr.f32.mxu0 %v4076
        %4433 = vmatmul.mubr.f32.gmra.mrb[0].mxu0 %v3985
        %v4434 = vpop.f32.mrb[0].mxu0
        %v4435 = vadd.f32 %v4210, %v4434
        %v4436 = vpop.f32.mrb[0].mxu0
        %4437 = vmatprep.mubr.f32.mxu0 %v4078
        %4438 = vmatmul.mubr.f32.gmra.mrb[0].mxu0 %v3986
        %v4439 = vpop.f32.mrb[0].mxu0
        %v4440 = vadd.f32 %v4215, %v4439
        %v4441 = vpop.f32.mrb[0].mxu0
        %4442 = vmatprep.mubr.f32.mxu0 %v4080
        %4443 = vmatmul.mubr.f32.gmra.mrb[0].mxu0 %v3987
        %v4444 = vpop.f32.mrb[0].mxu0
        %v4445 = vadd.f32 %v4220, %v4444
        %v4446 = vpop.f32.mrb[0].mxu0
        %4447 = vmatprep.mubr.f32.mxu0 %v4082
        %4448 = vmatmul.mubr.f32.gmra.mrb[0].mxu0 %v3988
        %v4449 = vpop.f32.mrb[0].mxu0
        %v4450 = vadd.f32 %v4225, %v4449
        %v4451 = vpop.f32.mrb[0].mxu0
        %4452 = vmatprep.mubr.f32.mxu0 %v4084
        %4453 = vmatmul.mubr.f32.gmra.mrb[0].mxu0 %v3989
        %v4454 = vpop.f32.mrb[0].mxu0
        %v4455 = vadd.f32 %v4230, %v4454
        %v4456 = vpop.f32.mrb[0].mxu0
        %4457 = vmatprep.mubr.f32.mxu0 %v4086
        %4458 = vmatmul.mubr.f32.gmra.mrb[0].mxu0 %v3990
        %v4459 = vpop.f32.mrb[0].mxu0
        %v4460 = vadd.f32 %v4235, %v4459
        %v4461 = vpop.f32.mrb[0].mxu0
        %4462 = vmatprep.mubr.f32.mxu0 %v4088
        %4463 = vmatmul.mubr.f32.gmra.mrb[0].mxu0 %v3991
        %v4464 = vpop.f32.mrb[0].mxu0
        %v4465 = vadd.f32 %v4240, %v4464
        %v4466 = vpop.f32.mrb[0].mxu0
        %4467 = vmatprep.mubr.f32.mxu0 %v4090
        %4468 = vmatmul.mubr.f32.gmra.mrb[0].mxu0 %v3992
        %v4469 = vpop.f32.mrb[0].mxu0
        %v4470 = vadd.f32 %v4245, %v4469
        %v4471 = vpop.f32.mrb[0].mxu0
        %4472 = vmatprep.mubr.f32.mxu0 %v4092
        %4473 = vmatmul.mubr.f32.gmra.mrb[0].mxu0 %v3993
        %v4474 = vpop.f32.mrb[0].mxu0
        %v4475 = vadd.f32 %v4250, %v4474
        %v4476 = vpop.f32.mrb[0].mxu0
        %4477 = vmatprep.mubr.f32.mxu0 %v4094
        %4478 = vmatmul.mubr.f32.gmra.mrb[0].mxu0 %v3994
        %v4479 = vpop.f32.mrb[0].mxu0
        %v4480 = vadd.f32 %v4255, %v4479
        %v4481 = vpop.f32.mrb[0].mxu0
        %4482 = vmatprep.mubr.f32.mxu0 %v4096
        %4483 = vmatmul.mubr.f32.gmra.mrb[0].mxu0 %v3995
        %v4484 = vpop.f32.mrb[0].mxu0
        %v4485 = vadd.f32 %v4260, %v4484
        %v4486 = vpop.f32.mrb[0].mxu0
        %4487 = vmatprep.mubr.f32.mxu0 %v4098
        %4488 = vmatmul.mubr.f32.gmra.mrb[0].mxu0 %v3996
        %v4489 = vpop.f32.mrb[0].mxu0
        %v4490 = vadd.f32 %v4265, %v4489
        %v4491 = vpop.f32.mrb[0].mxu0
        %4492 = vmatprep.mubr.f32.mxu0 %v4100
        %4493 = vmatmul.mubr.f32.gmra.mrb[0].mxu0 %v3997
        %v4494 = vpop.f32.mrb[0].mxu0
        %v4495 = vadd.f32 %v4270, %v4494
        %v4496 = vpop.f32.mrb[0].mxu0
        %4497 = vmatprep.mubr.f32.mxu0 %v4102
        %4498 = vmatmul.mubr.f32.gmra.mrb[0].mxu0 %v3998
        %v4499 = vpop.f32.mrb[0].mxu0
        %v4500 = vadd.f32 %v4275, %v4499
        %v4501 = vpop.f32.mrb[0].mxu0
        %4502 = vmatprep.mubr.f32.mxu0 %v4104
        %4503 = vmatmul.mubr.f32.gmra.mrb[0].mxu0 %v3999
        %v4504 = vpop.f32.mrb[0].mxu0
        %v4505 = vadd.f32 %v4280, %v4504
        %v4506 = vpop.f32.mrb[0].mxu0
        %4507 = vmatprep.mubr.f32.mxu0 %v4106
        %4508 = vmatmul.mubr.f32.gmra.mrb[0].mxu0 %v4000
        %v4509 = vpop.f32.mrb[0].mxu0
        %v4510 = vadd.f32 %v4285, %v4509
        %v4511 = vpop.f32.mrb[0].mxu0
        %4512 = vmatprep.mubr.f32.mxu0 %v4108
        %4513 = vmatmul.mubr.f32.gmra.mrb[0].mxu0 %v4001
        %v4514 = vpop.f32.mrb[0].mxu0
        %v4515 = vadd.f32 %v4290, %v4514
        %v4516 = vpop.f32.mrb[0].mxu0
        %4517 = vmatprep.mubr.f32.mxu0 %v4110
        %4518 = vmatmul.mubr.f32.gmra.mrb[0].mxu0 %v4002
        %v4519 = vpop.f32.mrb[0].mxu0
        %v4520 = vadd.f32 %v4295, %v4519
        %v4521 = vpop.f32.mrb[0].mxu0
        %4522 = vmatprep.mubr.f32.mxu0 %v4112
        %4523 = vmatmul.mubr.f32.gmra.mrb[0].mxu0 %v4003
        %v4524 = vpop.f32.mrb[0].mxu0
        %v4525 = vadd.f32 %v4300, %v4524
        %v4526 = vpop.f32.mrb[0].mxu0
        %4527 = vmatprep.mubr.f32.mxu0 %v4114
        %4528 = vmatmul.mubr.f32.gmra.mrb[0].mxu0 %v4004
        %v4529 = vpop.f32.mrb[0].mxu0
        %v4530 = vadd.f32 %v4305, %v4529
        %v4531 = vpop.f32.mrb[0].mxu0
        %4532 = vmatprep.mubr.f32.mxu0 %v4116
        %4533 = vmatmul.mubr.f32.gmra.mrb[0].mxu0 %v4005
        %v4534 = vpop.f32.mrb[0].mxu0
        %v4535 = vadd.f32 %v4310, %v4534
        %v4536 = vpop.f32.mrb[0].mxu0
        %4537 = vmatprep.mubr.f32.mxu0 %v4118
        %4538 = vmatmul.mubr.f32.gmra.mrb[0].mxu0 %v4006
        %v4539 = vpop.f32.mrb[0].mxu0
        %v4540 = vadd.f32 %v4315, %v4539
        %v4541 = vpop.f32.mrb[0].mxu0
        %4542 = vmatprep.mubr.f32.mxu0 %v4120
        %4543 = vmatmul.mubr.f32.gmra.mrb[0].mxu0 %v4007
        %v4544 = vpop.f32.mrb[0].mxu0
        %v4545 = vadd.f32 %v4320, %v4544
        %v4546 = vpop.f32.mrb[0].mxu0
        %4547 = vmatprep.mubr.f32.mxu0 %v4122
        %4548 = vmatmul.mubr.f32.gmra.mrb[0].mxu0 %v4008
        %v4549 = vpop.f32.mrb[0].mxu0
        %v4550 = vadd.f32 %v4325, %v4549
        %v4551 = vpop.f32.mrb[0].mxu0
        %4552 = vmatprep.mubr.f32.mxu0 %v4124
        %4553 = vmatmul.mubr.f32.gmra.mrb[0].mxu0 %v4009
        %v4554 = vpop.f32.mrb[0].mxu0
        %v4555 = vadd.f32 %v4330, %v4554
        %v4556 = vpop.f32.mrb[0].mxu0
        %4557 = vmatprep.mubr.f32.mxu0 %v4126
        %4558 = vmatmul.mubr.f32.gmra.mrb[0].mxu0 %v4010
        %v4559 = vpop.f32.mrb[0].mxu0
        %v4560 = vadd.f32 %v4335, %v4559
        %v4561 = vpop.f32.mrb[0].mxu0
        %4562 = vmatprep.mubr.f32.mxu0 %v4126
        %4563 = vmatmul.mubr.f32.gmra.mrb[0].mxu0 %v4011
        %v4564 = vpop.f32.mrb[0].mxu0
        %v4565 = vadd.f32 %v4340, %v4564
        %v4566 = vpop.f32.mrb[0].mxu0
        %4567 = vmatprep.mubr.f32.mxu0 %v4126
        %4568 = vmatmul.mubr.f32.gmra.mrb[0].mxu0 %v4012
        %v4569 = vpop.f32.mrb[0].mxu0
        %v4570 = vadd.f32 %v4345, %v4569
        %v4571 = vpop.f32.mrb[0].mxu0
        %4572 = vmatprep.mubr.f32.mxu0 %v4126
        %4573 = vmatmul.mubr.f32.gmra.mrb[0].mxu0 %v4012
        %v4574 = vpop.f32.mrb[0].mxu0
        %v4575 = vadd.f32 %v4350, %v4574
        %v4576 = vpop.f32.mrb[0].mxu0
        %4577 = vdwg.mxu0
        %vm4578 = vcmask 1040384
        %v4579 = vrot.slane %v724, 7
        %v4580 = vrot.slane %v725, 7
        %v4581 = vsel %vm4578, %v4579, %v4580
        %v4582 = vrot.slane %v726, 7
        %v4583 = vrot.slane %v727, 7
        %v4584 = vsel %vm4578, %v4582, %v4583
        %v4585 = vrot.slane %v728, 7
        %v4586 = vrot.slane %v729, 7
        %v4587 = vsel %vm4578, %v4585, %v4586
        %v4588 = vrot.slane %v730, 7
        %v4589 = vrot.slane %v731, 7
        %v4590 = vsel %vm4578, %v4588, %v4589
        %v4591 = vrot.slane %v732, 7
        %v4592 = vrot.slane %v733, 7
        %v4593 = vsel %vm4578, %v4591, %v4592
        %v4594 = vrot.slane %v734, 7
        %v4595 = vrot.slane %v735, 7
        %v4596 = vsel %vm4578, %v4594, %v4595
        %v4597 = vrot.slane %v736, 7
        %v4598 = vrot.slane %v737, 7
        %v4599 = vsel %vm4578, %v4597, %v4598
        %v4600 = vrot.slane %v738, 7
        %v4601 = vrot.slane %v739, 7
        %v4602 = vsel %vm4578, %v4600, %v4601
        %v4603 = vrot.slane %v740, 7
        %v4604 = vrot.slane %v741, 7
        %v4605 = vsel %vm4578, %v4603, %v4604
        %v4606 = vrot.slane %v742, 7
        %v4607 = vrot.slane %v743, 7
        %v4608 = vsel %vm4578, %v4606, %v4607
        %v4609 = vrot.slane %v744, 7
        %v4610 = vrot.slane %v745, 7
        %v4611 = vsel %vm4578, %v4609, %v4610
        %v4612 = vrot.slane %v746, 7
        %v4613 = vrot.slane %v747, 7
        %v4614 = vsel %vm4578, %v4612, %v4613
        %v4615 = vrot.slane %v748, 7
        %v4616 = vrot.slane %v749, 7
        %v4617 = vsel %vm4578, %v4615, %v4616
        %v4618 = vrot.slane %v750, 7
        %v4619 = vrot.slane %v751, 7
        %v4620 = vsel %vm4578, %v4618, %v4619
        %v4621 = vrot.slane %v752, 7
        %v4622 = vrot.slane %v753, 7
        %v4623 = vsel %vm4578, %v4621, %v4622
        %v4624 = vrot.slane %v754, 7
        %v4625 = vrot.slane %v755, 7
        %v4626 = vsel %vm4578, %v4624, %v4625
        %4627 = vrot.lane.b32.xlu0 %v4579, 96
        %v4628 = vpop.permute.xlu0 %4627
        %4629 = vrot.lane.b32.xlu0 %v4581, 96
        %v4630 = vpop.permute.xlu0 %4629
        %4631 = vrot.lane.b32.xlu0 %v4580, 96
        %v4632 = vpop.permute.xlu0 %4631
        %4633 = vrot.lane.b32.xlu0 %v4582, 96
        %v4634 = vpop.permute.xlu0 %4633
        %4635 = vrot.lane.b32.xlu0 %v4584, 96
        %v4636 = vpop.permute.xlu0 %4635
        %4637 = vrot.lane.b32.xlu0 %v4583, 96
        %v4638 = vpop.permute.xlu0 %4637
        %4639 = vrot.lane.b32.xlu0 %v4585, 96
        %v4640 = vpop.permute.xlu0 %4639
        %4641 = vrot.lane.b32.xlu0 %v4587, 96
        %v4642 = vpop.permute.xlu0 %4641
        %4643 = vrot.lane.b32.xlu0 %v4586, 96
        %v4644 = vpop.permute.xlu0 %4643
        %4645 = vrot.lane.b32.xlu0 %v4588, 96
        %v4646 = vpop.permute.xlu0 %4645
        %4647 = vrot.lane.b32.xlu0 %v4590, 96
        %v4648 = vpop.permute.xlu0 %4647
        %4649 = vrot.lane.b32.xlu0 %v4589, 96
        %v4650 = vpop.permute.xlu0 %4649
        %4651 = vrot.lane.b32.xlu0 %v4591, 96
        %v4652 = vpop.permute.xlu0 %4651
        %4653 = vrot.lane.b32.xlu0 %v4593, 96
        %v4654 = vpop.permute.xlu0 %4653
        %4655 = vrot.lane.b32.xlu0 %v4592, 96
        %v4656 = vpop.permute.xlu0 %4655
        %4657 = vrot.lane.b32.xlu0 %v4594, 96
        %v4658 = vpop.permute.xlu0 %4657
        %4659 = vrot.lane.b32.xlu0 %v4596, 96
        %v4660 = vpop.permute.xlu0 %4659
        %4661 = vrot.lane.b32.xlu0 %v4595, 96
        %v4662 = vpop.permute.xlu0 %4661
        %4663 = vrot.lane.b32.xlu0 %v4597, 96
        %v4664 = vpop.permute.xlu0 %4663
        %4665 = vrot.lane.b32.xlu0 %v4599, 96
        %v4666 = vpop.permute.xlu0 %4665
        %4667 = vrot.lane.b32.xlu0 %v4598, 96
        %v4668 = vpop.permute.xlu0 %4667
        %4669 = vrot.lane.b32.xlu0 %v4600, 96
        %v4670 = vpop.permute.xlu0 %4669
        %4671 = vrot.lane.b32.xlu0 %v4602, 96
        %v4672 = vpop.permute.xlu0 %4671
        %4673 = vrot.lane.b32.xlu0 %v4601, 96
        %v4674 = vpop.permute.xlu0 %4673
        %4675 = vrot.lane.b32.xlu0 %v4603, 96
        %v4676 = vpop.permute.xlu0 %4675
        %4677 = vrot.lane.b32.xlu0 %v4605, 96
        %v4678 = vpop.permute.xlu0 %4677
        %4679 = vrot.lane.b32.xlu0 %v4604, 96
        %v4680 = vpop.permute.xlu0 %4679
        %4681 = vrot.lane.b32.xlu0 %v4606, 96
        %v4682 = vpop.permute.xlu0 %4681
        %4683 = vrot.lane.b32.xlu0 %v4608, 96
        %v4684 = vpop.permute.xlu0 %4683
        %4685 = vrot.lane.b32.xlu0 %v4607, 96
        %v4686 = vpop.permute.xlu0 %4685
        %4687 = vrot.lane.b32.xlu0 %v4609, 96
        %v4688 = vpop.permute.xlu0 %4687
        %4689 = vrot.lane.b32.xlu0 %v4611, 96
        %v4690 = vpop.permute.xlu0 %4689
        %4691 = vrot.lane.b32.xlu0 %v4610, 96
        %v4692 = vpop.permute.xlu0 %4691
        %4693 = vrot.lane.b32.xlu0 %v4612, 96
        %v4694 = vpop.permute.xlu0 %4693
        %4695 = vrot.lane.b32.xlu0 %v4614, 96
        %v4696 = vpop.permute.xlu0 %4695
        %4697 = vrot.lane.b32.xlu0 %v4613, 96
        %v4698 = vpop.permute.xlu0 %4697
        %4699 = vrot.lane.b32.xlu0 %v4615, 96
        %v4700 = vpop.permute.xlu0 %4699
        %4701 = vrot.lane.b32.xlu0 %v4617, 96
        %v4702 = vpop.permute.xlu0 %4701
        %4703 = vrot.lane.b32.xlu0 %v4616, 96
        %v4704 = vpop.permute.xlu0 %4703
        %4705 = vrot.lane.b32.xlu0 %v4618, 96
        %v4706 = vpop.permute.xlu0 %4705
        %4707 = vrot.lane.b32.xlu0 %v4620, 96
        %v4708 = vpop.permute.xlu0 %4707
        %4709 = vrot.lane.b32.xlu0 %v4619, 96
        %v4710 = vpop.permute.xlu0 %4709
        %4711 = vrot.lane.b32.xlu0 %v4621, 96
        %v4712 = vpop.permute.xlu0 %4711
        %4713 = vrot.lane.b32.xlu0 %v4623, 96
        %v4714 = vpop.permute.xlu0 %4713
        %4715 = vrot.lane.b32.xlu0 %v4622, 96
        %v4716 = vpop.permute.xlu0 %4715
        %4717 = vrot.lane.b32.xlu0 %v4624, 96
        %v4718 = vpop.permute.xlu0 %4717
        %4719 = vrot.lane.b32.xlu0 %v4626, 96
        %v4720 = vpop.permute.xlu0 %4719
        %4721 = vrot.lane.b32.xlu0 %v4625, 96
        %v4722 = vpop.permute.xlu0 %4721
        %v4770 = vsel %vm4578, 0.0, %v4628
        %v4771 = vsel %vm4578, 0.0, %v4634
        %v4772 = vsel %vm4578, 0.0, %v4640
        %v4773 = vsel %vm4578, 0.0, %v4646
        %v4774 = vsel %vm4578, 0.0, %v4652
        %v4775 = vsel %vm4578, 0.0, %v4658
        %v4776 = vsel %vm4578, 0.0, %v4664
        %v4777 = vsel %vm4578, 0.0, %v4670
        %v4778 = vsel %vm4578, 0.0, %v4676
        %v4779 = vsel %vm4578, 0.0, %v4682
        %v4780 = vsel %vm4578, 0.0, %v4688
        %v4781 = vsel %vm4578, 0.0, %v4694
        %v4782 = vsel %vm4578, 0.0, %v4700
        %v4783 = vsel %vm4578, 0.0, %v4706
        %v4784 = vsel %vm4578, 0.0, %v4712
        %v4785 = vsel %vm4578, 0.0, %v4718
        %v4786 = vsel %vm4578, %v4632, 0.0
        %v4787 = vsel %vm4578, %v4638, 0.0
        %v4788 = vsel %vm4578, %v4644, 0.0
        %v4789 = vsel %vm4578, %v4650, 0.0
        %v4790 = vsel %vm4578, %v4656, 0.0
        %v4791 = vsel %vm4578, %v4662, 0.0
        %v4792 = vsel %vm4578, %v4668, 0.0
        %v4793 = vsel %vm4578, %v4674, 0.0
        %v4794 = vsel %vm4578, %v4680, 0.0
        %v4795 = vsel %vm4578, %v4686, 0.0
        %v4796 = vsel %vm4578, %v4692, 0.0
        %v4797 = vsel %vm4578, %v4698, 0.0
        %v4798 = vsel %vm4578, %v4704, 0.0
        %v4799 = vsel %vm4578, %v4710, 0.0
        %v4800 = vsel %vm4578, %v4716, 0.0
        %v4801 = vsel %vm4578, %v4722, 0.0
        %v4832 = vrot.slane %v4770, 1
        %v4833 = vrot.slane %v4630, 1
        %v4834 = vsel %vm1040, %v4832, %v4833
        %v4835 = vrot.slane %v4786, 1
        %v4836 = vsel %vm1040, %v4833, %v4835
        %v4837 = vrot.slane %v4771, 1
        %v4838 = vrot.slane %v4636, 1
        %v4839 = vsel %vm1040, %v4837, %v4838
        %v4840 = vrot.slane %v4787, 1
        %v4841 = vsel %vm1040, %v4838, %v4840
        %v4842 = vrot.slane %v4772, 1
        %v4843 = vrot.slane %v4642, 1
        %v4844 = vsel %vm1040, %v4842, %v4843
        %v4845 = vrot.slane %v4788, 1
        %v4846 = vsel %vm1040, %v4843, %v4845
        %v4847 = vrot.slane %v4773, 1
        %v4848 = vrot.slane %v4648, 1
        %v4849 = vsel %vm1040, %v4847, %v4848
        %v4850 = vrot.slane %v4789, 1
        %v4851 = vsel %vm1040, %v4848, %v4850
        %v4852 = vrot.slane %v4774, 1
        %v4853 = vrot.slane %v4654, 1
        %v4854 = vsel %vm1040, %v4852, %v4853
        %v4855 = vrot.slane %v4790, 1
        %v4856 = vsel %vm1040, %v4853, %v4855
        %v4857 = vrot.slane %v4775, 1
        %v4858 = vrot.slane %v4660, 1
        %v4859 = vsel %vm1040, %v4857, %v4858
        %v4860 = vrot.slane %v4791, 1
        %v4861 = vsel %vm1040, %v4858, %v4860
        %v4862 = vrot.slane %v4776, 1
        %v4863 = vrot.slane %v4666, 1
        %v4864 = vsel %vm1040, %v4862, %v4863
        %v4865 = vrot.slane %v4792, 1
        %v4866 = vsel %vm1040, %v4863, %v4865
        %v4867 = vrot.slane %v4777, 1
        %v4868 = vrot.slane %v4672, 1
        %v4869 = vsel %vm1040, %v4867, %v4868
        %v4870 = vrot.slane %v4793, 1
        %v4871 = vsel %vm1040, %v4868, %v4870
        %v4872 = vrot.slane %v4778, 1
        %v4873 = vrot.slane %v4678, 1
        %v4874 = vsel %vm1040, %v4872, %v4873
        %v4875 = vrot.slane %v4794, 1
        %v4876 = vsel %vm1040, %v4873, %v4875
        %v4877 = vrot.slane %v4779, 1
        %v4878 = vrot.slane %v4684, 1
        %v4879 = vsel %vm1040, %v4877, %v4878
        %v4880 = vrot.slane %v4795, 1
        %v4881 = vsel %vm1040, %v4878, %v4880
        %v4882 = vrot.slane %v4780, 1
        %v4883 = vrot.slane %v4690, 1
        %v4884 = vsel %vm1040, %v4882, %v4883
        %v4885 = vrot.slane %v4796, 1
        %v4886 = vsel %vm1040, %v4883, %v4885
        %v4887 = vrot.slane %v4781, 1
        %v4888 = vrot.slane %v4696, 1
        %v4889 = vsel %vm1040, %v4887, %v4888
        %v4890 = vrot.slane %v4797, 1
        %v4891 = vsel %vm1040, %v4888, %v4890
        %v4892 = vrot.slane %v4782, 1
        %v4893 = vrot.slane %v4702, 1
        %v4894 = vsel %vm1040, %v4892, %v4893
        %v4895 = vrot.slane %v4798, 1
        %v4896 = vsel %vm1040, %v4893, %v4895
        %v4897 = vrot.slane %v4783, 1
        %v4898 = vrot.slane %v4708, 1
        %v4899 = vsel %vm1040, %v4897, %v4898
        %v4900 = vrot.slane %v4799, 1
        %v4901 = vsel %vm1040, %v4898, %v4900
        %v4902 = vrot.slane %v4784, 1
        %v4903 = vrot.slane %v4714, 1
        %v4904 = vsel %vm1040, %v4902, %v4903
        %v4905 = vrot.slane %v4800, 1
        %v4906 = vsel %vm1040, %v4903, %v4905
        %v4907 = vrot.slane %v4770, 2
        %v4908 = vrot.slane %v4630, 2
        %v4909 = vsel %vm1113, %v4907, %v4908
        %v4910 = vrot.slane %v4786, 2
        %v4911 = vsel %vm1113, %v4908, %v4910
        %v4912 = vrot.slane %v4771, 2
        %v4913 = vrot.slane %v4636, 2
        %v4914 = vsel %vm1113, %v4912, %v4913
        %v4915 = vrot.slane %v4787, 2
        %v4916 = vsel %vm1113, %v4913, %v4915
        %v4917 = vrot.slane %v4772, 2
        %v4918 = vrot.slane %v4642, 2
        %v4919 = vsel %vm1113, %v4917, %v4918
        %v4920 = vrot.slane %v4788, 2
        %v4921 = vsel %vm1113, %v4918, %v4920
        %v4922 = vrot.slane %v4773, 2
        %v4923 = vrot.slane %v4648, 2
        %v4924 = vsel %vm1113, %v4922, %v4923
        %v4925 = vrot.slane %v4789, 2
        %v4926 = vsel %vm1113, %v4923, %v4925
        %v4927 = vrot.slane %v4774, 2
        %v4928 = vrot.slane %v4654, 2
        %v4929 = vsel %vm1113, %v4927, %v4928
        %v4930 = vrot.slane %v4790, 2
        %v4931 = vsel %vm1113, %v4928, %v4930
        %v4932 = vrot.slane %v4775, 2
        %v4933 = vrot.slane %v4660, 2
        %v4934 = vsel %vm1113, %v4932, %v4933
        %v4935 = vrot.slane %v4791, 2
        %v4936 = vsel %vm1113, %v4933, %v4935
        %v4937 = vrot.slane %v4776, 2
        %v4938 = vrot.slane %v4666, 2
        %v4939 = vsel %vm1113, %v4937, %v4938
        %v4940 = vrot.slane %v4792, 2
        %v4941 = vsel %vm1113, %v4938, %v4940
        %v4942 = vrot.slane %v4777, 2
        %v4943 = vrot.slane %v4672, 2
        %v4944 = vsel %vm1113, %v4942, %v4943
        %v4945 = vrot.slane %v4793, 2
        %v4946 = vsel %vm1113, %v4943, %v4945
        %v4947 = vrot.slane %v4778, 2
        %v4948 = vrot.slane %v4678, 2
        %v4949 = vsel %vm1113, %v4947, %v4948
        %v4950 = vrot.slane %v4794, 2
        %v4951 = vsel %vm1113, %v4948, %v4950
        %v4952 = vrot.slane %v4779, 2
        %v4953 = vrot.slane %v4684, 2
        %v4954 = vsel %vm1113, %v4952, %v4953
        %v4955 = vrot.slane %v4795, 2
        %v4956 = vsel %vm1113, %v4953, %v4955
        %v4957 = vrot.slane %v4780, 2
        %v4958 = vrot.slane %v4690, 2
        %v4959 = vsel %vm1113, %v4957, %v4958
        %v4960 = vrot.slane %v4796, 2
        %v4961 = vsel %vm1113, %v4958, %v4960
        %v4962 = vrot.slane %v4781, 2
        %v4963 = vrot.slane %v4696, 2
        %v4964 = vsel %vm1113, %v4962, %v4963
        %v4965 = vrot.slane %v4797, 2
        %v4966 = vsel %vm1113, %v4963, %v4965
        %v4967 = vrot.slane %v4782, 2
        %v4968 = vrot.slane %v4702, 2
        %v4969 = vsel %vm1113, %v4967, %v4968
        %v4970 = vrot.slane %v4798, 2
        %v4971 = vsel %vm1113, %v4968, %v4970
        %v4972 = vrot.slane %v4783, 2
        %v4973 = vrot.slane %v4708, 2
        %v4974 = vsel %vm1113, %v4972, %v4973
        %v4975 = vrot.slane %v4799, 2
        %v4976 = vsel %vm1113, %v4973, %v4975
        %v4977 = vrot.slane %v4784, 2
        %v4978 = vrot.slane %v4714, 2
        %v4979 = vsel %vm1113, %v4977, %v4978
        %v4980 = vrot.slane %v4800, 2
        %v4981 = vsel %vm1113, %v4978, %v4980
        %v4984 = vrot.slane %v4785, 1
        %v4985 = vrot.slane %v4720, 1
        %v4986 = vsel %vm1040, %v4984, %v4985
        %v4987 = vrot.slane %v4801, 1
        %v4988 = vsel %vm1040, %v4985, %v4987
        %v4989 = vrot.slane %v4785, 2
        %v4990 = vrot.slane %v4720, 2
        %v4991 = vsel %vm1113, %v4989, %v4990
        %v4992 = vrot.slane %v4801, 2
        %v4993 = vsel %vm1113, %v4990, %v4992
        %4994 = vrot.lane.b32.xlu0 %v4834, 16
        %v4995 = vpop.permute.xlu0 %4994
        %4996 = vrot.lane.b32.xlu0 %v4836, 16
        %v4997 = vpop.permute.xlu0 %4996
        %4998 = vrot.lane.b32.xlu0 %v4839, 16
        %v4999 = vpop.permute.xlu0 %4998
        %5000 = vrot.lane.b32.xlu0 %v4841, 16
        %v5001 = vpop.permute.xlu0 %5000
        %5002 = vrot.lane.b32.xlu0 %v4844, 16
        %v5003 = vpop.permute.xlu0 %5002
        %5004 = vrot.lane.b32.xlu0 %v4846, 16
        %v5005 = vpop.permute.xlu0 %5004
        %5006 = vrot.lane.b32.xlu0 %v4849, 16
        %v5007 = vpop.permute.xlu0 %5006
        %5008 = vrot.lane.b32.xlu0 %v4851, 16
        %v5009 = vpop.permute.xlu0 %5008
        %5010 = vrot.lane.b32.xlu0 %v4854, 16
        %v5011 = vpop.permute.xlu0 %5010
        %5012 = vrot.lane.b32.xlu0 %v4856, 16
        %v5013 = vpop.permute.xlu0 %5012
        %5014 = vrot.lane.b32.xlu0 %v4859, 16
        %v5015 = vpop.permute.xlu0 %5014
        %5016 = vrot.lane.b32.xlu0 %v4861, 16
        %v5017 = vpop.permute.xlu0 %5016
        %5018 = vrot.lane.b32.xlu0 %v4864, 16
        %v5019 = vpop.permute.xlu0 %5018
        %5020 = vrot.lane.b32.xlu0 %v4866, 16
        %v5021 = vpop.permute.xlu0 %5020
        %5022 = vrot.lane.b32.xlu0 %v4869, 16
        %v5023 = vpop.permute.xlu0 %5022
        %5024 = vrot.lane.b32.xlu0 %v4871, 16
        %v5025 = vpop.permute.xlu0 %5024
        %5026 = vrot.lane.b32.xlu0 %v4874, 16
        %v5027 = vpop.permute.xlu0 %5026
        %5028 = vrot.lane.b32.xlu0 %v4876, 16
        %v5029 = vpop.permute.xlu0 %5028
        %5030 = vrot.lane.b32.xlu0 %v4879, 16
        %v5031 = vpop.permute.xlu0 %5030
        %5032 = vrot.lane.b32.xlu0 %v4881, 16
        %v5033 = vpop.permute.xlu0 %5032
        %5034 = vrot.lane.b32.xlu0 %v4884, 16
        %v5035 = vpop.permute.xlu0 %5034
        %5036 = vrot.lane.b32.xlu0 %v4886, 16
        %v5037 = vpop.permute.xlu0 %5036
        %5038 = vrot.lane.b32.xlu0 %v4889, 16
        %v5039 = vpop.permute.xlu0 %5038
        %5040 = vrot.lane.b32.xlu0 %v4891, 16
        %v5041 = vpop.permute.xlu0 %5040
        %5042 = vrot.lane.b32.xlu0 %v4894, 16
        %v5043 = vpop.permute.xlu0 %5042
        %5044 = vrot.lane.b32.xlu0 %v4896, 16
        %v5045 = vpop.permute.xlu0 %5044
        %5046 = vrot.lane.b32.xlu0 %v4899, 16
        %v5047 = vpop.permute.xlu0 %5046
        %5048 = vrot.lane.b32.xlu0 %v4901, 16
        %v5049 = vpop.permute.xlu0 %5048
        %5050 = vrot.lane.b32.xlu0 %v4904, 16
        %v5051 = vpop.permute.xlu0 %5050
        %5052 = vrot.lane.b32.xlu0 %v4906, 16
        %v5053 = vpop.permute.xlu0 %5052
        %5084 = vrot.lane.b32.xlu0 %v4909, 32
        %v5085 = vpop.permute.xlu0 %5084
        %5086 = vrot.lane.b32.xlu0 %v4911, 32
        %v5087 = vpop.permute.xlu0 %5086
        %5088 = vrot.lane.b32.xlu0 %v4914, 32
        %v5089 = vpop.permute.xlu0 %5088
        %5090 = vrot.lane.b32.xlu0 %v4916, 32
        %v5091 = vpop.permute.xlu0 %5090
        %5092 = vrot.lane.b32.xlu0 %v4919, 32
        %v5093 = vpop.permute.xlu0 %5092
        %5094 = vrot.lane.b32.xlu0 %v4921, 32
        %v5095 = vpop.permute.xlu0 %5094
        %5096 = vrot.lane.b32.xlu0 %v4924, 32
        %v5097 = vpop.permute.xlu0 %5096
        %5098 = vrot.lane.b32.xlu0 %v4926, 32
        %v5099 = vpop.permute.xlu0 %5098
        %5100 = vrot.lane.b32.xlu0 %v4929, 32
        %v5101 = vpop.permute.xlu0 %5100
        %5102 = vrot.lane.b32.xlu0 %v4931, 32
        %v5103 = vpop.permute.xlu0 %5102
        %5104 = vrot.lane.b32.xlu0 %v4934, 32
        %v5105 = vpop.permute.xlu0 %5104
        %5106 = vrot.lane.b32.xlu0 %v4936, 32
        %v5107 = vpop.permute.xlu0 %5106
        %5108 = vrot.lane.b32.xlu0 %v4939, 32
        %v5109 = vpop.permute.xlu0 %5108
        %5110 = vrot.lane.b32.xlu0 %v4941, 32
        %v5111 = vpop.permute.xlu0 %5110
        %5112 = vrot.lane.b32.xlu0 %v4944, 32
        %v5113 = vpop.permute.xlu0 %5112
        %5114 = vrot.lane.b32.xlu0 %v4946, 32
        %v5115 = vpop.permute.xlu0 %5114
        %5116 = vrot.lane.b32.xlu0 %v4949, 32
        %v5117 = vpop.permute.xlu0 %5116
        %5118 = vrot.lane.b32.xlu0 %v4951, 32
        %v5119 = vpop.permute.xlu0 %5118
        %5120 = vrot.lane.b32.xlu0 %v4954, 32
        %v5121 = vpop.permute.xlu0 %5120
        %5122 = vrot.lane.b32.xlu0 %v4956, 32
        %v5123 = vpop.permute.xlu0 %5122
        %5124 = vrot.lane.b32.xlu0 %v4959, 32
        %v5125 = vpop.permute.xlu0 %5124
        %5126 = vrot.lane.b32.xlu0 %v4961, 32
        %v5127 = vpop.permute.xlu0 %5126
        %5128 = vrot.lane.b32.xlu0 %v4964, 32
        %v5129 = vpop.permute.xlu0 %5128
        %5130 = vrot.lane.b32.xlu0 %v4966, 32
        %v5131 = vpop.permute.xlu0 %5130
        %5132 = vrot.lane.b32.xlu0 %v4969, 32
        %v5133 = vpop.permute.xlu0 %5132
        %5134 = vrot.lane.b32.xlu0 %v4971, 32
        %v5135 = vpop.permute.xlu0 %5134
        %5136 = vrot.lane.b32.xlu0 %v4974, 32
        %v5137 = vpop.permute.xlu0 %5136
        %5138 = vrot.lane.b32.xlu0 %v4976, 32
        %v5139 = vpop.permute.xlu0 %5138
        %5140 = vrot.lane.b32.xlu0 %v4979, 32
        %v5141 = vpop.permute.xlu0 %5140
        %5142 = vrot.lane.b32.xlu0 %v4981, 32
        %v5143 = vpop.permute.xlu0 %5142
        %5174 = vrot.lane.b32.xlu0 %v4770, 48
        %v5175 = vpop.permute.xlu0 %5174
        %5176 = vrot.lane.b32.xlu0 %v4630, 48
        %v5177 = vpop.permute.xlu0 %5176
        %5178 = vrot.lane.b32.xlu0 %v4771, 48
        %v5179 = vpop.permute.xlu0 %5178
        %5180 = vrot.lane.b32.xlu0 %v4636, 48
        %v5181 = vpop.permute.xlu0 %5180
        %5182 = vrot.lane.b32.xlu0 %v4772, 48
        %v5183 = vpop.permute.xlu0 %5182
        %5184 = vrot.lane.b32.xlu0 %v4642, 48
        %v5185 = vpop.permute.xlu0 %5184
        %5186 = vrot.lane.b32.xlu0 %v4773, 48
        %v5187 = vpop.permute.xlu0 %5186
        %5188 = vrot.lane.b32.xlu0 %v4648, 48
        %v5189 = vpop.permute.xlu0 %5188
        %5190 = vrot.lane.b32.xlu0 %v4774, 48
        %v5191 = vpop.permute.xlu0 %5190
        %5192 = vrot.lane.b32.xlu0 %v4654, 48
        %v5193 = vpop.permute.xlu0 %5192
        %5194 = vrot.lane.b32.xlu0 %v4775, 48
        %v5195 = vpop.permute.xlu0 %5194
        %5196 = vrot.lane.b32.xlu0 %v4660, 48
        %v5197 = vpop.permute.xlu0 %5196
        %5198 = vrot.lane.b32.xlu0 %v4776, 48
        %v5199 = vpop.permute.xlu0 %5198
        %5200 = vrot.lane.b32.xlu0 %v4666, 48
        %v5201 = vpop.permute.xlu0 %5200
        %5202 = vrot.lane.b32.xlu0 %v4777, 48
        %v5203 = vpop.permute.xlu0 %5202
        %5204 = vrot.lane.b32.xlu0 %v4672, 48
        %v5205 = vpop.permute.xlu0 %5204
        %5206 = vrot.lane.b32.xlu0 %v4778, 48
        %v5207 = vpop.permute.xlu0 %5206
        %5208 = vrot.lane.b32.xlu0 %v4678, 48
        %v5209 = vpop.permute.xlu0 %5208
        %5210 = vrot.lane.b32.xlu0 %v4779, 48
        %v5211 = vpop.permute.xlu0 %5210
        %5212 = vrot.lane.b32.xlu0 %v4684, 48
        %v5213 = vpop.permute.xlu0 %5212
        %5214 = vrot.lane.b32.xlu0 %v4780, 48
        %v5215 = vpop.permute.xlu0 %5214
        %5216 = vrot.lane.b32.xlu0 %v4690, 48
        %v5217 = vpop.permute.xlu0 %5216
        %5218 = vrot.lane.b32.xlu0 %v4781, 48
        %v5219 = vpop.permute.xlu0 %5218
        %5220 = vrot.lane.b32.xlu0 %v4696, 48
        %v5221 = vpop.permute.xlu0 %5220
        %5222 = vrot.lane.b32.xlu0 %v4782, 48
        %v5223 = vpop.permute.xlu0 %5222
        %5224 = vrot.lane.b32.xlu0 %v4702, 48
        %v5225 = vpop.permute.xlu0 %5224
        %5226 = vrot.lane.b32.xlu0 %v4783, 48
        %v5227 = vpop.permute.xlu0 %5226
        %5228 = vrot.lane.b32.xlu0 %v4708, 48
        %v5229 = vpop.permute.xlu0 %5228
        %5230 = vrot.lane.b32.xlu0 %v4784, 48
        %v5231 = vpop.permute.xlu0 %5230
        %5232 = vrot.lane.b32.xlu0 %v4714, 48
        %v5233 = vpop.permute.xlu0 %5232
        %5234 = vrot.lane.b32.xlu0 %v4785, 48
        %v5235 = vpop.permute.xlu0 %5234
        %5236 = vrot.lane.b32.xlu0 %v4720, 48
        %v5237 = vpop.permute.xlu0 %5236
        %5270 = vrot.lane.b32.xlu0 %v4834, 64
        %v5271 = vpop.permute.xlu0 %5270
        %5272 = vrot.lane.b32.xlu0 %v4836, 64
        %v5273 = vpop.permute.xlu0 %5272
        %5274 = vrot.lane.b32.xlu0 %v4839, 64
        %v5275 = vpop.permute.xlu0 %5274
        %5276 = vrot.lane.b32.xlu0 %v4841, 64
        %v5277 = vpop.permute.xlu0 %5276
        %5278 = vrot.lane.b32.xlu0 %v4844, 64
        %v5279 = vpop.permute.xlu0 %5278
        %5280 = vrot.lane.b32.xlu0 %v4846, 64
        %v5281 = vpop.permute.xlu0 %5280
        %5282 = vrot.lane.b32.xlu0 %v4849, 64
        %v5283 = vpop.permute.xlu0 %5282
        %5284 = vrot.lane.b32.xlu0 %v4851, 64
        %v5285 = vpop.permute.xlu0 %5284
        %5286 = vrot.lane.b32.xlu0 %v4854, 64
        %v5287 = vpop.permute.xlu0 %5286
        %5288 = vrot.lane.b32.xlu0 %v4856, 64
        %v5289 = vpop.permute.xlu0 %5288
        %5290 = vrot.lane.b32.xlu0 %v4859, 64
        %v5291 = vpop.permute.xlu0 %5290
        %5292 = vrot.lane.b32.xlu0 %v4861, 64
        %v5293 = vpop.permute.xlu0 %5292
        %5294 = vrot.lane.b32.xlu0 %v4864, 64
        %v5295 = vpop.permute.xlu0 %5294
        %5296 = vrot.lane.b32.xlu0 %v4866, 64
        %v5297 = vpop.permute.xlu0 %5296
        %5298 = vrot.lane.b32.xlu0 %v4869, 64
        %v5299 = vpop.permute.xlu0 %5298
        %5300 = vrot.lane.b32.xlu0 %v4871, 64
        %v5301 = vpop.permute.xlu0 %5300
        %5302 = vrot.lane.b32.xlu0 %v4874, 64
        %v5303 = vpop.permute.xlu0 %5302
        %5304 = vrot.lane.b32.xlu0 %v4876, 64
        %v5305 = vpop.permute.xlu0 %5304
        %5306 = vrot.lane.b32.xlu0 %v4879, 64
        %v5307 = vpop.permute.xlu0 %5306
        %5308 = vrot.lane.b32.xlu0 %v4881, 64
        %v5309 = vpop.permute.xlu0 %5308
        %5310 = vrot.lane.b32.xlu0 %v4884, 64
        %v5311 = vpop.permute.xlu0 %5310
        %5312 = vrot.lane.b32.xlu0 %v4886, 64
        %v5313 = vpop.permute.xlu0 %5312
        %5314 = vrot.lane.b32.xlu0 %v4889, 64
        %v5315 = vpop.permute.xlu0 %5314
        %5316 = vrot.lane.b32.xlu0 %v4891, 64
        %v5317 = vpop.permute.xlu0 %5316
        %5318 = vrot.lane.b32.xlu0 %v4894, 64
        %v5319 = vpop.permute.xlu0 %5318
        %5320 = vrot.lane.b32.xlu0 %v4896, 64
        %v5321 = vpop.permute.xlu0 %5320
        %5322 = vrot.lane.b32.xlu0 %v4899, 64
        %v5323 = vpop.permute.xlu0 %5322
        %5324 = vrot.lane.b32.xlu0 %v4901, 64
        %v5325 = vpop.permute.xlu0 %5324
        %5326 = vrot.lane.b32.xlu0 %v4904, 64
        %v5327 = vpop.permute.xlu0 %5326
        %5328 = vrot.lane.b32.xlu0 %v4906, 64
        %v5329 = vpop.permute.xlu0 %5328
        %5330 = vrot.lane.b32.xlu0 %v4986, 64
        %v5331 = vpop.permute.xlu0 %5330
        %5332 = vrot.lane.b32.xlu0 %v4988, 64
        %v5333 = vpop.permute.xlu0 %5332
        %5366 = vrot.lane.b32.xlu0 %v4909, 80
        %v5367 = vpop.permute.xlu0 %5366
        %5368 = vrot.lane.b32.xlu0 %v4911, 80
        %v5369 = vpop.permute.xlu0 %5368
        %5370 = vrot.lane.b32.xlu0 %v4914, 80
        %v5371 = vpop.permute.xlu0 %5370
        %5372 = vrot.lane.b32.xlu0 %v4916, 80
        %v5373 = vpop.permute.xlu0 %5372
        %5374 = vrot.lane.b32.xlu0 %v4919, 80
        %v5375 = vpop.permute.xlu0 %5374
        %5376 = vrot.lane.b32.xlu0 %v4921, 80
        %v5377 = vpop.permute.xlu0 %5376
        %5378 = vrot.lane.b32.xlu0 %v4924, 80
        %v5379 = vpop.permute.xlu0 %5378
        %5380 = vrot.lane.b32.xlu0 %v4926, 80
        %v5381 = vpop.permute.xlu0 %5380
        %5382 = vrot.lane.b32.xlu0 %v4929, 80
        %v5383 = vpop.permute.xlu0 %5382
        %5384 = vrot.lane.b32.xlu0 %v4931, 80
        %v5385 = vpop.permute.xlu0 %5384
        %5386 = vrot.lane.b32.xlu0 %v4934, 80
        %v5387 = vpop.permute.xlu0 %5386
        %5388 = vrot.lane.b32.xlu0 %v4936, 80
        %v5389 = vpop.permute.xlu0 %5388
        %5390 = vrot.lane.b32.xlu0 %v4939, 80
        %v5391 = vpop.permute.xlu0 %5390
        %5392 = vrot.lane.b32.xlu0 %v4941, 80
        %v5393 = vpop.permute.xlu0 %5392
        %5394 = vrot.lane.b32.xlu0 %v4944, 80
        %v5395 = vpop.permute.xlu0 %5394
        %5396 = vrot.lane.b32.xlu0 %v4946, 80
        %v5397 = vpop.permute.xlu0 %5396
        %5398 = vrot.lane.b32.xlu0 %v4949, 80
        %v5399 = vpop.permute.xlu0 %5398
        %5400 = vrot.lane.b32.xlu0 %v4951, 80
        %v5401 = vpop.permute.xlu0 %5400
        %5402 = vrot.lane.b32.xlu0 %v4954, 80
        %v5403 = vpop.permute.xlu0 %5402
        %5404 = vrot.lane.b32.xlu0 %v4956, 80
        %v5405 = vpop.permute.xlu0 %5404
        %5406 = vrot.lane.b32.xlu0 %v4959, 80
        %v5407 = vpop.permute.xlu0 %5406
        %5408 = vrot.lane.b32.xlu0 %v4961, 80
        %v5409 = vpop.permute.xlu0 %5408
        %5410 = vrot.lane.b32.xlu0 %v4964, 80
        %v5411 = vpop.permute.xlu0 %5410
        %5412 = vrot.lane.b32.xlu0 %v4966, 80
        %v5413 = vpop.permute.xlu0 %5412
        %5414 = vrot.lane.b32.xlu0 %v4969, 80
        %v5415 = vpop.permute.xlu0 %5414
        %5416 = vrot.lane.b32.xlu0 %v4971, 80
        %v5417 = vpop.permute.xlu0 %5416
        %5418 = vrot.lane.b32.xlu0 %v4974, 80
        %v5419 = vpop.permute.xlu0 %5418
        %5420 = vrot.lane.b32.xlu0 %v4976, 80
        %v5421 = vpop.permute.xlu0 %5420
        %5422 = vrot.lane.b32.xlu0 %v4979, 80
        %v5423 = vpop.permute.xlu0 %5422
        %5424 = vrot.lane.b32.xlu0 %v4981, 80
        %v5425 = vpop.permute.xlu0 %5424
        %5426 = vrot.lane.b32.xlu0 %v4991, 80
        %v5427 = vpop.permute.xlu0 %5426
        %5428 = vrot.lane.b32.xlu0 %v4993, 80
        %v5429 = vpop.permute.xlu0 %5428
        %5462 = vrot.lane.b32.xlu0 %v4771, 96
        %v5463 = vpop.permute.xlu0 %5462
        %5464 = vrot.lane.b32.xlu0 %v4636, 96
        %v5465 = vpop.permute.xlu0 %5464
        %5466 = vrot.lane.b32.xlu0 %v4772, 96
        %v5467 = vpop.permute.xlu0 %5466
        %5468 = vrot.lane.b32.xlu0 %v4642, 96
        %v5469 = vpop.permute.xlu0 %5468
        %5470 = vrot.lane.b32.xlu0 %v4773, 96
        %v5471 = vpop.permute.xlu0 %5470
        %5472 = vrot.lane.b32.xlu0 %v4648, 96
        %v5473 = vpop.permute.xlu0 %5472
        %5474 = vrot.lane.b32.xlu0 %v4774, 96
        %v5475 = vpop.permute.xlu0 %5474
        %5476 = vrot.lane.b32.xlu0 %v4654, 96
        %v5477 = vpop.permute.xlu0 %5476
        %5478 = vrot.lane.b32.xlu0 %v4775, 96
        %v5479 = vpop.permute.xlu0 %5478
        %5480 = vrot.lane.b32.xlu0 %v4660, 96
        %v5481 = vpop.permute.xlu0 %5480
        %5482 = vrot.lane.b32.xlu0 %v4776, 96
        %v5483 = vpop.permute.xlu0 %5482
        %5484 = vrot.lane.b32.xlu0 %v4666, 96
        %v5485 = vpop.permute.xlu0 %5484
        %5486 = vrot.lane.b32.xlu0 %v4777, 96
        %v5487 = vpop.permute.xlu0 %5486
        %5488 = vrot.lane.b32.xlu0 %v4672, 96
        %v5489 = vpop.permute.xlu0 %5488
        %5490 = vrot.lane.b32.xlu0 %v4778, 96
        %v5491 = vpop.permute.xlu0 %5490
        %5492 = vrot.lane.b32.xlu0 %v4678, 96
        %v5493 = vpop.permute.xlu0 %5492
        %5494 = vrot.lane.b32.xlu0 %v4779, 96
        %v5495 = vpop.permute.xlu0 %5494
        %5496 = vrot.lane.b32.xlu0 %v4684, 96
        %v5497 = vpop.permute.xlu0 %5496
        %5498 = vrot.lane.b32.xlu0 %v4780, 96
        %v5499 = vpop.permute.xlu0 %5498
        %5500 = vrot.lane.b32.xlu0 %v4690, 96
        %v5501 = vpop.permute.xlu0 %5500
        %5502 = vrot.lane.b32.xlu0 %v4781, 96
        %v5503 = vpop.permute.xlu0 %5502
        %5504 = vrot.lane.b32.xlu0 %v4696, 96
        %v5505 = vpop.permute.xlu0 %5504
        %5506 = vrot.lane.b32.xlu0 %v4782, 96
        %v5507 = vpop.permute.xlu0 %5506
        %5508 = vrot.lane.b32.xlu0 %v4702, 96
        %v5509 = vpop.permute.xlu0 %5508
        %5510 = vrot.lane.b32.xlu0 %v4783, 96
        %v5511 = vpop.permute.xlu0 %5510
        %5512 = vrot.lane.b32.xlu0 %v4708, 96
        %v5513 = vpop.permute.xlu0 %5512
        %5514 = vrot.lane.b32.xlu0 %v4784, 96
        %v5515 = vpop.permute.xlu0 %5514
        %5516 = vrot.lane.b32.xlu0 %v4714, 96
        %v5517 = vpop.permute.xlu0 %5516
        %5518 = vrot.lane.b32.xlu0 %v4785, 96
        %v5519 = vpop.permute.xlu0 %5518
        %5520 = vrot.lane.b32.xlu0 %v4720, 96
        %v5521 = vpop.permute.xlu0 %5520
        %5522 = vrot.lane.b32.xlu0 0.0, 96
        %v5523 = vpop.permute.xlu0 %5522
        %5555 = vrot.lane.b32.xlu0 %v4839, 112
        %v5556 = vpop.permute.xlu0 %5555
        %5557 = vrot.lane.b32.xlu0 %v4841, 112
        %v5558 = vpop.permute.xlu0 %5557
        %5559 = vrot.lane.b32.xlu0 %v4844, 112
        %v5560 = vpop.permute.xlu0 %5559
        %5561 = vrot.lane.b32.xlu0 %v4846, 112
        %v5562 = vpop.permute.xlu0 %5561
        %5563 = vrot.lane.b32.xlu0 %v4849, 112
        %v5564 = vpop.permute.xlu0 %5563
        %5565 = vrot.lane.b32.xlu0 %v4851, 112
        %v5566 = vpop.permute.xlu0 %5565
        %5567 = vrot.lane.b32.xlu0 %v4854, 112
        %v5568 = vpop.permute.xlu0 %5567
        %5569 = vrot.lane.b32.xlu0 %v4856, 112
        %v5570 = vpop.permute.xlu0 %5569
        %5571 = vrot.lane.b32.xlu0 %v4859, 112
        %v5572 = vpop.permute.xlu0 %5571
        %5573 = vrot.lane.b32.xlu0 %v4861, 112
        %v5574 = vpop.permute.xlu0 %5573
        %5575 = vrot.lane.b32.xlu0 %v4864, 112
        %v5576 = vpop.permute.xlu0 %5575
        %5577 = vrot.lane.b32.xlu0 %v4866, 112
        %v5578 = vpop.permute.xlu0 %5577
        %5579 = vrot.lane.b32.xlu0 %v4869, 112
        %v5580 = vpop.permute.xlu0 %5579
        %5581 = vrot.lane.b32.xlu0 %v4871, 112
        %v5582 = vpop.permute.xlu0 %5581
        %5583 = vrot.lane.b32.xlu0 %v4874, 112
        %v5584 = vpop.permute.xlu0 %5583
        %5585 = vrot.lane.b32.xlu0 %v4876, 112
        %v5586 = vpop.permute.xlu0 %5585
        %5587 = vrot.lane.b32.xlu0 %v4879, 112
        %v5588 = vpop.permute.xlu0 %5587
        %5589 = vrot.lane.b32.xlu0 %v4881, 112
        %v5590 = vpop.permute.xlu0 %5589
        %5591 = vrot.lane.b32.xlu0 %v4884, 112
        %v5592 = vpop.permute.xlu0 %5591
        %5593 = vrot.lane.b32.xlu0 %v4886, 112
        %v5594 = vpop.permute.xlu0 %5593
        %5595 = vrot.lane.b32.xlu0 %v4889, 112
        %v5596 = vpop.permute.xlu0 %5595
        %5597 = vrot.lane.b32.xlu0 %v4891, 112
        %v5598 = vpop.permute.xlu0 %5597
        %5599 = vrot.lane.b32.xlu0 %v4894, 112
        %v5600 = vpop.permute.xlu0 %5599
        %5601 = vrot.lane.b32.xlu0 %v4896, 112
        %v5602 = vpop.permute.xlu0 %5601
        %5603 = vrot.lane.b32.xlu0 %v4899, 112
        %v5604 = vpop.permute.xlu0 %5603
        %5605 = vrot.lane.b32.xlu0 %v4901, 112
        %v5606 = vpop.permute.xlu0 %5605
        %5607 = vrot.lane.b32.xlu0 %v4904, 112
        %v5608 = vpop.permute.xlu0 %5607
        %5609 = vrot.lane.b32.xlu0 %v4906, 112
        %v5610 = vpop.permute.xlu0 %5609
        %5611 = vrot.lane.b32.xlu0 %v4986, 112
        %v5612 = vpop.permute.xlu0 %5611
        %5613 = vrot.lane.b32.xlu0 %v4988, 112
        %v5614 = vpop.permute.xlu0 %5613
        %5615 = vrot.lane.b32.xlu0 %v1042, 112
        %v5616 = vpop.permute.xlu0 %5615
        %v5648 = vsel %vm2730, %v4770, %v4995
        %v5649 = vsel %vm2730, %v4630, %v4997
        %v5650 = vsel %vm2730, %v4771, %v4999
        %v5651 = vsel %vm2730, %v4636, %v5001
        %v5652 = vsel %vm2730, %v4772, %v5003
        %v5653 = vsel %vm2730, %v4642, %v5005
        %v5654 = vsel %vm2730, %v4773, %v5007
        %v5655 = vsel %vm2730, %v4648, %v5009
        %v5656 = vsel %vm2730, %v4774, %v5011
        %v5657 = vsel %vm2730, %v4654, %v5013
        %v5658 = vsel %vm2730, %v4775, %v5015
        %v5659 = vsel %vm2730, %v4660, %v5017
        %v5660 = vsel %vm2730, %v4776, %v5019
        %v5661 = vsel %vm2730, %v4666, %v5021
        %v5662 = vsel %vm2730, %v4777, %v5023
        %v5663 = vsel %vm2730, %v4672, %v5025
        %v5664 = vsel %vm2730, %v4778, %v5027
        %v5665 = vsel %vm2730, %v4678, %v5029
        %v5666 = vsel %vm2730, %v4779, %v5031
        %v5667 = vsel %vm2730, %v4684, %v5033
        %v5668 = vsel %vm2730, %v4780, %v5035
        %v5669 = vsel %vm2730, %v4690, %v5037
        %v5670 = vsel %vm2730, %v4781, %v5039
        %v5671 = vsel %vm2730, %v4696, %v5041
        %v5672 = vsel %vm2730, %v4782, %v5043
        %v5673 = vsel %vm2730, %v4702, %v5045
        %v5674 = vsel %vm2730, %v4783, %v5047
        %v5675 = vsel %vm2730, %v4708, %v5049
        %v5676 = vsel %vm2730, %v4784, %v5051
        %v5677 = vsel %vm2730, %v4714, %v5053
        %v5678 = vsel %vm2760, %v5648, %v5085
        %v5679 = vsel %vm2760, %v5649, %v5087
        %v5680 = vsel %vm2760, %v5650, %v5089
        %v5681 = vsel %vm2760, %v5651, %v5091
        %v5682 = vsel %vm2760, %v5652, %v5093
        %v5683 = vsel %vm2760, %v5653, %v5095
        %v5684 = vsel %vm2760, %v5654, %v5097
        %v5685 = vsel %vm2760, %v5655, %v5099
        %v5686 = vsel %vm2760, %v5656, %v5101
        %v5687 = vsel %vm2760, %v5657, %v5103
        %v5688 = vsel %vm2760, %v5658, %v5105
        %v5689 = vsel %vm2760, %v5659, %v5107
        %v5690 = vsel %vm2760, %v5660, %v5109
        %v5691 = vsel %vm2760, %v5661, %v5111
        %v5692 = vsel %vm2760, %v5662, %v5113
        %v5693 = vsel %vm2760, %v5663, %v5115
        %v5694 = vsel %vm2760, %v5664, %v5117
        %v5695 = vsel %vm2760, %v5665, %v5119
        %v5696 = vsel %vm2760, %v5666, %v5121
        %v5697 = vsel %vm2760, %v5667, %v5123
        %v5698 = vsel %vm2760, %v5668, %v5125
        %v5699 = vsel %vm2760, %v5669, %v5127
        %v5700 = vsel %vm2760, %v5670, %v5129
        %v5701 = vsel %vm2760, %v5671, %v5131
        %v5702 = vsel %vm2760, %v5672, %v5133
        %v5703 = vsel %vm2760, %v5673, %v5135
        %v5704 = vsel %vm2760, %v5674, %v5137
        %v5705 = vsel %vm2760, %v5675, %v5139
        %v5706 = vsel %vm2760, %v5676, %v5141
        %v5707 = vsel %vm2760, %v5677, %v5143
        %v5708 = vsel %vm2790, %v2761, %v5175
        %v5709 = vsel %vm2790, %v2761, %v5177
        %v5710 = vsel %vm2790, %v5678, %v5179
        %v5711 = vsel %vm2790, %v5679, %v5181
        %v5712 = vsel %vm2790, %v5680, %v5183
        %v5713 = vsel %vm2790, %v5681, %v5185
        %v5714 = vsel %vm2790, %v5682, %v5187
        %v5715 = vsel %vm2790, %v5683, %v5189
        %v5716 = vsel %vm2790, %v5684, %v5191
        %v5717 = vsel %vm2790, %v5685, %v5193
        %v5718 = vsel %vm2790, %v5686, %v5195
        %v5719 = vsel %vm2790, %v5687, %v5197
        %v5720 = vsel %vm2790, %v5688, %v5199
        %v5721 = vsel %vm2790, %v5689, %v5201
        %v5722 = vsel %vm2790, %v5690, %v5203
        %v5723 = vsel %vm2790, %v5691, %v5205
        %v5724 = vsel %vm2790, %v5692, %v5207
        %v5725 = vsel %vm2790, %v5693, %v5209
        %v5726 = vsel %vm2790, %v5694, %v5211
        %v5727 = vsel %vm2790, %v5695, %v5213
        %v5728 = vsel %vm2790, %v5696, %v5215
        %v5729 = vsel %vm2790, %v5697, %v5217
        %v5730 = vsel %vm2790, %v5698, %v5219
        %v5731 = vsel %vm2790, %v5699, %v5221
        %v5732 = vsel %vm2790, %v5700, %v5223
        %v5733 = vsel %vm2790, %v5701, %v5225
        %v5734 = vsel %vm2790, %v5702, %v5227
        %v5735 = vsel %vm2790, %v5703, %v5229
        %v5736 = vsel %vm2790, %v5704, %v5231
        %v5737 = vsel %vm2790, %v5705, %v5233
        %v5738 = vsel %vm2790, %v5706, %v5235
        %v5739 = vsel %vm2790, %v5707, %v5237
        %v5740 = vsel %vm2820, %v5708, %v5271
        %v5741 = vsel %vm2820, %v5709, %v5273
        %v5742 = vsel %vm2820, %v5710, %v5275
        %v5743 = vsel %vm2820, %v5711, %v5277
        %v5744 = vsel %vm2820, %v5712, %v5279
        %v5745 = vsel %vm2820, %v5713, %v5281
        %v5746 = vsel %vm2820, %v5714, %v5283
        %v5747 = vsel %vm2820, %v5715, %v5285
        %v5748 = vsel %vm2820, %v5716, %v5287
        %v5749 = vsel %vm2820, %v5717, %v5289
        %v5750 = vsel %vm2820, %v5718, %v5291
        %v5751 = vsel %vm2820, %v5719, %v5293
        %v5752 = vsel %vm2820, %v5720, %v5295
        %v5753 = vsel %vm2820, %v5721, %v5297
        %v5754 = vsel %vm2820, %v5722, %v5299
        %v5755 = vsel %vm2820, %v5723, %v5301
        %v5756 = vsel %vm2820, %v5724, %v5303
        %v5757 = vsel %vm2820, %v5725, %v5305
        %v5758 = vsel %vm2820, %v5726, %v5307
        %v5759 = vsel %vm2820, %v5727, %v5309
        %v5760 = vsel %vm2820, %v5728, %v5311
        %v5761 = vsel %vm2820, %v5729, %v5313
        %v5762 = vsel %vm2820, %v5730, %v5315
        %v5763 = vsel %vm2820, %v5731, %v5317
        %v5764 = vsel %vm2820, %v5732, %v5319
        %v5765 = vsel %vm2820, %v5733, %v5321
        %v5766 = vsel %vm2820, %v5734, %v5323
        %v5767 = vsel %vm2820, %v5735, %v5325
        %v5768 = vsel %vm2820, %v5736, %v5327
        %v5769 = vsel %vm2820, %v5737, %v5329
        %v5770 = vsel %vm2820, %v5738, %v5331
        %v5771 = vsel %vm2820, %v5739, %v5333
        %v5772 = vsel %vm2850, %v5740, %v5367
        %v5773 = vsel %vm2850, %v5741, %v5369
        %v5774 = vsel %vm2850, %v5742, %v5371
        %v5775 = vsel %vm2850, %v5743, %v5373
        %v5776 = vsel %vm2850, %v5744, %v5375
        %v5777 = vsel %vm2850, %v5745, %v5377
        %v5778 = vsel %vm2850, %v5746, %v5379
        %v5779 = vsel %vm2850, %v5747, %v5381
        %v5780 = vsel %vm2850, %v5748, %v5383
        %v5781 = vsel %vm2850, %v5749, %v5385
        %v5782 = vsel %vm2850, %v5750, %v5387
        %v5783 = vsel %vm2850, %v5751, %v5389
        %v5784 = vsel %vm2850, %v5752, %v5391
        %v5785 = vsel %vm2850, %v5753, %v5393
        %v5786 = vsel %vm2850, %v5754, %v5395
        %v5787 = vsel %vm2850, %v5755, %v5397
        %v5788 = vsel %vm2850, %v5756, %v5399
        %v5789 = vsel %vm2850, %v5757, %v5401
        %v5790 = vsel %vm2850, %v5758, %v5403
        %v5791 = vsel %vm2850, %v5759, %v5405
        %v5792 = vsel %vm2850, %v5760, %v5407
        %v5793 = vsel %vm2850, %v5761, %v5409
        %v5794 = vsel %vm2850, %v5762, %v5411
        %v5795 = vsel %vm2850, %v5763, %v5413
        %v5796 = vsel %vm2850, %v5764, %v5415
        %v5797 = vsel %vm2850, %v5765, %v5417
        %v5798 = vsel %vm2850, %v5766, %v5419
        %v5799 = vsel %vm2850, %v5767, %v5421
        %v5800 = vsel %vm2850, %v5768, %v5423
        %v5801 = vsel %vm2850, %v5769, %v5425
        %v5802 = vsel %vm2850, %v5770, %v5427
        %v5803 = vsel %vm2850, %v5771, %v5429
        %v5804 = vsel %vm2882, %v5772, %v5463
        %v5805 = vsel %vm2882, %v5773, %v5465
        %v5806 = vsel %vm2882, %v5774, %v5467
        %v5807 = vsel %vm2882, %v5775, %v5469
        %v5808 = vsel %vm2882, %v5776, %v5471
        %v5809 = vsel %vm2882, %v5777, %v5473
        %v5810 = vsel %vm2882, %v5778, %v5475
        %v5811 = vsel %vm2882, %v5779, %v5477
        %v5812 = vsel %vm2882, %v5780, %v5479
        %v5813 = vsel %vm2882, %v5781, %v5481
        %v5814 = vsel %vm2882, %v5782, %v5483
        %v5815 = vsel %vm2882, %v5783, %v5485
        %v5816 = vsel %vm2882, %v5784, %v5487
        %v5817 = vsel %vm2882, %v5785, %v5489
        %v5818 = vsel %vm2882, %v5786, %v5491
        %v5819 = vsel %vm2882, %v5787, %v5493
        %v5820 = vsel %vm2882, %v5788, %v5495
        %v5821 = vsel %vm2882, %v5789, %v5497
        %v5822 = vsel %vm2882, %v5790, %v5499
        %v5823 = vsel %vm2882, %v5791, %v5501
        %v5824 = vsel %vm2882, %v5792, %v5503
        %v5825 = vsel %vm2882, %v5793, %v5505
        %v5826 = vsel %vm2882, %v5794, %v5507
        %v5827 = vsel %vm2882, %v5795, %v5509
        %v5828 = vsel %vm2882, %v5796, %v5511
        %v5829 = vsel %vm2882, %v5797, %v5513
        %v5830 = vsel %vm2882, %v5798, %v5515
        %v5831 = vsel %vm2882, %v5799, %v5517
        %v5832 = vsel %vm2882, %v5800, %v5519
        %v5833 = vsel %vm2882, %v5801, %v5521
        %v5834 = vsel %vm2882, %v5802, %v5523
        %v5835 = vsel %vm2882, %v5803, %v5523
        %v5836 = vsel %vm2914, %v5804, %v5556
        %v5837 = vsel %vm2914, %v5805, %v5558
        %v5838 = vsel %vm2914, %v5806, %v5560
        %v5839 = vsel %vm2914, %v5807, %v5562
        %v5840 = vsel %vm2914, %v5808, %v5564
        %v5841 = vsel %vm2914, %v5809, %v5566
        %v5842 = vsel %vm2914, %v5810, %v5568
        %v5843 = vsel %vm2914, %v5811, %v5570
        %v5844 = vsel %vm2914, %v5812, %v5572
        %v5845 = vsel %vm2914, %v5813, %v5574
        %v5846 = vsel %vm2914, %v5814, %v5576
        %v5847 = vsel %vm2914, %v5815, %v5578
        %v5848 = vsel %vm2914, %v5816, %v5580
        %v5849 = vsel %vm2914, %v5817, %v5582
        %v5850 = vsel %vm2914, %v5818, %v5584
        %v5851 = vsel %vm2914, %v5819, %v5586
        %v5852 = vsel %vm2914, %v5820, %v5588
        %v5853 = vsel %vm2914, %v5821, %v5590
        %v5854 = vsel %vm2914, %v5822, %v5592
        %v5855 = vsel %vm2914, %v5823, %v5594
        %v5856 = vsel %vm2914, %v5824, %v5596
        %v5857 = vsel %vm2914, %v5825, %v5598
        %v5858 = vsel %vm2914, %v5826, %v5600
        %v5859 = vsel %vm2914, %v5827, %v5602
        %v5860 = vsel %vm2914, %v5828, %v5604
        %v5861 = vsel %vm2914, %v5829, %v5606
        %v5862 = vsel %vm2914, %v5830, %v5608
        %v5863 = vsel %vm2914, %v5831, %v5610
        %v5864 = vsel %vm2914, %v5832, %v5612
        %v5865 = vsel %vm2914, %v5833, %v5614
        %v5866 = vsel %vm2914, %v5834, %v5616
        %v5867 = vsel %vm2914, %v5835, %v5616
        %v5868 = vld [vmem:[%s5] sm:$0xff]
        %v5869 = vld [vmem:[%s5 + $0x8] sm:$0xff]
        %v5870 = vld [vmem:[%s5 + $0x10] sm:$0xff]
        %v5871 = vld [vmem:[%s5 + $0x18] sm:$0xff]
        %v5872 = vld [vmem:[%s5 + $0x20] sm:$0xff]
        %v5873 = vld [vmem:[%s5 + $0x28] sm:$0xff]
        %v5874 = vld [vmem:[%s5 + $0x30] sm:$0xff]
        %v5875 = vld [vmem:[%s5 + $0x38] sm:$0xff]
        %v5876 = vld [vmem:[%s5 + $0x40] sm:$0xff]
        %v5877 = vld [vmem:[%s5 + $0x48] sm:$0xff]
        %v5878 = vld [vmem:[%s5 + $0x50] sm:$0xff]
        %v5879 = vld [vmem:[%s5 + $0x58] sm:$0xff]
        %v5880 = vld [vmem:[%s5 + $0x60] sm:$0xff]
        %v5881 = vld [vmem:[%s5 + $0x68] sm:$0xff]
        %v5882 = vld [vmem:[%s5 + $0x70] sm:$0xff]
        %v5883 = vld [vmem:[%s5 + $0x78] sm:$0xff]
        %v5884 = vld [vmem:[%s5 + $0x80] sm:$0xff]
        %v5885 = vld [vmem:[%s5 + $0x88] sm:$0xff]
        %v5886 = vld [vmem:[%s6] sm:$0x1]
        %v5888 = vlaneseq
        %v5889 = vshrl.u32 %v5888, 7
        %v5890 = vsub.s32 0, %v5889
        %v5891 = vrot.slane %v5886, %v5890
        %v5893 = vsel %vm2730, %v4914, 0
        %v5895 = vsel %vm2730, %v4916, 0
        %v5897 = vsel %vm2730, %v4919, 0
        %v5899 = vsel %vm2730, %v4921, 0
        %v5901 = vsel %vm2730, %v4924, 0
        %v5903 = vsel %vm2730, %v4926, 0
        %v5905 = vsel %vm2730, %v4929, 0
        %v5907 = vsel %vm2730, %v4931, 0
        %v5909 = vsel %vm2730, %v4934, 0
        %v5911 = vsel %vm2730, %v4936, 0
        %v5913 = vsel %vm2730, %v4939, 0
        %v5915 = vsel %vm2730, %v4941, 0
        %v5917 = vsel %vm2730, %v4944, 0
        %v5919 = vsel %vm2730, %v4946, 0
        %v5921 = vsel %vm2730, %v4949, 0
        %v5923 = vsel %vm2730, %v4951, 0
        %v5925 = vsel %vm2730, %v4954, 0
        %v5927 = vsel %vm2730, %v4956, 0
        %v5929 = vsel %vm2730, %v4959, 0
        %v5931 = vsel %vm2730, %v4961, 0
        %v5933 = vsel %vm2730, %v4964, 0
        %v5935 = vsel %vm2730, %v4966, 0
        %v5937 = vsel %vm2730, %v4969, 0
        %v5939 = vsel %vm2730, %v4971, 0
        %v5941 = vsel %vm2730, %v4974, 0
        %v5943 = vsel %vm2730, %v4976, 0
        %v5945 = vsel %vm2730, %v4979, 0
        %v5947 = vsel %vm2730, %v4981, 0
        %v5949 = vsel %vm2730, %v4991, 0
        %v5951 = vsel %vm2730, %v4993, 0
        %v5953 = vsel %vm2730, %v1115, 0
        %5955 = vmatprep.subr.mxu0 0.0
        %5956 = vmatpush1.msra.mxu0 %v5868
        %5957 = vmatprep.subr.mxu0 0.0
        %5958 = vmatpush1.msra.mxu0 %v5869
        %5959 = vmatprep.subr.mxu0 0.0
        %5960 = vmatpush1.msra.mxu0 %v5870
        %5961 = vmatprep.subr.mxu0 0.0
        %5962 = vmatpush1.msra.mxu0 %v5871
        %5963 = vmatprep.subr.mxu0 0.0
        %5964 = vmatpush1.msra.mxu0 %v5872
        %5965 = vmatprep.subr.mxu0 0.0
        %5966 = vmatpush1.msra.mxu0 %v5873
        %5967 = vmatprep.subr.mxu0 0.0
        %5968 = vmatpush1.msra.mxu0 %v5874
        %5969 = vmatprep.subr.mxu0 0.0
        %5970 = vmatpush1.msra.mxu0 %v5875
        %5971 = vmatprep.subr.mxu0 0.0
        %5972 = vmatpush1.msra.mxu0 %v5876
        %5973 = vmatprep.subr.mxu0 0.0
        %5974 = vmatpush1.msra.mxu0 %v5877
        %5975 = vmatprep.subr.mxu0 0.0
        %5976 = vmatpush1.msra.mxu0 %v5878
        %5977 = vmatprep.subr.mxu0 0.0
        %5978 = vmatpush1.msra.mxu0 %v5879
        %5979 = vmatprep.subr.mxu0 0.0
        %5980 = vmatpush1.msra.mxu0 %v5880
        %5981 = vmatprep.subr.mxu0 0.0
        %5982 = vmatpush1.msra.mxu0 %v5881
        %5983 = vmatprep.subr.mxu0 0.0
        %5984 = vmatpush1.msra.mxu0 %v5882
        %5985 = vmatprep.subr.mxu0 0.0
        %5986 = vmatpush1.msra.mxu0 %v5883
        %5987 = vmatprep.subr.mxu0 0.0
        %5988 = vmatpush1.msra.mxu0 %v5884
        %5989 = vmatprep.subr.mxu0 0.0
        %5990 = vmatpush1.msra.mxu0 %v5885
        %5991 = vmatprep.subr.mxu0 0.0
        %5992 = vmatpush1.msra.mxu0 0.0
        %5993 = vmatprep.subr.mxu0 0.0
        %5994 = vmatpush1.msra.mxu0 0.0
        %5995 = vmatprep.subr.mxu0 0.0
        %5996 = vmatpush1.msra.mxu0 0.0
        %5997 = vmatprep.subr.mxu0 0.0
        %5998 = vmatpush1.msra.mxu0 0.0
        %5999 = vmatprep.subr.mxu0 0.0
        %6000 = vmatpush1.msra.mxu0 0.0
        %6001 = vmatprep.subr.mxu0 0.0
        %6002 = vmatpush1.msra.mxu0 0.0
        %6003 = vmatprep.subr.mxu0 0.0
        %6004 = vmatpush1.msra.mxu0 0.0
        %6005 = vmatprep.subr.mxu0 0.0
        %6006 = vmatpush1.msra.mxu0 0.0
        %6007 = vmatprep.subr.mxu0 0.0
        %6008 = vmatpush1.msra.mxu0 0.0
        %6009 = vmatprep.subr.mxu0 0.0
        %6010 = vmatpush1.msra.mxu0 0.0
        %6011 = vmatprep.subr.mxu0 0.0
        %6012 = vmatpush1.msra.mxu0 0.0
        %6013 = vmatprep.subr.mxu0 0.0
        %6014 = vmatpush1.msra.mxu0 0.0
        %6015 = vmatprep.subr.mxu0 0.0
        %6016 = vmatpush1.msra.mxu0 0.0
        %6017 = vmatprep.subr.mxu0 0.0
        %6018 = vmatpush1.msra.mxu0 0.0
        %6019 = vmatprep.mubr.f32.mxu0 %v5893
        %6020 = vmatmul.mubr.f32.gmra.mrb[0].mxu0 %v5836
        %v6021 = vpop.f32.mrb[0].mxu0
        %v6022 = vadd.f32 %v5891, %v6021
        %v6023 = vpop.f32.mrb[0].mxu0
        %6024 = vmatprep.mubr.f32.mxu0 %v5895
        %6025 = vmatmul.mubr.f32.gmra.mrb[0].mxu0 %v5837
        %v6026 = vpop.f32.mrb[0].mxu0
        %v6027 = vadd.f32 %v5891, %v6026
        %v6028 = vpop.f32.mrb[0].mxu0
        %6029 = vmatprep.mubr.f32.mxu0 %v5897
        %6030 = vmatmul.mubr.f32.gmra.mrb[0].mxu0 %v5838
        %v6031 = vpop.f32.mrb[0].mxu0
        %v6032 = vadd.f32 %v5891, %v6031
        %v6033 = vpop.f32.mrb[0].mxu0
        %6034 = vmatprep.mubr.f32.mxu0 %v5899
        %6035 = vmatmul.mubr.f32.gmra.mrb[0].mxu0 %v5839
        %v6036 = vpop.f32.mrb[0].mxu0
        %v6037 = vadd.f32 %v5891, %v6036
        %v6038 = vpop.f32.mrb[0].mxu0
        %6039 = vmatprep.mubr.f32.mxu0 %v5901
        %6040 = vmatmul.mubr.f32.gmra.mrb[0].mxu0 %v5840
        %v6041 = vpop.f32.mrb[0].mxu0
        %v6042 = vadd.f32 %v5891, %v6041
        %v6043 = vpop.f32.mrb[0].mxu0
        %6044 = vmatprep.mubr.f32.mxu0 %v5903
        %6045 = vmatmul.mubr.f32.gmra.mrb[0].mxu0 %v5841
        %v6046 = vpop.f32.mrb[0].mxu0
        %v6047 = vadd.f32 %v5891, %v6046
        %v6048 = vpop.f32.mrb[0].mxu0
        %6049 = vmatprep.mubr.f32.mxu0 %v5905
        %6050 = vmatmul.mubr.f32.gmra.mrb[0].mxu0 %v5842
        %v6051 = vpop.f32.mrb[0].mxu0
        %v6052 = vadd.f32 %v5891, %v6051
        %v6053 = vpop.f32.mrb[0].mxu0
        %6054 = vmatprep.mubr.f32.mxu0 %v5907
        %6055 = vmatmul.mubr.f32.gmra.mrb[0].mxu0 %v5843
        %v6056 = vpop.f32.mrb[0].mxu0
        %v6057 = vadd.f32 %v5891, %v6056
        %v6058 = vpop.f32.mrb[0].mxu0
        %6059 = vmatprep.mubr.f32.mxu0 %v5909
        %6060 = vmatmul.mubr.f32.gmra.mrb[0].mxu0 %v5844
        %v6061 = vpop.f32.mrb[0].mxu0
        %v6062 = vadd.f32 %v5891, %v6061
        %v6063 = vpop.f32.mrb[0].mxu0
        %6064 = vmatprep.mubr.f32.mxu0 %v5911
        %6065 = vmatmul.mubr.f32.gmra.mrb[0].mxu0 %v5845
        %v6066 = vpop.f32.mrb[0].mxu0
        %v6067 = vadd.f32 %v5891, %v6066
        %v6068 = vpop.f32.mrb[0].mxu0
        %6069 = vmatprep.mubr.f32.mxu0 %v5913
        %6070 = vmatmul.mubr.f32.gmra.mrb[0].mxu0 %v5846
        %v6071 = vpop.f32.mrb[0].mxu0
        %v6072 = vadd.f32 %v5891, %v6071
        %v6073 = vpop.f32.mrb[0].mxu0
        %6074 = vmatprep.mubr.f32.mxu0 %v5915
        %6075 = vmatmul.mubr.f32.gmra.mrb[0].mxu0 %v5847
        %v6076 = vpop.f32.mrb[0].mxu0
        %v6077 = vadd.f32 %v5891, %v6076
        %v6078 = vpop.f32.mrb[0].mxu0
        %6079 = vmatprep.mubr.f32.mxu0 %v5917
        %6080 = vmatmul.mubr.f32.gmra.mrb[0].mxu0 %v5848
        %v6081 = vpop.f32.mrb[0].mxu0
        %v6082 = vadd.f32 %v5891, %v6081
        %v6083 = vpop.f32.mrb[0].mxu0
        %6084 = vmatprep.mubr.f32.mxu0 %v5919
        %6085 = vmatmul.mubr.f32.gmra.mrb[0].mxu0 %v5849
        %v6086 = vpop.f32.mrb[0].mxu0
        %v6087 = vadd.f32 %v5891, %v6086
        %v6088 = vpop.f32.mrb[0].mxu0
        %6089 = vmatprep.mubr.f32.mxu0 %v5921
        %6090 = vmatmul.mubr.f32.gmra.mrb[0].mxu0 %v5850
        %v6091 = vpop.f32.mrb[0].mxu0
        %v6092 = vadd.f32 %v5891, %v6091
        %v6093 = vpop.f32.mrb[0].mxu0
        %6094 = vmatprep.mubr.f32.mxu0 %v5923
        %6095 = vmatmul.mubr.f32.gmra.mrb[0].mxu0 %v5851
        %v6096 = vpop.f32.mrb[0].mxu0
        %v6097 = vadd.f32 %v5891, %v6096
        %v6098 = vpop.f32.mrb[0].mxu0
        %6099 = vmatprep.mubr.f32.mxu0 %v5925
        %6100 = vmatmul.mubr.f32.gmra.mrb[0].mxu0 %v5852
        %v6101 = vpop.f32.mrb[0].mxu0
        %v6102 = vadd.f32 %v5891, %v6101
        %v6103 = vpop.f32.mrb[0].mxu0
        %6104 = vmatprep.mubr.f32.mxu0 %v5927
        %6105 = vmatmul.mubr.f32.gmra.mrb[0].mxu0 %v5853
        %v6106 = vpop.f32.mrb[0].mxu0
        %v6107 = vadd.f32 %v5891, %v6106
        %v6108 = vpop.f32.mrb[0].mxu0
        %6109 = vmatprep.mubr.f32.mxu0 %v5929
        %6110 = vmatmul.mubr.f32.gmra.mrb[0].mxu0 %v5854
        %v6111 = vpop.f32.mrb[0].mxu0
        %v6112 = vadd.f32 %v5891, %v6111
        %v6113 = vpop.f32.mrb[0].mxu0
        %6114 = vmatprep.mubr.f32.mxu0 %v5931
        %6115 = vmatmul.mubr.f32.gmra.mrb[0].mxu0 %v5855
        %v6116 = vpop.f32.mrb[0].mxu0
        %v6117 = vadd.f32 %v5891, %v6116
        %v6118 = vpop.f32.mrb[0].mxu0
        %6119 = vmatprep.mubr.f32.mxu0 %v5933
        %6120 = vmatmul.mubr.f32.gmra.mrb[0].mxu0 %v5856
        %v6121 = vpop.f32.mrb[0].mxu0
        %v6122 = vadd.f32 %v5891, %v6121
        %v6123 = vpop.f32.mrb[0].mxu0
        %6124 = vmatprep.mubr.f32.mxu0 %v5935
        %6125 = vmatmul.mubr.f32.gmra.mrb[0].mxu0 %v5857
        %v6126 = vpop.f32.mrb[0].mxu0
        %v6127 = vadd.f32 %v5891, %v6126
        %v6128 = vpop.f32.mrb[0].mxu0
        %6129 = vmatprep.mubr.f32.mxu0 %v5937
        %6130 = vmatmul.mubr.f32.gmra.mrb[0].mxu0 %v5858
        %v6131 = vpop.f32.mrb[0].mxu0
        %v6132 = vadd.f32 %v5891, %v6131
        %v6133 = vpop.f32.mrb[0].mxu0
        %6134 = vmatprep.mubr.f32.mxu0 %v5939
        %6135 = vmatmul.mubr.f32.gmra.mrb[0].mxu0 %v5859
        %v6136 = vpop.f32.mrb[0].mxu0
        %v6137 = vadd.f32 %v5891, %v6136
        %v6138 = vpop.f32.mrb[0].mxu0
        %6139 = vmatprep.mubr.f32.mxu0 %v5941
        %6140 = vmatmul.mubr.f32.gmra.mrb[0].mxu0 %v5860
        %v6141 = vpop.f32.mrb[0].mxu0
        %v6142 = vadd.f32 %v5891, %v6141
        %v6143 = vpop.f32.mrb[0].mxu0
        %6144 = vmatprep.mubr.f32.mxu0 %v5943
        %6145 = vmatmul.mubr.f32.gmra.mrb[0].mxu0 %v5861
        %v6146 = vpop.f32.mrb[0].mxu0
        %v6147 = vadd.f32 %v5891, %v6146
        %v6148 = vpop.f32.mrb[0].mxu0
        %6149 = vmatprep.mubr.f32.mxu0 %v5945
        %6150 = vmatmul.mubr.f32.gmra.mrb[0].mxu0 %v5862
        %v6151 = vpop.f32.mrb[0].mxu0
        %v6152 = vadd.f32 %v5891, %v6151
        %v6153 = vpop.f32.mrb[0].mxu0
        %6154 = vmatprep.mubr.f32.mxu0 %v5947
        %6155 = vmatmul.mubr.f32.gmra.mrb[0].mxu0 %v5863
        %v6156 = vpop.f32.mrb[0].mxu0
        %v6157 = vadd.f32 %v5891, %v6156
        %v6158 = vpop.f32.mrb[0].mxu0
        %6159 = vmatprep.mubr.f32.mxu0 %v5949
        %6160 = vmatmul.mubr.f32.gmra.mrb[0].mxu0 %v5864
        %v6161 = vpop.f32.mrb[0].mxu0
        %v6162 = vadd.f32 %v5891, %v6161
        %v6163 = vpop.f32.mrb[0].mxu0
        %6164 = vmatprep.mubr.f32.mxu0 %v5951
        %6165 = vmatmul.mubr.f32.gmra.mrb[0].mxu0 %v5865
        %v6166 = vpop.f32.mrb[0].mxu0
        %v6167 = vadd.f32 %v5891, %v6166
        %v6168 = vpop.f32.mrb[0].mxu0
        %6169 = vmatprep.mubr.f32.mxu0 %v5953
        %6170 = vmatmul.mubr.f32.gmra.mrb[0].mxu0 %v5866
        %v6171 = vpop.f32.mrb[0].mxu0
        %v6172 = vadd.f32 %v5891, %v6171
        %v6173 = vpop.f32.mrb[0].mxu0
        %6174 = vmatprep.mubr.f32.mxu0 %v5953
        %6175 = vmatmul.mubr.f32.gmra.mrb[0].mxu0 %v5867
        %v6176 = vpop.f32.mrb[0].mxu0
        %v6177 = vadd.f32 %v5891, %v6176
        %v6178 = vpop.f32.mrb[0].mxu0
        %6179 = vdwg.mxu0
        %v6212 = vrot.slane %v6022, 7
        %v6213 = vrot.slane %v6027, 7
        %v6214 = vsel %vm4578, %v6212, %v6213
        %v6215 = vrot.slane %v6032, 7
        %v6216 = vrot.slane %v6037, 7
        %v6217 = vsel %vm4578, %v6215, %v6216
        %v6218 = vrot.slane %v6042, 7
        %v6219 = vrot.slane %v6047, 7
        %v6220 = vsel %vm4578, %v6218, %v6219
        %v6221 = vrot.slane %v6052, 7
        %v6222 = vrot.slane %v6057, 7
        %v6223 = vsel %vm4578, %v6221, %v6222
        %v6224 = vrot.slane %v6062, 7
        %v6225 = vrot.slane %v6067, 7
        %v6226 = vsel %vm4578, %v6224, %v6225
        %v6227 = vrot.slane %v6072, 7
        %v6228 = vrot.slane %v6077, 7
        %v6229 = vsel %vm4578, %v6227, %v6228
        %v6230 = vrot.slane %v6082, 7
        %v6231 = vrot.slane %v6087, 7
        %v6232 = vsel %vm4578, %v6230, %v6231
        %v6233 = vrot.slane %v6092, 7
        %v6234 = vrot.slane %v6097, 7
        %v6235 = vsel %vm4578, %v6233, %v6234
        %v6236 = vrot.slane %v6102, 7
        %v6237 = vrot.slane %v6107, 7
        %v6238 = vsel %vm4578, %v6236, %v6237
        %v6239 = vrot.slane %v6112, 7
        %v6240 = vrot.slane %v6117, 7
        %v6241 = vsel %vm4578, %v6239, %v6240
        %v6242 = vrot.slane %v6122, 7
        %v6243 = vrot.slane %v6127, 7
        %v6244 = vsel %vm4578, %v6242, %v6243
        %v6245 = vrot.slane %v6132, 7
        %v6246 = vrot.slane %v6137, 7
        %v6247 = vsel %vm4578, %v6245, %v6246
        %v6248 = vrot.slane %v6142, 7
        %v6249 = vrot.slane %v6147, 7
        %v6250 = vsel %vm4578, %v6248, %v6249
        %v6251 = vrot.slane %v6152, 7
        %v6252 = vrot.slane %v6157, 7
        %v6253 = vsel %vm4578, %v6251, %v6252
        %v6254 = vrot.slane %v6162, 7
        %v6255 = vrot.slane %v6167, 7
        %v6256 = vsel %vm4578, %v6254, %v6255
        %v6257 = vrot.slane %v6172, 7
        %v6258 = vrot.slane %v6177, 7
        %v6259 = vsel %vm4578, %v6257, %v6258
        %v6307 = vsel %vm4578, 0.0, %v6212
        %v6308 = vsel %vm4578, 0.0, %v6215
        %v6309 = vsel %vm4578, 0.0, %v6218
        %v6310 = vsel %vm4578, 0.0, %v6221
        %v6311 = vsel %vm4578, 0.0, %v6224
        %v6312 = vsel %vm4578, 0.0, %v6227
        %v6313 = vsel %vm4578, 0.0, %v6230
        %v6314 = vsel %vm4578, 0.0, %v6233
        %v6315 = vsel %vm4578, 0.0, %v6236
        %v6316 = vsel %vm4578, 0.0, %v6239
        %v6317 = vsel %vm4578, 0.0, %v6242
        %v6318 = vsel %vm4578, 0.0, %v6245
        %v6319 = vsel %vm4578, 0.0, %v6248
        %v6320 = vsel %vm4578, 0.0, %v6251
        %v6321 = vsel %vm4578, 0.0, %v6254
        %v6322 = vsel %vm4578, 0.0, %v6257
        %v6323 = vsel %vm4578, %v6213, 0.0
        %v6324 = vsel %vm4578, %v6216, 0.0
        %v6325 = vsel %vm4578, %v6219, 0.0
        %v6326 = vsel %vm4578, %v6222, 0.0
        %v6327 = vsel %vm4578, %v6225, 0.0
        %v6328 = vsel %vm4578, %v6228, 0.0
        %v6329 = vsel %vm4578, %v6231, 0.0
        %v6330 = vsel %vm4578, %v6234, 0.0
        %v6331 = vsel %vm4578, %v6237, 0.0
        %v6332 = vsel %vm4578, %v6240, 0.0
        %v6333 = vsel %vm4578, %v6243, 0.0
        %v6334 = vsel %vm4578, %v6246, 0.0
        %v6335 = vsel %vm4578, %v6249, 0.0
        %v6336 = vsel %vm4578, %v6252, 0.0
        %v6337 = vsel %vm4578, %v6255, 0.0
        %v6338 = vsel %vm4578, %v6258, 0.0
        %v6369 = vrot.slane %v6307, 1
        %v6370 = vrot.slane %v6214, 1
        %v6371 = vsel %vm1040, %v6369, %v6370
        %v6372 = vrot.slane %v6323, 1
        %v6373 = vsel %vm1040, %v6370, %v6372
        %v6374 = vrot.slane %v6308, 1
        %v6375 = vrot.slane %v6217, 1
        %v6376 = vsel %vm1040, %v6374, %v6375
        %v6377 = vrot.slane %v6324, 1
        %v6378 = vsel %vm1040, %v6375, %v6377
        %v6379 = vrot.slane %v6309, 1
        %v6380 = vrot.slane %v6220, 1
        %v6381 = vsel %vm1040, %v6379, %v6380
        %v6382 = vrot.slane %v6325, 1
        %v6383 = vsel %vm1040, %v6380, %v6382
        %v6384 = vrot.slane %v6310, 1
        %v6385 = vrot.slane %v6223, 1
        %v6386 = vsel %vm1040, %v6384, %v6385
        %v6387 = vrot.slane %v6326, 1
        %v6388 = vsel %vm1040, %v6385, %v6387
        %v6389 = vrot.slane %v6311, 1
        %v6390 = vrot.slane %v6226, 1
        %v6391 = vsel %vm1040, %v6389, %v6390
        %v6392 = vrot.slane %v6327, 1
        %v6393 = vsel %vm1040, %v6390, %v6392
        %v6394 = vrot.slane %v6312, 1
        %v6395 = vrot.slane %v6229, 1
        %v6396 = vsel %vm1040, %v6394, %v6395
        %v6397 = vrot.slane %v6328, 1
        %v6398 = vsel %vm1040, %v6395, %v6397
        %v6399 = vrot.slane %v6313, 1
        %v6400 = vrot.slane %v6232, 1
        %v6401 = vsel %vm1040, %v6399, %v6400
        %v6402 = vrot.slane %v6329, 1
        %v6403 = vsel %vm1040, %v6400, %v6402
        %v6404 = vrot.slane %v6314, 1
        %v6405 = vrot.slane %v6235, 1
        %v6406 = vsel %vm1040, %v6404, %v6405
        %v6407 = vrot.slane %v6330, 1
        %v6408 = vsel %vm1040, %v6405, %v6407
        %v6409 = vrot.slane %v6315, 1
        %v6410 = vrot.slane %v6238, 1
        %v6411 = vsel %vm1040, %v6409, %v6410
        %v6412 = vrot.slane %v6331, 1
        %v6413 = vsel %vm1040, %v6410, %v6412
        %v6414 = vrot.slane %v6316, 1
        %v6415 = vrot.slane %v6241, 1
        %v6416 = vsel %vm1040, %v6414, %v6415
        %v6417 = vrot.slane %v6332, 1
        %v6418 = vsel %vm1040, %v6415, %v6417
        %v6419 = vrot.slane %v6317, 1
        %v6420 = vrot.slane %v6244, 1
        %v6421 = vsel %vm1040, %v6419, %v6420
        %v6422 = vrot.slane %v6333, 1
        %v6423 = vsel %vm1040, %v6420, %v6422
        %v6424 = vrot.slane %v6318, 1
        %v6425 = vrot.slane %v6247, 1
        %v6426 = vsel %vm1040, %v6424, %v6425
        %v6427 = vrot.slane %v6334, 1
        %v6428 = vsel %vm1040, %v6425, %v6427
        %v6429 = vrot.slane %v6319, 1
        %v6430 = vrot.slane %v6250, 1
        %v6431 = vsel %vm1040, %v6429, %v6430
        %v6432 = vrot.slane %v6335, 1
        %v6433 = vsel %vm1040, %v6430, %v6432
        %v6434 = vrot.slane %v6320, 1
        %v6435 = vrot.slane %v6253, 1
        %v6436 = vsel %vm1040, %v6434, %v6435
        %v6437 = vrot.slane %v6336, 1
        %v6438 = vsel %vm1040, %v6435, %v6437
        %v6439 = vrot.slane %v6321, 1
        %v6440 = vrot.slane %v6256, 1
        %v6441 = vsel %vm1040, %v6439, %v6440
        %v6442 = vrot.slane %v6337, 1
        %v6443 = vsel %vm1040, %v6440, %v6442
        %v6444 = vrot.slane %v6307, 2
        %v6445 = vrot.slane %v6214, 2
        %v6446 = vsel %vm1113, %v6444, %v6445
        %v6447 = vrot.slane %v6323, 2
        %v6448 = vsel %vm1113, %v6445, %v6447
        %v6449 = vrot.slane %v6308, 2
        %v6450 = vrot.slane %v6217, 2
        %v6451 = vsel %vm1113, %v6449, %v6450
        %v6452 = vrot.slane %v6324, 2
        %v6453 = vsel %vm1113, %v6450, %v6452
        %v6454 = vrot.slane %v6309, 2
        %v6455 = vrot.slane %v6220, 2
        %v6456 = vsel %vm1113, %v6454, %v6455
        %v6457 = vrot.slane %v6325, 2
        %v6458 = vsel %vm1113, %v6455, %v6457
        %v6459 = vrot.slane %v6310, 2
        %v6460 = vrot.slane %v6223, 2
        %v6461 = vsel %vm1113, %v6459, %v6460
        %v6462 = vrot.slane %v6326, 2
        %v6463 = vsel %vm1113, %v6460, %v6462
        %v6464 = vrot.slane %v6311, 2
        %v6465 = vrot.slane %v6226, 2
        %v6466 = vsel %vm1113, %v6464, %v6465
        %v6467 = vrot.slane %v6327, 2
        %v6468 = vsel %vm1113, %v6465, %v6467
        %v6469 = vrot.slane %v6312, 2
        %v6470 = vrot.slane %v6229, 2
        %v6471 = vsel %vm1113, %v6469, %v6470
        %v6472 = vrot.slane %v6328, 2
        %v6473 = vsel %vm1113, %v6470, %v6472
        %v6474 = vrot.slane %v6313, 2
        %v6475 = vrot.slane %v6232, 2
        %v6476 = vsel %vm1113, %v6474, %v6475
        %v6477 = vrot.slane %v6329, 2
        %v6478 = vsel %vm1113, %v6475, %v6477
        %v6479 = vrot.slane %v6314, 2
        %v6480 = vrot.slane %v6235, 2
        %v6481 = vsel %vm1113, %v6479, %v6480
        %v6482 = vrot.slane %v6330, 2
        %v6483 = vsel %vm1113, %v6480, %v6482
        %v6484 = vrot.slane %v6315, 2
        %v6485 = vrot.slane %v6238, 2
        %v6486 = vsel %vm1113, %v6484, %v6485
        %v6487 = vrot.slane %v6331, 2
        %v6488 = vsel %vm1113, %v6485, %v6487
        %v6489 = vrot.slane %v6316, 2
        %v6490 = vrot.slane %v6241, 2
        %v6491 = vsel %vm1113, %v6489, %v6490
        %v6492 = vrot.slane %v6332, 2
        %v6493 = vsel %vm1113, %v6490, %v6492
        %v6494 = vrot.slane %v6317, 2
        %v6495 = vrot.slane %v6244, 2
        %v6496 = vsel %vm1113, %v6494, %v6495
        %v6497 = vrot.slane %v6333, 2
        %v6498 = vsel %vm1113, %v6495, %v6497
        %v6499 = vrot.slane %v6318, 2
        %v6500 = vrot.slane %v6247, 2
        %v6501 = vsel %vm1113, %v6499, %v6500
        %v6502 = vrot.slane %v6334, 2
        %v6503 = vsel %vm1113, %v6500, %v6502
        %v6504 = vrot.slane %v6319, 2
        %v6505 = vrot.slane %v6250, 2
        %v6506 = vsel %vm1113, %v6504, %v6505
        %v6507 = vrot.slane %v6335, 2
        %v6508 = vsel %vm1113, %v6505, %v6507
        %v6509 = vrot.slane %v6320, 2
        %v6510 = vrot.slane %v6253, 2
        %v6511 = vsel %vm1113, %v6509, %v6510
        %v6512 = vrot.slane %v6336, 2
        %v6513 = vsel %vm1113, %v6510, %v6512
        %v6514 = vrot.slane %v6321, 2
        %v6515 = vrot.slane %v6256, 2
        %v6516 = vsel %vm1113, %v6514, %v6515
        %v6517 = vrot.slane %v6337, 2
        %v6518 = vsel %vm1113, %v6515, %v6517
        %v6521 = vrot.slane %v6322, 1
        %v6522 = vrot.slane %v6259, 1
        %v6523 = vsel %vm1040, %v6521, %v6522
        %v6524 = vrot.slane %v6338, 1
        %v6525 = vsel %vm1040, %v6522, %v6524
        %v6526 = vrot.slane %v6322, 2
        %v6527 = vrot.slane %v6259, 2
        %v6528 = vsel %vm1113, %v6526, %v6527
        %v6529 = vrot.slane %v6338, 2
        %v6530 = vsel %vm1113, %v6527, %v6529
        %6531 = vrot.lane.b32.xlu0 %v1042, 24
        %v6532 = vpop.permute.xlu0 %6531
        %6533 = vrot.lane.b32.xlu0 %v6371, 24
        %v6534 = vpop.permute.xlu0 %6533
        %6535 = vrot.lane.b32.xlu0 %v6373, 24
        %v6536 = vpop.permute.xlu0 %6535
        %6537 = vrot.lane.b32.xlu0 %v6376, 24
        %v6538 = vpop.permute.xlu0 %6537
        %6539 = vrot.lane.b32.xlu0 %v6378, 24
        %v6540 = vpop.permute.xlu0 %6539
        %6541 = vrot.lane.b32.xlu0 %v6381, 24
        %v6542 = vpop.permute.xlu0 %6541
        %6543 = vrot.lane.b32.xlu0 %v6383, 24
        %v6544 = vpop.permute.xlu0 %6543
        %6545 = vrot.lane.b32.xlu0 %v6386, 24
        %v6546 = vpop.permute.xlu0 %6545
        %6547 = vrot.lane.b32.xlu0 %v6388, 24
        %v6548 = vpop.permute.xlu0 %6547
        %6549 = vrot.lane.b32.xlu0 %v6391, 24
        %v6550 = vpop.permute.xlu0 %6549
        %6551 = vrot.lane.b32.xlu0 %v6393, 24
        %v6552 = vpop.permute.xlu0 %6551
        %6553 = vrot.lane.b32.xlu0 %v6396, 24
        %v6554 = vpop.permute.xlu0 %6553
        %6555 = vrot.lane.b32.xlu0 %v6398, 24
        %v6556 = vpop.permute.xlu0 %6555
        %6557 = vrot.lane.b32.xlu0 %v6401, 24
        %v6558 = vpop.permute.xlu0 %6557
        %6559 = vrot.lane.b32.xlu0 %v6403, 24
        %v6560 = vpop.permute.xlu0 %6559
        %6561 = vrot.lane.b32.xlu0 %v6406, 24
        %v6562 = vpop.permute.xlu0 %6561
        %6563 = vrot.lane.b32.xlu0 %v6408, 24
        %v6564 = vpop.permute.xlu0 %6563
        %6565 = vrot.lane.b32.xlu0 %v6411, 24
        %v6566 = vpop.permute.xlu0 %6565
        %6567 = vrot.lane.b32.xlu0 %v6413, 24
        %v6568 = vpop.permute.xlu0 %6567
        %6569 = vrot.lane.b32.xlu0 %v6416, 24
        %v6570 = vpop.permute.xlu0 %6569
        %6571 = vrot.lane.b32.xlu0 %v6418, 24
        %v6572 = vpop.permute.xlu0 %6571
        %6573 = vrot.lane.b32.xlu0 %v6421, 24
        %v6574 = vpop.permute.xlu0 %6573
        %6575 = vrot.lane.b32.xlu0 %v6423, 24
        %v6576 = vpop.permute.xlu0 %6575
        %6577 = vrot.lane.b32.xlu0 %v6426, 24
        %v6578 = vpop.permute.xlu0 %6577
        %6579 = vrot.lane.b32.xlu0 %v6428, 24
        %v6580 = vpop.permute.xlu0 %6579
        %6581 = vrot.lane.b32.xlu0 %v6431, 24
        %v6582 = vpop.permute.xlu0 %6581
        %6583 = vrot.lane.b32.xlu0 %v6433, 24
        %v6584 = vpop.permute.xlu0 %6583
        %6585 = vrot.lane.b32.xlu0 %v6436, 24
        %v6586 = vpop.permute.xlu0 %6585
        %6587 = vrot.lane.b32.xlu0 %v6438, 24
        %v6588 = vpop.permute.xlu0 %6587
        %6589 = vrot.lane.b32.xlu0 %v6441, 24
        %v6590 = vpop.permute.xlu0 %6589
        %6591 = vrot.lane.b32.xlu0 %v6443, 24
        %v6592 = vpop.permute.xlu0 %6591
        %6624 = vrot.lane.b32.xlu0 %v1115, 48
        %v6625 = vpop.permute.xlu0 %6624
        %6626 = vrot.lane.b32.xlu0 %v6446, 48
        %v6627 = vpop.permute.xlu0 %6626
        %6628 = vrot.lane.b32.xlu0 %v6448, 48
        %v6629 = vpop.permute.xlu0 %6628
        %6630 = vrot.lane.b32.xlu0 %v6451, 48
        %v6631 = vpop.permute.xlu0 %6630
        %6632 = vrot.lane.b32.xlu0 %v6453, 48
        %v6633 = vpop.permute.xlu0 %6632
        %6634 = vrot.lane.b32.xlu0 %v6456, 48
        %v6635 = vpop.permute.xlu0 %6634
        %6636 = vrot.lane.b32.xlu0 %v6458, 48
        %v6637 = vpop.permute.xlu0 %6636
        %6638 = vrot.lane.b32.xlu0 %v6461, 48
        %v6639 = vpop.permute.xlu0 %6638
        %6640 = vrot.lane.b32.xlu0 %v6463, 48
        %v6641 = vpop.permute.xlu0 %6640
        %6642 = vrot.lane.b32.xlu0 %v6466, 48
        %v6643 = vpop.permute.xlu0 %6642
        %6644 = vrot.lane.b32.xlu0 %v6468, 48
        %v6645 = vpop.permute.xlu0 %6644
        %6646 = vrot.lane.b32.xlu0 %v6471, 48
        %v6647 = vpop.permute.xlu0 %6646
        %6648 = vrot.lane.b32.xlu0 %v6473, 48
        %v6649 = vpop.permute.xlu0 %6648
        %6650 = vrot.lane.b32.xlu0 %v6476, 48
        %v6651 = vpop.permute.xlu0 %6650
        %6652 = vrot.lane.b32.xlu0 %v6478, 48
        %v6653 = vpop.permute.xlu0 %6652
        %6654 = vrot.lane.b32.xlu0 %v6481, 48
        %v6655 = vpop.permute.xlu0 %6654
        %6656 = vrot.lane.b32.xlu0 %v6483, 48
        %v6657 = vpop.permute.xlu0 %6656
        %6658 = vrot.lane.b32.xlu0 %v6486, 48
        %v6659 = vpop.permute.xlu0 %6658
        %6660 = vrot.lane.b32.xlu0 %v6488, 48
        %v6661 = vpop.permute.xlu0 %6660
        %6662 = vrot.lane.b32.xlu0 %v6491, 48
        %v6663 = vpop.permute.xlu0 %6662
        %6664 = vrot.lane.b32.xlu0 %v6493, 48
        %v6665 = vpop.permute.xlu0 %6664
        %6666 = vrot.lane.b32.xlu0 %v6496, 48
        %v6667 = vpop.permute.xlu0 %6666
        %6668 = vrot.lane.b32.xlu0 %v6498, 48
        %v6669 = vpop.permute.xlu0 %6668
        %6670 = vrot.lane.b32.xlu0 %v6501, 48
        %v6671 = vpop.permute.xlu0 %6670
        %6672 = vrot.lane.b32.xlu0 %v6503, 48
        %v6673 = vpop.permute.xlu0 %6672
        %6674 = vrot.lane.b32.xlu0 %v6506, 48
        %v6675 = vpop.permute.xlu0 %6674
        %6676 = vrot.lane.b32.xlu0 %v6508, 48
        %v6677 = vpop.permute.xlu0 %6676
        %6678 = vrot.lane.b32.xlu0 %v6511, 48
        %v6679 = vpop.permute.xlu0 %6678
        %6680 = vrot.lane.b32.xlu0 %v6513, 48
        %v6681 = vpop.permute.xlu0 %6680
        %6682 = vrot.lane.b32.xlu0 %v6516, 48
        %v6683 = vpop.permute.xlu0 %6682
        %6684 = vrot.lane.b32.xlu0 %v6518, 48
        %v6685 = vpop.permute.xlu0 %6684
        %6717 = vrot.lane.b32.xlu0 %v6307, 72
        %v6718 = vpop.permute.xlu0 %6717
        %6719 = vrot.lane.b32.xlu0 %v6214, 72
        %v6720 = vpop.permute.xlu0 %6719
        %6721 = vrot.lane.b32.xlu0 %v6308, 72
        %v6722 = vpop.permute.xlu0 %6721
        %6723 = vrot.lane.b32.xlu0 %v6217, 72
        %v6724 = vpop.permute.xlu0 %6723
        %6725 = vrot.lane.b32.xlu0 %v6309, 72
        %v6726 = vpop.permute.xlu0 %6725
        %6727 = vrot.lane.b32.xlu0 %v6220, 72
        %v6728 = vpop.permute.xlu0 %6727
        %6729 = vrot.lane.b32.xlu0 %v6310, 72
        %v6730 = vpop.permute.xlu0 %6729
        %6731 = vrot.lane.b32.xlu0 %v6223, 72
        %v6732 = vpop.permute.xlu0 %6731
        %6733 = vrot.lane.b32.xlu0 %v6311, 72
        %v6734 = vpop.permute.xlu0 %6733
        %6735 = vrot.lane.b32.xlu0 %v6226, 72
        %v6736 = vpop.permute.xlu0 %6735
        %6737 = vrot.lane.b32.xlu0 %v6312, 72
        %v6738 = vpop.permute.xlu0 %6737
        %6739 = vrot.lane.b32.xlu0 %v6229, 72
        %v6740 = vpop.permute.xlu0 %6739
        %6741 = vrot.lane.b32.xlu0 %v6313, 72
        %v6742 = vpop.permute.xlu0 %6741
        %6743 = vrot.lane.b32.xlu0 %v6232, 72
        %v6744 = vpop.permute.xlu0 %6743
        %6745 = vrot.lane.b32.xlu0 %v6314, 72
        %v6746 = vpop.permute.xlu0 %6745
        %6747 = vrot.lane.b32.xlu0 %v6235, 72
        %v6748 = vpop.permute.xlu0 %6747
        %6749 = vrot.lane.b32.xlu0 %v6315, 72
        %v6750 = vpop.permute.xlu0 %6749
        %6751 = vrot.lane.b32.xlu0 %v6238, 72
        %v6752 = vpop.permute.xlu0 %6751
        %6753 = vrot.lane.b32.xlu0 %v6316, 72
        %v6754 = vpop.permute.xlu0 %6753
        %6755 = vrot.lane.b32.xlu0 %v6241, 72
        %v6756 = vpop.permute.xlu0 %6755
        %6757 = vrot.lane.b32.xlu0 %v6317, 72
        %v6758 = vpop.permute.xlu0 %6757
        %6759 = vrot.lane.b32.xlu0 %v6244, 72
        %v6760 = vpop.permute.xlu0 %6759
        %6761 = vrot.lane.b32.xlu0 %v6318, 72
        %v6762 = vpop.permute.xlu0 %6761
        %6763 = vrot.lane.b32.xlu0 %v6247, 72
        %v6764 = vpop.permute.xlu0 %6763
        %6765 = vrot.lane.b32.xlu0 %v6319, 72
        %v6766 = vpop.permute.xlu0 %6765
        %6767 = vrot.lane.b32.xlu0 %v6250, 72
        %v6768 = vpop.permute.xlu0 %6767
        %6769 = vrot.lane.b32.xlu0 %v6320, 72
        %v6770 = vpop.permute.xlu0 %6769
        %6771 = vrot.lane.b32.xlu0 %v6253, 72
        %v6772 = vpop.permute.xlu0 %6771
        %6773 = vrot.lane.b32.xlu0 %v6321, 72
        %v6774 = vpop.permute.xlu0 %6773
        %6775 = vrot.lane.b32.xlu0 %v6256, 72
        %v6776 = vpop.permute.xlu0 %6775
        %6777 = vrot.lane.b32.xlu0 %v6322, 72
        %v6778 = vpop.permute.xlu0 %6777
        %6779 = vrot.lane.b32.xlu0 %v6259, 72
        %v6780 = vpop.permute.xlu0 %6779
        %6813 = vrot.lane.b32.xlu0 %v6371, 96
        %v6814 = vpop.permute.xlu0 %6813
        %6815 = vrot.lane.b32.xlu0 %v6373, 96
        %v6816 = vpop.permute.xlu0 %6815
        %6817 = vrot.lane.b32.xlu0 %v6376, 96
        %v6818 = vpop.permute.xlu0 %6817
        %6819 = vrot.lane.b32.xlu0 %v6378, 96
        %v6820 = vpop.permute.xlu0 %6819
        %6821 = vrot.lane.b32.xlu0 %v6381, 96
        %v6822 = vpop.permute.xlu0 %6821
        %6823 = vrot.lane.b32.xlu0 %v6383, 96
        %v6824 = vpop.permute.xlu0 %6823
        %6825 = vrot.lane.b32.xlu0 %v6386, 96
        %v6826 = vpop.permute.xlu0 %6825
        %6827 = vrot.lane.b32.xlu0 %v6388, 96
        %v6828 = vpop.permute.xlu0 %6827
        %6829 = vrot.lane.b32.xlu0 %v6391, 96
        %v6830 = vpop.permute.xlu0 %6829
        %6831 = vrot.lane.b32.xlu0 %v6393, 96
        %v6832 = vpop.permute.xlu0 %6831
        %6833 = vrot.lane.b32.xlu0 %v6396, 96
        %v6834 = vpop.permute.xlu0 %6833
        %6835 = vrot.lane.b32.xlu0 %v6398, 96
        %v6836 = vpop.permute.xlu0 %6835
        %6837 = vrot.lane.b32.xlu0 %v6401, 96
        %v6838 = vpop.permute.xlu0 %6837
        %6839 = vrot.lane.b32.xlu0 %v6403, 96
        %v6840 = vpop.permute.xlu0 %6839
        %6841 = vrot.lane.b32.xlu0 %v6406, 96
        %v6842 = vpop.permute.xlu0 %6841
        %6843 = vrot.lane.b32.xlu0 %v6408, 96
        %v6844 = vpop.permute.xlu0 %6843
        %6845 = vrot.lane.b32.xlu0 %v6411, 96
        %v6846 = vpop.permute.xlu0 %6845
        %6847 = vrot.lane.b32.xlu0 %v6413, 96
        %v6848 = vpop.permute.xlu0 %6847
        %6849 = vrot.lane.b32.xlu0 %v6416, 96
        %v6850 = vpop.permute.xlu0 %6849
        %6851 = vrot.lane.b32.xlu0 %v6418, 96
        %v6852 = vpop.permute.xlu0 %6851
        %6853 = vrot.lane.b32.xlu0 %v6421, 96
        %v6854 = vpop.permute.xlu0 %6853
        %6855 = vrot.lane.b32.xlu0 %v6423, 96
        %v6856 = vpop.permute.xlu0 %6855
        %6857 = vrot.lane.b32.xlu0 %v6426, 96
        %v6858 = vpop.permute.xlu0 %6857
        %6859 = vrot.lane.b32.xlu0 %v6428, 96
        %v6860 = vpop.permute.xlu0 %6859
        %6861 = vrot.lane.b32.xlu0 %v6431, 96
        %v6862 = vpop.permute.xlu0 %6861
        %6863 = vrot.lane.b32.xlu0 %v6433, 96
        %v6864 = vpop.permute.xlu0 %6863
        %6865 = vrot.lane.b32.xlu0 %v6436, 96
        %v6866 = vpop.permute.xlu0 %6865
        %6867 = vrot.lane.b32.xlu0 %v6438, 96
        %v6868 = vpop.permute.xlu0 %6867
        %6869 = vrot.lane.b32.xlu0 %v6441, 96
        %v6870 = vpop.permute.xlu0 %6869
        %6871 = vrot.lane.b32.xlu0 %v6443, 96
        %v6872 = vpop.permute.xlu0 %6871
        %6873 = vrot.lane.b32.xlu0 %v6523, 96
        %v6874 = vpop.permute.xlu0 %6873
        %6875 = vrot.lane.b32.xlu0 %v6525, 96
        %v6876 = vpop.permute.xlu0 %6875
        %6909 = vrot.lane.b32.xlu0 %v6446, 120
        %v6910 = vpop.permute.xlu0 %6909
        %6911 = vrot.lane.b32.xlu0 %v6448, 120
        %v6912 = vpop.permute.xlu0 %6911
        %6913 = vrot.lane.b32.xlu0 %v6451, 120
        %v6914 = vpop.permute.xlu0 %6913
        %6915 = vrot.lane.b32.xlu0 %v6453, 120
        %v6916 = vpop.permute.xlu0 %6915
        %6917 = vrot.lane.b32.xlu0 %v6456, 120
        %v6918 = vpop.permute.xlu0 %6917
        %6919 = vrot.lane.b32.xlu0 %v6458, 120
        %v6920 = vpop.permute.xlu0 %6919
        %6921 = vrot.lane.b32.xlu0 %v6461, 120
        %v6922 = vpop.permute.xlu0 %6921
        %6923 = vrot.lane.b32.xlu0 %v6463, 120
        %v6924 = vpop.permute.xlu0 %6923
        %6925 = vrot.lane.b32.xlu0 %v6466, 120
        %v6926 = vpop.permute.xlu0 %6925
        %6927 = vrot.lane.b32.xlu0 %v6468, 120
        %v6928 = vpop.permute.xlu0 %6927
        %6929 = vrot.lane.b32.xlu0 %v6471, 120
        %v6930 = vpop.permute.xlu0 %6929
        %6931 = vrot.lane.b32.xlu0 %v6473, 120
        %v6932 = vpop.permute.xlu0 %6931
        %6933 = vrot.lane.b32.xlu0 %v6476, 120
        %v6934 = vpop.permute.xlu0 %6933
        %6935 = vrot.lane.b32.xlu0 %v6478, 120
        %v6936 = vpop.permute.xlu0 %6935
        %6937 = vrot.lane.b32.xlu0 %v6481, 120
        %v6938 = vpop.permute.xlu0 %6937
        %6939 = vrot.lane.b32.xlu0 %v6483, 120
        %v6940 = vpop.permute.xlu0 %6939
        %6941 = vrot.lane.b32.xlu0 %v6486, 120
        %v6942 = vpop.permute.xlu0 %6941
        %6943 = vrot.lane.b32.xlu0 %v6488, 120
        %v6944 = vpop.permute.xlu0 %6943
        %6945 = vrot.lane.b32.xlu0 %v6491, 120
        %v6946 = vpop.permute.xlu0 %6945
        %6947 = vrot.lane.b32.xlu0 %v6493, 120
        %v6948 = vpop.permute.xlu0 %6947
        %6949 = vrot.lane.b32.xlu0 %v6496, 120
        %v6950 = vpop.permute.xlu0 %6949
        %6951 = vrot.lane.b32.xlu0 %v6498, 120
        %v6952 = vpop.permute.xlu0 %6951
        %6953 = vrot.lane.b32.xlu0 %v6501, 120
        %v6954 = vpop.permute.xlu0 %6953
        %6955 = vrot.lane.b32.xlu0 %v6503, 120
        %v6956 = vpop.permute.xlu0 %6955
        %6957 = vrot.lane.b32.xlu0 %v6506, 120
        %v6958 = vpop.permute.xlu0 %6957
        %6959 = vrot.lane.b32.xlu0 %v6508, 120
        %v6960 = vpop.permute.xlu0 %6959
        %6961 = vrot.lane.b32.xlu0 %v6511, 120
        %v6962 = vpop.permute.xlu0 %6961
        %6963 = vrot.lane.b32.xlu0 %v6513, 120
        %v6964 = vpop.permute.xlu0 %6963
        %6965 = vrot.lane.b32.xlu0 %v6516, 120
        %v6966 = vpop.permute.xlu0 %6965
        %6967 = vrot.lane.b32.xlu0 %v6518, 120
        %v6968 = vpop.permute.xlu0 %6967
        %6969 = vrot.lane.b32.xlu0 %v6528, 120
        %v6970 = vpop.permute.xlu0 %6969
        %6971 = vrot.lane.b32.xlu0 %v6530, 120
        %v6972 = vpop.permute.xlu0 %6971
        %7005 = vrot.lane.b32.xlu0 %v6308, 16
        %v7006 = vpop.permute.xlu0 %7005
        %7007 = vrot.lane.b32.xlu0 %v6217, 16
        %v7008 = vpop.permute.xlu0 %7007
        %7009 = vrot.lane.b32.xlu0 %v6309, 16
        %v7010 = vpop.permute.xlu0 %7009
        %7011 = vrot.lane.b32.xlu0 %v6220, 16
        %v7012 = vpop.permute.xlu0 %7011
        %7013 = vrot.lane.b32.xlu0 %v6310, 16
        %v7014 = vpop.permute.xlu0 %7013
        %7015 = vrot.lane.b32.xlu0 %v6223, 16
        %v7016 = vpop.permute.xlu0 %7015
        %7017 = vrot.lane.b32.xlu0 %v6311, 16
        %v7018 = vpop.permute.xlu0 %7017
        %7019 = vrot.lane.b32.xlu0 %v6226, 16
        %v7020 = vpop.permute.xlu0 %7019
        %7021 = vrot.lane.b32.xlu0 %v6312, 16
        %v7022 = vpop.permute.xlu0 %7021
        %7023 = vrot.lane.b32.xlu0 %v6229, 16
        %v7024 = vpop.permute.xlu0 %7023
        %7025 = vrot.lane.b32.xlu0 %v6313, 16
        %v7026 = vpop.permute.xlu0 %7025
        %7027 = vrot.lane.b32.xlu0 %v6232, 16
        %v7028 = vpop.permute.xlu0 %7027
        %7029 = vrot.lane.b32.xlu0 %v6314, 16
        %v7030 = vpop.permute.xlu0 %7029
        %7031 = vrot.lane.b32.xlu0 %v6235, 16
        %v7032 = vpop.permute.xlu0 %7031
        %7033 = vrot.lane.b32.xlu0 %v6315, 16
        %v7034 = vpop.permute.xlu0 %7033
        %7035 = vrot.lane.b32.xlu0 %v6238, 16
        %v7036 = vpop.permute.xlu0 %7035
        %7037 = vrot.lane.b32.xlu0 %v6316, 16
        %v7038 = vpop.permute.xlu0 %7037
        %7039 = vrot.lane.b32.xlu0 %v6241, 16
        %v7040 = vpop.permute.xlu0 %7039
        %7041 = vrot.lane.b32.xlu0 %v6317, 16
        %v7042 = vpop.permute.xlu0 %7041
        %7043 = vrot.lane.b32.xlu0 %v6244, 16
        %v7044 = vpop.permute.xlu0 %7043
        %7045 = vrot.lane.b32.xlu0 %v6318, 16
        %v7046 = vpop.permute.xlu0 %7045
        %7047 = vrot.lane.b32.xlu0 %v6247, 16
        %v7048 = vpop.permute.xlu0 %7047
        %7049 = vrot.lane.b32.xlu0 %v6319, 16
        %v7050 = vpop.permute.xlu0 %7049
        %7051 = vrot.lane.b32.xlu0 %v6250, 16
        %v7052 = vpop.permute.xlu0 %7051
        %7053 = vrot.lane.b32.xlu0 %v6320, 16
        %v7054 = vpop.permute.xlu0 %7053
        %7055 = vrot.lane.b32.xlu0 %v6253, 16
        %v7056 = vpop.permute.xlu0 %7055
        %7057 = vrot.lane.b32.xlu0 %v6321, 16
        %v7058 = vpop.permute.xlu0 %7057
        %7059 = vrot.lane.b32.xlu0 %v6256, 16
        %v7060 = vpop.permute.xlu0 %7059
        %7061 = vrot.lane.b32.xlu0 %v6322, 16
        %v7062 = vpop.permute.xlu0 %7061
        %7063 = vrot.lane.b32.xlu0 %v6259, 16
        %v7064 = vpop.permute.xlu0 %7063
        %7065 = vrot.lane.b32.xlu0 0.0, 16
        %v7066 = vpop.permute.xlu0 %7065
        %7098 = vrot.lane.b32.xlu0 %v6376, 40
        %v7099 = vpop.permute.xlu0 %7098
        %7100 = vrot.lane.b32.xlu0 %v6378, 40
        %v7101 = vpop.permute.xlu0 %7100
        %7102 = vrot.lane.b32.xlu0 %v6381, 40
        %v7103 = vpop.permute.xlu0 %7102
        %7104 = vrot.lane.b32.xlu0 %v6383, 40
        %v7105 = vpop.permute.xlu0 %7104
        %7106 = vrot.lane.b32.xlu0 %v6386, 40
        %v7107 = vpop.permute.xlu0 %7106
        %7108 = vrot.lane.b32.xlu0 %v6388, 40
        %v7109 = vpop.permute.xlu0 %7108
        %7110 = vrot.lane.b32.xlu0 %v6391, 40
        %v7111 = vpop.permute.xlu0 %7110
        %7112 = vrot.lane.b32.xlu0 %v6393, 40
        %v7113 = vpop.permute.xlu0 %7112
        %7114 = vrot.lane.b32.xlu0 %v6396, 40
        %v7115 = vpop.permute.xlu0 %7114
        %7116 = vrot.lane.b32.xlu0 %v6398, 40
        %v7117 = vpop.permute.xlu0 %7116
        %7118 = vrot.lane.b32.xlu0 %v6401, 40
        %v7119 = vpop.permute.xlu0 %7118
        %7120 = vrot.lane.b32.xlu0 %v6403, 40
        %v7121 = vpop.permute.xlu0 %7120
        %7122 = vrot.lane.b32.xlu0 %v6406, 40
        %v7123 = vpop.permute.xlu0 %7122
        %7124 = vrot.lane.b32.xlu0 %v6408, 40
        %v7125 = vpop.permute.xlu0 %7124
        %7126 = vrot.lane.b32.xlu0 %v6411, 40
        %v7127 = vpop.permute.xlu0 %7126
        %7128 = vrot.lane.b32.xlu0 %v6413, 40
        %v7129 = vpop.permute.xlu0 %7128
        %7130 = vrot.lane.b32.xlu0 %v6416, 40
        %v7131 = vpop.permute.xlu0 %7130
        %7132 = vrot.lane.b32.xlu0 %v6418, 40
        %v7133 = vpop.permute.xlu0 %7132
        %7134 = vrot.lane.b32.xlu0 %v6421, 40
        %v7135 = vpop.permute.xlu0 %7134
        %7136 = vrot.lane.b32.xlu0 %v6423, 40
        %v7137 = vpop.permute.xlu0 %7136
        %7138 = vrot.lane.b32.xlu0 %v6426, 40
        %v7139 = vpop.permute.xlu0 %7138
        %7140 = vrot.lane.b32.xlu0 %v6428, 40
        %v7141 = vpop.permute.xlu0 %7140
        %7142 = vrot.lane.b32.xlu0 %v6431, 40
        %v7143 = vpop.permute.xlu0 %7142
        %7144 = vrot.lane.b32.xlu0 %v6433, 40
        %v7145 = vpop.permute.xlu0 %7144
        %7146 = vrot.lane.b32.xlu0 %v6436, 40
        %v7147 = vpop.permute.xlu0 %7146
        %7148 = vrot.lane.b32.xlu0 %v6438, 40
        %v7149 = vpop.permute.xlu0 %7148
        %7150 = vrot.lane.b32.xlu0 %v6441, 40
        %v7151 = vpop.permute.xlu0 %7150
        %7152 = vrot.lane.b32.xlu0 %v6443, 40
        %v7153 = vpop.permute.xlu0 %7152
        %7154 = vrot.lane.b32.xlu0 %v6523, 40
        %v7155 = vpop.permute.xlu0 %7154
        %7156 = vrot.lane.b32.xlu0 %v6525, 40
        %v7157 = vpop.permute.xlu0 %7156
        %7158 = vrot.lane.b32.xlu0 %v1042, 40
        %v7159 = vpop.permute.xlu0 %7158
        %7191 = vrot.lane.b32.xlu0 %v6451, 64
        %v7192 = vpop.permute.xlu0 %7191
        %7193 = vrot.lane.b32.xlu0 %v6453, 64
        %v7194 = vpop.permute.xlu0 %7193
        %7195 = vrot.lane.b32.xlu0 %v6456, 64
        %v7196 = vpop.permute.xlu0 %7195
        %7197 = vrot.lane.b32.xlu0 %v6458, 64
        %v7198 = vpop.permute.xlu0 %7197
        %7199 = vrot.lane.b32.xlu0 %v6461, 64
        %v7200 = vpop.permute.xlu0 %7199
        %7201 = vrot.lane.b32.xlu0 %v6463, 64
        %v7202 = vpop.permute.xlu0 %7201
        %7203 = vrot.lane.b32.xlu0 %v6466, 64
        %v7204 = vpop.permute.xlu0 %7203
        %7205 = vrot.lane.b32.xlu0 %v6468, 64
        %v7206 = vpop.permute.xlu0 %7205
        %7207 = vrot.lane.b32.xlu0 %v6471, 64
        %v7208 = vpop.permute.xlu0 %7207
        %7209 = vrot.lane.b32.xlu0 %v6473, 64
        %v7210 = vpop.permute.xlu0 %7209
        %7211 = vrot.lane.b32.xlu0 %v6476, 64
        %v7212 = vpop.permute.xlu0 %7211
        %7213 = vrot.lane.b32.xlu0 %v6478, 64
        %v7214 = vpop.permute.xlu0 %7213
        %7215 = vrot.lane.b32.xlu0 %v6481, 64
        %v7216 = vpop.permute.xlu0 %7215
        %7217 = vrot.lane.b32.xlu0 %v6483, 64
        %v7218 = vpop.permute.xlu0 %7217
        %7219 = vrot.lane.b32.xlu0 %v6486, 64
        %v7220 = vpop.permute.xlu0 %7219
        %7221 = vrot.lane.b32.xlu0 %v6488, 64
        %v7222 = vpop.permute.xlu0 %7221
        %7223 = vrot.lane.b32.xlu0 %v6491, 64
        %v7224 = vpop.permute.xlu0 %7223
        %7225 = vrot.lane.b32.xlu0 %v6493, 64
        %v7226 = vpop.permute.xlu0 %7225
        %7227 = vrot.lane.b32.xlu0 %v6496, 64
        %v7228 = vpop.permute.xlu0 %7227
        %7229 = vrot.lane.b32.xlu0 %v6498, 64
        %v7230 = vpop.permute.xlu0 %7229
        %7231 = vrot.lane.b32.xlu0 %v6501, 64
        %v7232 = vpop.permute.xlu0 %7231
        %7233 = vrot.lane.b32.xlu0 %v6503, 64
        %v7234 = vpop.permute.xlu0 %7233
        %7235 = vrot.lane.b32.xlu0 %v6506, 64
        %v7236 = vpop.permute.xlu0 %7235
        %7237 = vrot.lane.b32.xlu0 %v6508, 64
        %v7238 = vpop.permute.xlu0 %7237
        %7239 = vrot.lane.b32.xlu0 %v6511, 64
        %v7240 = vpop.permute.xlu0 %7239
        %7241 = vrot.lane.b32.xlu0 %v6513, 64
        %v7242 = vpop.permute.xlu0 %7241
        %7243 = vrot.lane.b32.xlu0 %v6516, 64
        %v7244 = vpop.permute.xlu0 %7243
        %7245 = vrot.lane.b32.xlu0 %v6518, 64
        %v7246 = vpop.permute.xlu0 %7245
        %7247 = vrot.lane.b32.xlu0 %v6528, 64
        %v7248 = vpop.permute.xlu0 %7247
        %7249 = vrot.lane.b32.xlu0 %v6530, 64
        %v7250 = vpop.permute.xlu0 %7249
        %7251 = vrot.lane.b32.xlu0 %v1115, 64
        %v7252 = vpop.permute.xlu0 %7251
        %vm7284 = vcmask 195584
        %v7285 = vsel %vm7284, 0.0, %v6532
        %v7286 = vsel %vm7284, %v6307, %v6534
        %v7287 = vsel %vm7284, %v6214, %v6536
        %v7288 = vsel %vm7284, %v6308, %v6538
        %v7289 = vsel %vm7284, %v6217, %v6540
        %v7290 = vsel %vm7284, %v6309, %v6542
        %v7291 = vsel %vm7284, %v6220, %v6544
        %v7292 = vsel %vm7284, %v6310, %v6546
        %v7293 = vsel %vm7284, %v6223, %v6548
        %v7294 = vsel %vm7284, %v6311, %v6550
        %v7295 = vsel %vm7284, %v6226, %v6552
        %v7296 = vsel %vm7284, %v6312, %v6554
        %v7297 = vsel %vm7284, %v6229, %v6556
        %v7298 = vsel %vm7284, %v6313, %v6558
        %v7299 = vsel %vm7284, %v6232, %v6560
        %v7300 = vsel %vm7284, %v6314, %v6562
        %v7301 = vsel %vm7284, %v6235, %v6564
        %v7302 = vsel %vm7284, %v6315, %v6566
        %v7303 = vsel %vm7284, %v6238, %v6568
        %v7304 = vsel %vm7284, %v6316, %v6570
        %v7305 = vsel %vm7284, %v6241, %v6572
        %v7306 = vsel %vm7284, %v6317, %v6574
        %v7307 = vsel %vm7284, %v6244, %v6576
        %v7308 = vsel %vm7284, %v6318, %v6578
        %v7309 = vsel %vm7284, %v6247, %v6580
        %v7310 = vsel %vm7284, %v6319, %v6582
        %v7311 = vsel %vm7284, %v6250, %v6584
        %v7312 = vsel %vm7284, %v6320, %v6586
        %v7313 = vsel %vm7284, %v6253, %v6588
        %v7314 = vsel %vm7284, %v6321, %v6590
        %v7315 = vsel %vm7284, %v6256, %v6592
        %v7316 = vsel %vm2790, %v7285, %v6625
        %v7317 = vsel %vm2790, %v7286, %v6627
        %v7318 = vsel %vm2790, %v7287, %v6629
        %v7319 = vsel %vm2790, %v7288, %v6631
        %v7320 = vsel %vm2790, %v7289, %v6633
        %v7321 = vsel %vm2790, %v7290, %v6635
        %v7322 = vsel %vm2790, %v7291, %v6637
        %v7323 = vsel %vm2790, %v7292, %v6639
        %v7324 = vsel %vm2790, %v7293, %v6641
        %v7325 = vsel %vm2790, %v7294, %v6643
        %v7326 = vsel %vm2790, %v7295, %v6645
        %v7327 = vsel %vm2790, %v7296, %v6647
        %v7328 = vsel %vm2790, %v7297, %v6649
        %v7329 = vsel %vm2790, %v7298, %v6651
        %v7330 = vsel %vm2790, %v7299, %v6653
        %v7331 = vsel %vm2790, %v7300, %v6655
        %v7332 = vsel %vm2790, %v7301, %v6657
        %v7333 = vsel %vm2790, %v7302, %v6659
        %v7334 = vsel %vm2790, %v7303, %v6661
        %v7335 = vsel %vm2790, %v7304, %v6663
        %v7336 = vsel %vm2790, %v7305, %v6665
        %v7337 = vsel %vm2790, %v7306, %v6667
        %v7338 = vsel %vm2790, %v7307, %v6669
        %v7339 = vsel %vm2790, %v7308, %v6671
        %v7340 = vsel %vm2790, %v7309, %v6673
        %v7341 = vsel %vm2790, %v7310, %v6675
        %v7342 = vsel %vm2790, %v7311, %v6677
        %v7343 = vsel %vm2790, %v7312, %v6679
        %v7344 = vsel %vm2790, %v7313, %v6681
        %v7345 = vsel %vm2790, %v7314, %v6683
        %v7346 = vsel %vm2790, %v7315, %v6685
        %vm7347 = vcmask 588800
        %v7348 = vsel %vm7347, %v7316, %v6718
        %v7349 = vsel %vm7347, %v7316, %v6720
        %v7350 = vsel %vm7347, %v7317, %v6722
        %v7351 = vsel %vm7347, %v7318, %v6724
        %v7352 = vsel %vm7347, %v7319, %v6726
        %v7353 = vsel %vm7347, %v7320, %v6728
        %v7354 = vsel %vm7347, %v7321, %v6730
        %v7355 = vsel %vm7347, %v7322, %v6732
        %v7356 = vsel %vm7347, %v7323, %v6734
        %v7357 = vsel %vm7347, %v7324, %v6736
        %v7358 = vsel %vm7347, %v7325, %v6738
        %v7359 = vsel %vm7347, %v7326, %v6740
        %v7360 = vsel %vm7347, %v7327, %v6742
        %v7361 = vsel %vm7347, %v7328, %v6744
        %v7362 = vsel %vm7347, %v7329, %v6746
        %v7363 = vsel %vm7347, %v7330, %v6748
        %v7364 = vsel %vm7347, %v7331, %v6750
        %v7365 = vsel %vm7347, %v7332, %v6752
        %v7366 = vsel %vm7347, %v7333, %v6754
        %v7367 = vsel %vm7347, %v7334, %v6756
        %v7368 = vsel %vm7347, %v7335, %v6758
        %v7369 = vsel %vm7347, %v7336, %v6760
        %v7370 = vsel %vm7347, %v7337, %v6762
        %v7371 = vsel %vm7347, %v7338, %v6764
        %v7372 = vsel %vm7347, %v7339, %v6766
        %v7373 = vsel %vm7347, %v7340, %v6768
        %v7374 = vsel %vm7347, %v7341, %v6770
        %v7375 = vsel %vm7347, %v7342, %v6772
        %v7376 = vsel %vm7347, %v7343, %v6774
        %v7377 = vsel %vm7347, %v7344, %v6776
        %v7378 = vsel %vm7347, %v7345, %v6778
        %v7379 = vsel %vm7347, %v7346, %v6780
        %v7380 = vsel %vm2882, %v7348, %v6814
        %v7381 = vsel %vm2882, %v7349, %v6816
        %v7382 = vsel %vm2882, %v7350, %v6818
        %v7383 = vsel %vm2882, %v7351, %v6820
        %v7384 = vsel %vm2882, %v7352, %v6822
        %v7385 = vsel %vm2882, %v7353, %v6824
        %v7386 = vsel %vm2882, %v7354, %v6826
        %v7387 = vsel %vm2882, %v7355, %v6828
        %v7388 = vsel %vm2882, %v7356, %v6830
        %v7389 = vsel %vm2882, %v7357, %v6832
        %v7390 = vsel %vm2882, %v7358, %v6834
        %v7391 = vsel %vm2882, %v7359, %v6836
        %v7392 = vsel %vm2882, %v7360, %v6838
        %v7393 = vsel %vm2882, %v7361, %v6840
        %v7394 = vsel %vm2882, %v7362, %v6842
        %v7395 = vsel %vm2882, %v7363, %v6844
        %v7396 = vsel %vm2882, %v7364, %v6846
        %v7397 = vsel %vm2882, %v7365, %v6848
        %v7398 = vsel %vm2882, %v7366, %v6850
        %v7399 = vsel %vm2882, %v7367, %v6852
        %v7400 = vsel %vm2882, %v7368, %v6854
        %v7401 = vsel %vm2882, %v7369, %v6856
        %v7402 = vsel %vm2882, %v7370, %v6858
        %v7403 = vsel %vm2882, %v7371, %v6860
        %v7404 = vsel %vm2882, %v7372, %v6862
        %v7405 = vsel %vm2882, %v7373, %v6864
        %v7406 = vsel %vm2882, %v7374, %v6866
        %v7407 = vsel %vm2882, %v7375, %v6868
        %v7408 = vsel %vm2882, %v7376, %v6870
        %v7409 = vsel %vm2882, %v7377, %v6872
        %v7410 = vsel %vm2882, %v7378, %v6874
        %v7411 = vsel %vm2882, %v7379, %v6876
        %vm7412 = vcmask 982016
        %v7413 = vsel %vm7412, %v7380, %v6910
        %v7414 = vsel %vm7412, %v7381, %v6912
        %v7415 = vsel %vm7412, %v7382, %v6914
        %v7416 = vsel %vm7412, %v7383, %v6916
        %v7417 = vsel %vm7412, %v7384, %v6918
        %v7418 = vsel %vm7412, %v7385, %v6920
        %v7419 = vsel %vm7412, %v7386, %v6922
        %v7420 = vsel %vm7412, %v7387, %v6924
        %v7421 = vsel %vm7412, %v7388, %v6926
        %v7422 = vsel %vm7412, %v7389, %v6928
        %v7423 = vsel %vm7412, %v7390, %v6930
        %v7424 = vsel %vm7412, %v7391, %v6932
        %v7425 = vsel %vm7412, %v7392, %v6934
        %v7426 = vsel %vm7412, %v7393, %v6936
        %v7427 = vsel %vm7412, %v7394, %v6938
        %v7428 = vsel %vm7412, %v7395, %v6940
        %v7429 = vsel %vm7412, %v7396, %v6942
        %v7430 = vsel %vm7412, %v7397, %v6944
        %v7431 = vsel %vm7412, %v7398, %v6946
        %v7432 = vsel %vm7412, %v7399, %v6948
        %v7433 = vsel %vm7412, %v7400, %v6950
        %v7434 = vsel %vm7412, %v7401, %v6952
        %v7435 = vsel %vm7412, %v7402, %v6954
        %v7436 = vsel %vm7412, %v7403, %v6956
        %v7437 = vsel %vm7412, %v7404, %v6958
        %v7438 = vsel %vm7412, %v7405, %v6960
        %v7439 = vsel %vm7412, %v7406, %v6962
        %v7440 = vsel %vm7412, %v7407, %v6964
        %v7441 = vsel %vm7412, %v7408, %v6966
        %v7442 = vsel %vm7412, %v7409, %v6968
        %v7443 = vsel %vm7412, %v7410, %v6970
        %v7444 = vsel %vm7412, %v7411, %v6972
        %v7445 = vsel %vm2730, %v6910, %v7006
        %v7446 = vsel %vm2730, %v6912, %v7008
        %v7447 = vsel %vm2730, %v6914, %v7010
        %v7448 = vsel %vm2730, %v6916, %v7012
        %v7449 = vsel %vm2730, %v6918, %v7014
        %v7450 = vsel %vm2730, %v6920, %v7016
        %v7451 = vsel %vm2730, %v6922, %v7018
        %v7452 = vsel %vm2730, %v6924, %v7020
        %v7453 = vsel %vm2730, %v6926, %v7022
        %v7454 = vsel %vm2730, %v6928, %v7024
        %v7455 = vsel %vm2730, %v6930, %v7026
        %v7456 = vsel %vm2730, %v6932, %v7028
        %v7457 = vsel %vm2730, %v6934, %v7030
        %v7458 = vsel %vm2730, %v6936, %v7032
        %v7459 = vsel %vm2730, %v6938, %v7034
        %v7460 = vsel %vm2730, %v6940, %v7036
        %v7461 = vsel %vm2730, %v6942, %v7038
        %v7462 = vsel %vm2730, %v6944, %v7040
        %v7463 = vsel %vm2730, %v6946, %v7042
        %v7464 = vsel %vm2730, %v6948, %v7044
        %v7465 = vsel %vm2730, %v6950, %v7046
        %v7466 = vsel %vm2730, %v6952, %v7048
        %v7467 = vsel %vm2730, %v6954, %v7050
        %v7468 = vsel %vm2730, %v6956, %v7052
        %v7469 = vsel %vm2730, %v6958, %v7054
        %v7470 = vsel %vm2730, %v6960, %v7056
        %v7471 = vsel %vm2730, %v6962, %v7058
        %v7472 = vsel %vm2730, %v6964, %v7060
        %v7473 = vsel %vm2730, %v6966, %v7062
        %v7474 = vsel %vm2730, %v6968, %v7064
        %v7475 = vsel %vm2730, %v6970, %v7066
        %v7476 = vsel %vm2730, %v6972, %v7066
        %vm7477 = vcmask 326656
        %v7478 = vsel %vm7477, %v7445, %v7099
        %v7479 = vsel %vm7477, %v7446, %v7101
        %v7480 = vsel %vm7477, %v7447, %v7103
        %v7481 = vsel %vm7477, %v7448, %v7105
        %v7482 = vsel %vm7477, %v7449, %v7107
        %v7483 = vsel %vm7477, %v7450, %v7109
        %v7484 = vsel %vm7477, %v7451, %v7111
        %v7485 = vsel %vm7477, %v7452, %v7113
        %v7486 = vsel %vm7477, %v7453, %v7115
        %v7487 = vsel %vm7477, %v7454, %v7117
        %v7488 = vsel %vm7477, %v7455, %v7119
        %v7489 = vsel %vm7477, %v7456, %v7121
        %v7490 = vsel %vm7477, %v7457, %v7123
        %v7491 = vsel %vm7477, %v7458, %v7125
        %v7492 = vsel %vm7477, %v7459, %v7127
        %v7493 = vsel %vm7477, %v7460, %v7129
        %v7494 = vsel %vm7477, %v7461, %v7131
        %v7495 = vsel %vm7477, %v7462, %v7133
        %v7496 = vsel %vm7477, %v7463, %v7135
        %v7497 = vsel %vm7477, %v7464, %v7137
        %v7498 = vsel %vm7477, %v7465, %v7139
        %v7499 = vsel %vm7477, %v7466, %v7141
        %v7500 = vsel %vm7477, %v7467, %v7143
        %v7501 = vsel %vm7477, %v7468, %v7145
        %v7502 = vsel %vm7477, %v7469, %v7147
        %v7503 = vsel %vm7477, %v7470, %v7149
        %v7504 = vsel %vm7477, %v7471, %v7151
        %v7505 = vsel %vm7477, %v7472, %v7153
        %v7506 = vsel %vm7477, %v7473, %v7155
        %v7507 = vsel %vm7477, %v7474, %v7157
        %v7508 = vsel %vm7477, %v7475, %v7159
        %v7509 = vsel %vm7477, %v7476, %v7159
        %v7510 = vsel %vm2820, %v7478, %v7192
        %v7511 = vsel %vm2820, %v7479, %v7194
        %v7512 = vsel %vm2820, %v7480, %v7196
        %v7513 = vsel %vm2820, %v7481, %v7198
        %v7514 = vsel %vm2820, %v7482, %v7200
        %v7515 = vsel %vm2820, %v7483, %v7202
        %v7516 = vsel %vm2820, %v7484, %v7204
        %v7517 = vsel %vm2820, %v7485, %v7206
        %v7518 = vsel %vm2820, %v7486, %v7208
        %v7519 = vsel %vm2820, %v7487, %v7210
        %v7520 = vsel %vm2820, %v7488, %v7212
        %v7521 = vsel %vm2820, %v7489, %v7214
        %v7522 = vsel %vm2820, %v7490, %v7216
        %v7523 = vsel %vm2820, %v7491, %v7218
        %v7524 = vsel %vm2820, %v7492, %v7220
        %v7525 = vsel %vm2820, %v7493, %v7222
        %v7526 = vsel %vm2820, %v7494, %v7224
        %v7527 = vsel %vm2820, %v7495, %v7226
        %v7528 = vsel %vm2820, %v7496, %v7228
        %v7529 = vsel %vm2820, %v7497, %v7230
        %v7530 = vsel %vm2820, %v7498, %v7232
        %v7531 = vsel %vm2820, %v7499, %v7234
        %v7532 = vsel %vm2820, %v7500, %v7236
        %v7533 = vsel %vm2820, %v7501, %v7238
        %v7534 = vsel %vm2820, %v7502, %v7240
        %v7535 = vsel %vm2820, %v7503, %v7242
        %v7536 = vsel %vm2820, %v7504, %v7244
        %v7537 = vsel %vm2820, %v7505, %v7246
        %v7538 = vsel %vm2820, %v7506, %v7248
        %v7539 = vsel %vm2820, %v7507, %v7250
        %v7540 = vsel %vm2820, %v7508, %v7252
        %v7541 = vsel %vm2820, %v7509, %v7252
        %v7542 = vld [vmem:[%s7] sm:$0xff]
        %v7543 = vld [vmem:[%s7 + $0x8] sm:$0xff]
        %v7544 = vld [vmem:[%s7 + $0x10] sm:$0xff]
        %v7545 = vld [vmem:[%s7 + $0x18] sm:$0xff]
        %v7546 = vld [vmem:[%s7 + $0x20] sm:$0xff]
        %v7547 = vld [vmem:[%s7 + $0x28] sm:$0xff]
        %v7548 = vld [vmem:[%s7 + $0x30] sm:$0xff]
        %v7549 = vld [vmem:[%s7 + $0x38] sm:$0xff]
        %v7550 = vld [vmem:[%s7 + $0x40] sm:$0xff]
        %v7551 = vld [vmem:[%s7 + $0x48] sm:$0xff]
        %v7552 = vld [vmem:[%s7 + $0x50] sm:$0xff]
        %v7553 = vld [vmem:[%s7 + $0x58] sm:$0xff]
        %v7554 = vld [vmem:[%s7 + $0x60] sm:$0xff]
        %v7555 = vld [vmem:[%s7 + $0x68] sm:$0xff]
        %v7556 = vld [vmem:[%s7 + $0x70] sm:$0xff]
        %v7557 = vld [vmem:[%s7 + $0x78] sm:$0xff]
        %v7558 = vld [vmem:[%s7 + $0x80] sm:$0xff]
        %v7559 = vld [vmem:[%s7 + $0x88] sm:$0xff]
        %v7560 = vld [vmem:[%s7 + $0x90] sm:$0xff]
        %v7561 = vld [vmem:[%s7 + $0x98] sm:$0xff]
        %v7562 = vld [vmem:[%s7 + $0xa0] sm:$0xff]
        %v7563 = vld [vmem:[%s7 + $0xa8] sm:$0xff]
        %v7564 = vld [vmem:[%s7 + $0xb0] sm:$0xff]
        %v7565 = vld [vmem:[%s7 + $0xb8] sm:$0xff]
        %v7566 = vld [vmem:[%s7 + $0xc0] sm:$0xff]
        %v7567 = vld [vmem:[%s7 + $0xc8] sm:$0xff]
        %v7568 = vld [vmem:[%s7 + $0xd0] sm:$0xff]
        %v7569 = vld [vmem:[%s8] sm:$0x1]
        %v7571 = vlaneseq
        %v7572 = vshrl.u32 %v7571, 7
        %v7573 = vsub.s32 0, %v7572
        %v7574 = vrot.slane %v7569, %v7573
        %vm7576 = vcmask 719872
        %v7578 = vsel %vm7576, %v7510, 0
        %v7581 = vsel %vm7576, %v7511, 0
        %v7584 = vsel %vm7576, %v7512, 0
        %v7587 = vsel %vm7576, %v7513, 0
        %v7590 = vsel %vm7576, %v7514, 0
        %v7593 = vsel %vm7576, %v7515, 0
        %v7596 = vsel %vm7576, %v7516, 0
        %v7599 = vsel %vm7576, %v7517, 0
        %v7602 = vsel %vm7576, %v7518, 0
        %v7605 = vsel %vm7576, %v7519, 0
        %v7608 = vsel %vm7576, %v7520, 0
        %v7611 = vsel %vm7576, %v7521, 0
        %v7614 = vsel %vm7576, %v7522, 0
        %v7617 = vsel %vm7576, %v7523, 0
        %v7620 = vsel %vm7576, %v7524, 0
        %v7623 = vsel %vm7576, %v7525, 0
        %v7626 = vsel %vm7576, %v7526, 0
        %v7629 = vsel %vm7576, %v7527, 0
        %v7632 = vsel %vm7576, %v7528, 0
        %v7635 = vsel %vm7576, %v7529, 0
        %v7638 = vsel %vm7576, %v7530, 0
        %v7641 = vsel %vm7576, %v7531, 0
        %v7644 = vsel %vm7576, %v7532, 0
        %v7647 = vsel %vm7576, %v7533, 0
        %v7650 = vsel %vm7576, %v7534, 0
        %v7653 = vsel %vm7576, %v7535, 0
        %v7656 = vsel %vm7576, %v7536, 0
        %v7659 = vsel %vm7576, %v7537, 0
        %v7662 = vsel %vm7576, %v7538, 0
        %v7665 = vsel %vm7576, %v7539, 0
        %v7668 = vsel %vm7576, %v7540, 0
        %v7671 = vsel %vm7576, %v7541, 0
        %7673 = vmatprep.subr.mxu0 0.0
        %7674 = vmatpush1.msra.mxu0 %v7542
        %7675 = vmatprep.subr.mxu0 0.0
        %7676 = vmatpush1.msra.mxu0 %v7543
        %7677 = vmatprep.subr.mxu0 0.0
        %7678 = vmatpush1.msra.mxu0 %v7544
        %7679 = vmatprep.subr.mxu0 0.0
        %7680 = vmatpush1.msra.mxu0 %v7545
        %7681 = vmatprep.subr.mxu0 0.0
        %7682 = vmatpush1.msra.mxu0 %v7546
        %7683 = vmatprep.subr.mxu0 0.0
        %7684 = vmatpush1.msra.mxu0 %v7547
        %7685 = vmatprep.subr.mxu0 0.0
        %7686 = vmatpush1.msra.mxu0 %v7548
        %7687 = vmatprep.subr.mxu0 0.0
        %7688 = vmatpush1.msra.mxu0 %v7549
        %7689 = vmatprep.subr.mxu0 0.0
        %7690 = vmatpush1.msra.mxu0 %v7550
        %7691 = vmatprep.subr.mxu0 0.0
        %7692 = vmatpush1.msra.mxu0 %v7551
        %7693 = vmatprep.subr.mxu0 0.0
        %7694 = vmatpush1.msra.mxu0 %v7552
        %7695 = vmatprep.subr.mxu0 0.0
        %7696 = vmatpush1.msra.mxu0 %v7553
        %7697 = vmatprep.subr.mxu0 0.0
        %7698 = vmatpush1.msra.mxu0 %v7554
        %7699 = vmatprep.subr.mxu0 0.0
        %7700 = vmatpush1.msra.mxu0 %v7555
        %7701 = vmatprep.subr.mxu0 0.0
        %7702 = vmatpush1.msra.mxu0 %v7556
        %7703 = vmatprep.subr.mxu0 0.0
        %7704 = vmatpush1.msra.mxu0 %v7557
        %7705 = vmatprep.subr.mxu0 0.0
        %7706 = vmatpush1.msra.mxu0 %v7558
        %7707 = vmatprep.subr.mxu0 0.0
        %7708 = vmatpush1.msra.mxu0 %v7559
        %7709 = vmatprep.subr.mxu0 0.0
        %7710 = vmatpush1.msra.mxu0 %v7560
        %7711 = vmatprep.subr.mxu0 0.0
        %7712 = vmatpush1.msra.mxu0 %v7561
        %7713 = vmatprep.subr.mxu0 0.0
        %7714 = vmatpush1.msra.mxu0 %v7562
        %7715 = vmatprep.subr.mxu0 0.0
        %7716 = vmatpush1.msra.mxu0 %v7563
        %7717 = vmatprep.subr.mxu0 0.0
        %7718 = vmatpush1.msra.mxu0 %v7564
        %7719 = vmatprep.subr.mxu0 0.0
        %7720 = vmatpush1.msra.mxu0 %v7565
        %7721 = vmatprep.subr.mxu0 0.0
        %7722 = vmatpush1.msra.mxu0 %v7566
        %7723 = vmatprep.subr.mxu0 0.0
        %7724 = vmatpush1.msra.mxu0 %v7567
        %7725 = vmatprep.subr.mxu0 0.0
        %7726 = vmatpush1.msra.mxu0 %v7568
        %7727 = vmatprep.subr.mxu0 0.0
        %7728 = vmatpush1.msra.mxu0 0.0
        %7729 = vmatprep.subr.mxu0 0.0
        %7730 = vmatpush1.msra.mxu0 0.0
        %7731 = vmatprep.subr.mxu0 0.0
        %7732 = vmatpush1.msra.mxu0 0.0
        %7733 = vmatprep.subr.mxu0 0.0
        %7734 = vmatpush1.msra.mxu0 0.0
        %7735 = vmatprep.subr.mxu0 0.0
        %7736 = vmatpush1.msra.mxu0 0.0
        %7737 = vmatprep.mubr.f32.mxu0 %v7578
        %7738 = vmatmul.mubr.f32.gmra.mrb[0].mxu0 %v7413
        %v7739 = vpop.f32.mrb[0].mxu0
        %v7740 = vadd.f32 %v7574, %v7739
        %v7741 = vpop.f32.mrb[0].mxu0
        %7742 = vmatprep.mubr.f32.mxu0 %v7581
        %7743 = vmatmul.mubr.f32.gmra.mrb[0].mxu0 %v7414
        %v7744 = vpop.f32.mrb[0].mxu0
        %v7745 = vadd.f32 %v7574, %v7744
        %v7746 = vpop.f32.mrb[0].mxu0
        %7747 = vmatprep.mubr.f32.mxu0 %v7584
        %7748 = vmatmul.mubr.f32.gmra.mrb[0].mxu0 %v7415
        %v7749 = vpop.f32.mrb[0].mxu0
        %v7750 = vadd.f32 %v7574, %v7749
        %v7751 = vpop.f32.mrb[0].mxu0
        %7752 = vmatprep.mubr.f32.mxu0 %v7587
        %7753 = vmatmul.mubr.f32.gmra.mrb[0].mxu0 %v7416
        %v7754 = vpop.f32.mrb[0].mxu0
        %v7755 = vadd.f32 %v7574, %v7754
        %v7756 = vpop.f32.mrb[0].mxu0
        %7757 = vmatprep.mubr.f32.mxu0 %v7590
        %7758 = vmatmul.mubr.f32.gmra.mrb[0].mxu0 %v7417
        %v7759 = vpop.f32.mrb[0].mxu0
        %v7760 = vadd.f32 %v7574, %v7759
        %v7761 = vpop.f32.mrb[0].mxu0
        %7762 = vmatprep.mubr.f32.mxu0 %v7593
        %7763 = vmatmul.mubr.f32.gmra.mrb[0].mxu0 %v7418
        %v7764 = vpop.f32.mrb[0].mxu0
        %v7765 = vadd.f32 %v7574, %v7764
        %v7766 = vpop.f32.mrb[0].mxu0
        %7767 = vmatprep.mubr.f32.mxu0 %v7596
        %7768 = vmatmul.mubr.f32.gmra.mrb[0].mxu0 %v7419
        %v7769 = vpop.f32.mrb[0].mxu0
        %v7770 = vadd.f32 %v7574, %v7769
        %v7771 = vpop.f32.mrb[0].mxu0
        %7772 = vmatprep.mubr.f32.mxu0 %v7599
        %7773 = vmatmul.mubr.f32.gmra.mrb[0].mxu0 %v7420
        %v7774 = vpop.f32.mrb[0].mxu0
        %v7775 = vadd.f32 %v7574, %v7774
        %v7776 = vpop.f32.mrb[0].mxu0
        %7777 = vmatprep.mubr.f32.mxu0 %v7602
        %7778 = vmatmul.mubr.f32.gmra.mrb[0].mxu0 %v7421
        %v7779 = vpop.f32.mrb[0].mxu0
        %v7780 = vadd.f32 %v7574, %v7779
        %v7781 = vpop.f32.mrb[0].mxu0
        %7782 = vmatprep.mubr.f32.mxu0 %v7605
        %7783 = vmatmul.mubr.f32.gmra.mrb[0].mxu0 %v7422
        %v7784 = vpop.f32.mrb[0].mxu0
        %v7785 = vadd.f32 %v7574, %v7784
        %v7786 = vpop.f32.mrb[0].mxu0
        %7787 = vmatprep.mubr.f32.mxu0 %v7608
        %7788 = vmatmul.mubr.f32.gmra.mrb[0].mxu0 %v7423
        %v7789 = vpop.f32.mrb[0].mxu0
        %v7790 = vadd.f32 %v7574, %v7789
        %v7791 = vpop.f32.mrb[0].mxu0
        %7792 = vmatprep.mubr.f32.mxu0 %v7611
        %7793 = vmatmul.mubr.f32.gmra.mrb[0].mxu0 %v7424
        %v7794 = vpop.f32.mrb[0].mxu0
        %v7795 = vadd.f32 %v7574, %v7794
        %v7796 = vpop.f32.mrb[0].mxu0
        %7797 = vmatprep.mubr.f32.mxu0 %v7614
        %7798 = vmatmul.mubr.f32.gmra.mrb[0].mxu0 %v7425
        %v7799 = vpop.f32.mrb[0].mxu0
        %v7800 = vadd.f32 %v7574, %v7799
        %v7801 = vpop.f32.mrb[0].mxu0
        %7802 = vmatprep.mubr.f32.mxu0 %v7617
        %7803 = vmatmul.mubr.f32.gmra.mrb[0].mxu0 %v7426
        %v7804 = vpop.f32.mrb[0].mxu0
        %v7805 = vadd.f32 %v7574, %v7804
        %v7806 = vpop.f32.mrb[0].mxu0
        %7807 = vmatprep.mubr.f32.mxu0 %v7620
        %7808 = vmatmul.mubr.f32.gmra.mrb[0].mxu0 %v7427
        %v7809 = vpop.f32.mrb[0].mxu0
        %v7810 = vadd.f32 %v7574, %v7809
        %v7811 = vpop.f32.mrb[0].mxu0
        %7812 = vmatprep.mubr.f32.mxu0 %v7623
        %7813 = vmatmul.mubr.f32.gmra.mrb[0].mxu0 %v7428
        %v7814 = vpop.f32.mrb[0].mxu0
        %v7815 = vadd.f32 %v7574, %v7814
        %v7816 = vpop.f32.mrb[0].mxu0
        %7817 = vmatprep.mubr.f32.mxu0 %v7626
        %7818 = vmatmul.mubr.f32.gmra.mrb[0].mxu0 %v7429
        %v7819 = vpop.f32.mrb[0].mxu0
        %v7820 = vadd.f32 %v7574, %v7819
        %v7821 = vpop.f32.mrb[0].mxu0
        %7822 = vmatprep.mubr.f32.mxu0 %v7629
        %7823 = vmatmul.mubr.f32.gmra.mrb[0].mxu0 %v7430
        %v7824 = vpop.f32.mrb[0].mxu0
        %v7825 = vadd.f32 %v7574, %v7824
        %v7826 = vpop.f32.mrb[0].mxu0
        %7827 = vmatprep.mubr.f32.mxu0 %v7632
        %7828 = vmatmul.mubr.f32.gmra.mrb[0].mxu0 %v7431
        %v7829 = vpop.f32.mrb[0].mxu0
        %v7830 = vadd.f32 %v7574, %v7829
        %v7831 = vpop.f32.mrb[0].mxu0
        %7832 = vmatprep.mubr.f32.mxu0 %v7635
        %7833 = vmatmul.mubr.f32.gmra.mrb[0].mxu0 %v7432
        %v7834 = vpop.f32.mrb[0].mxu0
        %v7835 = vadd.f32 %v7574, %v7834
        %v7836 = vpop.f32.mrb[0].mxu0
        %7837 = vmatprep.mubr.f32.mxu0 %v7638
        %7838 = vmatmul.mubr.f32.gmra.mrb[0].mxu0 %v7433
        %v7839 = vpop.f32.mrb[0].mxu0
        %v7840 = vadd.f32 %v7574, %v7839
        %v7841 = vpop.f32.mrb[0].mxu0
        %7842 = vmatprep.mubr.f32.mxu0 %v7641
        %7843 = vmatmul.mubr.f32.gmra.mrb[0].mxu0 %v7434
        %v7844 = vpop.f32.mrb[0].mxu0
        %v7845 = vadd.f32 %v7574, %v7844
        %v7846 = vpop.f32.mrb[0].mxu0
        %7847 = vmatprep.mubr.f32.mxu0 %v7644
        %7848 = vmatmul.mubr.f32.gmra.mrb[0].mxu0 %v7435
        %v7849 = vpop.f32.mrb[0].mxu0
        %v7850 = vadd.f32 %v7574, %v7849
        %v7851 = vpop.f32.mrb[0].mxu0
        %7852 = vmatprep.mubr.f32.mxu0 %v7647
        %7853 = vmatmul.mubr.f32.gmra.mrb[0].mxu0 %v7436
        %v7854 = vpop.f32.mrb[0].mxu0
        %v7855 = vadd.f32 %v7574, %v7854
        %v7856 = vpop.f32.mrb[0].mxu0
        %7857 = vmatprep.mubr.f32.mxu0 %v7650
        %7858 = vmatmul.mubr.f32.gmra.mrb[0].mxu0 %v7437
        %v7859 = vpop.f32.mrb[0].mxu0
        %v7860 = vadd.f32 %v7574, %v7859
        %v7861 = vpop.f32.mrb[0].mxu0
        %7862 = vmatprep.mubr.f32.mxu0 %v7653
        %7863 = vmatmul.mubr.f32.gmra.mrb[0].mxu0 %v7438
        %v7864 = vpop.f32.mrb[0].mxu0
        %v7865 = vadd.f32 %v7574, %v7864
        %v7866 = vpop.f32.mrb[0].mxu0
        %7867 = vmatprep.mubr.f32.mxu0 %v7656
        %7868 = vmatmul.mubr.f32.gmra.mrb[0].mxu0 %v7439
        %v7869 = vpop.f32.mrb[0].mxu0
        %v7870 = vadd.f32 %v7574, %v7869
        %v7871 = vpop.f32.mrb[0].mxu0
        %7872 = vmatprep.mubr.f32.mxu0 %v7659
        %7873 = vmatmul.mubr.f32.gmra.mrb[0].mxu0 %v7440
        %v7874 = vpop.f32.mrb[0].mxu0
        %v7875 = vadd.f32 %v7574, %v7874
        %v7876 = vpop.f32.mrb[0].mxu0
        %7877 = vmatprep.mubr.f32.mxu0 %v7662
        %7878 = vmatmul.mubr.f32.gmra.mrb[0].mxu0 %v7441
        %v7879 = vpop.f32.mrb[0].mxu0
        %v7880 = vadd.f32 %v7574, %v7879
        %v7881 = vpop.f32.mrb[0].mxu0
        %7882 = vmatprep.mubr.f32.mxu0 %v7665
        %7883 = vmatmul.mubr.f32.gmra.mrb[0].mxu0 %v7442
        %v7884 = vpop.f32.mrb[0].mxu0
        %v7885 = vadd.f32 %v7574, %v7884
        %v7886 = vpop.f32.mrb[0].mxu0
        %7887 = vmatprep.mubr.f32.mxu0 %v7668
        %7888 = vmatmul.mubr.f32.gmra.mrb[0].mxu0 %v7443
        %v7889 = vpop.f32.mrb[0].mxu0
        %v7890 = vadd.f32 %v7574, %v7889
        %v7891 = vpop.f32.mrb[0].mxu0
        %7892 = vmatprep.mubr.f32.mxu0 %v7671
        %7893 = vmatmul.mubr.f32.gmra.mrb[0].mxu0 %v7444
        %v7894 = vpop.f32.mrb[0].mxu0
        %v7895 = vadd.f32 %v7574, %v7894
        %v7896 = vpop.f32.mrb[0].mxu0
        %7897 = vdwg.mxu0
        %v7930 = vrot.slane %v559, 7
        %v7931 = vrot.slane %v564, 7
        %v7932 = vsel %vm4578, %v7930, %v7931
        %v7933 = vrot.slane %v569, 7
        %v7934 = vrot.slane %v574, 7
        %v7935 = vsel %vm4578, %v7933, %v7934
        %v7936 = vrot.slane %v579, 7
        %v7937 = vrot.slane %v584, 7
        %v7938 = vsel %vm4578, %v7936, %v7937
        %v7939 = vrot.slane %v589, 7
        %v7940 = vrot.slane %v594, 7
        %v7941 = vsel %vm4578, %v7939, %v7940
        %v7942 = vrot.slane %v599, 7
        %v7943 = vrot.slane %v604, 7
        %v7944 = vsel %vm4578, %v7942, %v7943
        %v7945 = vrot.slane %v609, 7
        %v7946 = vrot.slane %v614, 7
        %v7947 = vsel %vm4578, %v7945, %v7946
        %v7948 = vrot.slane %v619, 7
        %v7949 = vrot.slane %v624, 7
        %v7950 = vsel %vm4578, %v7948, %v7949
        %v7951 = vrot.slane %v629, 7
        %v7952 = vrot.slane %v634, 7
        %v7953 = vsel %vm4578, %v7951, %v7952
        %v7954 = vrot.slane %v639, 7
        %v7955 = vrot.slane %v644, 7
        %v7956 = vsel %vm4578, %v7954, %v7955
        %v7957 = vrot.slane %v649, 7
        %v7958 = vrot.slane %v654, 7
        %v7959 = vsel %vm4578, %v7957, %v7958
        %v7960 = vrot.slane %v659, 7
        %v7961 = vrot.slane %v664, 7
        %v7962 = vsel %vm4578, %v7960, %v7961
        %v7963 = vrot.slane %v669, 7
        %v7964 = vrot.slane %v674, 7
        %v7965 = vsel %vm4578, %v7963, %v7964
        %v7966 = vrot.slane %v679, 7
        %v7967 = vrot.slane %v684, 7
        %v7968 = vsel %vm4578, %v7966, %v7967
        %v7969 = vrot.slane %v689, 7
        %v7970 = vrot.slane %v694, 7
        %v7971 = vsel %vm4578, %v7969, %v7970
        %v7972 = vrot.slane %v699, 7
        %v7973 = vrot.slane %v704, 7
        %v7974 = vsel %vm4578, %v7972, %v7973
        %v7975 = vrot.slane %v709, 7
        %v7976 = vrot.slane %v714, 7
        %v7977 = vsel %vm4578, %v7975, %v7976
        %7978 = vrot.lane.b32.xlu0 %v7930, 80
        %v7979 = vpop.permute.xlu0 %7978
        %7980 = vrot.lane.b32.xlu0 %v7932, 80
        %v7981 = vpop.permute.xlu0 %7980
        %7982 = vrot.lane.b32.xlu0 %v7931, 80
        %v7983 = vpop.permute.xlu0 %7982
        %7984 = vrot.lane.b32.xlu0 %v7933, 80
        %v7985 = vpop.permute.xlu0 %7984
        %7986 = vrot.lane.b32.xlu0 %v7935, 80
        %v7987 = vpop.permute.xlu0 %7986
        %7988 = vrot.lane.b32.xlu0 %v7934, 80
        %v7989 = vpop.permute.xlu0 %7988
        %7990 = vrot.lane.b32.xlu0 %v7936, 80
        %v7991 = vpop.permute.xlu0 %7990
        %7992 = vrot.lane.b32.xlu0 %v7938, 80
        %v7993 = vpop.permute.xlu0 %7992
        %7994 = vrot.lane.b32.xlu0 %v7937, 80
        %v7995 = vpop.permute.xlu0 %7994
        %7996 = vrot.lane.b32.xlu0 %v7939, 80
        %v7997 = vpop.permute.xlu0 %7996
        %7998 = vrot.lane.b32.xlu0 %v7941, 80
        %v7999 = vpop.permute.xlu0 %7998
        %8000 = vrot.lane.b32.xlu0 %v7940, 80
        %v8001 = vpop.permute.xlu0 %8000
        %8002 = vrot.lane.b32.xlu0 %v7942, 80
        %v8003 = vpop.permute.xlu0 %8002
        %8004 = vrot.lane.b32.xlu0 %v7944, 80
        %v8005 = vpop.permute.xlu0 %8004
        %8006 = vrot.lane.b32.xlu0 %v7943, 80
        %v8007 = vpop.permute.xlu0 %8006
        %8008 = vrot.lane.b32.xlu0 %v7945, 80
        %v8009 = vpop.permute.xlu0 %8008
        %8010 = vrot.lane.b32.xlu0 %v7947, 80
        %v8011 = vpop.permute.xlu0 %8010
        %8012 = vrot.lane.b32.xlu0 %v7946, 80
        %v8013 = vpop.permute.xlu0 %8012
        %8014 = vrot.lane.b32.xlu0 %v7948, 80
        %v8015 = vpop.permute.xlu0 %8014
        %8016 = vrot.lane.b32.xlu0 %v7950, 80
        %v8017 = vpop.permute.xlu0 %8016
        %8018 = vrot.lane.b32.xlu0 %v7949, 80
        %v8019 = vpop.permute.xlu0 %8018
        %8020 = vrot.lane.b32.xlu0 %v7951, 80
        %v8021 = vpop.permute.xlu0 %8020
        %8022 = vrot.lane.b32.xlu0 %v7953, 80
        %v8023 = vpop.permute.xlu0 %8022
        %8024 = vrot.lane.b32.xlu0 %v7952, 80
        %v8025 = vpop.permute.xlu0 %8024
        %8026 = vrot.lane.b32.xlu0 %v7954, 80
        %v8027 = vpop.permute.xlu0 %8026
        %8028 = vrot.lane.b32.xlu0 %v7956, 80
        %v8029 = vpop.permute.xlu0 %8028
        %8030 = vrot.lane.b32.xlu0 %v7955, 80
        %v8031 = vpop.permute.xlu0 %8030
        %8032 = vrot.lane.b32.xlu0 %v7957, 80
        %v8033 = vpop.permute.xlu0 %8032
        %8034 = vrot.lane.b32.xlu0 %v7959, 80
        %v8035 = vpop.permute.xlu0 %8034
        %8036 = vrot.lane.b32.xlu0 %v7958, 80
        %v8037 = vpop.permute.xlu0 %8036
        %8038 = vrot.lane.b32.xlu0 %v7960, 80
        %v8039 = vpop.permute.xlu0 %8038
        %8040 = vrot.lane.b32.xlu0 %v7962, 80
        %v8041 = vpop.permute.xlu0 %8040
        %8042 = vrot.lane.b32.xlu0 %v7961, 80
        %v8043 = vpop.permute.xlu0 %8042
        %8044 = vrot.lane.b32.xlu0 %v7963, 80
        %v8045 = vpop.permute.xlu0 %8044
        %8046 = vrot.lane.b32.xlu0 %v7965, 80
        %v8047 = vpop.permute.xlu0 %8046
        %8048 = vrot.lane.b32.xlu0 %v7964, 80
        %v8049 = vpop.permute.xlu0 %8048
        %8050 = vrot.lane.b32.xlu0 %v7966, 80
        %v8051 = vpop.permute.xlu0 %8050
        %8052 = vrot.lane.b32.xlu0 %v7968, 80
        %v8053 = vpop.permute.xlu0 %8052
        %8054 = vrot.lane.b32.xlu0 %v7967, 80
        %v8055 = vpop.permute.xlu0 %8054
        %8056 = vrot.lane.b32.xlu0 %v7969, 80
        %v8057 = vpop.permute.xlu0 %8056
        %8058 = vrot.lane.b32.xlu0 %v7971, 80
        %v8059 = vpop.permute.xlu0 %8058
        %8060 = vrot.lane.b32.xlu0 %v7970, 80
        %v8061 = vpop.permute.xlu0 %8060
        %8062 = vrot.lane.b32.xlu0 %v7972, 80
        %v8063 = vpop.permute.xlu0 %8062
        %8064 = vrot.lane.b32.xlu0 %v7974, 80
        %v8065 = vpop.permute.xlu0 %8064
        %8066 = vrot.lane.b32.xlu0 %v7973, 80
        %v8067 = vpop.permute.xlu0 %8066
        %8068 = vrot.lane.b32.xlu0 %v7975, 80
        %v8069 = vpop.permute.xlu0 %8068
        %8070 = vrot.lane.b32.xlu0 %v7977, 80
        %v8071 = vpop.permute.xlu0 %8070
        %8072 = vrot.lane.b32.xlu0 %v7976, 80
        %v8073 = vpop.permute.xlu0 %8072
        %v8122 = vsel %vm4578, 0.0, %v7979
        %v8123 = vsel %vm4578, 0.0, %v7985
        %v8124 = vsel %vm4578, 0.0, %v7991
        %v8125 = vsel %vm4578, 0.0, %v7997
        %v8126 = vsel %vm4578, 0.0, %v8003
        %v8127 = vsel %vm4578, 0.0, %v8009
        %v8128 = vsel %vm4578, 0.0, %v8015
        %v8129 = vsel %vm4578, 0.0, %v8021
        %v8130 = vsel %vm4578, 0.0, %v8027
        %v8131 = vsel %vm4578, 0.0, %v8033
        %v8132 = vsel %vm4578, 0.0, %v8039
        %v8133 = vsel %vm4578, 0.0, %v8045
        %v8134 = vsel %vm4578, 0.0, %v8051
        %v8135 = vsel %vm4578, 0.0, %v8057
        %v8136 = vsel %vm4578, 0.0, %v8063
        %v8137 = vsel %vm4578, 0.0, %v8069
        %v8138 = vsel %vm4578, %v7983, 0.0
        %v8139 = vsel %vm4578, %v7989, 0.0
        %v8140 = vsel %vm4578, %v7995, 0.0
        %v8141 = vsel %vm4578, %v8001, 0.0
        %v8142 = vsel %vm4578, %v8007, 0.0
        %v8143 = vsel %vm4578, %v8013, 0.0
        %v8144 = vsel %vm4578, %v8019, 0.0
        %v8145 = vsel %vm4578, %v8025, 0.0
        %v8146 = vsel %vm4578, %v8031, 0.0
        %v8147 = vsel %vm4578, %v8037, 0.0
        %v8148 = vsel %vm4578, %v8043, 0.0
        %v8149 = vsel %vm4578, %v8049, 0.0
        %v8150 = vsel %vm4578, %v8055, 0.0
        %v8151 = vsel %vm4578, %v8061, 0.0
        %v8152 = vsel %vm4578, %v8067, 0.0
        %v8153 = vsel %vm4578, %v8073, 0.0
        %v8154 = vadd.f32 %v8122, 0.0
        %v8155 = vadd.f32 %v7981, 0.0
        %v8156 = vadd.f32 %v8123, 0.0
        %v8157 = vadd.f32 %v7987, 0.0
        %v8158 = vadd.f32 %v8124, 0.0
        %v8159 = vadd.f32 %v7993, 0.0
        %v8160 = vadd.f32 %v8125, 0.0
        %v8161 = vadd.f32 %v7999, 0.0
        %v8162 = vadd.f32 %v8126, 0.0
        %v8163 = vadd.f32 %v8005, 0.0
        %v8164 = vadd.f32 %v8127, 0.0
        %v8165 = vadd.f32 %v8011, 0.0
        %v8166 = vadd.f32 %v8128, 0.0
        %v8167 = vadd.f32 %v8017, 0.0
        %v8168 = vadd.f32 %v8129, 0.0
        %v8169 = vadd.f32 %v8023, 0.0
        %v8170 = vadd.f32 %v8130, 0.0
        %v8171 = vadd.f32 %v8029, 0.0
        %v8172 = vadd.f32 %v8131, 0.0
        %v8173 = vadd.f32 %v8035, 0.0
        %v8174 = vadd.f32 %v8132, 0.0
        %v8175 = vadd.f32 %v8041, 0.0
        %v8176 = vadd.f32 %v8133, 0.0
        %v8177 = vadd.f32 %v8047, 0.0
        %v8178 = vadd.f32 %v8134, 0.0
        %v8179 = vadd.f32 %v8053, 0.0
        %v8180 = vadd.f32 %v8135, 0.0
        %v8181 = vadd.f32 %v8059, 0.0
        %v8182 = vadd.f32 %v8136, 0.0
        %v8183 = vadd.f32 %v8065, 0.0
        %v8214 = vrot.slane %v8122, 1
        %v8215 = vrot.slane %v7981, 1
        %v8216 = vsel %vm1040, %v8214, %v8215
        %v8217 = vrot.slane %v8138, 1
        %v8218 = vsel %vm1040, %v8215, %v8217
        %v8219 = vrot.slane %v8123, 1
        %v8220 = vrot.slane %v7987, 1
        %v8221 = vsel %vm1040, %v8219, %v8220
        %v8222 = vrot.slane %v8139, 1
        %v8223 = vsel %vm1040, %v8220, %v8222
        %v8224 = vrot.slane %v8124, 1
        %v8225 = vrot.slane %v7993, 1
        %v8226 = vsel %vm1040, %v8224, %v8225
        %v8227 = vrot.slane %v8140, 1
        %v8228 = vsel %vm1040, %v8225, %v8227
        %v8229 = vrot.slane %v8125, 1
        %v8230 = vrot.slane %v7999, 1
        %v8231 = vsel %vm1040, %v8229, %v8230
        %v8232 = vrot.slane %v8141, 1
        %v8233 = vsel %vm1040, %v8230, %v8232
        %v8234 = vrot.slane %v8126, 1
        %v8235 = vrot.slane %v8005, 1
        %v8236 = vsel %vm1040, %v8234, %v8235
        %v8237 = vrot.slane %v8142, 1
        %v8238 = vsel %vm1040, %v8235, %v8237
        %v8239 = vrot.slane %v8127, 1
        %v8240 = vrot.slane %v8011, 1
        %v8241 = vsel %vm1040, %v8239, %v8240
        %v8242 = vrot.slane %v8143, 1
        %v8243 = vsel %vm1040, %v8240, %v8242
        %v8244 = vrot.slane %v8128, 1
        %v8245 = vrot.slane %v8017, 1
        %v8246 = vsel %vm1040, %v8244, %v8245
        %v8247 = vrot.slane %v8144, 1
        %v8248 = vsel %vm1040, %v8245, %v8247
        %v8249 = vrot.slane %v8129, 1
        %v8250 = vrot.slane %v8023, 1
        %v8251 = vsel %vm1040, %v8249, %v8250
        %v8252 = vrot.slane %v8145, 1
        %v8253 = vsel %vm1040, %v8250, %v8252
        %v8254 = vrot.slane %v8130, 1
        %v8255 = vrot.slane %v8029, 1
        %v8256 = vsel %vm1040, %v8254, %v8255
        %v8257 = vrot.slane %v8146, 1
        %v8258 = vsel %vm1040, %v8255, %v8257
        %v8259 = vrot.slane %v8131, 1
        %v8260 = vrot.slane %v8035, 1
        %v8261 = vsel %vm1040, %v8259, %v8260
        %v8262 = vrot.slane %v8147, 1
        %v8263 = vsel %vm1040, %v8260, %v8262
        %v8264 = vrot.slane %v8132, 1
        %v8265 = vrot.slane %v8041, 1
        %v8266 = vsel %vm1040, %v8264, %v8265
        %v8267 = vrot.slane %v8148, 1
        %v8268 = vsel %vm1040, %v8265, %v8267
        %v8269 = vrot.slane %v8133, 1
        %v8270 = vrot.slane %v8047, 1
        %v8271 = vsel %vm1040, %v8269, %v8270
        %v8272 = vrot.slane %v8149, 1
        %v8273 = vsel %vm1040, %v8270, %v8272
        %v8274 = vrot.slane %v8134, 1
        %v8275 = vrot.slane %v8053, 1
        %v8276 = vsel %vm1040, %v8274, %v8275
        %v8277 = vrot.slane %v8150, 1
        %v8278 = vsel %vm1040, %v8275, %v8277
        %v8279 = vrot.slane %v8135, 1
        %v8280 = vrot.slane %v8059, 1
        %v8281 = vsel %vm1040, %v8279, %v8280
        %v8282 = vrot.slane %v8151, 1
        %v8283 = vsel %vm1040, %v8280, %v8282
        %v8284 = vrot.slane %v8136, 1
        %v8285 = vrot.slane %v8065, 1
        %v8286 = vsel %vm1040, %v8284, %v8285
        %v8287 = vrot.slane %v8152, 1
        %v8288 = vsel %vm1040, %v8285, %v8287
        %v8319 = vadd.f32 %v1042, 0.0
        %v8320 = vadd.f32 %v8154, %v8216
        %v8321 = vadd.f32 %v8155, %v8218
        %v8322 = vadd.f32 %v8156, %v8221
        %v8323 = vadd.f32 %v8157, %v8223
        %v8324 = vadd.f32 %v8158, %v8226
        %v8325 = vadd.f32 %v8159, %v8228
        %v8326 = vadd.f32 %v8160, %v8231
        %v8327 = vadd.f32 %v8161, %v8233
        %v8328 = vadd.f32 %v8162, %v8236
        %v8329 = vadd.f32 %v8163, %v8238
        %v8330 = vadd.f32 %v8164, %v8241
        %v8331 = vadd.f32 %v8165, %v8243
        %v8332 = vadd.f32 %v8166, %v8246
        %v8333 = vadd.f32 %v8167, %v8248
        %v8334 = vadd.f32 %v8168, %v8251
        %v8335 = vadd.f32 %v8169, %v8253
        %v8336 = vadd.f32 %v8170, %v8256
        %v8337 = vadd.f32 %v8171, %v8258
        %v8338 = vadd.f32 %v8172, %v8261
        %v8339 = vadd.f32 %v8173, %v8263
        %v8340 = vadd.f32 %v8174, %v8266
        %v8341 = vadd.f32 %v8175, %v8268
        %v8342 = vadd.f32 %v8176, %v8271
        %v8343 = vadd.f32 %v8177, %v8273
        %v8344 = vadd.f32 %v8178, %v8276
        %v8345 = vadd.f32 %v8179, %v8278
        %v8346 = vadd.f32 %v8180, %v8281
        %v8347 = vadd.f32 %v8181, %v8283
        %v8348 = vadd.f32 %v8182, %v8286
        %v8349 = vadd.f32 %v8183, %v8288
        %v8350 = vrot.slane %v8122, 2
        %v8351 = vrot.slane %v7981, 2
        %v8352 = vsel %vm1113, %v8350, %v8351
        %v8353 = vrot.slane %v8138, 2
        %v8354 = vsel %vm1113, %v8351, %v8353
        %v8355 = vrot.slane %v8123, 2
        %v8356 = vrot.slane %v7987, 2
        %v8357 = vsel %vm1113, %v8355, %v8356
        %v8358 = vrot.slane %v8139, 2
        %v8359 = vsel %vm1113, %v8356, %v8358
        %v8360 = vrot.slane %v8124, 2
        %v8361 = vrot.slane %v7993, 2
        %v8362 = vsel %vm1113, %v8360, %v8361
        %v8363 = vrot.slane %v8140, 2
        %v8364 = vsel %vm1113, %v8361, %v8363
        %v8365 = vrot.slane %v8125, 2
        %v8366 = vrot.slane %v7999, 2
        %v8367 = vsel %vm1113, %v8365, %v8366
        %v8368 = vrot.slane %v8141, 2
        %v8369 = vsel %vm1113, %v8366, %v8368
        %v8370 = vrot.slane %v8126, 2
        %v8371 = vrot.slane %v8005, 2
        %v8372 = vsel %vm1113, %v8370, %v8371
        %v8373 = vrot.slane %v8142, 2
        %v8374 = vsel %vm1113, %v8371, %v8373
        %v8375 = vrot.slane %v8127, 2
        %v8376 = vrot.slane %v8011, 2
        %v8377 = vsel %vm1113, %v8375, %v8376
        %v8378 = vrot.slane %v8143, 2
        %v8379 = vsel %vm1113, %v8376, %v8378
        %v8380 = vrot.slane %v8128, 2
        %v8381 = vrot.slane %v8017, 2
        %v8382 = vsel %vm1113, %v8380, %v8381
        %v8383 = vrot.slane %v8144, 2
        %v8384 = vsel %vm1113, %v8381, %v8383
        %v8385 = vrot.slane %v8129, 2
        %v8386 = vrot.slane %v8023, 2
        %v8387 = vsel %vm1113, %v8385, %v8386
        %v8388 = vrot.slane %v8145, 2
        %v8389 = vsel %vm1113, %v8386, %v8388
        %v8390 = vrot.slane %v8130, 2
        %v8391 = vrot.slane %v8029, 2
        %v8392 = vsel %vm1113, %v8390, %v8391
        %v8393 = vrot.slane %v8146, 2
        %v8394 = vsel %vm1113, %v8391, %v8393
        %v8395 = vrot.slane %v8131, 2
        %v8396 = vrot.slane %v8035, 2
        %v8397 = vsel %vm1113, %v8395, %v8396
        %v8398 = vrot.slane %v8147, 2
        %v8399 = vsel %vm1113, %v8396, %v8398
        %v8400 = vrot.slane %v8132, 2
        %v8401 = vrot.slane %v8041, 2
        %v8402 = vsel %vm1113, %v8400, %v8401
        %v8403 = vrot.slane %v8148, 2
        %v8404 = vsel %vm1113, %v8401, %v8403
        %v8405 = vrot.slane %v8133, 2
        %v8406 = vrot.slane %v8047, 2
        %v8407 = vsel %vm1113, %v8405, %v8406
        %v8408 = vrot.slane %v8149, 2
        %v8409 = vsel %vm1113, %v8406, %v8408
        %v8410 = vrot.slane %v8134, 2
        %v8411 = vrot.slane %v8053, 2
        %v8412 = vsel %vm1113, %v8410, %v8411
        %v8413 = vrot.slane %v8150, 2
        %v8414 = vsel %vm1113, %v8411, %v8413
        %v8415 = vrot.slane %v8135, 2
        %v8416 = vrot.slane %v8059, 2
        %v8417 = vsel %vm1113, %v8415, %v8416
        %v8418 = vrot.slane %v8151, 2
        %v8419 = vsel %vm1113, %v8416, %v8418
        %v8420 = vrot.slane %v8136, 2
        %v8421 = vrot.slane %v8065, 2
        %v8422 = vsel %vm1113, %v8420, %v8421
        %v8423 = vrot.slane %v8152, 2
        %v8424 = vsel %vm1113, %v8421, %v8423
        %v8456 = vadd.f32 %v8319, %v1115
        %v8457 = vadd.f32 %v8320, %v8352
        %v8458 = vadd.f32 %v8321, %v8354
        %v8459 = vadd.f32 %v8322, %v8357
        %v8460 = vadd.f32 %v8323, %v8359
        %v8461 = vadd.f32 %v8324, %v8362
        %v8462 = vadd.f32 %v8325, %v8364
        %v8463 = vadd.f32 %v8326, %v8367
        %v8464 = vadd.f32 %v8327, %v8369
        %v8465 = vadd.f32 %v8328, %v8372
        %v8466 = vadd.f32 %v8329, %v8374
        %v8467 = vadd.f32 %v8330, %v8377
        %v8468 = vadd.f32 %v8331, %v8379
        %v8469 = vadd.f32 %v8332, %v8382
        %v8470 = vadd.f32 %v8333, %v8384
        %v8471 = vadd.f32 %v8334, %v8387
        %v8472 = vadd.f32 %v8335, %v8389
        %v8473 = vadd.f32 %v8336, %v8392
        %v8474 = vadd.f32 %v8337, %v8394
        %v8475 = vadd.f32 %v8338, %v8397
        %v8476 = vadd.f32 %v8339, %v8399
        %v8477 = vadd.f32 %v8340, %v8402
        %v8478 = vadd.f32 %v8341, %v8404
        %v8479 = vadd.f32 %v8342, %v8407
        %v8480 = vadd.f32 %v8343, %v8409
        %v8481 = vadd.f32 %v8344, %v8412
        %v8482 = vadd.f32 %v8345, %v8414
        %v8483 = vadd.f32 %v8346, %v8417
        %v8484 = vadd.f32 %v8347, %v8419
        %v8485 = vadd.f32 %v8348, %v8422
        %v8486 = vadd.f32 %v8349, %v8424
        %v8487 = vadd.f32 %v8456, %v8122
        %v8488 = vadd.f32 %v8456, %v7981
        %v8489 = vadd.f32 %v8457, %v8123
        %v8490 = vadd.f32 %v8458, %v7987
        %v8491 = vadd.f32 %v8459, %v8124
        %v8492 = vadd.f32 %v8460, %v7993
        %v8493 = vadd.f32 %v8461, %v8125
        %v8494 = vadd.f32 %v8462, %v7999
        %v8495 = vadd.f32 %v8463, %v8126
        %v8496 = vadd.f32 %v8464, %v8005
        %v8497 = vadd.f32 %v8465, %v8127
        %v8498 = vadd.f32 %v8466, %v8011
        %v8499 = vadd.f32 %v8467, %v8128
        %v8500 = vadd.f32 %v8468, %v8017
        %v8501 = vadd.f32 %v8469, %v8129
        %v8502 = vadd.f32 %v8470, %v8023
        %v8503 = vadd.f32 %v8471, %v8130
        %v8504 = vadd.f32 %v8472, %v8029
        %v8505 = vadd.f32 %v8473, %v8131
        %v8506 = vadd.f32 %v8474, %v8035
        %v8507 = vadd.f32 %v8475, %v8132
        %v8508 = vadd.f32 %v8476, %v8041
        %v8509 = vadd.f32 %v8477, %v8133
        %v8510 = vadd.f32 %v8478, %v8047
        %v8511 = vadd.f32 %v8479, %v8134
        %v8512 = vadd.f32 %v8480, %v8053
        %v8513 = vadd.f32 %v8481, %v8135
        %v8514 = vadd.f32 %v8482, %v8059
        %v8515 = vadd.f32 %v8483, %v8136
        %v8516 = vadd.f32 %v8484, %v8065
        %v8517 = vadd.f32 %v8485, %v8137
        %v8518 = vadd.f32 %v8486, %v8071
        %v8521 = vrot.slane %v8137, 1
        %v8522 = vrot.slane %v8071, 1
        %v8523 = vsel %vm1040, %v8521, %v8522
        %v8524 = vrot.slane %v8153, 1
        %v8525 = vsel %vm1040, %v8522, %v8524
        %v8528 = vadd.f32 %v8487, %v8216
        %v8529 = vadd.f32 %v8488, %v8218
        %v8530 = vadd.f32 %v8489, %v8221
        %v8531 = vadd.f32 %v8490, %v8223
        %v8532 = vadd.f32 %v8491, %v8226
        %v8533 = vadd.f32 %v8492, %v8228
        %v8534 = vadd.f32 %v8493, %v8231
        %v8535 = vadd.f32 %v8494, %v8233
        %v8536 = vadd.f32 %v8495, %v8236
        %v8537 = vadd.f32 %v8496, %v8238
        %v8538 = vadd.f32 %v8497, %v8241
        %v8539 = vadd.f32 %v8498, %v8243
        %v8540 = vadd.f32 %v8499, %v8246
        %v8541 = vadd.f32 %v8500, %v8248
        %v8542 = vadd.f32 %v8501, %v8251
        %v8543 = vadd.f32 %v8502, %v8253
        %v8544 = vadd.f32 %v8503, %v8256
        %v8545 = vadd.f32 %v8504, %v8258
        %v8546 = vadd.f32 %v8505, %v8261
        %v8547 = vadd.f32 %v8506, %v8263
        %v8548 = vadd.f32 %v8507, %v8266
        %v8549 = vadd.f32 %v8508, %v8268
        %v8550 = vadd.f32 %v8509, %v8271
        %v8551 = vadd.f32 %v8510, %v8273
        %v8552 = vadd.f32 %v8511, %v8276
        %v8553 = vadd.f32 %v8512, %v8278
        %v8554 = vadd.f32 %v8513, %v8281
        %v8555 = vadd.f32 %v8514, %v8283
        %v8556 = vadd.f32 %v8515, %v8286
        %v8557 = vadd.f32 %v8516, %v8288
        %v8558 = vadd.f32 %v8517, %v8523
        %v8559 = vadd.f32 %v8518, %v8525
        %v8560 = vrot.slane %v8137, 2
        %v8561 = vrot.slane %v8071, 2
        %v8562 = vsel %vm1113, %v8560, %v8561
        %v8563 = vrot.slane %v8153, 2
        %v8564 = vsel %vm1113, %v8561, %v8563
        %v8567 = vadd.f32 %v8528, %v8352
        %v8568 = vadd.f32 %v8529, %v8354
        %v8569 = vadd.f32 %v8530, %v8357
        %v8570 = vadd.f32 %v8531, %v8359
        %v8571 = vadd.f32 %v8532, %v8362
        %v8572 = vadd.f32 %v8533, %v8364
        %v8573 = vadd.f32 %v8534, %v8367
        %v8574 = vadd.f32 %v8535, %v8369
        %v8575 = vadd.f32 %v8536, %v8372
        %v8576 = vadd.f32 %v8537, %v8374
        %v8577 = vadd.f32 %v8538, %v8377
        %v8578 = vadd.f32 %v8539, %v8379
        %v8579 = vadd.f32 %v8540, %v8382
        %v8580 = vadd.f32 %v8541, %v8384
        %v8581 = vadd.f32 %v8542, %v8387
        %v8582 = vadd.f32 %v8543, %v8389
        %v8583 = vadd.f32 %v8544, %v8392
        %v8584 = vadd.f32 %v8545, %v8394
        %v8585 = vadd.f32 %v8546, %v8397
        %v8586 = vadd.f32 %v8547, %v8399
        %v8587 = vadd.f32 %v8548, %v8402
        %v8588 = vadd.f32 %v8549, %v8404
        %v8589 = vadd.f32 %v8550, %v8407
        %v8590 = vadd.f32 %v8551, %v8409
        %v8591 = vadd.f32 %v8552, %v8412
        %v8592 = vadd.f32 %v8553, %v8414
        %v8593 = vadd.f32 %v8554, %v8417
        %v8594 = vadd.f32 %v8555, %v8419
        %v8595 = vadd.f32 %v8556, %v8422
        %v8596 = vadd.f32 %v8557, %v8424
        %v8597 = vadd.f32 %v8558, %v8562
        %v8598 = vadd.f32 %v8559, %v8564
        %v8599 = vadd.f32 %v8567, %v8123
        %v8600 = vadd.f32 %v8568, %v7987
        %v8601 = vadd.f32 %v8569, %v8124
        %v8602 = vadd.f32 %v8570, %v7993
        %v8603 = vadd.f32 %v8571, %v8125
        %v8604 = vadd.f32 %v8572, %v7999
        %v8605 = vadd.f32 %v8573, %v8126
        %v8606 = vadd.f32 %v8574, %v8005
        %v8607 = vadd.f32 %v8575, %v8127
        %v8608 = vadd.f32 %v8576, %v8011
        %v8609 = vadd.f32 %v8577, %v8128
        %v8610 = vadd.f32 %v8578, %v8017
        %v8611 = vadd.f32 %v8579, %v8129
        %v8612 = vadd.f32 %v8580, %v8023
        %v8613 = vadd.f32 %v8581, %v8130
        %v8614 = vadd.f32 %v8582, %v8029
        %v8615 = vadd.f32 %v8583, %v8131
        %v8616 = vadd.f32 %v8584, %v8035
        %v8617 = vadd.f32 %v8585, %v8132
        %v8618 = vadd.f32 %v8586, %v8041
        %v8619 = vadd.f32 %v8587, %v8133
        %v8620 = vadd.f32 %v8588, %v8047
        %v8621 = vadd.f32 %v8589, %v8134
        %v8622 = vadd.f32 %v8590, %v8053
        %v8623 = vadd.f32 %v8591, %v8135
        %v8624 = vadd.f32 %v8592, %v8059
        %v8625 = vadd.f32 %v8593, %v8136
        %v8626 = vadd.f32 %v8594, %v8065
        %v8627 = vadd.f32 %v8595, %v8137
        %v8628 = vadd.f32 %v8596, %v8071
        %v8629 = vadd.f32 %v8597, 0.0
        %v8630 = vadd.f32 %v8598, 0.0
        %v8631 = vadd.f32 %v8599, %v8221
        %v8632 = vadd.f32 %v8600, %v8223
        %v8633 = vadd.f32 %v8601, %v8226
        %v8634 = vadd.f32 %v8602, %v8228
        %v8635 = vadd.f32 %v8603, %v8231
        %v8636 = vadd.f32 %v8604, %v8233
        %v8637 = vadd.f32 %v8605, %v8236
        %v8638 = vadd.f32 %v8606, %v8238
        %v8639 = vadd.f32 %v8607, %v8241
        %v8640 = vadd.f32 %v8608, %v8243
        %v8641 = vadd.f32 %v8609, %v8246
        %v8642 = vadd.f32 %v8610, %v8248
        %v8643 = vadd.f32 %v8611, %v8251
        %v8644 = vadd.f32 %v8612, %v8253
        %v8645 = vadd.f32 %v8613, %v8256
        %v8646 = vadd.f32 %v8614, %v8258
        %v8647 = vadd.f32 %v8615, %v8261
        %v8648 = vadd.f32 %v8616, %v8263
        %v8649 = vadd.f32 %v8617, %v8266
        %v8650 = vadd.f32 %v8618, %v8268
        %v8651 = vadd.f32 %v8619, %v8271
        %v8652 = vadd.f32 %v8620, %v8273
        %v8653 = vadd.f32 %v8621, %v8276
        %v8654 = vadd.f32 %v8622, %v8278
        %v8655 = vadd.f32 %v8623, %v8281
        %v8656 = vadd.f32 %v8624, %v8283
        %v8657 = vadd.f32 %v8625, %v8286
        %v8658 = vadd.f32 %v8626, %v8288
        %v8659 = vadd.f32 %v8627, %v8523
        %v8660 = vadd.f32 %v8628, %v8525
        %v8661 = vadd.f32 %v8629, %v1042
        %v8662 = vadd.f32 %v8630, %v1042
        %v8663 = vadd.f32 %v8631, %v8357
        %v8664 = vadd.f32 %v8632, %v8359
        %v8665 = vadd.f32 %v8633, %v8362
        %v8666 = vadd.f32 %v8634, %v8364
        %v8667 = vadd.f32 %v8635, %v8367
        %v8668 = vadd.f32 %v8636, %v8369
        %v8669 = vadd.f32 %v8637, %v8372
        %v8670 = vadd.f32 %v8638, %v8374
        %v8671 = vadd.f32 %v8639, %v8377
        %v8672 = vadd.f32 %v8640, %v8379
        %v8673 = vadd.f32 %v8641, %v8382
        %v8674 = vadd.f32 %v8642, %v8384
        %v8675 = vadd.f32 %v8643, %v8387
        %v8676 = vadd.f32 %v8644, %v8389
        %v8677 = vadd.f32 %v8645, %v8392
        %v8678 = vadd.f32 %v8646, %v8394
        %v8679 = vadd.f32 %v8647, %v8397
        %v8680 = vadd.f32 %v8648, %v8399
        %v8681 = vadd.f32 %v8649, %v8402
        %v8682 = vadd.f32 %v8650, %v8404
        %v8683 = vadd.f32 %v8651, %v8407
        %v8684 = vadd.f32 %v8652, %v8409
        %v8685 = vadd.f32 %v8653, %v8412
        %v8686 = vadd.f32 %v8654, %v8414
        %v8687 = vadd.f32 %v8655, %v8417
        %v8688 = vadd.f32 %v8656, %v8419
        %v8689 = vadd.f32 %v8657, %v8422
        %v8690 = vadd.f32 %v8658, %v8424
        %v8691 = vadd.f32 %v8659, %v8562
        %v8692 = vadd.f32 %v8660, %v8564
        %v8693 = vadd.f32 %v8661, %v1115
        %v8694 = vadd.f32 %v8662, %v1115
        %v8695 = vmul.f32 %v8663, 0.11111111
        %v8696 = vmul.f32 %v8664, 0.11111111
        %v8697 = vmul.f32 %v8665, 0.11111111
        %v8698 = vmul.f32 %v8666, 0.11111111
        %v8699 = vmul.f32 %v8667, 0.11111111
        %v8700 = vmul.f32 %v8668, 0.11111111
        %v8701 = vmul.f32 %v8669, 0.11111111
        %v8702 = vmul.f32 %v8670, 0.11111111
        %v8703 = vmul.f32 %v8671, 0.11111111
        %v8704 = vmul.f32 %v8672, 0.11111111
        %v8705 = vmul.f32 %v8673, 0.11111111
        %v8706 = vmul.f32 %v8674, 0.11111111
        %v8707 = vmul.f32 %v8675, 0.11111111
        %v8708 = vmul.f32 %v8676, 0.11111111
        %v8709 = vmul.f32 %v8677, 0.11111111
        %v8710 = vmul.f32 %v8678, 0.11111111
        %v8711 = vmul.f32 %v8679, 0.11111111
        %v8712 = vmul.f32 %v8680, 0.11111111
        %v8713 = vmul.f32 %v8681, 0.11111111
        %v8714 = vmul.f32 %v8682, 0.11111111
        %v8715 = vmul.f32 %v8683, 0.11111111
        %v8716 = vmul.f32 %v8684, 0.11111111
        %v8717 = vmul.f32 %v8685, 0.11111111
        %v8718 = vmul.f32 %v8686, 0.11111111
        %v8719 = vmul.f32 %v8687, 0.11111111
        %v8720 = vmul.f32 %v8688, 0.11111111
        %v8721 = vmul.f32 %v8689, 0.11111111
        %v8722 = vmul.f32 %v8690, 0.11111111
        %v8723 = vmul.f32 %v8691, 0.11111111
        %v8724 = vmul.f32 %v8692, 0.11111111
        %v8725 = vmul.f32 %v8693, 0.11111111
        %v8726 = vmul.f32 %v8694, 0.11111111
        %v8727 = vld [vmem:[%s9] sm:$0x1]
        %v8729 = vlaneseq
        %v8730 = vshrl.u32 %v8729, 7
        %v8731 = vsub.s32 0, %v8730
        %v8732 = vrot.slane %v8727, %v8731
        %v8734 = vadd.f32 %v8695, %v8732
        %v8735 = vadd.f32 %v8696, %v8732
        %v8736 = vadd.f32 %v8697, %v8732
        %v8737 = vadd.f32 %v8698, %v8732
        %v8738 = vadd.f32 %v8699, %v8732
        %v8739 = vadd.f32 %v8700, %v8732
        %v8740 = vadd.f32 %v8701, %v8732
        %v8741 = vadd.f32 %v8702, %v8732
        %v8742 = vadd.f32 %v8703, %v8732
        %v8743 = vadd.f32 %v8704, %v8732
        %v8744 = vadd.f32 %v8705, %v8732
        %v8745 = vadd.f32 %v8706, %v8732
        %v8746 = vadd.f32 %v8707, %v8732
        %v8747 = vadd.f32 %v8708, %v8732
        %v8748 = vadd.f32 %v8709, %v8732
        %v8749 = vadd.f32 %v8710, %v8732
        %v8750 = vadd.f32 %v8711, %v8732
        %v8751 = vadd.f32 %v8712, %v8732
        %v8752 = vadd.f32 %v8713, %v8732
        %v8753 = vadd.f32 %v8714, %v8732
        %v8754 = vadd.f32 %v8715, %v8732
        %v8755 = vadd.f32 %v8716, %v8732
        %v8756 = vadd.f32 %v8717, %v8732
        %v8757 = vadd.f32 %v8718, %v8732
        %v8758 = vadd.f32 %v8719, %v8732
        %v8759 = vadd.f32 %v8720, %v8732
        %v8760 = vadd.f32 %v8721, %v8732
        %v8761 = vadd.f32 %v8722, %v8732
        %v8762 = vadd.f32 %v8723, %v8732
        %v8763 = vadd.f32 %v8724, %v8732
        %v8764 = vadd.f32 %v8725, %v8732
        %v8765 = vadd.f32 %v8726, %v8732
        %8798 = vrot.lane.b32.xlu0 %v7740, 16
        %v8799 = vpop.permute.xlu0 %8798
        %8800 = vrot.lane.b32.xlu0 %v7745, 16
        %v8801 = vpop.permute.xlu0 %8800
        %8802 = vrot.lane.b32.xlu0 %v7750, 16
        %v8803 = vpop.permute.xlu0 %8802
        %8804 = vrot.lane.b32.xlu0 %v7755, 16
        %v8805 = vpop.permute.xlu0 %8804
        %8806 = vrot.lane.b32.xlu0 %v7760, 16
        %v8807 = vpop.permute.xlu0 %8806
        %8808 = vrot.lane.b32.xlu0 %v7765, 16
        %v8809 = vpop.permute.xlu0 %8808
        %8810 = vrot.lane.b32.xlu0 %v7770, 16
        %v8811 = vpop.permute.xlu0 %8810
        %8812 = vrot.lane.b32.xlu0 %v7775, 16
        %v8813 = vpop.permute.xlu0 %8812
        %8814 = vrot.lane.b32.xlu0 %v7780, 16
        %v8815 = vpop.permute.xlu0 %8814
        %8816 = vrot.lane.b32.xlu0 %v7785, 16
        %v8817 = vpop.permute.xlu0 %8816
        %8818 = vrot.lane.b32.xlu0 %v7790, 16
        %v8819 = vpop.permute.xlu0 %8818
        %8820 = vrot.lane.b32.xlu0 %v7795, 16
        %v8821 = vpop.permute.xlu0 %8820
        %8822 = vrot.lane.b32.xlu0 %v7800, 16
        %v8823 = vpop.permute.xlu0 %8822
        %8824 = vrot.lane.b32.xlu0 %v7805, 16
        %v8825 = vpop.permute.xlu0 %8824
        %8826 = vrot.lane.b32.xlu0 %v7810, 16
        %v8827 = vpop.permute.xlu0 %8826
        %8828 = vrot.lane.b32.xlu0 %v7815, 16
        %v8829 = vpop.permute.xlu0 %8828
        %8830 = vrot.lane.b32.xlu0 %v7820, 16
        %v8831 = vpop.permute.xlu0 %8830
        %8832 = vrot.lane.b32.xlu0 %v7825, 16
        %v8833 = vpop.permute.xlu0 %8832
        %8834 = vrot.lane.b32.xlu0 %v7830, 16
        %v8835 = vpop.permute.xlu0 %8834
        %8836 = vrot.lane.b32.xlu0 %v7835, 16
        %v8837 = vpop.permute.xlu0 %8836
        %8838 = vrot.lane.b32.xlu0 %v7840, 16
        %v8839 = vpop.permute.xlu0 %8838
        %8840 = vrot.lane.b32.xlu0 %v7845, 16
        %v8841 = vpop.permute.xlu0 %8840
        %8842 = vrot.lane.b32.xlu0 %v7850, 16
        %v8843 = vpop.permute.xlu0 %8842
        %8844 = vrot.lane.b32.xlu0 %v7855, 16
        %v8845 = vpop.permute.xlu0 %8844
        %8846 = vrot.lane.b32.xlu0 %v7860, 16
        %v8847 = vpop.permute.xlu0 %8846
        %8848 = vrot.lane.b32.xlu0 %v7865, 16
        %v8849 = vpop.permute.xlu0 %8848
        %8850 = vrot.lane.b32.xlu0 %v7870, 16
        %v8851 = vpop.permute.xlu0 %8850
        %8852 = vrot.lane.b32.xlu0 %v7875, 16
        %v8853 = vpop.permute.xlu0 %8852
        %8854 = vrot.lane.b32.xlu0 %v7880, 16
        %v8855 = vpop.permute.xlu0 %8854
        %8856 = vrot.lane.b32.xlu0 %v7885, 16
        %v8857 = vpop.permute.xlu0 %8856
        %8858 = vrot.lane.b32.xlu0 %v7890, 16
        %v8859 = vpop.permute.xlu0 %8858
        %8860 = vrot.lane.b32.xlu0 %v7895, 16
        %v8861 = vpop.permute.xlu0 %8860
        %8926 = vrot.lane.b32.xlu0 %v4420, 40
        %v8927 = vpop.permute.xlu0 %8926
        %8928 = vrot.lane.b32.xlu0 %v4425, 40
        %v8929 = vpop.permute.xlu0 %8928
        %8930 = vrot.lane.b32.xlu0 %v4430, 40
        %v8931 = vpop.permute.xlu0 %8930
        %8932 = vrot.lane.b32.xlu0 %v4435, 40
        %v8933 = vpop.permute.xlu0 %8932
        %8934 = vrot.lane.b32.xlu0 %v4440, 40
        %v8935 = vpop.permute.xlu0 %8934
        %8936 = vrot.lane.b32.xlu0 %v4445, 40
        %v8937 = vpop.permute.xlu0 %8936
        %8938 = vrot.lane.b32.xlu0 %v4450, 40
        %v8939 = vpop.permute.xlu0 %8938
        %8940 = vrot.lane.b32.xlu0 %v4455, 40
        %v8941 = vpop.permute.xlu0 %8940
        %8942 = vrot.lane.b32.xlu0 %v4460, 40
        %v8943 = vpop.permute.xlu0 %8942
        %8944 = vrot.lane.b32.xlu0 %v4465, 40
        %v8945 = vpop.permute.xlu0 %8944
        %8946 = vrot.lane.b32.xlu0 %v4470, 40
        %v8947 = vpop.permute.xlu0 %8946
        %8948 = vrot.lane.b32.xlu0 %v4475, 40
        %v8949 = vpop.permute.xlu0 %8948
        %8950 = vrot.lane.b32.xlu0 %v4480, 40
        %v8951 = vpop.permute.xlu0 %8950
        %8952 = vrot.lane.b32.xlu0 %v4485, 40
        %v8953 = vpop.permute.xlu0 %8952
        %8954 = vrot.lane.b32.xlu0 %v4490, 40
        %v8955 = vpop.permute.xlu0 %8954
        %8956 = vrot.lane.b32.xlu0 %v4495, 40
        %v8957 = vpop.permute.xlu0 %8956
        %8958 = vrot.lane.b32.xlu0 %v4500, 40
        %v8959 = vpop.permute.xlu0 %8958
        %8960 = vrot.lane.b32.xlu0 %v4505, 40
        %v8961 = vpop.permute.xlu0 %8960
        %8962 = vrot.lane.b32.xlu0 %v4510, 40
        %v8963 = vpop.permute.xlu0 %8962
        %8964 = vrot.lane.b32.xlu0 %v4515, 40
        %v8965 = vpop.permute.xlu0 %8964
        %8966 = vrot.lane.b32.xlu0 %v4520, 40
        %v8967 = vpop.permute.xlu0 %8966
        %8968 = vrot.lane.b32.xlu0 %v4525, 40
        %v8969 = vpop.permute.xlu0 %8968
        %8970 = vrot.lane.b32.xlu0 %v4530, 40
        %v8971 = vpop.permute.xlu0 %8970
        %8972 = vrot.lane.b32.xlu0 %v4535, 40
        %v8973 = vpop.permute.xlu0 %8972
        %8974 = vrot.lane.b32.xlu0 %v4540, 40
        %v8975 = vpop.permute.xlu0 %8974
        %8976 = vrot.lane.b32.xlu0 %v4545, 40
        %v8977 = vpop.permute.xlu0 %8976
        %8978 = vrot.lane.b32.xlu0 %v4550, 40
        %v8979 = vpop.permute.xlu0 %8978
        %8980 = vrot.lane.b32.xlu0 %v4555, 40
        %v8981 = vpop.permute.xlu0 %8980
        %8982 = vrot.lane.b32.xlu0 %v4560, 40
        %v8983 = vpop.permute.xlu0 %8982
        %8984 = vrot.lane.b32.xlu0 %v4565, 40
        %v8985 = vpop.permute.xlu0 %8984
        %8986 = vrot.lane.b32.xlu0 %v4570, 40
        %v8987 = vpop.permute.xlu0 %8986
        %8988 = vrot.lane.b32.xlu0 %v4575, 40
        %v8989 = vpop.permute.xlu0 %8988
        %9054 = vrot.lane.b32.xlu0 %v8734, 64
        %v9055 = vpop.permute.xlu0 %9054
        %9056 = vrot.lane.b32.xlu0 %v8735, 64
        %v9057 = vpop.permute.xlu0 %9056
        %9058 = vrot.lane.b32.xlu0 %v8736, 64
        %v9059 = vpop.permute.xlu0 %9058
        %9060 = vrot.lane.b32.xlu0 %v8737, 64
        %v9061 = vpop.permute.xlu0 %9060
        %9062 = vrot.lane.b32.xlu0 %v8738, 64
        %v9063 = vpop.permute.xlu0 %9062
        %9064 = vrot.lane.b32.xlu0 %v8739, 64
        %v9065 = vpop.permute.xlu0 %9064
        %9066 = vrot.lane.b32.xlu0 %v8740, 64
        %v9067 = vpop.permute.xlu0 %9066
        %9068 = vrot.lane.b32.xlu0 %v8741, 64
        %v9069 = vpop.permute.xlu0 %9068
        %9070 = vrot.lane.b32.xlu0 %v8742, 64
        %v9071 = vpop.permute.xlu0 %9070
        %9072 = vrot.lane.b32.xlu0 %v8743, 64
        %v9073 = vpop.permute.xlu0 %9072
        %9074 = vrot.lane.b32.xlu0 %v8744, 64
        %v9075 = vpop.permute.xlu0 %9074
        %9076 = vrot.lane.b32.xlu0 %v8745, 64
        %v9077 = vpop.permute.xlu0 %9076
        %9078 = vrot.lane.b32.xlu0 %v8746, 64
        %v9079 = vpop.permute.xlu0 %9078
        %9080 = vrot.lane.b32.xlu0 %v8747, 64
        %v9081 = vpop.permute.xlu0 %9080
        %9082 = vrot.lane.b32.xlu0 %v8748, 64
        %v9083 = vpop.permute.xlu0 %9082
        %9084 = vrot.lane.b32.xlu0 %v8749, 64
        %v9085 = vpop.permute.xlu0 %9084
        %9086 = vrot.lane.b32.xlu0 %v8750, 64
        %v9087 = vpop.permute.xlu0 %9086
        %9088 = vrot.lane.b32.xlu0 %v8751, 64
        %v9089 = vpop.permute.xlu0 %9088
        %9090 = vrot.lane.b32.xlu0 %v8752, 64
        %v9091 = vpop.permute.xlu0 %9090
        %9092 = vrot.lane.b32.xlu0 %v8753, 64
        %v9093 = vpop.permute.xlu0 %9092
        %9094 = vrot.lane.b32.xlu0 %v8754, 64
        %v9095 = vpop.permute.xlu0 %9094
        %9096 = vrot.lane.b32.xlu0 %v8755, 64
        %v9097 = vpop.permute.xlu0 %9096
        %9098 = vrot.lane.b32.xlu0 %v8756, 64
        %v9099 = vpop.permute.xlu0 %9098
        %9100 = vrot.lane.b32.xlu0 %v8757, 64
        %v9101 = vpop.permute.xlu0 %9100
        %9102 = vrot.lane.b32.xlu0 %v8758, 64
        %v9103 = vpop.permute.xlu0 %9102
        %9104 = vrot.lane.b32.xlu0 %v8759, 64
        %v9105 = vpop.permute.xlu0 %9104
        %9106 = vrot.lane.b32.xlu0 %v8760, 64
        %v9107 = vpop.permute.xlu0 %9106
        %9108 = vrot.lane.b32.xlu0 %v8761, 64
        %v9109 = vpop.permute.xlu0 %9108
        %9110 = vrot.lane.b32.xlu0 %v8762, 64
        %v9111 = vpop.permute.xlu0 %9110
        %9112 = vrot.lane.b32.xlu0 %v8763, 64
        %v9113 = vpop.permute.xlu0 %9112
        %9114 = vrot.lane.b32.xlu0 %v8764, 64
        %v9115 = vpop.permute.xlu0 %9114
        %9116 = vrot.lane.b32.xlu0 %v8765, 64
        %v9117 = vpop.permute.xlu0 %9116
        %v9150 = vsel %vm2730, %v724, %v8799
        %v9151 = vsel %vm2730, %v725, %v8801
        %v9152 = vsel %vm2730, %v726, %v8803
        %v9153 = vsel %vm2730, %v727, %v8805
        %v9154 = vsel %vm2730, %v728, %v8807
        %v9155 = vsel %vm2730, %v729, %v8809
        %v9156 = vsel %vm2730, %v730, %v8811
        %v9157 = vsel %vm2730, %v731, %v8813
        %v9158 = vsel %vm2730, %v732, %v8815
        %v9159 = vsel %vm2730, %v733, %v8817
        %v9160 = vsel %vm2730, %v734, %v8819
        %v9161 = vsel %vm2730, %v735, %v8821
        %v9162 = vsel %vm2730, %v736, %v8823
        %v9163 = vsel %vm2730, %v737, %v8825
        %v9164 = vsel %vm2730, %v738, %v8827
        %v9165 = vsel %vm2730, %v739, %v8829
        %v9166 = vsel %vm2730, %v740, %v8831
        %v9167 = vsel %vm2730, %v741, %v8833
        %v9168 = vsel %vm2730, %v742, %v8835
        %v9169 = vsel %vm2730, %v743, %v8837
        %v9170 = vsel %vm2730, %v744, %v8839
        %v9171 = vsel %vm2730, %v745, %v8841
        %v9172 = vsel %vm2730, %v746, %v8843
        %v9173 = vsel %vm2730, %v747, %v8845
        %v9174 = vsel %vm2730, %v748, %v8847
        %v9175 = vsel %vm2730, %v749, %v8849
        %v9176 = vsel %vm2730, %v750, %v8851
        %v9177 = vsel %vm2730, %v751, %v8853
        %v9178 = vsel %vm2730, %v752, %v8855
        %v9179 = vsel %vm2730, %v753, %v8857
        %v9180 = vsel %vm2730, %v754, %v8859
        %v9181 = vsel %vm2730, %v755, %v8861
        %v9182 = vsel %vm7477, %v9150, %v8927
        %v9183 = vsel %vm7477, %v9151, %v8929
        %v9184 = vsel %vm7477, %v9152, %v8931
        %v9185 = vsel %vm7477, %v9153, %v8933
        %v9186 = vsel %vm7477, %v9154, %v8935
        %v9187 = vsel %vm7477, %v9155, %v8937
        %v9188 = vsel %vm7477, %v9156, %v8939
        %v9189 = vsel %vm7477, %v9157, %v8941
        %v9190 = vsel %vm7477, %v9158, %v8943
        %v9191 = vsel %vm7477, %v9159, %v8945
        %v9192 = vsel %vm7477, %v9160, %v8947
        %v9193 = vsel %vm7477, %v9161, %v8949
        %v9194 = vsel %vm7477, %v9162, %v8951
        %v9195 = vsel %vm7477, %v9163, %v8953
        %v9196 = vsel %vm7477, %v9164, %v8955
        %v9197 = vsel %vm7477, %v9165, %v8957
        %v9198 = vsel %vm7477, %v9166, %v8959
        %v9199 = vsel %vm7477, %v9167, %v8961
        %v9200 = vsel %vm7477, %v9168, %v8963
        %v9201 = vsel %vm7477, %v9169, %v8965
        %v9202 = vsel %vm7477, %v9170, %v8967
        %v9203 = vsel %vm7477, %v9171, %v8969
        %v9204 = vsel %vm7477, %v9172, %v8971
        %v9205 = vsel %vm7477, %v9173, %v8973
        %v9206 = vsel %vm7477, %v9174, %v8975
        %v9207 = vsel %vm7477, %v9175, %v8977
        %v9208 = vsel %vm7477, %v9176, %v8979
        %v9209 = vsel %vm7477, %v9177, %v8981
        %v9210 = vsel %vm7477, %v9178, %v8983
        %v9211 = vsel %vm7477, %v9179, %v8985
        %v9212 = vsel %vm7477, %v9180, %v8987
        %v9213 = vsel %vm7477, %v9181, %v8989
        %v9214 = vsel %vm2820, %v9182, %v9055
        %v9215 = vsel %vm2820, %v9183, %v9057
        %v9216 = vsel %vm2820, %v9184, %v9059
        %v9217 = vsel %vm2820, %v9185, %v9061
        %v9218 = vsel %vm2820, %v9186, %v9063
        %v9219 = vsel %vm2820, %v9187, %v9065
        %v9220 = vsel %vm2820, %v9188, %v9067
        %v9221 = vsel %vm2820, %v9189, %v9069
        %v9222 = vsel %vm2820, %v9190, %v9071
        %v9223 = vsel %vm2820, %v9191, %v9073
        %v9224 = vsel %vm2820, %v9192, %v9075
        %v9225 = vsel %vm2820, %v9193, %v9077
        %v9226 = vsel %vm2820, %v9194, %v9079
        %v9227 = vsel %vm2820, %v9195, %v9081
        %v9228 = vsel %vm2820, %v9196, %v9083
        %v9229 = vsel %vm2820, %v9197, %v9085
        %v9230 = vsel %vm2820, %v9198, %v9087
        %v9231 = vsel %vm2820, %v9199, %v9089
        %v9232 = vsel %vm2820, %v9200, %v9091
        %v9233 = vsel %vm2820, %v9201, %v9093
        %v9234 = vsel %vm2820, %v9202, %v9095
        %v9235 = vsel %vm2820, %v9203, %v9097
        %v9236 = vsel %vm2820, %v9204, %v9099
        %v9237 = vsel %vm2820, %v9205, %v9101
        %v9238 = vsel %vm2820, %v9206, %v9103
        %v9239 = vsel %vm2820, %v9207, %v9105
        %v9240 = vsel %vm2820, %v9208, %v9107
        %v9241 = vsel %vm2820, %v9209, %v9109
        %v9242 = vsel %vm2820, %v9210, %v9111
        %v9243 = vsel %vm2820, %v9211, %v9113
        %v9244 = vsel %vm2820, %v9212, %v9115
        %v9245 = vsel %vm2820, %v9213, %v9117
        %v9246 = vsel %vm7576, %v9214, 0.0
        %v9247 = vsel %vm7576, %v9215, 0.0
        %v9248 = vsel %vm7576, %v9216, 0.0
        %v9249 = vsel %vm7576, %v9217, 0.0
        %v9250 = vsel %vm7576, %v9218, 0.0
        %v9251 = vsel %vm7576, %v9219, 0.0
        %v9252 = vsel %vm7576, %v9220, 0.0
        %v9253 = vsel %vm7576, %v9221, 0.0
        %v9254 = vsel %vm7576, %v9222, 0.0
        %v9255 = vsel %vm7576, %v9223, 0.0
        %v9256 = vsel %vm7576, %v9224, 0.0
        %v9257 = vsel %vm7576, %v9225, 0.0
        %v9258 = vsel %vm7576, %v9226, 0.0
        %v9259 = vsel %vm7576, %v9227, 0.0
        %v9260 = vsel %vm7576, %v9228, 0.0
        %v9261 = vsel %vm7576, %v9229, 0.0
        %v9262 = vsel %vm7576, %v9230, 0.0
        %v9263 = vsel %vm7576, %v9231, 0.0
        %v9264 = vsel %vm7576, %v9232, 0.0
        %v9265 = vsel %vm7576, %v9233, 0.0
        %v9266 = vsel %vm7576, %v9234, 0.0
        %v9267 = vsel %vm7576, %v9235, 0.0
        %v9268 = vsel %vm7576, %v9236, 0.0
        %v9269 = vsel %vm7576, %v9237, 0.0
        %v9270 = vsel %vm7576, %v9238, 0.0
        %v9271 = vsel %vm7576, %v9239, 0.0
        %v9272 = vsel %vm7576, %v9240, 0.0
        %v9273 = vsel %vm7576, %v9241, 0.0
        %v9274 = vsel %vm7576, %v9242, 0.0
        %v9275 = vsel %vm7576, %v9243, 0.0
        %v9276 = vsel %vm7576, %v9244, 0.0
        %v9277 = vsel %vm7576, %v9245, 0.0
        %9278 = vxpose.xlu0.b32.start [1/16] %v9246, 128
        %9279 = vxpose.xlu0.b32.cont [2/16] %v9247, 128
        %9280 = vxpose.xlu0.b32.cont [3/16] %v9248, 128
        %9281 = vxpose.xlu0.b32.cont [4/16] %v9249, 128
        %9282 = vxpose.xlu0.b32.cont [5/16] %v9250, 128
        %9283 = vxpose.xlu0.b32.cont [6/16] %v9251, 128
        %9284 = vxpose.xlu0.b32.cont [7/16] %v9252, 128
        %9285 = vxpose.xlu0.b32.cont [8/16] %v9253, 128
        %9286 = vxpose.xlu0.b32.cont [9/16] %v9254, 128
        %9287 = vxpose.xlu0.b32.cont [10/16] %v9255, 128
        %9288 = vxpose.xlu0.b32.cont [11/16] %v9256, 128
        %9289 = vxpose.xlu0.b32.cont [12/16] %v9257, 128
        %9290 = vxpose.xlu0.b32.cont [13/16] %v9258, 128
        %9291 = vxpose.xlu0.b32.cont [14/16] %v9259, 128
        %9292 = vxpose.xlu0.b32.cont [15/16] %v9260, 128
        %9293 = vxpose.xlu0.b32.end [16/16] %v9261, 128
        %v9294 = vpop.trf.xlu0
        %v9295 = vpop.trf.xlu0
        %v9296 = vpop.trf.xlu0
        %v9297 = vpop.trf.xlu0
        %v9298 = vpop.trf.xlu0
        %v9299 = vpop.trf.xlu0
        %v9300 = vpop.trf.xlu0
        %v9301 = vpop.trf.xlu0
        %v9302 = vpop.trf.xlu0
        %v9303 = vpop.trf.xlu0
        %v9304 = vpop.trf.xlu0
        %v9305 = vpop.trf.xlu0
        %v9306 = vpop.trf.xlu0
        %v9307 = vpop.trf.xlu0
        %v9308 = vpop.trf.xlu0
        %v9309 = vpop.trf.xlu0
        %9310 = vxpose.xlu0.b32.start [1/16] %v9262, 128
        %9311 = vxpose.xlu0.b32.cont [2/16] %v9263, 128
        %9312 = vxpose.xlu0.b32.cont [3/16] %v9264, 128
        %9313 = vxpose.xlu0.b32.cont [4/16] %v9265, 128
        %9314 = vxpose.xlu0.b32.cont [5/16] %v9266, 128
        %9315 = vxpose.xlu0.b32.cont [6/16] %v9267, 128
        %9316 = vxpose.xlu0.b32.cont [7/16] %v9268, 128
        %9317 = vxpose.xlu0.b32.cont [8/16] %v9269, 128
        %9318 = vxpose.xlu0.b32.cont [9/16] %v9270, 128
        %9319 = vxpose.xlu0.b32.cont [10/16] %v9271, 128
        %9320 = vxpose.xlu0.b32.cont [11/16] %v9272, 128
        %9321 = vxpose.xlu0.b32.cont [12/16] %v9273, 128
        %9322 = vxpose.xlu0.b32.cont [13/16] %v9274, 128
        %9323 = vxpose.xlu0.b32.cont [14/16] %v9275, 128
        %9324 = vxpose.xlu0.b32.cont [15/16] %v9276, 128
        %9325 = vxpose.xlu0.b32.end [16/16] %v9277, 128
        %v9326 = vpop.trf.xlu0
        %v9327 = vpop.trf.xlu0
        %v9328 = vpop.trf.xlu0
        %v9329 = vpop.trf.xlu0
        %v9330 = vpop.trf.xlu0
        %v9331 = vpop.trf.xlu0
        %v9332 = vpop.trf.xlu0
        %v9333 = vpop.trf.xlu0
        %v9334 = vpop.trf.xlu0
        %v9335 = vpop.trf.xlu0
        %v9336 = vpop.trf.xlu0
        %v9337 = vpop.trf.xlu0
        %v9338 = vpop.trf.xlu0
        %v9339 = vpop.trf.xlu0
        %v9340 = vpop.trf.xlu0
        %v9341 = vpop.trf.xlu0
        %9342 = vst [vmem:[%s352] sm:$0xff] %v9294
        %9343 = vst [vmem:[%s352 + $0x8] sm:$0xff] %v9326
        %9344 = vst [vmem:[%s352 + $0x10] sm:$0xff] %v9295
        %9345 = vst [vmem:[%s352 + $0x18] sm:$0xff] %v9327
        %9346 = vst [vmem:[%s352 + $0x20] sm:$0xff] %v9296
        %9347 = vst [vmem:[%s352 + $0x28] sm:$0xff] %v9328
        %9348 = vst [vmem:[%s352 + $0x30] sm:$0xff] %v9297
        %9349 = vst [vmem:[%s352 + $0x38] sm:$0xff] %v9329
        %9350 = vst [vmem:[%s352 + $0x40] sm:$0xff] %v9298
        %9351 = vst [vmem:[%s352 + $0x48] sm:$0xff] %v9330
        %9352 = vst [vmem:[%s352 + $0x50] sm:$0xff] %v9299
        %9353 = vst [vmem:[%s352 + $0x58] sm:$0xff] %v9331
        %9354 = vst [vmem:[%s352 + $0x60] sm:$0xff] %v9300
        %9355 = vst [vmem:[%s352 + $0x68] sm:$0xff] %v9332
        %9356 = vst [vmem:[%s352 + $0x70] sm:$0xff] %v9301
        %9357 = vst [vmem:[%s352 + $0x78] sm:$0xff] %v9333
        %9358 = vst [vmem:[%s352 + $0x80] sm:$0xff] %v9302
        %9359 = vst [vmem:[%s352 + $0x88] sm:$0xff] %v9334
        %9360 = vst [vmem:[%s352 + $0x90] sm:$0xff] %v9303
        %9361 = vst [vmem:[%s352 + $0x98] sm:$0xff] %v9335
        %9362 = vst [vmem:[%s352 + $0xa0] sm:$0xff] %v9304
        %9363 = vst [vmem:[%s352 + $0xa8] sm:$0xff] %v9336
        %s9364 = sand.u32 %s247, 1
        %s9365 = scalar_lea.sflag [#allocation3], %s9364
        %s9366 = sand.u32 %s247, 1
        %s9367 = smul.addr %s9366, 176
        %s9368 = scalar_lea.vmem [#allocation2], %s9367
        // Predicated region
        $region61: #{tpu_custom_call.1} parent=59 // pred_check
          %p9369 = pneg %p257
        $region62: #{tpu_custom_call.1} parent=59 // pred_check_branch
          %9371 = sbr.rel (%p9369) target = $region64
        $region63: #{tpu_custom_call.1} parent=59 // pred_region
          %s9373 = ssub.s32 2816, 2816
          %9374 = vsyncadd %s9365, %s9373
          %s9375 = smul.addr %s24, 22
          %s9376 = smul.addr %s9375, 128
          %s9377 = scalar_lea.hbm %s10, %s9376
          %s9378 = sshll.u32 %s9368, 4
          %s9379 = int_to_ptr.vmem [resolvable:$true] %s9378
          %9384 = dma.vmem_to_hbm [thread:$0]  %s9379, 2816, %s9377, %s9365, 256, 256, 16
        $region64: #{tpu_custom_call.1} parent=59 // pred_fallthru
          _
      $region60: #{tpu_custom_call.1} parent=5 // pred_fallthru
        _
      %p9385 = scmp.le.s32.totalorder 2, %s19
      // Predicated region
      $region65: #{tpu_custom_call.1} parent=5 // pred_check
        %p9386 = pneg %p9385
      $region66: #{tpu_custom_call.1} parent=5 // pred_check_branch
        %9388 = sbr.rel (%p9386) target = $region68
      $region67: #{tpu_custom_call.1} parent=5 // pred_region
        %s9389 = ssub.s32 %s19, 2
        // Predicated region
        $region69: #{tpu_custom_call.1} parent=67 // pred_check
          %p9390 = pneg %p263
        $region70: #{tpu_custom_call.1} parent=67 // pred_check_branch
          %9392 = sbr.rel (%p9390) target = $region72
        $region71: #{tpu_custom_call.1} parent=67 // pred_region
          %s9393 = sand.u32 %s248, 1
          %s9394 = scalar_lea.sflag [#allocation3], %s9393
          %s9395 = sand.u32 %s248, 1
          %s9396 = smul.addr %s9395, 176
          %s9397 = scalar_lea.vmem [#allocation2], %s9396
          %9398 = dma.done %s9394, 2816
        $region72: #{tpu_custom_call.1} parent=67 // pred_fallthru
          _
      $region68: #{tpu_custom_call.1} parent=5 // pred_fallthru
        _
    $region6: #{tpu_custom_call.1} parent=1 // loop_footer
      %s23 = sadd.s32 1, %s19
    $region7: #{tpu_custom_call.1} parent=1 // loop_footer_branch
      %18 = sbr.rel target = $region3
    $region8: #{tpu_custom_call.1} parent=1 // loop_exit
      _
    %9399 = vsyncpa [#allocation3], 1
    %s9400 = scalar_lea.sflag [#allocation3], 1
    %9401 = vsyncpa %s9400, 1

</llo_original>
